<compile_context>
chip_gen: v6e
topology: v6e:2x2x1
jax: 0.10.0
libtpu: 0.0.40
codegen_flags: <defaults>
</compile_context>

<pallas_src>
import math

import jax
import jax.numpy as jnp
import numpy as np
from jax import lax
from jax.experimental import pallas as pl
from jax.experimental.pallas import tpu as pltpu

# ---------------- scaled-down configuration ----------------
IMG = 32
PATCH = 4
IN_CH = 3
WINDOW = 4
C1 = 32                     # stage-1 embed dim (96 in swin-tiny)
C2 = 64                     # stage-2 embed dim
HEADS1 = 2
HEADS2 = 4
HEAD_DIM = C1 // HEADS1     # 16 in both stages
MLP_RATIO = 4
NUM_CLASSES = 16            # stand-in for the backbone's 1000-dim output
FC_HID = 64                 # stand-in for 4096
OUT_W = 8                   # packed head output: [fc1(3) | fc2(1) | fc3(3) | pad(1)]
LN_EPS = 1e-5
NEG_INF = -1e9              # cross-window mask value

# TODO(synk): timm's pretrained swin_tiny_patch4_window7_224 weights are not loaded;
# parameters are deterministic synthetic values with matching (scaled-down) shapes.

_BLOCK_KEYS = ("ln1_g", "ln1_b", "qkv_w", "qkv_b", "proj_w", "proj_b",
               "ln2_g", "ln2_b", "fc1_w", "fc1_b", "fc2_w", "fc2_b")


# ---------------- in-kernel helpers ----------------
def _ln_rows(x, g, b, eps=LN_EPS):
    mu = jnp.mean(x, axis=-1, keepdims=True)
    var = jnp.mean((x - mu) * (x - mu), axis=-1, keepdims=True)
    return (x - mu) * jax.lax.rsqrt(var + eps) * g + b


def _gelu(x):
    # TODO(synk): timm nn.GELU is exact erf GELU; tanh approximation used for a
    # Mosaic-friendly elementwise lowering (~1e-3 max relative error).
    c = math.sqrt(2.0 / math.pi)
    return 0.5 * x * (1.0 + jnp.tanh(c * (x + 0.044715 * x * x * x)))


def _block_body(x, bias_ref, pr, n_heads):
    """One Swin block on per-image (L, C) tokens.  Window structure, cyclic shift and
    the shifted-window mask are encoded in the additive bias (n_heads, L, L)."""
    (ln1_g, ln1_b, qkv_w, qkv_b, proj_w, proj_b,
     ln2_g, ln2_b, fc1_w, fc1_b, fc2_w, fc2_b) = pr
    L, C = x.shape
    dh = C // n_heads

    # ---- windowed MSA (attention scale is pre-folded into qkv_w's q columns) ----
    h = _ln_rows(x, ln1_g[...], ln1_b[...])
    qkv = jnp.dot(h.astype(jnp.bfloat16), qkv_w[...],
                  preferred_element_type=jnp.float32) + qkv_b[...]
    heads = []
    for hh in range(n_heads):                       # static unroll (2 or 4)
        qh = qkv[:, hh * dh:(hh + 1) * dh].astype(jnp.bfloat16)
        kh = qkv[:, C + hh * dh:C + (hh + 1) * dh].astype(jnp.bfloat16)
        vh = qkv[:, 2 * C + hh * dh:2 * C + (hh + 1) * dh].astype(jnp.bfloat16)
        # q @ k^T without materializing an explicit transpose
        s = lax.dot_general(qh, kh, (((1,), (1,)), ((), ())),
                            preferred_element_type=jnp.float32)
        s = s + bias_ref[hh].astype(jnp.float32)
        s = s - jnp.max(s, axis=-1, keepdims=True)
        e = jnp.exp(s)
        a = e * pl.reciprocal(jnp.sum(e, axis=-1, keepdims=True), approx=True)
        heads.append(jnp.dot(a.astype(jnp.bfloat16), vh,
                             preferred_element_type=jnp.float32))
    o = jnp.concatenate(heads, axis=-1)             # (L, C) -> single fat projection
    x = x + jnp.dot(o.astype(jnp.bfloat16), proj_w[...],
                    preferred_element_type=jnp.float32) + proj_b[...]

    # ---- MLP ----
    h = _ln_rows(x, ln2_g[...], ln2_b[...])
    h = jnp.dot(h.astype(jnp.bfloat16), fc1_w[...],
                preferred_element_type=jnp.float32) + fc1_b[...]
    h = _gelu(h)
    h = jnp.dot(h.astype(jnp.bfloat16), fc2_w[...],
                preferred_element_type=jnp.float32) + fc2_b[...]
    return x + h


# ---------------- single fused Pallas kernel ----------------
def _fused_kernel(x_ref, pe_w, pe_b, pe_g, pe_bb, b10, b11, *rest):
    """Whole forward for ONE image (grid step): patch embed + stage 1 + patch merge +
    stage 2 + final LN + pool + classifier + fused 3-head MLP.  VMEM-resident."""
    s1 = rest[0:24]
    merge_sel, mg_g, mg_b, mg_w, b20, b21 = rest[24:30]
    s2 = rest[30:54]
    (lnf_g, lnf_b, hw, hb, w1, bb1, w2, bb2, w3, bb3) = rest[54:64]
    o_ref = rest[64]

    # ---- patch embed (4x4 stride-4 conv as matmul) + LN ----
    x = x_ref[0]                                                     # (64, 48)
    x = jnp.dot(x.astype(jnp.bfloat16), pe_w[...],
                preferred_element_type=jnp.float32) + pe_b[...]      # (64, C1)
    x = _ln_rows(x, pe_g[...], pe_bb[...])

    # ---- stage 1: 2 Swin blocks (shift 0, shift 2) ----
    x = _block_body(x, b10, s1[0:12], HEADS1)
    x = _block_body(x, b11, s1[12:24], HEADS1)

    # ---- patch merging (row gather as one selection matmul + lane concat) ----
    y = jnp.dot(merge_sel[...], x, preferred_element_type=jnp.float32)   # (64, C1)
    q = y.shape[0] // 4
    xcat = jnp.concatenate([y[0:q], y[q:2 * q], y[2 * q:3 * q], y[3 * q:]], axis=-1)
    xcat = _ln_rows(xcat, mg_g[...], mg_b[...])                          # (16, 4*C1)
    x = jnp.dot(xcat.astype(jnp.bfloat16), mg_w[...],
                preferred_element_type=jnp.float32)                      # (16, C2)

    # ---- stage 2: 2 Swin blocks (window == resolution, no shift) ----
    x = _block_body(x, b20, s2[0:12], HEADS2)
    x = _block_body(x, b21, s2[12:24], HEADS2)

    # ---- final LN + global average pool + classifier ----
    x = _ln_rows(x, lnf_g[...], lnf_b[...])
    pooled = jnp.mean(x, axis=0, keepdims=True)                          # (1, C2)
    feat = jnp.dot(pooled.astype(jnp.bfloat16), hw[...],
                   preferred_element_type=jnp.float32) + hb[...]         # (1, 16)

    # ---- fused 3-head MLP (block-diagonal weights built at init) ----
    h = jnp.maximum(jnp.dot(feat.astype(jnp.bfloat16), w1[...],
                            preferred_element_type=jnp.float32) + bb1[...], 0.0)
    h = jnp.maximum(jnp.dot(h.astype(jnp.bfloat16), w2[...],
                            preferred_element_type=jnp.float32) + bb2[...], 0.0)
    yout = jnp.dot(h.astype(jnp.bfloat16), w3[...],
                   preferred_element_type=jnp.float32) + bb3[...]        # (1, OUT_W)
    lane = lax.broadcasted_iota(jnp.int32, yout.shape, 1)
    yout = jnp.where(lane == 3, jax.nn.sigmoid(yout), yout)              # sigmoid on fc2
    o_ref[...] = yout.reshape(o_ref.shape).astype(o_ref.dtype)


# ---------------- host-side precomputation ----------------
def _full_pair_bias(table, hc, wc, ws, shift, n_heads):
    """Per-image (n_heads, L, L) additive bias in raster token order encoding
    timm-style (shifted-)window attention: relative-position bias inside a window,
    -100 between different shift regions sharing a window, NEG_INF across windows."""
    L = hc * wc
    gh, gw = np.meshgrid(np.arange(hc), np.arange(wc), indexing="ij")
    sh = ((gh - shift) % hc).reshape(-1)          # coords in the cyclically-shifted frame
    sw = ((gw - shift) % wc).reshape(-1)
    win_id = (sh // ws) * (wc // ws) + (sw // ws)
    in_h, in_w = sh % ws, sw % ws
    dh = in_h[:, None] - in_h[None, :] + ws - 1
    dw = in_w[:, None] - in_w[None, :] + ws - 1
    rel_idx = dh * (2 * ws - 1) + dw                               # (L, L)
    same_win = win_id[:, None] == win_id[None, :]
    if shift > 0:                                                  # timm shift mask
        def region(c, size):
            return np.where(c < size - ws, 0, np.where(c < size - shift, 1, 2))
        reg = region(sh, hc) * 3 + region(sw, wc)
        shift_mask = np.where(reg[:, None] == reg[None, :], 0.0, -100.0)
    else:
        shift_mask = np.zeros((L, L))
    rel = table[rel_idx.reshape(-1)].reshape(L, L, n_heads)
    rel = jnp.transpose(rel, (2, 0, 1))                            # (nH, L, L)
    bias = jnp.where(jnp.asarray(same_win)[None],
                     rel + jnp.asarray(shift_mask, dtype=jnp.float32)[None],
                     NEG_INF)
    return bias.astype(jnp.bfloat16)


def _merge_select(hc, wc):
    """(4*h2*w2, hc*wc) 0/1 matrix: S @ x reorders raster tokens into timm
    patch-merging order (x0=[0::2,0::2], x1=[1::2,0::2], x2=[0::2,1::2], x3=[1::2,1::2])."""
    h2, w2 = hc // 2, wc // 2
    S = np.zeros((4 * h2 * w2, hc * wc), np.float32)
    for g, (di, dj) in enumerate(((0, 0), (1, 0), (0, 1), (1, 1))):
        for i in range(h2):
            for j in range(w2):
                S[g * h2 * w2 + i * w2 + j, (2 * i + di) * wc + (2 * j + dj)] = 1.0
    return jnp.asarray(S)


# ---------------- parameter construction ----------------
def init_params(key):
    keys = iter(jax.random.split(key, 64))

    def nrm(shape, std=0.02):
        return (std * jax.random.normal(next(keys), shape)).astype(jnp.float32)

    def w16(shape, std=0.02):                 # bf16 matmul weights (f32 accumulation)
        return nrm(shape, std).astype(jnp.bfloat16)

    p = {}
    p["patch_w"] = w16((IN_CH * PATCH * PATCH, C1))
    p["patch_b"] = jnp.zeros((1, C1), jnp.float32)
    p["pe_ln_g"] = jnp.ones((1, C1), jnp.float32)
    p["pe_ln_b"] = jnp.zeros((1, C1), jnp.float32)

    def make_block(c, n_heads, hc, wc, shift):
        table = nrm(((2 * WINDOW - 1) ** 2, n_heads))
        scale = (c // n_heads) ** -0.5
        qkv_w = nrm((c, 3 * c))
        qkv_w = qkv_w.at[:, 0:c].multiply(scale)        # fold attention scale into q
        return dict(
            ln1_g=jnp.ones((1, c), jnp.float32), ln1_b=jnp.zeros((1, c), jnp.float32),
            qkv_w=qkv_w.astype(jnp.bfloat16), qkv_b=jnp.zeros((1, 3 * c), jnp.float32),
            proj_w=w16((c, c)), proj_b=jnp.zeros((1, c), jnp.float32),
            ln2_g=jnp.ones((1, c), jnp.float32), ln2_b=jnp.zeros((1, c), jnp.float32),
            fc1_w=w16((c, MLP_RATIO * c)), fc1_b=jnp.zeros((1, MLP_RATIO * c), jnp.float32),
            fc2_w=w16((MLP_RATIO * c, c)), fc2_b=jnp.zeros((1, c), jnp.float32),
            bias=_full_pair_bias(table, hc, wc, WINDOW, shift, n_heads),   # bf16, per-image
        )

    hc1 = wc1 = IMG // PATCH                       # 8x8 tokens
    p["s1_blocks"] = [make_block(C1, HEADS1, hc1, wc1, 0),
                      make_block(C1, HEADS1, hc1, wc1, WINDOW // 2)]
    p["merge_sel"] = _merge_select(hc1, wc1)       # (64, 64) f32 selection matrix
    p["mg_ln_g"] = jnp.ones((1, 4 * C1), jnp.float32)
    p["mg_ln_b"] = jnp.zeros((1, 4 * C1), jnp.float32)
    p["mg_w"] = w16((4 * C1, C2))
    hc2 = wc2 = hc1 // 2                           # 4x4 tokens; window==resolution -> no shift
    p["s2_blocks"] = [make_block(C2, HEADS2, hc2, wc2, 0),
                      make_block(C2, HEADS2, hc2, wc2, 0)]
    p["ln_f_g"] = jnp.ones((1, C2), jnp.float32)
    p["ln_f_b"] = jnp.zeros((1, C2), jnp.float32)
    p["head_w"] = w16((C2, NUM_CLASSES))
    p["head_b"] = jnp.zeros((1, NUM_CLASSES), jnp.float32)

    # --- three MLP heads fused into one packed weight set ---
    def make_mlp(out_dim):
        return dict(w1=nrm((NUM_CLASSES, FC_HID), 0.05), b1=jnp.zeros((1, FC_HID), jnp.float32),
                    w2=nrm((FC_HID, FC_HID), 0.05), b2=jnp.zeros((1, FC_HID), jnp.float32),
                    w3=nrm((FC_HID, out_dim), 0.05), b3=jnp.zeros((1, out_dim), jnp.float32))

    m1, m2, m3 = make_mlp(3), make_mlp(1), make_mlp(3)
    p["mlp_w1"] = jnp.concatenate([m1["w1"], m2["w1"], m3["w1"]], axis=1).astype(jnp.bfloat16)
    p["mlp_b1"] = jnp.concatenate([m1["b1"], m2["b1"], m3["b1"]], axis=1)
    W2 = jnp.zeros((3 * FC_HID, 3 * FC_HID), jnp.float32)
    W2 = W2.at[0:FC_HID, 0:FC_HID].set(m1["w2"])
    W2 = W2.at[FC_HID:2 * FC_HID, FC_HID:2 * FC_HID].set(m2["w2"])
    W2 = W2.at[2 * FC_HID:, 2 * FC_HID:].set(m3["w2"])
    p["mlp_w2"] = W2.astype(jnp.bfloat16)
    p["mlp_b2"] = jnp.concatenate([m1["b2"], m2["b2"], m3["b2"]], axis=1)
    W3 = jnp.zeros((3 * FC_HID, OUT_W), jnp.float32)
    W3 = W3.at[0:FC_HID, 0:3].set(m1["w3"])
    W3 = W3.at[FC_HID:2 * FC_HID, 3:4].set(m2["w3"])
    W3 = W3.at[2 * FC_HID:, 4:7].set(m3["w3"])
    p["mlp_w3"] = W3.astype(jnp.bfloat16)
    p["mlp_b3"] = jnp.concatenate([m1["b3"], m2["b3"], m3["b3"],
                                   jnp.zeros((1, 1), jnp.float32)], axis=1)
    return p


def _block_args(blk):
    return [blk[k] for k in _BLOCK_KEYS]


def _const_spec(a):
    nd = a.ndim
    return pl.BlockSpec(a.shape, lambda b, _nd=nd: (0,) * _nd)


def _mosaic_params():
    cls = getattr(pltpu, "CompilerParams", None) or getattr(pltpu, "TPUCompilerParams", None)
    if cls is None:
        return None
    return cls(dimension_semantics=("parallel",))


# ---------------- model forward ----------------
def model_forward(x_nchw, p):
    B, Cin, H, W = x_nchw.shape
    hc1, wc1 = H // PATCH, W // PATCH
    L1 = hc1 * wc1

    # 4x4 stride-4 conv as per-image patch-flatten (raster token order, Cin-major).
    xp = x_nchw.reshape(B, Cin, hc1, PATCH, wc1, PATCH).transpose(0, 2, 4, 1, 3, 5)
    patches = xp.reshape(B, L1, Cin * PATCH * PATCH)

    weight_args = [
        p["patch_w"], p["patch_b"], p["pe_ln_g"], p["pe_ln_b"],
        p["s1_blocks"][0]["bias"], p["s1_blocks"][1]["bias"],
        *_block_args(p["s1_blocks"][0]), *_block_args(p["s1_blocks"][1]),
        p["merge_sel"], p["mg_ln_g"], p["mg_ln_b"], p["mg_w"],
        p["s2_blocks"][0]["bias"], p["s2_blocks"][1]["bias"],
        *_block_args(p["s2_blocks"][0]), *_block_args(p["s2_blocks"][1]),
        p["ln_f_g"], p["ln_f_b"], p["head_w"], p["head_b"],
        p["mlp_w1"], p["mlp_b1"], p["mlp_w2"], p["mlp_b2"], p["mlp_w3"], p["mlp_b3"],
    ]

    in_specs = ([pl.BlockSpec((1, L1, Cin * PATCH * PATCH), lambda b: (b, 0, 0))]
                + [_const_spec(a) for a in weight_args])
    out_specs = pl.BlockSpec((1, 1, OUT_W), lambda b: (b, 0, 0))

    out = pl.pallas_call(
        _fused_kernel,
        out_shape=jax.ShapeDtypeStruct((B, 1, OUT_W), jnp.float32),
        grid_spec=pltpu.PrefetchScalarGridSpec(
            num_scalar_prefetch=0, grid=(B,),
            in_specs=in_specs, out_specs=out_specs),
        compiler_params=_mosaic_params(),
    )(patches, *weight_args)

    out = out.reshape(B, OUT_W)
    return out[:, 0:3], out[:, 3:4], out[:, 4:7]


# ---------------- main ----------------
if __name__ == "__main__":
    key = jax.random.PRNGKey(0)
    k_params, k_x = jax.random.split(key)
    params = init_params(k_params)
    x = jax.random.normal(k_x, (2, IN_CH, IMG, IMG), dtype=jnp.float32)  # NCHW

    fwd = jax.jit(lambda xx: model_forward(xx, params))
    o1, o2, o3 = fwd(x)
    jax.block_until_ready((o1, o2, o3))

    assert o1.shape == (2, 3) and o2.shape == (2, 1) and o3.shape == (2, 3)
    assert bool(jnp.all(jnp.isfinite(o1))) and bool(jnp.all(jnp.isfinite(o3)))
    assert bool(jnp.all((o2 >= 0.0) & (o2 <= 1.0)))   # sigmoid range
    print("KERNEL_OK")
</pallas_src>

<mosaic_0001>
module attributes {stable_mosaic.version = 11 : i64} {
  func.func @_fused_kernel(%arg0: i32, %arg1: memref<1x64x48xf32, #tpu.memory_space<vmem>>, %arg2: memref<48x32xbf16, #tpu.memory_space<vmem>>, %arg3: memref<1x32xf32, #tpu.memory_space<vmem>>, %arg4: memref<1x32xf32, #tpu.memory_space<vmem>>, %arg5: memref<1x32xf32, #tpu.memory_space<vmem>>, %arg6: memref<2x64x64xbf16, #tpu.memory_space<vmem>>, %arg7: memref<2x64x64xbf16, #tpu.memory_space<vmem>>, %arg8: memref<1x32xf32, #tpu.memory_space<vmem>>, %arg9: memref<1x32xf32, #tpu.memory_space<vmem>>, %arg10: memref<32x96xbf16, #tpu.memory_space<vmem>>, %arg11: memref<1x96xf32, #tpu.memory_space<vmem>>, %arg12: memref<32x32xbf16, #tpu.memory_space<vmem>>, %arg13: memref<1x32xf32, #tpu.memory_space<vmem>>, %arg14: memref<1x32xf32, #tpu.memory_space<vmem>>, %arg15: memref<1x32xf32, #tpu.memory_space<vmem>>, %arg16: memref<32x128xbf16, #tpu.memory_space<vmem>>, %arg17: memref<1x128xf32, #tpu.memory_space<vmem>>, %arg18: memref<128x32xbf16, #tpu.memory_space<vmem>>, %arg19: memref<1x32xf32, #tpu.memory_space<vmem>>, %arg20: memref<1x32xf32, #tpu.memory_space<vmem>>, %arg21: memref<1x32xf32, #tpu.memory_space<vmem>>, %arg22: memref<32x96xbf16, #tpu.memory_space<vmem>>, %arg23: memref<1x96xf32, #tpu.memory_space<vmem>>, %arg24: memref<32x32xbf16, #tpu.memory_space<vmem>>, %arg25: memref<1x32xf32, #tpu.memory_space<vmem>>, %arg26: memref<1x32xf32, #tpu.memory_space<vmem>>, %arg27: memref<1x32xf32, #tpu.memory_space<vmem>>, %arg28: memref<32x128xbf16, #tpu.memory_space<vmem>>, %arg29: memref<1x128xf32, #tpu.memory_space<vmem>>, %arg30: memref<128x32xbf16, #tpu.memory_space<vmem>>, %arg31: memref<1x32xf32, #tpu.memory_space<vmem>>, %arg32: memref<64x64xf32, #tpu.memory_space<vmem>>, %arg33: memref<1x128xf32, #tpu.memory_space<vmem>>, %arg34: memref<1x128xf32, #tpu.memory_space<vmem>>, %arg35: memref<128x64xbf16, #tpu.memory_space<vmem>>, %arg36: memref<4x16x16xbf16, #tpu.memory_space<vmem>>, %arg37: memref<4x16x16xbf16, #tpu.memory_space<vmem>>, %arg38: memref<1x64xf32, #tpu.memory_space<vmem>>, %arg39: memref<1x64xf32, #tpu.memory_space<vmem>>, %arg40: memref<64x192xbf16, #tpu.memory_space<vmem>>, %arg41: memref<1x192xf32, #tpu.memory_space<vmem>>, %arg42: memref<64x64xbf16, #tpu.memory_space<vmem>>, %arg43: memref<1x64xf32, #tpu.memory_space<vmem>>, %arg44: memref<1x64xf32, #tpu.memory_space<vmem>>, %arg45: memref<1x64xf32, #tpu.memory_space<vmem>>, %arg46: memref<64x256xbf16, #tpu.memory_space<vmem>>, %arg47: memref<1x256xf32, #tpu.memory_space<vmem>>, %arg48: memref<256x64xbf16, #tpu.memory_space<vmem>>, %arg49: memref<1x64xf32, #tpu.memory_space<vmem>>, %arg50: memref<1x64xf32, #tpu.memory_space<vmem>>, %arg51: memref<1x64xf32, #tpu.memory_space<vmem>>, %arg52: memref<64x192xbf16, #tpu.memory_space<vmem>>, %arg53: memref<1x192xf32, #tpu.memory_space<vmem>>, %arg54: memref<64x64xbf16, #tpu.memory_space<vmem>>, %arg55: memref<1x64xf32, #tpu.memory_space<vmem>>, %arg56: memref<1x64xf32, #tpu.memory_space<vmem>>, %arg57: memref<1x64xf32, #tpu.memory_space<vmem>>, %arg58: memref<64x256xbf16, #tpu.memory_space<vmem>>, %arg59: memref<1x256xf32, #tpu.memory_space<vmem>>, %arg60: memref<256x64xbf16, #tpu.memory_space<vmem>>, %arg61: memref<1x64xf32, #tpu.memory_space<vmem>>, %arg62: memref<1x64xf32, #tpu.memory_space<vmem>>, %arg63: memref<1x64xf32, #tpu.memory_space<vmem>>, %arg64: memref<64x16xbf16, #tpu.memory_space<vmem>>, %arg65: memref<1x16xf32, #tpu.memory_space<vmem>>, %arg66: memref<16x192xbf16, #tpu.memory_space<vmem>>, %arg67: memref<1x192xf32, #tpu.memory_space<vmem>>, %arg68: memref<192x192xbf16, #tpu.memory_space<vmem>>, %arg69: memref<1x192xf32, #tpu.memory_space<vmem>>, %arg70: memref<192x8xbf16, #tpu.memory_space<vmem>>, %arg71: memref<1x8xf32, #tpu.memory_space<vmem>>, %arg72: memref<1x1x8xf32, #tpu.memory_space<vmem>>) attributes {dimension_semantics = [#tpu.dimension_semantics<parallel>], iteration_bounds = array<i64: 2>, scalar_prefetch = 0 : i64, scratch_operands = 0 : i64, tpu.core_type = #tpu.core_type<tc>, window_params = [{transform_indices = @transform_0, window_bounds = array<i64: 1, 64, 48>}, {pipeline_mode = #tpu.pipeline_mode<synchronous>, transform_indices = @transform_1, window_bounds = array<i64: 48, 32>}, {pipeline_mode = #tpu.pipeline_mode<synchronous>, transform_indices = @transform_2, window_bounds = array<i64: 1, 32>}, {pipeline_mode = #tpu.pipeline_mode<synchronous>, transform_indices = @transform_3, window_bounds = array<i64: 1, 32>}, {pipeline_mode = #tpu.pipeline_mode<synchronous>, transform_indices = @transform_4, window_bounds = array<i64: 1, 32>}, {pipeline_mode = #tpu.pipeline_mode<synchronous>, transform_indices = @transform_5, window_bounds = array<i64: 2, 64, 64>}, {pipeline_mode = #tpu.pipeline_mode<synchronous>, transform_indices = @transform_6, window_bounds = array<i64: 2, 64, 64>}, {pipeline_mode = #tpu.pipeline_mode<synchronous>, transform_indices = @transform_7, window_bounds = array<i64: 1, 32>}, {pipeline_mode = #tpu.pipeline_mode<synchronous>, transform_indices = @transform_8, window_bounds = array<i64: 1, 32>}, {pipeline_mode = #tpu.pipeline_mode<synchronous>, transform_indices = @transform_9, window_bounds = array<i64: 32, 96>}, {pipeline_mode = #tpu.pipeline_mode<synchronous>, transform_indices = @transform_10, window_bounds = array<i64: 1, 96>}, {pipeline_mode = #tpu.pipeline_mode<synchronous>, transform_indices = @transform_11, window_bounds = array<i64: 32, 32>}, {pipeline_mode = #tpu.pipeline_mode<synchronous>, transform_indices = @transform_12, window_bounds = array<i64: 1, 32>}, {pipeline_mode = #tpu.pipeline_mode<synchronous>, transform_indices = @transform_13, window_bounds = array<i64: 1, 32>}, {pipeline_mode = #tpu.pipeline_mode<synchronous>, transform_indices = @transform_14, window_bounds = array<i64: 1, 32>}, {pipeline_mode = #tpu.pipeline_mode<synchronous>, transform_indices = @transform_15, window_bounds = array<i64: 32, 128>}, {pipeline_mode = #tpu.pipeline_mode<synchronous>, transform_indices = @transform_16, window_bounds = array<i64: 1, 128>}, {pipeline_mode = #tpu.pipeline_mode<synchronous>, transform_indices = @transform_17, window_bounds = array<i64: 128, 32>}, {pipeline_mode = #tpu.pipeline_mode<synchronous>, transform_indices = @transform_18, window_bounds = array<i64: 1, 32>}, {pipeline_mode = #tpu.pipeline_mode<synchronous>, transform_indices = @transform_19, window_bounds = array<i64: 1, 32>}, {pipeline_mode = #tpu.pipeline_mode<synchronous>, transform_indices = @transform_20, window_bounds = array<i64: 1, 32>}, {pipeline_mode = #tpu.pipeline_mode<synchronous>, transform_indices = @transform_21, window_bounds = array<i64: 32, 96>}, {pipeline_mode = #tpu.pipeline_mode<synchronous>, transform_indices = @transform_22, window_bounds = array<i64: 1, 96>}, {pipeline_mode = #tpu.pipeline_mode<synchronous>, transform_indices = @transform_23, window_bounds = array<i64: 32, 32>}, {pipeline_mode = #tpu.pipeline_mode<synchronous>, transform_indices = @transform_24, window_bounds = array<i64: 1, 32>}, {pipeline_mode = #tpu.pipeline_mode<synchronous>, transform_indices = @transform_25, window_bounds = array<i64: 1, 32>}, {pipeline_mode = #tpu.pipeline_mode<synchronous>, transform_indices = @transform_26, window_bounds = array<i64: 1, 32>}, {pipeline_mode = #tpu.pipeline_mode<synchronous>, transform_indices = @transform_27, window_bounds = array<i64: 32, 128>}, {pipeline_mode = #tpu.pipeline_mode<synchronous>, transform_indices = @transform_28, window_bounds = array<i64: 1, 128>}, {pipeline_mode = #tpu.pipeline_mode<synchronous>, transform_indices = @transform_29, window_bounds = array<i64: 128, 32>}, {pipeline_mode = #tpu.pipeline_mode<synchronous>, transform_indices = @transform_30, window_bounds = array<i64: 1, 32>}, {pipeline_mode = #tpu.pipeline_mode<synchronous>, transform_indices = @transform_31, window_bounds = array<i64: 64, 64>}, {pipeline_mode = #tpu.pipeline_mode<synchronous>, transform_indices = @transform_32, window_bounds = array<i64: 1, 128>}, {pipeline_mode = #tpu.pipeline_mode<synchronous>, transform_indices = @transform_33, window_bounds = array<i64: 1, 128>}, {pipeline_mode = #tpu.pipeline_mode<synchronous>, transform_indices = @transform_34, window_bounds = array<i64: 128, 64>}, {pipeline_mode = #tpu.pipeline_mode<synchronous>, transform_indices = @transform_35, window_bounds = array<i64: 4, 16, 16>}, {pipeline_mode = #tpu.pipeline_mode<synchronous>, transform_indices = @transform_36, window_bounds = array<i64: 4, 16, 16>}, {pipeline_mode = #tpu.pipeline_mode<synchronous>, transform_indices = @transform_37, window_bounds = array<i64: 1, 64>}, {pipeline_mode = #tpu.pipeline_mode<synchronous>, transform_indices = @transform_38, window_bounds = array<i64: 1, 64>}, {pipeline_mode = #tpu.pipeline_mode<synchronous>, transform_indices = @transform_39, window_bounds = array<i64: 64, 192>}, {pipeline_mode = #tpu.pipeline_mode<synchronous>, transform_indices = @transform_40, window_bounds = array<i64: 1, 192>}, {pipeline_mode = #tpu.pipeline_mode<synchronous>, transform_indices = @transform_41, window_bounds = array<i64: 64, 64>}, {pipeline_mode = #tpu.pipeline_mode<synchronous>, transform_indices = @transform_42, window_bounds = array<i64: 1, 64>}, {pipeline_mode = #tpu.pipeline_mode<synchronous>, transform_indices = @transform_43, window_bounds = array<i64: 1, 64>}, {pipeline_mode = #tpu.pipeline_mode<synchronous>, transform_indices = @transform_44, window_bounds = array<i64: 1, 64>}, {pipeline_mode = #tpu.pipeline_mode<synchronous>, transform_indices = @transform_45, window_bounds = array<i64: 64, 256>}, {pipeline_mode = #tpu.pipeline_mode<synchronous>, transform_indices = @transform_46, window_bounds = array<i64: 1, 256>}, {pipeline_mode = #tpu.pipeline_mode<synchronous>, transform_indices = @transform_47, window_bounds = array<i64: 256, 64>}, {pipeline_mode = #tpu.pipeline_mode<synchronous>, transform_indices = @transform_48, window_bounds = array<i64: 1, 64>}, {pipeline_mode = #tpu.pipeline_mode<synchronous>, transform_indices = @transform_49, window_bounds = array<i64: 1, 64>}, {pipeline_mode = #tpu.pipeline_mode<synchronous>, transform_indices = @transform_50, window_bounds = array<i64: 1, 64>}, {pipeline_mode = #tpu.pipeline_mode<synchronous>, transform_indices = @transform_51, window_bounds = array<i64: 64, 192>}, {pipeline_mode = #tpu.pipeline_mode<synchronous>, transform_indices = @transform_52, window_bounds = array<i64: 1, 192>}, {pipeline_mode = #tpu.pipeline_mode<synchronous>, transform_indices = @transform_53, window_bounds = array<i64: 64, 64>}, {pipeline_mode = #tpu.pipeline_mode<synchronous>, transform_indices = @transform_54, window_bounds = array<i64: 1, 64>}, {pipeline_mode = #tpu.pipeline_mode<synchronous>, transform_indices = @transform_55, window_bounds = array<i64: 1, 64>}, {pipeline_mode = #tpu.pipeline_mode<synchronous>, transform_indices = @transform_56, window_bounds = array<i64: 1, 64>}, {pipeline_mode = #tpu.pipeline_mode<synchronous>, transform_indices = @transform_57, window_bounds = array<i64: 64, 256>}, {pipeline_mode = #tpu.pipeline_mode<synchronous>, transform_indices = @transform_58, window_bounds = array<i64: 1, 256>}, {pipeline_mode = #tpu.pipeline_mode<synchronous>, transform_indices = @transform_59, window_bounds = array<i64: 256, 64>}, {pipeline_mode = #tpu.pipeline_mode<synchronous>, transform_indices = @transform_60, window_bounds = array<i64: 1, 64>}, {pipeline_mode = #tpu.pipeline_mode<synchronous>, transform_indices = @transform_61, window_bounds = array<i64: 1, 64>}, {pipeline_mode = #tpu.pipeline_mode<synchronous>, transform_indices = @transform_62, window_bounds = array<i64: 1, 64>}, {pipeline_mode = #tpu.pipeline_mode<synchronous>, transform_indices = @transform_63, window_bounds = array<i64: 64, 16>}, {pipeline_mode = #tpu.pipeline_mode<synchronous>, transform_indices = @transform_64, window_bounds = array<i64: 1, 16>}, {pipeline_mode = #tpu.pipeline_mode<synchronous>, transform_indices = @transform_65, window_bounds = array<i64: 16, 192>}, {pipeline_mode = #tpu.pipeline_mode<synchronous>, transform_indices = @transform_66, window_bounds = array<i64: 1, 192>}, {pipeline_mode = #tpu.pipeline_mode<synchronous>, transform_indices = @transform_67, window_bounds = array<i64: 192, 192>}, {pipeline_mode = #tpu.pipeline_mode<synchronous>, transform_indices = @transform_68, window_bounds = array<i64: 1, 192>}, {pipeline_mode = #tpu.pipeline_mode<synchronous>, transform_indices = @transform_69, window_bounds = array<i64: 192, 8>}, {pipeline_mode = #tpu.pipeline_mode<synchronous>, transform_indices = @transform_70, window_bounds = array<i64: 1, 8>}, {transform_indices = @transform_71, window_bounds = array<i64: 1, 1, 8>}]} {
    %c0 = arith.constant 0 : index
    %c0_0 = arith.constant 0 : index
    %c0_1 = arith.constant 0 : index
    %0 = vector.load %arg1[%c0, %c0_0, %c0_1] : memref<1x64x48xf32, #tpu.memory_space<vmem>>, vector<1x64x48xf32>
    %1 = vector.shape_cast %0 : vector<1x64x48xf32> to vector<64x48xf32>
    %2 = arith.truncf %1 : vector<64x48xf32> to vector<64x48xbf16>
    %c0_2 = arith.constant 0 : index
    %c0_3 = arith.constant 0 : index
    %3 = vector.load %arg2[%c0_2, %c0_3] : memref<48x32xbf16, #tpu.memory_space<vmem>>, vector<48x32xbf16>
    %cst = arith.constant dense<0.000000e+00> : vector<64x32xf32>
    %4 = tpu.matmul %2, %3, %cst {dimension_numbers = #tpu.dot_dimension_numbers<[1], [0], [0], [1], [0, 0, 1, 1], [], []>} : vector<64x48xbf16>, vector<48x32xbf16>, vector<64x32xf32> -> vector<64x32xf32>
    %c0_4 = arith.constant 0 : index
    %c0_5 = arith.constant 0 : index
    %5 = vector.load %arg3[%c0_4, %c0_5] : memref<1x32xf32, #tpu.memory_space<vmem>>, vector<1x32xf32>
    %6 = vector.broadcast %5 : vector<1x32xf32> to vector<64x32xf32>
    %7 = arith.addf %4, %6 : vector<64x32xf32>
    %c0_6 = arith.constant 0 : index
    %c0_7 = arith.constant 0 : index
    %8 = vector.load %arg4[%c0_6, %c0_7] : memref<1x32xf32, #tpu.memory_space<vmem>>, vector<1x32xf32>
    %c0_8 = arith.constant 0 : index
    %c0_9 = arith.constant 0 : index
    %9 = vector.load %arg5[%c0_8, %c0_9] : memref<1x32xf32, #tpu.memory_space<vmem>>, vector<1x32xf32>
    %cst_10 = arith.constant dense<0.000000e+00> : vector<64xf32>
    %10 = vector.multi_reduction <add>, %7, %cst_10 [1] : vector<64x32xf32> to vector<64xf32>
    %11 = vector.shape_cast %10 : vector<64xf32> to vector<64x1xf32>
    %cst_11 = arith.constant 3.200000e+01 : f32
    %12 = vector.broadcast %cst_11 : f32 to vector<64x1xf32>
    %13 = arith.divf %11, %12 : vector<64x1xf32>
    %14 = vector.broadcast %13 : vector<64x1xf32> to vector<64x32xf32>
    %15 = arith.subf %7, %14 : vector<64x32xf32>
    %16 = vector.broadcast %13 : vector<64x1xf32> to vector<64x32xf32>
    %17 = arith.subf %7, %16 : vector<64x32xf32>
    %18 = arith.mulf %15, %17 : vector<64x32xf32>
    %cst_12 = arith.constant dense<0.000000e+00> : vector<64xf32>
    %19 = vector.multi_reduction <add>, %18, %cst_12 [1] : vector<64x32xf32> to vector<64xf32>
    %20 = vector.shape_cast %19 : vector<64xf32> to vector<64x1xf32>
    %cst_13 = arith.constant 3.200000e+01 : f32
    %21 = vector.broadcast %cst_13 : f32 to vector<64x1xf32>
    %22 = arith.divf %20, %21 : vector<64x1xf32>
    %23 = vector.broadcast %13 : vector<64x1xf32> to vector<64x32xf32>
    %24 = arith.subf %7, %23 : vector<64x32xf32>
    %cst_14 = arith.constant 9.99999974E-6 : f32
    %25 = vector.broadcast %cst_14 : f32 to vector<64x1xf32>
    %26 = arith.addf %22, %25 : vector<64x1xf32>
    %27 = math.rsqrt %26 : vector<64x1xf32>
    %28 = vector.broadcast %27 : vector<64x1xf32> to vector<64x32xf32>
    %29 = arith.mulf %24, %28 : vector<64x32xf32>
    %30 = vector.broadcast %8 : vector<1x32xf32> to vector<64x32xf32>
    %31 = arith.mulf %29, %30 : vector<64x32xf32>
    %32 = vector.broadcast %9 : vector<1x32xf32> to vector<64x32xf32>
    %33 = arith.addf %31, %32 : vector<64x32xf32>
    %c0_15 = arith.constant 0 : index
    %c0_16 = arith.constant 0 : index
    %34 = vector.load %arg8[%c0_15, %c0_16] : memref<1x32xf32, #tpu.memory_space<vmem>>, vector<1x32xf32>
    %c0_17 = arith.constant 0 : index
    %c0_18 = arith.constant 0 : index
    %35 = vector.load %arg9[%c0_17, %c0_18] : memref<1x32xf32, #tpu.memory_space<vmem>>, vector<1x32xf32>
    %cst_19 = arith.constant dense<0.000000e+00> : vector<64xf32>
    %36 = vector.multi_reduction <add>, %33, %cst_19 [1] : vector<64x32xf32> to vector<64xf32>
    %37 = vector.shape_cast %36 : vector<64xf32> to vector<64x1xf32>
    %cst_20 = arith.constant 3.200000e+01 : f32
    %38 = vector.broadcast %cst_20 : f32 to vector<64x1xf32>
    %39 = arith.divf %37, %38 : vector<64x1xf32>
    %40 = vector.broadcast %39 : vector<64x1xf32> to vector<64x32xf32>
    %41 = arith.subf %33, %40 : vector<64x32xf32>
    %42 = vector.broadcast %39 : vector<64x1xf32> to vector<64x32xf32>
    %43 = arith.subf %33, %42 : vector<64x32xf32>
    %44 = arith.mulf %41, %43 : vector<64x32xf32>
    %cst_21 = arith.constant dense<0.000000e+00> : vector<64xf32>
    %45 = vector.multi_reduction <add>, %44, %cst_21 [1] : vector<64x32xf32> to vector<64xf32>
    %46 = vector.shape_cast %45 : vector<64xf32> to vector<64x1xf32>
    %cst_22 = arith.constant 3.200000e+01 : f32
    %47 = vector.broadcast %cst_22 : f32 to vector<64x1xf32>
    %48 = arith.divf %46, %47 : vector<64x1xf32>
    %49 = vector.broadcast %39 : vector<64x1xf32> to vector<64x32xf32>
    %50 = arith.subf %33, %49 : vector<64x32xf32>
    %cst_23 = arith.constant 9.99999974E-6 : f32
    %51 = vector.broadcast %cst_23 : f32 to vector<64x1xf32>
    %52 = arith.addf %48, %51 : vector<64x1xf32>
    %53 = math.rsqrt %52 : vector<64x1xf32>
    %54 = vector.broadcast %53 : vector<64x1xf32> to vector<64x32xf32>
    %55 = arith.mulf %50, %54 : vector<64x32xf32>
    %56 = vector.broadcast %34 : vector<1x32xf32> to vector<64x32xf32>
    %57 = arith.mulf %55, %56 : vector<64x32xf32>
    %58 = vector.broadcast %35 : vector<1x32xf32> to vector<64x32xf32>
    %59 = arith.addf %57, %58 : vector<64x32xf32>
    %60 = arith.truncf %59 : vector<64x32xf32> to vector<64x32xbf16>
    %c0_24 = arith.constant 0 : index
    %c0_25 = arith.constant 0 : index
    %61 = vector.load %arg10[%c0_24, %c0_25] : memref<32x96xbf16, #tpu.memory_space<vmem>>, vector<32x96xbf16>
    %cst_26 = arith.constant dense<0.000000e+00> : vector<64x96xf32>
    %62 = tpu.matmul %60, %61, %cst_26 {dimension_numbers = #tpu.dot_dimension_numbers<[1], [0], [0], [1], [0, 0, 1, 1], [], []>} : vector<64x32xbf16>, vector<32x96xbf16>, vector<64x96xf32> -> vector<64x96xf32>
    %c0_27 = arith.constant 0 : index
    %c0_28 = arith.constant 0 : index
    %63 = vector.load %arg11[%c0_27, %c0_28] : memref<1x96xf32, #tpu.memory_space<vmem>>, vector<1x96xf32>
    %64 = vector.broadcast %63 : vector<1x96xf32> to vector<64x96xf32>
    %65 = arith.addf %62, %64 : vector<64x96xf32>
    %66 = vector.extract_strided_slice %65 {offsets = [0, 0], sizes = [64, 16], strides = [1, 1]} : vector<64x96xf32> to vector<64x16xf32>
    %67 = arith.truncf %66 : vector<64x16xf32> to vector<64x16xbf16>
    %68 = vector.extract_strided_slice %65 {offsets = [0, 32], sizes = [64, 16], strides = [1, 1]} : vector<64x96xf32> to vector<64x16xf32>
    %69 = arith.truncf %68 : vector<64x16xf32> to vector<64x16xbf16>
    %70 = vector.extract_strided_slice %65 {offsets = [0, 64], sizes = [64, 16], strides = [1, 1]} : vector<64x96xf32> to vector<64x16xf32>
    %71 = arith.truncf %70 : vector<64x16xf32> to vector<64x16xbf16>
    %cst_29 = arith.constant dense<0.000000e+00> : vector<64x64xf32>
    %72 = tpu.matmul %67, %69, %cst_29 {dimension_numbers = #tpu.dot_dimension_numbers<[1], [1], [0], [0], [0, 0, 1, 0], [], []>} : vector<64x16xbf16>, vector<64x16xbf16>, vector<64x64xf32> -> vector<64x64xf32>
    %c0_30 = arith.constant 0 : index
    %c0_31 = arith.constant 0 : index
    %c0_32 = arith.constant 0 : index
    %73 = vector.load %arg6[%c0_30, %c0_31, %c0_32] : memref<2x64x64xbf16, #tpu.memory_space<vmem>>, vector<1x64x64xbf16>
    %74 = vector.shape_cast %73 : vector<1x64x64xbf16> to vector<64x64xbf16>
    %75 = arith.extf %74 : vector<64x64xbf16> to vector<64x64xf32>
    %76 = arith.addf %72, %75 : vector<64x64xf32>
    %cst_33 = arith.constant dense<0xFF800000> : vector<64xf32>
    %77 = vector.multi_reduction <maximumf>, %76, %cst_33 [1] : vector<64x64xf32> to vector<64xf32>
    %78 = vector.shape_cast %77 : vector<64xf32> to vector<64x1xf32>
    %79 = vector.broadcast %78 : vector<64x1xf32> to vector<64x64xf32>
    %80 = arith.subf %76, %79 : vector<64x64xf32>
    %81 = math.exp %80 : vector<64x64xf32>
    %cst_34 = arith.constant dense<0.000000e+00> : vector<64xf32>
    %82 = vector.multi_reduction <add>, %81, %cst_34 [1] : vector<64x64xf32> to vector<64xf32>
    %83 = vector.shape_cast %82 : vector<64xf32> to vector<64x1xf32>
    %84 = tpu.reciprocal %83 {approx = true} : vector<64x1xf32> -> vector<64x1xf32>
    %85 = vector.broadcast %84 : vector<64x1xf32> to vector<64x64xf32>
    %86 = arith.mulf %81, %85 : vector<64x64xf32>
    %87 = arith.truncf %86 : vector<64x64xf32> to vector<64x64xbf16>
    %cst_35 = arith.constant dense<0.000000e+00> : vector<64x16xf32>
    %88 = tpu.matmul %87, %71, %cst_35 {dimension_numbers = #tpu.dot_dimension_numbers<[1], [0], [0], [1], [0, 0, 1, 1], [], []>} : vector<64x64xbf16>, vector<64x16xbf16>, vector<64x16xf32> -> vector<64x16xf32>
    %89 = vector.extract_strided_slice %65 {offsets = [0, 16], sizes = [64, 16], strides = [1, 1]} : vector<64x96xf32> to vector<64x16xf32>
    %90 = arith.truncf %89 : vector<64x16xf32> to vector<64x16xbf16>
    %91 = vector.extract_strided_slice %65 {offsets = [0, 48], sizes = [64, 16], strides = [1, 1]} : vector<64x96xf32> to vector<64x16xf32>
    %92 = arith.truncf %91 : vector<64x16xf32> to vector<64x16xbf16>
    %93 = vector.extract_strided_slice %65 {offsets = [0, 80], sizes = [64, 16], strides = [1, 1]} : vector<64x96xf32> to vector<64x16xf32>
    %94 = arith.truncf %93 : vector<64x16xf32> to vector<64x16xbf16>
    %cst_36 = arith.constant dense<0.000000e+00> : vector<64x64xf32>
    %95 = tpu.matmul %90, %92, %cst_36 {dimension_numbers = #tpu.dot_dimension_numbers<[1], [1], [0], [0], [0, 0, 1, 0], [], []>} : vector<64x16xbf16>, vector<64x16xbf16>, vector<64x64xf32> -> vector<64x64xf32>
    %c1 = arith.constant 1 : index
    %c0_37 = arith.constant 0 : index
    %c0_38 = arith.constant 0 : index
    %96 = vector.load %arg6[%c1, %c0_37, %c0_38] : memref<2x64x64xbf16, #tpu.memory_space<vmem>>, vector<1x64x64xbf16>
    %97 = vector.shape_cast %96 : vector<1x64x64xbf16> to vector<64x64xbf16>
    %98 = arith.extf %97 : vector<64x64xbf16> to vector<64x64xf32>
    %99 = arith.addf %95, %98 : vector<64x64xf32>
    %cst_39 = arith.constant dense<0xFF800000> : vector<64xf32>
    %100 = vector.multi_reduction <maximumf>, %99, %cst_39 [1] : vector<64x64xf32> to vector<64xf32>
    %101 = vector.shape_cast %100 : vector<64xf32> to vector<64x1xf32>
    %102 = vector.broadcast %101 : vector<64x1xf32> to vector<64x64xf32>
    %103 = arith.subf %99, %102 : vector<64x64xf32>
    %104 = math.exp %103 : vector<64x64xf32>
    %cst_40 = arith.constant dense<0.000000e+00> : vector<64xf32>
    %105 = vector.multi_reduction <add>, %104, %cst_40 [1] : vector<64x64xf32> to vector<64xf32>
    %106 = vector.shape_cast %105 : vector<64xf32> to vector<64x1xf32>
    %107 = tpu.reciprocal %106 {approx = true} : vector<64x1xf32> -> vector<64x1xf32>
    %108 = vector.broadcast %107 : vector<64x1xf32> to vector<64x64xf32>
    %109 = arith.mulf %104, %108 : vector<64x64xf32>
    %110 = arith.truncf %109 : vector<64x64xf32> to vector<64x64xbf16>
    %cst_41 = arith.constant dense<0.000000e+00> : vector<64x16xf32>
    %111 = tpu.matmul %110, %94, %cst_41 {dimension_numbers = #tpu.dot_dimension_numbers<[1], [0], [0], [1], [0, 0, 1, 1], [], []>} : vector<64x64xbf16>, vector<64x16xbf16>, vector<64x16xf32> -> vector<64x16xf32>
    %112 = tpu.concatenate %88, %111 in 1 : vector<64x16xf32>, vector<64x16xf32> -> vector<64x32xf32>
    %113 = arith.truncf %112 : vector<64x32xf32> to vector<64x32xbf16>
    %c0_42 = arith.constant 0 : index
    %c0_43 = arith.constant 0 : index
    %114 = vector.load %arg12[%c0_42, %c0_43] : memref<32x32xbf16, #tpu.memory_space<vmem>>, vector<32x32xbf16>
    %cst_44 = arith.constant dense<0.000000e+00> : vector<64x32xf32>
    %115 = tpu.matmul %113, %114, %cst_44 {dimension_numbers = #tpu.dot_dimension_numbers<[1], [0], [0], [1], [0, 0, 1, 1], [], []>} : vector<64x32xbf16>, vector<32x32xbf16>, vector<64x32xf32> -> vector<64x32xf32>
    %116 = arith.addf %33, %115 : vector<64x32xf32>
    %c0_45 = arith.constant 0 : index
    %c0_46 = arith.constant 0 : index
    %117 = vector.load %arg13[%c0_45, %c0_46] : memref<1x32xf32, #tpu.memory_space<vmem>>, vector<1x32xf32>
    %118 = vector.broadcast %117 : vector<1x32xf32> to vector<64x32xf32>
    %119 = arith.addf %116, %118 : vector<64x32xf32>
    %c0_47 = arith.constant 0 : index
    %c0_48 = arith.constant 0 : index
    %120 = vector.load %arg14[%c0_47, %c0_48] : memref<1x32xf32, #tpu.memory_space<vmem>>, vector<1x32xf32>
    %c0_49 = arith.constant 0 : index
    %c0_50 = arith.constant 0 : index
    %121 = vector.load %arg15[%c0_49, %c0_50] : memref<1x32xf32, #tpu.memory_space<vmem>>, vector<1x32xf32>
    %cst_51 = arith.constant dense<0.000000e+00> : vector<64xf32>
    %122 = vector.multi_reduction <add>, %119, %cst_51 [1] : vector<64x32xf32> to vector<64xf32>
    %123 = vector.shape_cast %122 : vector<64xf32> to vector<64x1xf32>
    %cst_52 = arith.constant 3.200000e+01 : f32
    %124 = vector.broadcast %cst_52 : f32 to vector<64x1xf32>
    %125 = arith.divf %123, %124 : vector<64x1xf32>
    %126 = vector.broadcast %125 : vector<64x1xf32> to vector<64x32xf32>
    %127 = arith.subf %119, %126 : vector<64x32xf32>
    %128 = vector.broadcast %125 : vector<64x1xf32> to vector<64x32xf32>
    %129 = arith.subf %119, %128 : vector<64x32xf32>
    %130 = arith.mulf %127, %129 : vector<64x32xf32>
    %cst_53 = arith.constant dense<0.000000e+00> : vector<64xf32>
    %131 = vector.multi_reduction <add>, %130, %cst_53 [1] : vector<64x32xf32> to vector<64xf32>
    %132 = vector.shape_cast %131 : vector<64xf32> to vector<64x1xf32>
    %cst_54 = arith.constant 3.200000e+01 : f32
    %133 = vector.broadcast %cst_54 : f32 to vector<64x1xf32>
    %134 = arith.divf %132, %133 : vector<64x1xf32>
    %135 = vector.broadcast %125 : vector<64x1xf32> to vector<64x32xf32>
    %136 = arith.subf %119, %135 : vector<64x32xf32>
    %cst_55 = arith.constant 9.99999974E-6 : f32
    %137 = vector.broadcast %cst_55 : f32 to vector<64x1xf32>
    %138 = arith.addf %134, %137 : vector<64x1xf32>
    %139 = math.rsqrt %138 : vector<64x1xf32>
    %140 = vector.broadcast %139 : vector<64x1xf32> to vector<64x32xf32>
    %141 = arith.mulf %136, %140 : vector<64x32xf32>
    %142 = vector.broadcast %120 : vector<1x32xf32> to vector<64x32xf32>
    %143 = arith.mulf %141, %142 : vector<64x32xf32>
    %144 = vector.broadcast %121 : vector<1x32xf32> to vector<64x32xf32>
    %145 = arith.addf %143, %144 : vector<64x32xf32>
    %146 = arith.truncf %145 : vector<64x32xf32> to vector<64x32xbf16>
    %c0_56 = arith.constant 0 : index
    %c0_57 = arith.constant 0 : index
    %147 = vector.load %arg16[%c0_56, %c0_57] : memref<32x128xbf16, #tpu.memory_space<vmem>>, vector<32x128xbf16>
    %cst_58 = arith.constant dense<0.000000e+00> : vector<64x128xf32>
    %148 = tpu.matmul %146, %147, %cst_58 {dimension_numbers = #tpu.dot_dimension_numbers<[1], [0], [0], [1], [0, 0, 1, 1], [], []>} : vector<64x32xbf16>, vector<32x128xbf16>, vector<64x128xf32> -> vector<64x128xf32>
    %c0_59 = arith.constant 0 : index
    %c0_60 = arith.constant 0 : index
    %149 = vector.load %arg17[%c0_59, %c0_60] : memref<1x128xf32, #tpu.memory_space<vmem>>, vector<1x128xf32>
    %150 = vector.broadcast %149 : vector<1x128xf32> to vector<64x128xf32>
    %151 = arith.addf %148, %150 : vector<64x128xf32>
    %cst_61 = arith.constant 5.000000e-01 : f32
    %152 = vector.broadcast %cst_61 : f32 to vector<64x128xf32>
    %153 = arith.mulf %152, %151 : vector<64x128xf32>
    %cst_62 = arith.constant 4.471500e-02 : f32
    %154 = vector.broadcast %cst_62 : f32 to vector<64x128xf32>
    %155 = arith.mulf %154, %151 : vector<64x128xf32>
    %156 = arith.mulf %155, %151 : vector<64x128xf32>
    %157 = arith.mulf %156, %151 : vector<64x128xf32>
    %158 = arith.addf %151, %157 : vector<64x128xf32>
    %cst_63 = arith.constant 0.797884583 : f32
    %159 = vector.broadcast %cst_63 : f32 to vector<64x128xf32>
    %160 = arith.mulf %159, %158 : vector<64x128xf32>
    %161 = math.tanh %160 : vector<64x128xf32>
    %cst_64 = arith.constant 1.000000e+00 : f32
    %162 = vector.broadcast %cst_64 : f32 to vector<64x128xf32>
    %163 = arith.addf %162, %161 : vector<64x128xf32>
    %164 = arith.mulf %153, %163 : vector<64x128xf32>
    %165 = arith.truncf %164 : vector<64x128xf32> to vector<64x128xbf16>
    %c0_65 = arith.constant 0 : index
    %c0_66 = arith.constant 0 : index
    %166 = vector.load %arg18[%c0_65, %c0_66] : memref<128x32xbf16, #tpu.memory_space<vmem>>, vector<128x32xbf16>
    %cst_67 = arith.constant dense<0.000000e+00> : vector<64x32xf32>
    %167 = tpu.matmul %165, %166, %cst_67 {dimension_numbers = #tpu.dot_dimension_numbers<[1], [0], [0], [1], [0, 0, 1, 1], [], []>} : vector<64x128xbf16>, vector<128x32xbf16>, vector<64x32xf32> -> vector<64x32xf32>
    %c0_68 = arith.constant 0 : index
    %c0_69 = arith.constant 0 : index
    %168 = vector.load %arg19[%c0_68, %c0_69] : memref<1x32xf32, #tpu.memory_space<vmem>>, vector<1x32xf32>
    %169 = vector.broadcast %168 : vector<1x32xf32> to vector<64x32xf32>
    %170 = arith.addf %167, %169 : vector<64x32xf32>
    %171 = arith.addf %119, %170 : vector<64x32xf32>
    %c0_70 = arith.constant 0 : index
    %c0_71 = arith.constant 0 : index
    %172 = vector.load %arg20[%c0_70, %c0_71] : memref<1x32xf32, #tpu.memory_space<vmem>>, vector<1x32xf32>
    %c0_72 = arith.constant 0 : index
    %c0_73 = arith.constant 0 : index
    %173 = vector.load %arg21[%c0_72, %c0_73] : memref<1x32xf32, #tpu.memory_space<vmem>>, vector<1x32xf32>
    %cst_74 = arith.constant dense<0.000000e+00> : vector<64xf32>
    %174 = vector.multi_reduction <add>, %171, %cst_74 [1] : vector<64x32xf32> to vector<64xf32>
    %175 = vector.shape_cast %174 : vector<64xf32> to vector<64x1xf32>
    %cst_75 = arith.constant 3.200000e+01 : f32
    %176 = vector.broadcast %cst_75 : f32 to vector<64x1xf32>
    %177 = arith.divf %175, %176 : vector<64x1xf32>
    %178 = vector.broadcast %177 : vector<64x1xf32> to vector<64x32xf32>
    %179 = arith.subf %171, %178 : vector<64x32xf32>
    %180 = vector.broadcast %177 : vector<64x1xf32> to vector<64x32xf32>
    %181 = arith.subf %171, %180 : vector<64x32xf32>
    %182 = arith.mulf %179, %181 : vector<64x32xf32>
    %cst_76 = arith.constant dense<0.000000e+00> : vector<64xf32>
    %183 = vector.multi_reduction <add>, %182, %cst_76 [1] : vector<64x32xf32> to vector<64xf32>
    %184 = vector.shape_cast %183 : vector<64xf32> to vector<64x1xf32>
    %cst_77 = arith.constant 3.200000e+01 : f32
    %185 = vector.broadcast %cst_77 : f32 to vector<64x1xf32>
    %186 = arith.divf %184, %185 : vector<64x1xf32>
    %187 = vector.broadcast %177 : vector<64x1xf32> to vector<64x32xf32>
    %188 = arith.subf %171, %187 : vector<64x32xf32>
    %cst_78 = arith.constant 9.99999974E-6 : f32
    %189 = vector.broadcast %cst_78 : f32 to vector<64x1xf32>
    %190 = arith.addf %186, %189 : vector<64x1xf32>
    %191 = math.rsqrt %190 : vector<64x1xf32>
    %192 = vector.broadcast %191 : vector<64x1xf32> to vector<64x32xf32>
    %193 = arith.mulf %188, %192 : vector<64x32xf32>
    %194 = vector.broadcast %172 : vector<1x32xf32> to vector<64x32xf32>
    %195 = arith.mulf %193, %194 : vector<64x32xf32>
    %196 = vector.broadcast %173 : vector<1x32xf32> to vector<64x32xf32>
    %197 = arith.addf %195, %196 : vector<64x32xf32>
    %198 = arith.truncf %197 : vector<64x32xf32> to vector<64x32xbf16>
    %c0_79 = arith.constant 0 : index
    %c0_80 = arith.constant 0 : index
    %199 = vector.load %arg22[%c0_79, %c0_80] : memref<32x96xbf16, #tpu.memory_space<vmem>>, vector<32x96xbf16>
    %cst_81 = arith.constant dense<0.000000e+00> : vector<64x96xf32>
    %200 = tpu.matmul %198, %199, %cst_81 {dimension_numbers = #tpu.dot_dimension_numbers<[1], [0], [0], [1], [0, 0, 1, 1], [], []>} : vector<64x32xbf16>, vector<32x96xbf16>, vector<64x96xf32> -> vector<64x96xf32>
    %c0_82 = arith.constant 0 : index
    %c0_83 = arith.constant 0 : index
    %201 = vector.load %arg23[%c0_82, %c0_83] : memref<1x96xf32, #tpu.memory_space<vmem>>, vector<1x96xf32>
    %202 = vector.broadcast %201 : vector<1x96xf32> to vector<64x96xf32>
    %203 = arith.addf %200, %202 : vector<64x96xf32>
    %204 = vector.extract_strided_slice %203 {offsets = [0, 0], sizes = [64, 16], strides = [1, 1]} : vector<64x96xf32> to vector<64x16xf32>
    %205 = arith.truncf %204 : vector<64x16xf32> to vector<64x16xbf16>
    %206 = vector.extract_strided_slice %203 {offsets = [0, 32], sizes = [64, 16], strides = [1, 1]} : vector<64x96xf32> to vector<64x16xf32>
    %207 = arith.truncf %206 : vector<64x16xf32> to vector<64x16xbf16>
    %208 = vector.extract_strided_slice %203 {offsets = [0, 64], sizes = [64, 16], strides = [1, 1]} : vector<64x96xf32> to vector<64x16xf32>
    %209 = arith.truncf %208 : vector<64x16xf32> to vector<64x16xbf16>
    %cst_84 = arith.constant dense<0.000000e+00> : vector<64x64xf32>
    %210 = tpu.matmul %205, %207, %cst_84 {dimension_numbers = #tpu.dot_dimension_numbers<[1], [1], [0], [0], [0, 0, 1, 0], [], []>} : vector<64x16xbf16>, vector<64x16xbf16>, vector<64x64xf32> -> vector<64x64xf32>
    %c0_85 = arith.constant 0 : index
    %c0_86 = arith.constant 0 : index
    %c0_87 = arith.constant 0 : index
    %211 = vector.load %arg7[%c0_85, %c0_86, %c0_87] : memref<2x64x64xbf16, #tpu.memory_space<vmem>>, vector<1x64x64xbf16>
    %212 = vector.shape_cast %211 : vector<1x64x64xbf16> to vector<64x64xbf16>
    %213 = arith.extf %212 : vector<64x64xbf16> to vector<64x64xf32>
    %214 = arith.addf %210, %213 : vector<64x64xf32>
    %cst_88 = arith.constant dense<0xFF800000> : vector<64xf32>
    %215 = vector.multi_reduction <maximumf>, %214, %cst_88 [1] : vector<64x64xf32> to vector<64xf32>
    %216 = vector.shape_cast %215 : vector<64xf32> to vector<64x1xf32>
    %217 = vector.broadcast %216 : vector<64x1xf32> to vector<64x64xf32>
    %218 = arith.subf %214, %217 : vector<64x64xf32>
    %219 = math.exp %218 : vector<64x64xf32>
    %cst_89 = arith.constant dense<0.000000e+00> : vector<64xf32>
    %220 = vector.multi_reduction <add>, %219, %cst_89 [1] : vector<64x64xf32> to vector<64xf32>
    %221 = vector.shape_cast %220 : vector<64xf32> to vector<64x1xf32>
    %222 = tpu.reciprocal %221 {approx = true} : vector<64x1xf32> -> vector<64x1xf32>
    %223 = vector.broadcast %222 : vector<64x1xf32> to vector<64x64xf32>
    %224 = arith.mulf %219, %223 : vector<64x64xf32>
    %225 = arith.truncf %224 : vector<64x64xf32> to vector<64x64xbf16>
    %cst_90 = arith.constant dense<0.000000e+00> : vector<64x16xf32>
    %226 = tpu.matmul %225, %209, %cst_90 {dimension_numbers = #tpu.dot_dimension_numbers<[1], [0], [0], [1], [0, 0, 1, 1], [], []>} : vector<64x64xbf16>, vector<64x16xbf16>, vector<64x16xf32> -> vector<64x16xf32>
    %227 = vector.extract_strided_slice %203 {offsets = [0, 16], sizes = [64, 16], strides = [1, 1]} : vector<64x96xf32> to vector<64x16xf32>
    %228 = arith.truncf %227 : vector<64x16xf32> to vector<64x16xbf16>
    %229 = vector.extract_strided_slice %203 {offsets = [0, 48], sizes = [64, 16], strides = [1, 1]} : vector<64x96xf32> to vector<64x16xf32>
    %230 = arith.truncf %229 : vector<64x16xf32> to vector<64x16xbf16>
    %231 = vector.extract_strided_slice %203 {offsets = [0, 80], sizes = [64, 16], strides = [1, 1]} : vector<64x96xf32> to vector<64x16xf32>
    %232 = arith.truncf %231 : vector<64x16xf32> to vector<64x16xbf16>
    %cst_91 = arith.constant dense<0.000000e+00> : vector<64x64xf32>
    %233 = tpu.matmul %228, %230, %cst_91 {dimension_numbers = #tpu.dot_dimension_numbers<[1], [1], [0], [0], [0, 0, 1, 0], [], []>} : vector<64x16xbf16>, vector<64x16xbf16>, vector<64x64xf32> -> vector<64x64xf32>
    %c1_92 = arith.constant 1 : index
    %c0_93 = arith.constant 0 : index
    %c0_94 = arith.constant 0 : index
    %234 = vector.load %arg7[%c1_92, %c0_93, %c0_94] : memref<2x64x64xbf16, #tpu.memory_space<vmem>>, vector<1x64x64xbf16>
    %235 = vector.shape_cast %234 : vector<1x64x64xbf16> to vector<64x64xbf16>
    %236 = arith.extf %235 : vector<64x64xbf16> to vector<64x64xf32>
    %237 = arith.addf %233, %236 : vector<64x64xf32>
    %cst_95 = arith.constant dense<0xFF800000> : vector<64xf32>
    %238 = vector.multi_reduction <maximumf>, %237, %cst_95 [1] : vector<64x64xf32> to vector<64xf32>
    %239 = vector.shape_cast %238 : vector<64xf32> to vector<64x1xf32>
    %240 = vector.broadcast %239 : vector<64x1xf32> to vector<64x64xf32>
    %241 = arith.subf %237, %240 : vector<64x64xf32>
    %242 = math.exp %241 : vector<64x64xf32>
    %cst_96 = arith.constant dense<0.000000e+00> : vector<64xf32>
    %243 = vector.multi_reduction <add>, %242, %cst_96 [1] : vector<64x64xf32> to vector<64xf32>
    %244 = vector.shape_cast %243 : vector<64xf32> to vector<64x1xf32>
    %245 = tpu.reciprocal %244 {approx = true} : vector<64x1xf32> -> vector<64x1xf32>
    %246 = vector.broadcast %245 : vector<64x1xf32> to vector<64x64xf32>
    %247 = arith.mulf %242, %246 : vector<64x64xf32>
    %248 = arith.truncf %247 : vector<64x64xf32> to vector<64x64xbf16>
    %cst_97 = arith.constant dense<0.000000e+00> : vector<64x16xf32>
    %249 = tpu.matmul %248, %232, %cst_97 {dimension_numbers = #tpu.dot_dimension_numbers<[1], [0], [0], [1], [0, 0, 1, 1], [], []>} : vector<64x64xbf16>, vector<64x16xbf16>, vector<64x16xf32> -> vector<64x16xf32>
    %250 = tpu.concatenate %226, %249 in 1 : vector<64x16xf32>, vector<64x16xf32> -> vector<64x32xf32>
    %251 = arith.truncf %250 : vector<64x32xf32> to vector<64x32xbf16>
    %c0_98 = arith.constant 0 : index
    %c0_99 = arith.constant 0 : index
    %252 = vector.load %arg24[%c0_98, %c0_99] : memref<32x32xbf16, #tpu.memory_space<vmem>>, vector<32x32xbf16>
    %cst_100 = arith.constant dense<0.000000e+00> : vector<64x32xf32>
    %253 = tpu.matmul %251, %252, %cst_100 {dimension_numbers = #tpu.dot_dimension_numbers<[1], [0], [0], [1], [0, 0, 1, 1], [], []>} : vector<64x32xbf16>, vector<32x32xbf16>, vector<64x32xf32> -> vector<64x32xf32>
    %254 = arith.addf %171, %253 : vector<64x32xf32>
    %c0_101 = arith.constant 0 : index
    %c0_102 = arith.constant 0 : index
    %255 = vector.load %arg25[%c0_101, %c0_102] : memref<1x32xf32, #tpu.memory_space<vmem>>, vector<1x32xf32>
    %256 = vector.broadcast %255 : vector<1x32xf32> to vector<64x32xf32>
    %257 = arith.addf %254, %256 : vector<64x32xf32>
    %c0_103 = arith.constant 0 : index
    %c0_104 = arith.constant 0 : index
    %258 = vector.load %arg26[%c0_103, %c0_104] : memref<1x32xf32, #tpu.memory_space<vmem>>, vector<1x32xf32>
    %c0_105 = arith.constant 0 : index
    %c0_106 = arith.constant 0 : index
    %259 = vector.load %arg27[%c0_105, %c0_106] : memref<1x32xf32, #tpu.memory_space<vmem>>, vector<1x32xf32>
    %cst_107 = arith.constant dense<0.000000e+00> : vector<64xf32>
    %260 = vector.multi_reduction <add>, %257, %cst_107 [1] : vector<64x32xf32> to vector<64xf32>
    %261 = vector.shape_cast %260 : vector<64xf32> to vector<64x1xf32>
    %cst_108 = arith.constant 3.200000e+01 : f32
    %262 = vector.broadcast %cst_108 : f32 to vector<64x1xf32>
    %263 = arith.divf %261, %262 : vector<64x1xf32>
    %264 = vector.broadcast %263 : vector<64x1xf32> to vector<64x32xf32>
    %265 = arith.subf %257, %264 : vector<64x32xf32>
    %266 = vector.broadcast %263 : vector<64x1xf32> to vector<64x32xf32>
    %267 = arith.subf %257, %266 : vector<64x32xf32>
    %268 = arith.mulf %265, %267 : vector<64x32xf32>
    %cst_109 = arith.constant dense<0.000000e+00> : vector<64xf32>
    %269 = vector.multi_reduction <add>, %268, %cst_109 [1] : vector<64x32xf32> to vector<64xf32>
    %270 = vector.shape_cast %269 : vector<64xf32> to vector<64x1xf32>
    %cst_110 = arith.constant 3.200000e+01 : f32
    %271 = vector.broadcast %cst_110 : f32 to vector<64x1xf32>
    %272 = arith.divf %270, %271 : vector<64x1xf32>
    %273 = vector.broadcast %263 : vector<64x1xf32> to vector<64x32xf32>
    %274 = arith.subf %257, %273 : vector<64x32xf32>
    %cst_111 = arith.constant 9.99999974E-6 : f32
    %275 = vector.broadcast %cst_111 : f32 to vector<64x1xf32>
    %276 = arith.addf %272, %275 : vector<64x1xf32>
    %277 = math.rsqrt %276 : vector<64x1xf32>
    %278 = vector.broadcast %277 : vector<64x1xf32> to vector<64x32xf32>
    %279 = arith.mulf %274, %278 : vector<64x32xf32>
    %280 = vector.broadcast %258 : vector<1x32xf32> to vector<64x32xf32>
    %281 = arith.mulf %279, %280 : vector<64x32xf32>
    %282 = vector.broadcast %259 : vector<1x32xf32> to vector<64x32xf32>
    %283 = arith.addf %281, %282 : vector<64x32xf32>
    %284 = arith.truncf %283 : vector<64x32xf32> to vector<64x32xbf16>
    %c0_112 = arith.constant 0 : index
    %c0_113 = arith.constant 0 : index
    %285 = vector.load %arg28[%c0_112, %c0_113] : memref<32x128xbf16, #tpu.memory_space<vmem>>, vector<32x128xbf16>
    %cst_114 = arith.constant dense<0.000000e+00> : vector<64x128xf32>
    %286 = tpu.matmul %284, %285, %cst_114 {dimension_numbers = #tpu.dot_dimension_numbers<[1], [0], [0], [1], [0, 0, 1, 1], [], []>} : vector<64x32xbf16>, vector<32x128xbf16>, vector<64x128xf32> -> vector<64x128xf32>
    %c0_115 = arith.constant 0 : index
    %c0_116 = arith.constant 0 : index
    %287 = vector.load %arg29[%c0_115, %c0_116] : memref<1x128xf32, #tpu.memory_space<vmem>>, vector<1x128xf32>
    %288 = vector.broadcast %287 : vector<1x128xf32> to vector<64x128xf32>
    %289 = arith.addf %286, %288 : vector<64x128xf32>
    %cst_117 = arith.constant 5.000000e-01 : f32
    %290 = vector.broadcast %cst_117 : f32 to vector<64x128xf32>
    %291 = arith.mulf %290, %289 : vector<64x128xf32>
    %cst_118 = arith.constant 4.471500e-02 : f32
    %292 = vector.broadcast %cst_118 : f32 to vector<64x128xf32>
    %293 = arith.mulf %292, %289 : vector<64x128xf32>
    %294 = arith.mulf %293, %289 : vector<64x128xf32>
    %295 = arith.mulf %294, %289 : vector<64x128xf32>
    %296 = arith.addf %289, %295 : vector<64x128xf32>
    %cst_119 = arith.constant 0.797884583 : f32
    %297 = vector.broadcast %cst_119 : f32 to vector<64x128xf32>
    %298 = arith.mulf %297, %296 : vector<64x128xf32>
    %299 = math.tanh %298 : vector<64x128xf32>
    %cst_120 = arith.constant 1.000000e+00 : f32
    %300 = vector.broadcast %cst_120 : f32 to vector<64x128xf32>
    %301 = arith.addf %300, %299 : vector<64x128xf32>
    %302 = arith.mulf %291, %301 : vector<64x128xf32>
    %303 = arith.truncf %302 : vector<64x128xf32> to vector<64x128xbf16>
    %c0_121 = arith.constant 0 : index
    %c0_122 = arith.constant 0 : index
    %304 = vector.load %arg30[%c0_121, %c0_122] : memref<128x32xbf16, #tpu.memory_space<vmem>>, vector<128x32xbf16>
    %cst_123 = arith.constant dense<0.000000e+00> : vector<64x32xf32>
    %305 = tpu.matmul %303, %304, %cst_123 {dimension_numbers = #tpu.dot_dimension_numbers<[1], [0], [0], [1], [0, 0, 1, 1], [], []>} : vector<64x128xbf16>, vector<128x32xbf16>, vector<64x32xf32> -> vector<64x32xf32>
    %c0_124 = arith.constant 0 : index
    %c0_125 = arith.constant 0 : index
    %306 = vector.load %arg31[%c0_124, %c0_125] : memref<1x32xf32, #tpu.memory_space<vmem>>, vector<1x32xf32>
    %307 = vector.broadcast %306 : vector<1x32xf32> to vector<64x32xf32>
    %308 = arith.addf %305, %307 : vector<64x32xf32>
    %309 = arith.addf %257, %308 : vector<64x32xf32>
    %c0_126 = arith.constant 0 : index
    %c0_127 = arith.constant 0 : index
    %310 = vector.load %arg32[%c0_126, %c0_127] : memref<64x64xf32, #tpu.memory_space<vmem>>, vector<64x64xf32>
    %cst_128 = arith.constant dense<0.000000e+00> : vector<64x32xf32>
    %311 = tpu.matmul %310, %309, %cst_128 {dimension_numbers = #tpu.dot_dimension_numbers<[1], [0], [0], [1], [0, 0, 1, 1], [], []>} : vector<64x64xf32>, vector<64x32xf32>, vector<64x32xf32> -> vector<64x32xf32>
    %312 = vector.extract_strided_slice %311 {offsets = [0, 0], sizes = [16, 32], strides = [1, 1]} : vector<64x32xf32> to vector<16x32xf32>
    %313 = vector.extract_strided_slice %311 {offsets = [16, 0], sizes = [16, 32], strides = [1, 1]} : vector<64x32xf32> to vector<16x32xf32>
    %314 = vector.extract_strided_slice %311 {offsets = [32, 0], sizes = [16, 32], strides = [1, 1]} : vector<64x32xf32> to vector<16x32xf32>
    %315 = vector.extract_strided_slice %311 {offsets = [48, 0], sizes = [16, 32], strides = [1, 1]} : vector<64x32xf32> to vector<16x32xf32>
    %316 = tpu.concatenate %312, %313, %314, %315 in 1 : vector<16x32xf32>, vector<16x32xf32>, vector<16x32xf32>, vector<16x32xf32> -> vector<16x128xf32>
    %c0_129 = arith.constant 0 : index
    %c0_130 = arith.constant 0 : index
    %317 = vector.load %arg33[%c0_129, %c0_130] : memref<1x128xf32, #tpu.memory_space<vmem>>, vector<1x128xf32>
    %c0_131 = arith.constant 0 : index
    %c0_132 = arith.constant 0 : index
    %318 = vector.load %arg34[%c0_131, %c0_132] : memref<1x128xf32, #tpu.memory_space<vmem>>, vector<1x128xf32>
    %cst_133 = arith.constant dense<0.000000e+00> : vector<16xf32>
    %319 = vector.multi_reduction <add>, %316, %cst_133 [1] : vector<16x128xf32> to vector<16xf32>
    %320 = vector.shape_cast %319 : vector<16xf32> to vector<16x1xf32>
    %cst_134 = arith.constant 1.280000e+02 : f32
    %321 = vector.broadcast %cst_134 : f32 to vector<16x1xf32>
    %322 = arith.divf %320, %321 : vector<16x1xf32>
    %323 = vector.broadcast %322 : vector<16x1xf32> to vector<16x128xf32>
    %324 = arith.subf %316, %323 : vector<16x128xf32>
    %325 = vector.broadcast %322 : vector<16x1xf32> to vector<16x128xf32>
    %326 = arith.subf %316, %325 : vector<16x128xf32>
    %327 = arith.mulf %324, %326 : vector<16x128xf32>
    %cst_135 = arith.constant dense<0.000000e+00> : vector<16xf32>
    %328 = vector.multi_reduction <add>, %327, %cst_135 [1] : vector<16x128xf32> to vector<16xf32>
    %329 = vector.shape_cast %328 : vector<16xf32> to vector<16x1xf32>
    %cst_136 = arith.constant 1.280000e+02 : f32
    %330 = vector.broadcast %cst_136 : f32 to vector<16x1xf32>
    %331 = arith.divf %329, %330 : vector<16x1xf32>
    %332 = vector.broadcast %322 : vector<16x1xf32> to vector<16x128xf32>
    %333 = arith.subf %316, %332 : vector<16x128xf32>
    %cst_137 = arith.constant 9.99999974E-6 : f32
    %334 = vector.broadcast %cst_137 : f32 to vector<16x1xf32>
    %335 = arith.addf %331, %334 : vector<16x1xf32>
    %336 = math.rsqrt %335 : vector<16x1xf32>
    %337 = vector.broadcast %336 : vector<16x1xf32> to vector<16x128xf32>
    %338 = arith.mulf %333, %337 : vector<16x128xf32>
    %339 = vector.broadcast %317 : vector<1x128xf32> to vector<16x128xf32>
    %340 = arith.mulf %338, %339 : vector<16x128xf32>
    %341 = vector.broadcast %318 : vector<1x128xf32> to vector<16x128xf32>
    %342 = arith.addf %340, %341 : vector<16x128xf32>
    %343 = arith.truncf %342 : vector<16x128xf32> to vector<16x128xbf16>
    %c0_138 = arith.constant 0 : index
    %c0_139 = arith.constant 0 : index
    %344 = vector.load %arg35[%c0_138, %c0_139] : memref<128x64xbf16, #tpu.memory_space<vmem>>, vector<128x64xbf16>
    %cst_140 = arith.constant dense<0.000000e+00> : vector<16x64xf32>
    %345 = tpu.matmul %343, %344, %cst_140 {dimension_numbers = #tpu.dot_dimension_numbers<[1], [0], [0], [1], [0, 0, 1, 1], [], []>} : vector<16x128xbf16>, vector<128x64xbf16>, vector<16x64xf32> -> vector<16x64xf32>
    %c0_141 = arith.constant 0 : index
    %c0_142 = arith.constant 0 : index
    %346 = vector.load %arg38[%c0_141, %c0_142] : memref<1x64xf32, #tpu.memory_space<vmem>>, vector<1x64xf32>
    %c0_143 = arith.constant 0 : index
    %c0_144 = arith.constant 0 : index
    %347 = vector.load %arg39[%c0_143, %c0_144] : memref<1x64xf32, #tpu.memory_space<vmem>>, vector<1x64xf32>
    %cst_145 = arith.constant dense<0.000000e+00> : vector<16xf32>
    %348 = vector.multi_reduction <add>, %345, %cst_145 [1] : vector<16x64xf32> to vector<16xf32>
    %349 = vector.shape_cast %348 : vector<16xf32> to vector<16x1xf32>
    %cst_146 = arith.constant 6.400000e+01 : f32
    %350 = vector.broadcast %cst_146 : f32 to vector<16x1xf32>
    %351 = arith.divf %349, %350 : vector<16x1xf32>
    %352 = vector.broadcast %351 : vector<16x1xf32> to vector<16x64xf32>
    %353 = arith.subf %345, %352 : vector<16x64xf32>
    %354 = vector.broadcast %351 : vector<16x1xf32> to vector<16x64xf32>
    %355 = arith.subf %345, %354 : vector<16x64xf32>
    %356 = arith.mulf %353, %355 : vector<16x64xf32>
    %cst_147 = arith.constant dense<0.000000e+00> : vector<16xf32>
    %357 = vector.multi_reduction <add>, %356, %cst_147 [1] : vector<16x64xf32> to vector<16xf32>
    %358 = vector.shape_cast %357 : vector<16xf32> to vector<16x1xf32>
    %cst_148 = arith.constant 6.400000e+01 : f32
    %359 = vector.broadcast %cst_148 : f32 to vector<16x1xf32>
    %360 = arith.divf %358, %359 : vector<16x1xf32>
    %361 = vector.broadcast %351 : vector<16x1xf32> to vector<16x64xf32>
    %362 = arith.subf %345, %361 : vector<16x64xf32>
    %cst_149 = arith.constant 9.99999974E-6 : f32
    %363 = vector.broadcast %cst_149 : f32 to vector<16x1xf32>
    %364 = arith.addf %360, %363 : vector<16x1xf32>
    %365 = math.rsqrt %364 : vector<16x1xf32>
    %366 = vector.broadcast %365 : vector<16x1xf32> to vector<16x64xf32>
    %367 = arith.mulf %362, %366 : vector<16x64xf32>
    %368 = vector.broadcast %346 : vector<1x64xf32> to vector<16x64xf32>
    %369 = arith.mulf %367, %368 : vector<16x64xf32>
    %370 = vector.broadcast %347 : vector<1x64xf32> to vector<16x64xf32>
    %371 = arith.addf %369, %370 : vector<16x64xf32>
    %372 = arith.truncf %371 : vector<16x64xf32> to vector<16x64xbf16>
    %c0_150 = arith.constant 0 : index
    %c0_151 = arith.constant 0 : index
    %373 = vector.load %arg40[%c0_150, %c0_151] : memref<64x192xbf16, #tpu.memory_space<vmem>>, vector<64x192xbf16>
    %cst_152 = arith.constant dense<0.000000e+00> : vector<16x192xf32>
    %374 = tpu.matmul %372, %373, %cst_152 {dimension_numbers = #tpu.dot_dimension_numbers<[1], [0], [0], [1], [0, 0, 1, 1], [], []>} : vector<16x64xbf16>, vector<64x192xbf16>, vector<16x192xf32> -> vector<16x192xf32>
    %c0_153 = arith.constant 0 : index
    %c0_154 = arith.constant 0 : index
    %375 = vector.load %arg41[%c0_153, %c0_154] : memref<1x192xf32, #tpu.memory_space<vmem>>, vector<1x192xf32>
    %376 = vector.broadcast %375 : vector<1x192xf32> to vector<16x192xf32>
    %377 = arith.addf %374, %376 : vector<16x192xf32>
    %378 = vector.extract_strided_slice %377 {offsets = [0, 0], sizes = [16, 16], strides = [1, 1]} : vector<16x192xf32> to vector<16x16xf32>
    %379 = arith.truncf %378 : vector<16x16xf32> to vector<16x16xbf16>
    %380 = vector.extract_strided_slice %377 {offsets = [0, 64], sizes = [16, 16], strides = [1, 1]} : vector<16x192xf32> to vector<16x16xf32>
    %381 = arith.truncf %380 : vector<16x16xf32> to vector<16x16xbf16>
    %382 = vector.extract_strided_slice %377 {offsets = [0, 128], sizes = [16, 16], strides = [1, 1]} : vector<16x192xf32> to vector<16x16xf32>
    %383 = arith.truncf %382 : vector<16x16xf32> to vector<16x16xbf16>
    %cst_155 = arith.constant dense<0.000000e+00> : vector<16x16xf32>
    %384 = tpu.matmul %379, %381, %cst_155 {dimension_numbers = #tpu.dot_dimension_numbers<[1], [1], [0], [0], [0, 0, 1, 0], [], []>} : vector<16x16xbf16>, vector<16x16xbf16>, vector<16x16xf32> -> vector<16x16xf32>
    %c0_156 = arith.constant 0 : index
    %c0_157 = arith.constant 0 : index
    %c0_158 = arith.constant 0 : index
    %385 = vector.load %arg36[%c0_156, %c0_157, %c0_158] : memref<4x16x16xbf16, #tpu.memory_space<vmem>>, vector<1x16x16xbf16>
    %386 = vector.shape_cast %385 : vector<1x16x16xbf16> to vector<16x16xbf16>
    %387 = arith.extf %386 : vector<16x16xbf16> to vector<16x16xf32>
    %388 = arith.addf %384, %387 : vector<16x16xf32>
    %cst_159 = arith.constant dense<0xFF800000> : vector<16xf32>
    %389 = vector.multi_reduction <maximumf>, %388, %cst_159 [1] : vector<16x16xf32> to vector<16xf32>
    %390 = vector.shape_cast %389 : vector<16xf32> to vector<16x1xf32>
    %391 = vector.broadcast %390 : vector<16x1xf32> to vector<16x16xf32>
    %392 = arith.subf %388, %391 : vector<16x16xf32>
    %393 = math.exp %392 : vector<16x16xf32>
    %cst_160 = arith.constant dense<0.000000e+00> : vector<16xf32>
    %394 = vector.multi_reduction <add>, %393, %cst_160 [1] : vector<16x16xf32> to vector<16xf32>
    %395 = vector.shape_cast %394 : vector<16xf32> to vector<16x1xf32>
    %396 = tpu.reciprocal %395 {approx = true} : vector<16x1xf32> -> vector<16x1xf32>
    %397 = vector.broadcast %396 : vector<16x1xf32> to vector<16x16xf32>
    %398 = arith.mulf %393, %397 : vector<16x16xf32>
    %399 = arith.truncf %398 : vector<16x16xf32> to vector<16x16xbf16>
    %cst_161 = arith.constant dense<0.000000e+00> : vector<16x16xf32>
    %400 = tpu.matmul %399, %383, %cst_161 {dimension_numbers = #tpu.dot_dimension_numbers<[1], [0], [0], [1], [0, 0, 1, 1], [], []>} : vector<16x16xbf16>, vector<16x16xbf16>, vector<16x16xf32> -> vector<16x16xf32>
    %401 = vector.extract_strided_slice %377 {offsets = [0, 16], sizes = [16, 16], strides = [1, 1]} : vector<16x192xf32> to vector<16x16xf32>
    %402 = arith.truncf %401 : vector<16x16xf32> to vector<16x16xbf16>
    %403 = vector.extract_strided_slice %377 {offsets = [0, 80], sizes = [16, 16], strides = [1, 1]} : vector<16x192xf32> to vector<16x16xf32>
    %404 = arith.truncf %403 : vector<16x16xf32> to vector<16x16xbf16>
    %405 = vector.extract_strided_slice %377 {offsets = [0, 144], sizes = [16, 16], strides = [1, 1]} : vector<16x192xf32> to vector<16x16xf32>
    %406 = arith.truncf %405 : vector<16x16xf32> to vector<16x16xbf16>
    %cst_162 = arith.constant dense<0.000000e+00> : vector<16x16xf32>
    %407 = tpu.matmul %402, %404, %cst_162 {dimension_numbers = #tpu.dot_dimension_numbers<[1], [1], [0], [0], [0, 0, 1, 0], [], []>} : vector<16x16xbf16>, vector<16x16xbf16>, vector<16x16xf32> -> vector<16x16xf32>
    %c1_163 = arith.constant 1 : index
    %c0_164 = arith.constant 0 : index
    %c0_165 = arith.constant 0 : index
    %408 = vector.load %arg36[%c1_163, %c0_164, %c0_165] : memref<4x16x16xbf16, #tpu.memory_space<vmem>>, vector<1x16x16xbf16>
    %409 = vector.shape_cast %408 : vector<1x16x16xbf16> to vector<16x16xbf16>
    %410 = arith.extf %409 : vector<16x16xbf16> to vector<16x16xf32>
    %411 = arith.addf %407, %410 : vector<16x16xf32>
    %cst_166 = arith.constant dense<0xFF800000> : vector<16xf32>
    %412 = vector.multi_reduction <maximumf>, %411, %cst_166 [1] : vector<16x16xf32> to vector<16xf32>
    %413 = vector.shape_cast %412 : vector<16xf32> to vector<16x1xf32>
    %414 = vector.broadcast %413 : vector<16x1xf32> to vector<16x16xf32>
    %415 = arith.subf %411, %414 : vector<16x16xf32>
    %416 = math.exp %415 : vector<16x16xf32>
    %cst_167 = arith.constant dense<0.000000e+00> : vector<16xf32>
    %417 = vector.multi_reduction <add>, %416, %cst_167 [1] : vector<16x16xf32> to vector<16xf32>
    %418 = vector.shape_cast %417 : vector<16xf32> to vector<16x1xf32>
    %419 = tpu.reciprocal %418 {approx = true} : vector<16x1xf32> -> vector<16x1xf32>
    %420 = vector.broadcast %419 : vector<16x1xf32> to vector<16x16xf32>
    %421 = arith.mulf %416, %420 : vector<16x16xf32>
    %422 = arith.truncf %421 : vector<16x16xf32> to vector<16x16xbf16>
    %cst_168 = arith.constant dense<0.000000e+00> : vector<16x16xf32>
    %423 = tpu.matmul %422, %406, %cst_168 {dimension_numbers = #tpu.dot_dimension_numbers<[1], [0], [0], [1], [0, 0, 1, 1], [], []>} : vector<16x16xbf16>, vector<16x16xbf16>, vector<16x16xf32> -> vector<16x16xf32>
    %424 = vector.extract_strided_slice %377 {offsets = [0, 32], sizes = [16, 16], strides = [1, 1]} : vector<16x192xf32> to vector<16x16xf32>
    %425 = arith.truncf %424 : vector<16x16xf32> to vector<16x16xbf16>
    %426 = vector.extract_strided_slice %377 {offsets = [0, 96], sizes = [16, 16], strides = [1, 1]} : vector<16x192xf32> to vector<16x16xf32>
    %427 = arith.truncf %426 : vector<16x16xf32> to vector<16x16xbf16>
    %428 = vector.extract_strided_slice %377 {offsets = [0, 160], sizes = [16, 16], strides = [1, 1]} : vector<16x192xf32> to vector<16x16xf32>
    %429 = arith.truncf %428 : vector<16x16xf32> to vector<16x16xbf16>
    %cst_169 = arith.constant dense<0.000000e+00> : vector<16x16xf32>
    %430 = tpu.matmul %425, %427, %cst_169 {dimension_numbers = #tpu.dot_dimension_numbers<[1], [1], [0], [0], [0, 0, 1, 0], [], []>} : vector<16x16xbf16>, vector<16x16xbf16>, vector<16x16xf32> -> vector<16x16xf32>
    %c2 = arith.constant 2 : index
    %c0_170 = arith.constant 0 : index
    %c0_171 = arith.constant 0 : index
    %431 = vector.load %arg36[%c2, %c0_170, %c0_171] : memref<4x16x16xbf16, #tpu.memory_space<vmem>>, vector<1x16x16xbf16>
    %432 = vector.shape_cast %431 : vector<1x16x16xbf16> to vector<16x16xbf16>
    %433 = arith.extf %432 : vector<16x16xbf16> to vector<16x16xf32>
    %434 = arith.addf %430, %433 : vector<16x16xf32>
    %cst_172 = arith.constant dense<0xFF800000> : vector<16xf32>
    %435 = vector.multi_reduction <maximumf>, %434, %cst_172 [1] : vector<16x16xf32> to vector<16xf32>
    %436 = vector.shape_cast %435 : vector<16xf32> to vector<16x1xf32>
    %437 = vector.broadcast %436 : vector<16x1xf32> to vector<16x16xf32>
    %438 = arith.subf %434, %437 : vector<16x16xf32>
    %439 = math.exp %438 : vector<16x16xf32>
    %cst_173 = arith.constant dense<0.000000e+00> : vector<16xf32>
    %440 = vector.multi_reduction <add>, %439, %cst_173 [1] : vector<16x16xf32> to vector<16xf32>
    %441 = vector.shape_cast %440 : vector<16xf32> to vector<16x1xf32>
    %442 = tpu.reciprocal %441 {approx = true} : vector<16x1xf32> -> vector<16x1xf32>
    %443 = vector.broadcast %442 : vector<16x1xf32> to vector<16x16xf32>
    %444 = arith.mulf %439, %443 : vector<16x16xf32>
    %445 = arith.truncf %444 : vector<16x16xf32> to vector<16x16xbf16>
    %cst_174 = arith.constant dense<0.000000e+00> : vector<16x16xf32>
    %446 = tpu.matmul %445, %429, %cst_174 {dimension_numbers = #tpu.dot_dimension_numbers<[1], [0], [0], [1], [0, 0, 1, 1], [], []>} : vector<16x16xbf16>, vector<16x16xbf16>, vector<16x16xf32> -> vector<16x16xf32>
    %447 = vector.extract_strided_slice %377 {offsets = [0, 48], sizes = [16, 16], strides = [1, 1]} : vector<16x192xf32> to vector<16x16xf32>
    %448 = arith.truncf %447 : vector<16x16xf32> to vector<16x16xbf16>
    %449 = vector.extract_strided_slice %377 {offsets = [0, 112], sizes = [16, 16], strides = [1, 1]} : vector<16x192xf32> to vector<16x16xf32>
    %450 = arith.truncf %449 : vector<16x16xf32> to vector<16x16xbf16>
    %451 = vector.extract_strided_slice %377 {offsets = [0, 176], sizes = [16, 16], strides = [1, 1]} : vector<16x192xf32> to vector<16x16xf32>
    %452 = arith.truncf %451 : vector<16x16xf32> to vector<16x16xbf16>
    %cst_175 = arith.constant dense<0.000000e+00> : vector<16x16xf32>
    %453 = tpu.matmul %448, %450, %cst_175 {dimension_numbers = #tpu.dot_dimension_numbers<[1], [1], [0], [0], [0, 0, 1, 0], [], []>} : vector<16x16xbf16>, vector<16x16xbf16>, vector<16x16xf32> -> vector<16x16xf32>
    %c3 = arith.constant 3 : index
    %c0_176 = arith.constant 0 : index
    %c0_177 = arith.constant 0 : index
    %454 = vector.load %arg36[%c3, %c0_176, %c0_177] : memref<4x16x16xbf16, #tpu.memory_space<vmem>>, vector<1x16x16xbf16>
    %455 = vector.shape_cast %454 : vector<1x16x16xbf16> to vector<16x16xbf16>
    %456 = arith.extf %455 : vector<16x16xbf16> to vector<16x16xf32>
    %457 = arith.addf %453, %456 : vector<16x16xf32>
    %cst_178 = arith.constant dense<0xFF800000> : vector<16xf32>
    %458 = vector.multi_reduction <maximumf>, %457, %cst_178 [1] : vector<16x16xf32> to vector<16xf32>
    %459 = vector.shape_cast %458 : vector<16xf32> to vector<16x1xf32>
    %460 = vector.broadcast %459 : vector<16x1xf32> to vector<16x16xf32>
    %461 = arith.subf %457, %460 : vector<16x16xf32>
    %462 = math.exp %461 : vector<16x16xf32>
    %cst_179 = arith.constant dense<0.000000e+00> : vector<16xf32>
    %463 = vector.multi_reduction <add>, %462, %cst_179 [1] : vector<16x16xf32> to vector<16xf32>
    %464 = vector.shape_cast %463 : vector<16xf32> to vector<16x1xf32>
    %465 = tpu.reciprocal %464 {approx = true} : vector<16x1xf32> -> vector<16x1xf32>
    %466 = vector.broadcast %465 : vector<16x1xf32> to vector<16x16xf32>
    %467 = arith.mulf %462, %466 : vector<16x16xf32>
    %468 = arith.truncf %467 : vector<16x16xf32> to vector<16x16xbf16>
    %cst_180 = arith.constant dense<0.000000e+00> : vector<16x16xf32>
    %469 = tpu.matmul %468, %452, %cst_180 {dimension_numbers = #tpu.dot_dimension_numbers<[1], [0], [0], [1], [0, 0, 1, 1], [], []>} : vector<16x16xbf16>, vector<16x16xbf16>, vector<16x16xf32> -> vector<16x16xf32>
    %470 = tpu.concatenate %400, %423, %446, %469 in 1 : vector<16x16xf32>, vector<16x16xf32>, vector<16x16xf32>, vector<16x16xf32> -> vector<16x64xf32>
    %471 = arith.truncf %470 : vector<16x64xf32> to vector<16x64xbf16>
    %c0_181 = arith.constant 0 : index
    %c0_182 = arith.constant 0 : index
    %472 = vector.load %arg42[%c0_181, %c0_182] : memref<64x64xbf16, #tpu.memory_space<vmem>>, vector<64x64xbf16>
    %cst_183 = arith.constant dense<0.000000e+00> : vector<16x64xf32>
    %473 = tpu.matmul %471, %472, %cst_183 {dimension_numbers = #tpu.dot_dimension_numbers<[1], [0], [0], [1], [0, 0, 1, 1], [], []>} : vector<16x64xbf16>, vector<64x64xbf16>, vector<16x64xf32> -> vector<16x64xf32>
    %474 = arith.addf %345, %473 : vector<16x64xf32>
    %c0_184 = arith.constant 0 : index
    %c0_185 = arith.constant 0 : index
    %475 = vector.load %arg43[%c0_184, %c0_185] : memref<1x64xf32, #tpu.memory_space<vmem>>, vector<1x64xf32>
    %476 = vector.broadcast %475 : vector<1x64xf32> to vector<16x64xf32>
    %477 = arith.addf %474, %476 : vector<16x64xf32>
    %c0_186 = arith.constant 0 : index
    %c0_187 = arith.constant 0 : index
    %478 = vector.load %arg44[%c0_186, %c0_187] : memref<1x64xf32, #tpu.memory_space<vmem>>, vector<1x64xf32>
    %c0_188 = arith.constant 0 : index
    %c0_189 = arith.constant 0 : index
    %479 = vector.load %arg45[%c0_188, %c0_189] : memref<1x64xf32, #tpu.memory_space<vmem>>, vector<1x64xf32>
    %cst_190 = arith.constant dense<0.000000e+00> : vector<16xf32>
    %480 = vector.multi_reduction <add>, %477, %cst_190 [1] : vector<16x64xf32> to vector<16xf32>
    %481 = vector.shape_cast %480 : vector<16xf32> to vector<16x1xf32>
    %cst_191 = arith.constant 6.400000e+01 : f32
    %482 = vector.broadcast %cst_191 : f32 to vector<16x1xf32>
    %483 = arith.divf %481, %482 : vector<16x1xf32>
    %484 = vector.broadcast %483 : vector<16x1xf32> to vector<16x64xf32>
    %485 = arith.subf %477, %484 : vector<16x64xf32>
    %486 = vector.broadcast %483 : vector<16x1xf32> to vector<16x64xf32>
    %487 = arith.subf %477, %486 : vector<16x64xf32>
    %488 = arith.mulf %485, %487 : vector<16x64xf32>
    %cst_192 = arith.constant dense<0.000000e+00> : vector<16xf32>
    %489 = vector.multi_reduction <add>, %488, %cst_192 [1] : vector<16x64xf32> to vector<16xf32>
    %490 = vector.shape_cast %489 : vector<16xf32> to vector<16x1xf32>
    %cst_193 = arith.constant 6.400000e+01 : f32
    %491 = vector.broadcast %cst_193 : f32 to vector<16x1xf32>
    %492 = arith.divf %490, %491 : vector<16x1xf32>
    %493 = vector.broadcast %483 : vector<16x1xf32> to vector<16x64xf32>
    %494 = arith.subf %477, %493 : vector<16x64xf32>
    %cst_194 = arith.constant 9.99999974E-6 : f32
    %495 = vector.broadcast %cst_194 : f32 to vector<16x1xf32>
    %496 = arith.addf %492, %495 : vector<16x1xf32>
    %497 = math.rsqrt %496 : vector<16x1xf32>
    %498 = vector.broadcast %497 : vector<16x1xf32> to vector<16x64xf32>
    %499 = arith.mulf %494, %498 : vector<16x64xf32>
    %500 = vector.broadcast %478 : vector<1x64xf32> to vector<16x64xf32>
    %501 = arith.mulf %499, %500 : vector<16x64xf32>
    %502 = vector.broadcast %479 : vector<1x64xf32> to vector<16x64xf32>
    %503 = arith.addf %501, %502 : vector<16x64xf32>
    %504 = arith.truncf %503 : vector<16x64xf32> to vector<16x64xbf16>
    %c0_195 = arith.constant 0 : index
    %c0_196 = arith.constant 0 : index
    %505 = vector.load %arg46[%c0_195, %c0_196] : memref<64x256xbf16, #tpu.memory_space<vmem>>, vector<64x256xbf16>
    %cst_197 = arith.constant dense<0.000000e+00> : vector<16x256xf32>
    %506 = tpu.matmul %504, %505, %cst_197 {dimension_numbers = #tpu.dot_dimension_numbers<[1], [0], [0], [1], [0, 0, 1, 1], [], []>} : vector<16x64xbf16>, vector<64x256xbf16>, vector<16x256xf32> -> vector<16x256xf32>
    %c0_198 = arith.constant 0 : index
    %c0_199 = arith.constant 0 : index
    %507 = vector.load %arg47[%c0_198, %c0_199] : memref<1x256xf32, #tpu.memory_space<vmem>>, vector<1x256xf32>
    %508 = vector.broadcast %507 : vector<1x256xf32> to vector<16x256xf32>
    %509 = arith.addf %506, %508 : vector<16x256xf32>
    %cst_200 = arith.constant 5.000000e-01 : f32
    %510 = vector.broadcast %cst_200 : f32 to vector<16x256xf32>
    %511 = arith.mulf %510, %509 : vector<16x256xf32>
    %cst_201 = arith.constant 4.471500e-02 : f32
    %512 = vector.broadcast %cst_201 : f32 to vector<16x256xf32>
    %513 = arith.mulf %512, %509 : vector<16x256xf32>
    %514 = arith.mulf %513, %509 : vector<16x256xf32>
    %515 = arith.mulf %514, %509 : vector<16x256xf32>
    %516 = arith.addf %509, %515 : vector<16x256xf32>
    %cst_202 = arith.constant 0.797884583 : f32
    %517 = vector.broadcast %cst_202 : f32 to vector<16x256xf32>
    %518 = arith.mulf %517, %516 : vector<16x256xf32>
    %519 = math.tanh %518 : vector<16x256xf32>
    %cst_203 = arith.constant 1.000000e+00 : f32
    %520 = vector.broadcast %cst_203 : f32 to vector<16x256xf32>
    %521 = arith.addf %520, %519 : vector<16x256xf32>
    %522 = arith.mulf %511, %521 : vector<16x256xf32>
    %523 = arith.truncf %522 : vector<16x256xf32> to vector<16x256xbf16>
    %c0_204 = arith.constant 0 : index
    %c0_205 = arith.constant 0 : index
    %524 = vector.load %arg48[%c0_204, %c0_205] : memref<256x64xbf16, #tpu.memory_space<vmem>>, vector<256x64xbf16>
    %cst_206 = arith.constant dense<0.000000e+00> : vector<16x64xf32>
    %525 = tpu.matmul %523, %524, %cst_206 {dimension_numbers = #tpu.dot_dimension_numbers<[1], [0], [0], [1], [0, 0, 1, 1], [], []>} : vector<16x256xbf16>, vector<256x64xbf16>, vector<16x64xf32> -> vector<16x64xf32>
    %c0_207 = arith.constant 0 : index
    %c0_208 = arith.constant 0 : index
    %526 = vector.load %arg49[%c0_207, %c0_208] : memref<1x64xf32, #tpu.memory_space<vmem>>, vector<1x64xf32>
    %527 = vector.broadcast %526 : vector<1x64xf32> to vector<16x64xf32>
    %528 = arith.addf %525, %527 : vector<16x64xf32>
    %529 = arith.addf %477, %528 : vector<16x64xf32>
    %c0_209 = arith.constant 0 : index
    %c0_210 = arith.constant 0 : index
    %530 = vector.load %arg50[%c0_209, %c0_210] : memref<1x64xf32, #tpu.memory_space<vmem>>, vector<1x64xf32>
    %c0_211 = arith.constant 0 : index
    %c0_212 = arith.constant 0 : index
    %531 = vector.load %arg51[%c0_211, %c0_212] : memref<1x64xf32, #tpu.memory_space<vmem>>, vector<1x64xf32>
    %cst_213 = arith.constant dense<0.000000e+00> : vector<16xf32>
    %532 = vector.multi_reduction <add>, %529, %cst_213 [1] : vector<16x64xf32> to vector<16xf32>
    %533 = vector.shape_cast %532 : vector<16xf32> to vector<16x1xf32>
    %cst_214 = arith.constant 6.400000e+01 : f32
    %534 = vector.broadcast %cst_214 : f32 to vector<16x1xf32>
    %535 = arith.divf %533, %534 : vector<16x1xf32>
    %536 = vector.broadcast %535 : vector<16x1xf32> to vector<16x64xf32>
    %537 = arith.subf %529, %536 : vector<16x64xf32>
    %538 = vector.broadcast %535 : vector<16x1xf32> to vector<16x64xf32>
    %539 = arith.subf %529, %538 : vector<16x64xf32>
    %540 = arith.mulf %537, %539 : vector<16x64xf32>
    %cst_215 = arith.constant dense<0.000000e+00> : vector<16xf32>
    %541 = vector.multi_reduction <add>, %540, %cst_215 [1] : vector<16x64xf32> to vector<16xf32>
    %542 = vector.shape_cast %541 : vector<16xf32> to vector<16x1xf32>
    %cst_216 = arith.constant 6.400000e+01 : f32
    %543 = vector.broadcast %cst_216 : f32 to vector<16x1xf32>
    %544 = arith.divf %542, %543 : vector<16x1xf32>
    %545 = vector.broadcast %535 : vector<16x1xf32> to vector<16x64xf32>
    %546 = arith.subf %529, %545 : vector<16x64xf32>
    %cst_217 = arith.constant 9.99999974E-6 : f32
    %547 = vector.broadcast %cst_217 : f32 to vector<16x1xf32>
    %548 = arith.addf %544, %547 : vector<16x1xf32>
    %549 = math.rsqrt %548 : vector<16x1xf32>
    %550 = vector.broadcast %549 : vector<16x1xf32> to vector<16x64xf32>
    %551 = arith.mulf %546, %550 : vector<16x64xf32>
    %552 = vector.broadcast %530 : vector<1x64xf32> to vector<16x64xf32>
    %553 = arith.mulf %551, %552 : vector<16x64xf32>
    %554 = vector.broadcast %531 : vector<1x64xf32> to vector<16x64xf32>
    %555 = arith.addf %553, %554 : vector<16x64xf32>
    %556 = arith.truncf %555 : vector<16x64xf32> to vector<16x64xbf16>
    %c0_218 = arith.constant 0 : index
    %c0_219 = arith.constant 0 : index
    %557 = vector.load %arg52[%c0_218, %c0_219] : memref<64x192xbf16, #tpu.memory_space<vmem>>, vector<64x192xbf16>
    %cst_220 = arith.constant dense<0.000000e+00> : vector<16x192xf32>
    %558 = tpu.matmul %556, %557, %cst_220 {dimension_numbers = #tpu.dot_dimension_numbers<[1], [0], [0], [1], [0, 0, 1, 1], [], []>} : vector<16x64xbf16>, vector<64x192xbf16>, vector<16x192xf32> -> vector<16x192xf32>
    %c0_221 = arith.constant 0 : index
    %c0_222 = arith.constant 0 : index
    %559 = vector.load %arg53[%c0_221, %c0_222] : memref<1x192xf32, #tpu.memory_space<vmem>>, vector<1x192xf32>
    %560 = vector.broadcast %559 : vector<1x192xf32> to vector<16x192xf32>
    %561 = arith.addf %558, %560 : vector<16x192xf32>
    %562 = vector.extract_strided_slice %561 {offsets = [0, 0], sizes = [16, 16], strides = [1, 1]} : vector<16x192xf32> to vector<16x16xf32>
    %563 = arith.truncf %562 : vector<16x16xf32> to vector<16x16xbf16>
    %564 = vector.extract_strided_slice %561 {offsets = [0, 64], sizes = [16, 16], strides = [1, 1]} : vector<16x192xf32> to vector<16x16xf32>
    %565 = arith.truncf %564 : vector<16x16xf32> to vector<16x16xbf16>
    %566 = vector.extract_strided_slice %561 {offsets = [0, 128], sizes = [16, 16], strides = [1, 1]} : vector<16x192xf32> to vector<16x16xf32>
    %567 = arith.truncf %566 : vector<16x16xf32> to vector<16x16xbf16>
    %cst_223 = arith.constant dense<0.000000e+00> : vector<16x16xf32>
    %568 = tpu.matmul %563, %565, %cst_223 {dimension_numbers = #tpu.dot_dimension_numbers<[1], [1], [0], [0], [0, 0, 1, 0], [], []>} : vector<16x16xbf16>, vector<16x16xbf16>, vector<16x16xf32> -> vector<16x16xf32>
    %c0_224 = arith.constant 0 : index
    %c0_225 = arith.constant 0 : index
    %c0_226 = arith.constant 0 : index
    %569 = vector.load %arg37[%c0_224, %c0_225, %c0_226] : memref<4x16x16xbf16, #tpu.memory_space<vmem>>, vector<1x16x16xbf16>
    %570 = vector.shape_cast %569 : vector<1x16x16xbf16> to vector<16x16xbf16>
    %571 = arith.extf %570 : vector<16x16xbf16> to vector<16x16xf32>
    %572 = arith.addf %568, %571 : vector<16x16xf32>
    %cst_227 = arith.constant dense<0xFF800000> : vector<16xf32>
    %573 = vector.multi_reduction <maximumf>, %572, %cst_227 [1] : vector<16x16xf32> to vector<16xf32>
    %574 = vector.shape_cast %573 : vector<16xf32> to vector<16x1xf32>
    %575 = vector.broadcast %574 : vector<16x1xf32> to vector<16x16xf32>
    %576 = arith.subf %572, %575 : vector<16x16xf32>
    %577 = math.exp %576 : vector<16x16xf32>
    %cst_228 = arith.constant dense<0.000000e+00> : vector<16xf32>
    %578 = vector.multi_reduction <add>, %577, %cst_228 [1] : vector<16x16xf32> to vector<16xf32>
    %579 = vector.shape_cast %578 : vector<16xf32> to vector<16x1xf32>
    %580 = tpu.reciprocal %579 {approx = true} : vector<16x1xf32> -> vector<16x1xf32>
    %581 = vector.broadcast %580 : vector<16x1xf32> to vector<16x16xf32>
    %582 = arith.mulf %577, %581 : vector<16x16xf32>
    %583 = arith.truncf %582 : vector<16x16xf32> to vector<16x16xbf16>
    %cst_229 = arith.constant dense<0.000000e+00> : vector<16x16xf32>
    %584 = tpu.matmul %583, %567, %cst_229 {dimension_numbers = #tpu.dot_dimension_numbers<[1], [0], [0], [1], [0, 0, 1, 1], [], []>} : vector<16x16xbf16>, vector<16x16xbf16>, vector<16x16xf32> -> vector<16x16xf32>
    %585 = vector.extract_strided_slice %561 {offsets = [0, 16], sizes = [16, 16], strides = [1, 1]} : vector<16x192xf32> to vector<16x16xf32>
    %586 = arith.truncf %585 : vector<16x16xf32> to vector<16x16xbf16>
    %587 = vector.extract_strided_slice %561 {offsets = [0, 80], sizes = [16, 16], strides = [1, 1]} : vector<16x192xf32> to vector<16x16xf32>
    %588 = arith.truncf %587 : vector<16x16xf32> to vector<16x16xbf16>
    %589 = vector.extract_strided_slice %561 {offsets = [0, 144], sizes = [16, 16], strides = [1, 1]} : vector<16x192xf32> to vector<16x16xf32>
    %590 = arith.truncf %589 : vector<16x16xf32> to vector<16x16xbf16>
    %cst_230 = arith.constant dense<0.000000e+00> : vector<16x16xf32>
    %591 = tpu.matmul %586, %588, %cst_230 {dimension_numbers = #tpu.dot_dimension_numbers<[1], [1], [0], [0], [0, 0, 1, 0], [], []>} : vector<16x16xbf16>, vector<16x16xbf16>, vector<16x16xf32> -> vector<16x16xf32>
    %c1_231 = arith.constant 1 : index
    %c0_232 = arith.constant 0 : index
    %c0_233 = arith.constant 0 : index
    %592 = vector.load %arg37[%c1_231, %c0_232, %c0_233] : memref<4x16x16xbf16, #tpu.memory_space<vmem>>, vector<1x16x16xbf16>
    %593 = vector.shape_cast %592 : vector<1x16x16xbf16> to vector<16x16xbf16>
    %594 = arith.extf %593 : vector<16x16xbf16> to vector<16x16xf32>
    %595 = arith.addf %591, %594 : vector<16x16xf32>
    %cst_234 = arith.constant dense<0xFF800000> : vector<16xf32>
    %596 = vector.multi_reduction <maximumf>, %595, %cst_234 [1] : vector<16x16xf32> to vector<16xf32>
    %597 = vector.shape_cast %596 : vector<16xf32> to vector<16x1xf32>
    %598 = vector.broadcast %597 : vector<16x1xf32> to vector<16x16xf32>
    %599 = arith.subf %595, %598 : vector<16x16xf32>
    %600 = math.exp %599 : vector<16x16xf32>
    %cst_235 = arith.constant dense<0.000000e+00> : vector<16xf32>
    %601 = vector.multi_reduction <add>, %600, %cst_235 [1] : vector<16x16xf32> to vector<16xf32>
    %602 = vector.shape_cast %601 : vector<16xf32> to vector<16x1xf32>
    %603 = tpu.reciprocal %602 {approx = true} : vector<16x1xf32> -> vector<16x1xf32>
    %604 = vector.broadcast %603 : vector<16x1xf32> to vector<16x16xf32>
    %605 = arith.mulf %600, %604 : vector<16x16xf32>
    %606 = arith.truncf %605 : vector<16x16xf32> to vector<16x16xbf16>
    %cst_236 = arith.constant dense<0.000000e+00> : vector<16x16xf32>
    %607 = tpu.matmul %606, %590, %cst_236 {dimension_numbers = #tpu.dot_dimension_numbers<[1], [0], [0], [1], [0, 0, 1, 1], [], []>} : vector<16x16xbf16>, vector<16x16xbf16>, vector<16x16xf32> -> vector<16x16xf32>
    %608 = vector.extract_strided_slice %561 {offsets = [0, 32], sizes = [16, 16], strides = [1, 1]} : vector<16x192xf32> to vector<16x16xf32>
    %609 = arith.truncf %608 : vector<16x16xf32> to vector<16x16xbf16>
    %610 = vector.extract_strided_slice %561 {offsets = [0, 96], sizes = [16, 16], strides = [1, 1]} : vector<16x192xf32> to vector<16x16xf32>
    %611 = arith.truncf %610 : vector<16x16xf32> to vector<16x16xbf16>
    %612 = vector.extract_strided_slice %561 {offsets = [0, 160], sizes = [16, 16], strides = [1, 1]} : vector<16x192xf32> to vector<16x16xf32>
    %613 = arith.truncf %612 : vector<16x16xf32> to vector<16x16xbf16>
    %cst_237 = arith.constant dense<0.000000e+00> : vector<16x16xf32>
    %614 = tpu.matmul %609, %611, %cst_237 {dimension_numbers = #tpu.dot_dimension_numbers<[1], [1], [0], [0], [0, 0, 1, 0], [], []>} : vector<16x16xbf16>, vector<16x16xbf16>, vector<16x16xf32> -> vector<16x16xf32>
    %c2_238 = arith.constant 2 : index
    %c0_239 = arith.constant 0 : index
    %c0_240 = arith.constant 0 : index
    %615 = vector.load %arg37[%c2_238, %c0_239, %c0_240] : memref<4x16x16xbf16, #tpu.memory_space<vmem>>, vector<1x16x16xbf16>
    %616 = vector.shape_cast %615 : vector<1x16x16xbf16> to vector<16x16xbf16>
    %617 = arith.extf %616 : vector<16x16xbf16> to vector<16x16xf32>
    %618 = arith.addf %614, %617 : vector<16x16xf32>
    %cst_241 = arith.constant dense<0xFF800000> : vector<16xf32>
    %619 = vector.multi_reduction <maximumf>, %618, %cst_241 [1] : vector<16x16xf32> to vector<16xf32>
    %620 = vector.shape_cast %619 : vector<16xf32> to vector<16x1xf32>
    %621 = vector.broadcast %620 : vector<16x1xf32> to vector<16x16xf32>
    %622 = arith.subf %618, %621 : vector<16x16xf32>
    %623 = math.exp %622 : vector<16x16xf32>
    %cst_242 = arith.constant dense<0.000000e+00> : vector<16xf32>
    %624 = vector.multi_reduction <add>, %623, %cst_242 [1] : vector<16x16xf32> to vector<16xf32>
    %625 = vector.shape_cast %624 : vector<16xf32> to vector<16x1xf32>
    %626 = tpu.reciprocal %625 {approx = true} : vector<16x1xf32> -> vector<16x1xf32>
    %627 = vector.broadcast %626 : vector<16x1xf32> to vector<16x16xf32>
    %628 = arith.mulf %623, %627 : vector<16x16xf32>
    %629 = arith.truncf %628 : vector<16x16xf32> to vector<16x16xbf16>
    %cst_243 = arith.constant dense<0.000000e+00> : vector<16x16xf32>
    %630 = tpu.matmul %629, %613, %cst_243 {dimension_numbers = #tpu.dot_dimension_numbers<[1], [0], [0], [1], [0, 0, 1, 1], [], []>} : vector<16x16xbf16>, vector<16x16xbf16>, vector<16x16xf32> -> vector<16x16xf32>
    %631 = vector.extract_strided_slice %561 {offsets = [0, 48], sizes = [16, 16], strides = [1, 1]} : vector<16x192xf32> to vector<16x16xf32>
    %632 = arith.truncf %631 : vector<16x16xf32> to vector<16x16xbf16>
    %633 = vector.extract_strided_slice %561 {offsets = [0, 112], sizes = [16, 16], strides = [1, 1]} : vector<16x192xf32> to vector<16x16xf32>
    %634 = arith.truncf %633 : vector<16x16xf32> to vector<16x16xbf16>
    %635 = vector.extract_strided_slice %561 {offsets = [0, 176], sizes = [16, 16], strides = [1, 1]} : vector<16x192xf32> to vector<16x16xf32>
    %636 = arith.truncf %635 : vector<16x16xf32> to vector<16x16xbf16>
    %cst_244 = arith.constant dense<0.000000e+00> : vector<16x16xf32>
    %637 = tpu.matmul %632, %634, %cst_244 {dimension_numbers = #tpu.dot_dimension_numbers<[1], [1], [0], [0], [0, 0, 1, 0], [], []>} : vector<16x16xbf16>, vector<16x16xbf16>, vector<16x16xf32> -> vector<16x16xf32>
    %c3_245 = arith.constant 3 : index
    %c0_246 = arith.constant 0 : index
    %c0_247 = arith.constant 0 : index
    %638 = vector.load %arg37[%c3_245, %c0_246, %c0_247] : memref<4x16x16xbf16, #tpu.memory_space<vmem>>, vector<1x16x16xbf16>
    %639 = vector.shape_cast %638 : vector<1x16x16xbf16> to vector<16x16xbf16>
    %640 = arith.extf %639 : vector<16x16xbf16> to vector<16x16xf32>
    %641 = arith.addf %637, %640 : vector<16x16xf32>
    %cst_248 = arith.constant dense<0xFF800000> : vector<16xf32>
    %642 = vector.multi_reduction <maximumf>, %641, %cst_248 [1] : vector<16x16xf32> to vector<16xf32>
    %643 = vector.shape_cast %642 : vector<16xf32> to vector<16x1xf32>
    %644 = vector.broadcast %643 : vector<16x1xf32> to vector<16x16xf32>
    %645 = arith.subf %641, %644 : vector<16x16xf32>
    %646 = math.exp %645 : vector<16x16xf32>
    %cst_249 = arith.constant dense<0.000000e+00> : vector<16xf32>
    %647 = vector.multi_reduction <add>, %646, %cst_249 [1] : vector<16x16xf32> to vector<16xf32>
    %648 = vector.shape_cast %647 : vector<16xf32> to vector<16x1xf32>
    %649 = tpu.reciprocal %648 {approx = true} : vector<16x1xf32> -> vector<16x1xf32>
    %650 = vector.broadcast %649 : vector<16x1xf32> to vector<16x16xf32>
    %651 = arith.mulf %646, %650 : vector<16x16xf32>
    %652 = arith.truncf %651 : vector<16x16xf32> to vector<16x16xbf16>
    %cst_250 = arith.constant dense<0.000000e+00> : vector<16x16xf32>
    %653 = tpu.matmul %652, %636, %cst_250 {dimension_numbers = #tpu.dot_dimension_numbers<[1], [0], [0], [1], [0, 0, 1, 1], [], []>} : vector<16x16xbf16>, vector<16x16xbf16>, vector<16x16xf32> -> vector<16x16xf32>
    %654 = tpu.concatenate %584, %607, %630, %653 in 1 : vector<16x16xf32>, vector<16x16xf32>, vector<16x16xf32>, vector<16x16xf32> -> vector<16x64xf32>
    %655 = arith.truncf %654 : vector<16x64xf32> to vector<16x64xbf16>
    %c0_251 = arith.constant 0 : index
    %c0_252 = arith.constant 0 : index
    %656 = vector.load %arg54[%c0_251, %c0_252] : memref<64x64xbf16, #tpu.memory_space<vmem>>, vector<64x64xbf16>
    %cst_253 = arith.constant dense<0.000000e+00> : vector<16x64xf32>
    %657 = tpu.matmul %655, %656, %cst_253 {dimension_numbers = #tpu.dot_dimension_numbers<[1], [0], [0], [1], [0, 0, 1, 1], [], []>} : vector<16x64xbf16>, vector<64x64xbf16>, vector<16x64xf32> -> vector<16x64xf32>
    %658 = arith.addf %529, %657 : vector<16x64xf32>
    %c0_254 = arith.constant 0 : index
    %c0_255 = arith.constant 0 : index
    %659 = vector.load %arg55[%c0_254, %c0_255] : memref<1x64xf32, #tpu.memory_space<vmem>>, vector<1x64xf32>
    %660 = vector.broadcast %659 : vector<1x64xf32> to vector<16x64xf32>
    %661 = arith.addf %658, %660 : vector<16x64xf32>
    %c0_256 = arith.constant 0 : index
    %c0_257 = arith.constant 0 : index
    %662 = vector.load %arg56[%c0_256, %c0_257] : memref<1x64xf32, #tpu.memory_space<vmem>>, vector<1x64xf32>
    %c0_258 = arith.constant 0 : index
    %c0_259 = arith.constant 0 : index
    %663 = vector.load %arg57[%c0_258, %c0_259] : memref<1x64xf32, #tpu.memory_space<vmem>>, vector<1x64xf32>
    %cst_260 = arith.constant dense<0.000000e+00> : vector<16xf32>
    %664 = vector.multi_reduction <add>, %661, %cst_260 [1] : vector<16x64xf32> to vector<16xf32>
    %665 = vector.shape_cast %664 : vector<16xf32> to vector<16x1xf32>
    %cst_261 = arith.constant 6.400000e+01 : f32
    %666 = vector.broadcast %cst_261 : f32 to vector<16x1xf32>
    %667 = arith.divf %665, %666 : vector<16x1xf32>
    %668 = vector.broadcast %667 : vector<16x1xf32> to vector<16x64xf32>
    %669 = arith.subf %661, %668 : vector<16x64xf32>
    %670 = vector.broadcast %667 : vector<16x1xf32> to vector<16x64xf32>
    %671 = arith.subf %661, %670 : vector<16x64xf32>
    %672 = arith.mulf %669, %671 : vector<16x64xf32>
    %cst_262 = arith.constant dense<0.000000e+00> : vector<16xf32>
    %673 = vector.multi_reduction <add>, %672, %cst_262 [1] : vector<16x64xf32> to vector<16xf32>
    %674 = vector.shape_cast %673 : vector<16xf32> to vector<16x1xf32>
    %cst_263 = arith.constant 6.400000e+01 : f32
    %675 = vector.broadcast %cst_263 : f32 to vector<16x1xf32>
    %676 = arith.divf %674, %675 : vector<16x1xf32>
    %677 = vector.broadcast %667 : vector<16x1xf32> to vector<16x64xf32>
    %678 = arith.subf %661, %677 : vector<16x64xf32>
    %cst_264 = arith.constant 9.99999974E-6 : f32
    %679 = vector.broadcast %cst_264 : f32 to vector<16x1xf32>
    %680 = arith.addf %676, %679 : vector<16x1xf32>
    %681 = math.rsqrt %680 : vector<16x1xf32>
    %682 = vector.broadcast %681 : vector<16x1xf32> to vector<16x64xf32>
    %683 = arith.mulf %678, %682 : vector<16x64xf32>
    %684 = vector.broadcast %662 : vector<1x64xf32> to vector<16x64xf32>
    %685 = arith.mulf %683, %684 : vector<16x64xf32>
    %686 = vector.broadcast %663 : vector<1x64xf32> to vector<16x64xf32>
    %687 = arith.addf %685, %686 : vector<16x64xf32>
    %688 = arith.truncf %687 : vector<16x64xf32> to vector<16x64xbf16>
    %c0_265 = arith.constant 0 : index
    %c0_266 = arith.constant 0 : index
    %689 = vector.load %arg58[%c0_265, %c0_266] : memref<64x256xbf16, #tpu.memory_space<vmem>>, vector<64x256xbf16>
    %cst_267 = arith.constant dense<0.000000e+00> : vector<16x256xf32>
    %690 = tpu.matmul %688, %689, %cst_267 {dimension_numbers = #tpu.dot_dimension_numbers<[1], [0], [0], [1], [0, 0, 1, 1], [], []>} : vector<16x64xbf16>, vector<64x256xbf16>, vector<16x256xf32> -> vector<16x256xf32>
    %c0_268 = arith.constant 0 : index
    %c0_269 = arith.constant 0 : index
    %691 = vector.load %arg59[%c0_268, %c0_269] : memref<1x256xf32, #tpu.memory_space<vmem>>, vector<1x256xf32>
    %692 = vector.broadcast %691 : vector<1x256xf32> to vector<16x256xf32>
    %693 = arith.addf %690, %692 : vector<16x256xf32>
    %cst_270 = arith.constant 5.000000e-01 : f32
    %694 = vector.broadcast %cst_270 : f32 to vector<16x256xf32>
    %695 = arith.mulf %694, %693 : vector<16x256xf32>
    %cst_271 = arith.constant 4.471500e-02 : f32
    %696 = vector.broadcast %cst_271 : f32 to vector<16x256xf32>
    %697 = arith.mulf %696, %693 : vector<16x256xf32>
    %698 = arith.mulf %697, %693 : vector<16x256xf32>
    %699 = arith.mulf %698, %693 : vector<16x256xf32>
    %700 = arith.addf %693, %699 : vector<16x256xf32>
    %cst_272 = arith.constant 0.797884583 : f32
    %701 = vector.broadcast %cst_272 : f32 to vector<16x256xf32>
    %702 = arith.mulf %701, %700 : vector<16x256xf32>
    %703 = math.tanh %702 : vector<16x256xf32>
    %cst_273 = arith.constant 1.000000e+00 : f32
    %704 = vector.broadcast %cst_273 : f32 to vector<16x256xf32>
    %705 = arith.addf %704, %703 : vector<16x256xf32>
    %706 = arith.mulf %695, %705 : vector<16x256xf32>
    %707 = arith.truncf %706 : vector<16x256xf32> to vector<16x256xbf16>
    %c0_274 = arith.constant 0 : index
    %c0_275 = arith.constant 0 : index
    %708 = vector.load %arg60[%c0_274, %c0_275] : memref<256x64xbf16, #tpu.memory_space<vmem>>, vector<256x64xbf16>
    %cst_276 = arith.constant dense<0.000000e+00> : vector<16x64xf32>
    %709 = tpu.matmul %707, %708, %cst_276 {dimension_numbers = #tpu.dot_dimension_numbers<[1], [0], [0], [1], [0, 0, 1, 1], [], []>} : vector<16x256xbf16>, vector<256x64xbf16>, vector<16x64xf32> -> vector<16x64xf32>
    %c0_277 = arith.constant 0 : index
    %c0_278 = arith.constant 0 : index
    %710 = vector.load %arg61[%c0_277, %c0_278] : memref<1x64xf32, #tpu.memory_space<vmem>>, vector<1x64xf32>
    %711 = vector.broadcast %710 : vector<1x64xf32> to vector<16x64xf32>
    %712 = arith.addf %709, %711 : vector<16x64xf32>
    %713 = arith.addf %661, %712 : vector<16x64xf32>
    %c0_279 = arith.constant 0 : index
    %c0_280 = arith.constant 0 : index
    %714 = vector.load %arg62[%c0_279, %c0_280] : memref<1x64xf32, #tpu.memory_space<vmem>>, vector<1x64xf32>
    %c0_281 = arith.constant 0 : index
    %c0_282 = arith.constant 0 : index
    %715 = vector.load %arg63[%c0_281, %c0_282] : memref<1x64xf32, #tpu.memory_space<vmem>>, vector<1x64xf32>
    %cst_283 = arith.constant dense<0.000000e+00> : vector<16xf32>
    %716 = vector.multi_reduction <add>, %713, %cst_283 [1] : vector<16x64xf32> to vector<16xf32>
    %717 = vector.shape_cast %716 : vector<16xf32> to vector<16x1xf32>
    %cst_284 = arith.constant 6.400000e+01 : f32
    %718 = vector.broadcast %cst_284 : f32 to vector<16x1xf32>
    %719 = arith.divf %717, %718 : vector<16x1xf32>
    %720 = vector.broadcast %719 : vector<16x1xf32> to vector<16x64xf32>
    %721 = arith.subf %713, %720 : vector<16x64xf32>
    %722 = vector.broadcast %719 : vector<16x1xf32> to vector<16x64xf32>
    %723 = arith.subf %713, %722 : vector<16x64xf32>
    %724 = arith.mulf %721, %723 : vector<16x64xf32>
    %cst_285 = arith.constant dense<0.000000e+00> : vector<16xf32>
    %725 = vector.multi_reduction <add>, %724, %cst_285 [1] : vector<16x64xf32> to vector<16xf32>
    %726 = vector.shape_cast %725 : vector<16xf32> to vector<16x1xf32>
    %cst_286 = arith.constant 6.400000e+01 : f32
    %727 = vector.broadcast %cst_286 : f32 to vector<16x1xf32>
    %728 = arith.divf %726, %727 : vector<16x1xf32>
    %729 = vector.broadcast %719 : vector<16x1xf32> to vector<16x64xf32>
    %730 = arith.subf %713, %729 : vector<16x64xf32>
    %cst_287 = arith.constant 9.99999974E-6 : f32
    %731 = vector.broadcast %cst_287 : f32 to vector<16x1xf32>
    %732 = arith.addf %728, %731 : vector<16x1xf32>
    %733 = math.rsqrt %732 : vector<16x1xf32>
    %734 = vector.broadcast %733 : vector<16x1xf32> to vector<16x64xf32>
    %735 = arith.mulf %730, %734 : vector<16x64xf32>
    %736 = vector.broadcast %714 : vector<1x64xf32> to vector<16x64xf32>
    %737 = arith.mulf %735, %736 : vector<16x64xf32>
    %738 = vector.broadcast %715 : vector<1x64xf32> to vector<16x64xf32>
    %739 = arith.addf %737, %738 : vector<16x64xf32>
    %cst_288 = arith.constant dense<0.000000e+00> : vector<64xf32>
    %740 = vector.multi_reduction <add>, %739, %cst_288 [0] : vector<16x64xf32> to vector<64xf32>
    %741 = vector.shape_cast %740 : vector<64xf32> to vector<1x64xf32>
    %cst_289 = arith.constant 1.600000e+01 : f32
    %742 = vector.broadcast %cst_289 : f32 to vector<1x64xf32>
    %743 = arith.divf %741, %742 : vector<1x64xf32>
    %744 = arith.truncf %743 : vector<1x64xf32> to vector<1x64xbf16>
    %c0_290 = arith.constant 0 : index
    %c0_291 = arith.constant 0 : index
    %745 = vector.load %arg64[%c0_290, %c0_291] : memref<64x16xbf16, #tpu.memory_space<vmem>>, vector<64x16xbf16>
    %cst_292 = arith.constant dense<0.000000e+00> : vector<1x16xf32>
    %746 = tpu.matmul %744, %745, %cst_292 {dimension_numbers = #tpu.dot_dimension_numbers<[1], [0], [0], [1], [0, 0, 1, 1], [], []>} : vector<1x64xbf16>, vector<64x16xbf16>, vector<1x16xf32> -> vector<1x16xf32>
    %c0_293 = arith.constant 0 : index
    %c0_294 = arith.constant 0 : index
    %747 = vector.load %arg65[%c0_293, %c0_294] : memref<1x16xf32, #tpu.memory_space<vmem>>, vector<1x16xf32>
    %748 = arith.addf %746, %747 : vector<1x16xf32>
    %749 = arith.truncf %748 : vector<1x16xf32> to vector<1x16xbf16>
    %c0_295 = arith.constant 0 : index
    %c0_296 = arith.constant 0 : index
    %750 = vector.load %arg66[%c0_295, %c0_296] : memref<16x192xbf16, #tpu.memory_space<vmem>>, vector<16x192xbf16>
    %cst_297 = arith.constant dense<0.000000e+00> : vector<1x192xf32>
    %751 = tpu.matmul %749, %750, %cst_297 {dimension_numbers = #tpu.dot_dimension_numbers<[1], [0], [0], [1], [0, 0, 1, 1], [], []>} : vector<1x16xbf16>, vector<16x192xbf16>, vector<1x192xf32> -> vector<1x192xf32>
    %c0_298 = arith.constant 0 : index
    %c0_299 = arith.constant 0 : index
    %752 = vector.load %arg67[%c0_298, %c0_299] : memref<1x192xf32, #tpu.memory_space<vmem>>, vector<1x192xf32>
    %753 = arith.addf %751, %752 : vector<1x192xf32>
    %cst_300 = arith.constant 0.000000e+00 : f32
    %754 = vector.broadcast %cst_300 : f32 to vector<1x192xf32>
    %755 = arith.maximumf %753, %754 : vector<1x192xf32>
    %756 = arith.truncf %755 : vector<1x192xf32> to vector<1x192xbf16>
    %c0_301 = arith.constant 0 : index
    %c0_302 = arith.constant 0 : index
    %757 = vector.load %arg68[%c0_301, %c0_302] : memref<192x192xbf16, #tpu.memory_space<vmem>>, vector<192x192xbf16>
    %cst_303 = arith.constant dense<0.000000e+00> : vector<1x192xf32>
    %758 = tpu.matmul %756, %757, %cst_303 {dimension_numbers = #tpu.dot_dimension_numbers<[1], [0], [0], [1], [0, 0, 1, 1], [], []>} : vector<1x192xbf16>, vector<192x192xbf16>, vector<1x192xf32> -> vector<1x192xf32>
    %c0_304 = arith.constant 0 : index
    %c0_305 = arith.constant 0 : index
    %759 = vector.load %arg69[%c0_304, %c0_305] : memref<1x192xf32, #tpu.memory_space<vmem>>, vector<1x192xf32>
    %760 = arith.addf %758, %759 : vector<1x192xf32>
    %cst_306 = arith.constant 0.000000e+00 : f32
    %761 = vector.broadcast %cst_306 : f32 to vector<1x192xf32>
    %762 = arith.maximumf %760, %761 : vector<1x192xf32>
    %763 = arith.truncf %762 : vector<1x192xf32> to vector<1x192xbf16>
    %c0_307 = arith.constant 0 : index
    %c0_308 = arith.constant 0 : index
    %764 = vector.load %arg70[%c0_307, %c0_308] : memref<192x8xbf16, #tpu.memory_space<vmem>>, vector<192x8xbf16>
    %cst_309 = arith.constant dense<0.000000e+00> : vector<1x8xf32>
    %765 = tpu.matmul %763, %764, %cst_309 {dimension_numbers = #tpu.dot_dimension_numbers<[1], [0], [0], [1], [0, 0, 1, 1], [], []>} : vector<1x192xbf16>, vector<192x8xbf16>, vector<1x8xf32> -> vector<1x8xf32>
    %c0_310 = arith.constant 0 : index
    %c0_311 = arith.constant 0 : index
    %766 = vector.load %arg71[%c0_310, %c0_311] : memref<1x8xf32, #tpu.memory_space<vmem>>, vector<1x8xf32>
    %767 = arith.addf %765, %766 : vector<1x8xf32>
    %768 = tpu.iota {dimensions = array<i32: 1>} : vector<1x8xi32>
    %c3_i32 = arith.constant 3 : i32
    %769 = vector.broadcast %c3_i32 : i32 to vector<1x8xi32>
    %770 = arith.cmpi eq, %768, %769 : vector<1x8xi32>
    %771 = arith.negf %767 : vector<1x8xf32>
    %772 = math.exp %771 : vector<1x8xf32>
    %cst_312 = arith.constant 1.000000e+00 : f32
    %773 = vector.broadcast %cst_312 : f32 to vector<1x8xf32>
    %774 = arith.addf %773, %772 : vector<1x8xf32>
    %775 = arith.divf %773, %774 : vector<1x8xf32>
    %776 = arith.select %770, %775, %767 : vector<1x8xi1>, vector<1x8xf32>
    %777 = vector.shape_cast %776 : vector<1x8xf32> to vector<1x1x8xf32>
    %c0_313 = arith.constant 0 : index
    %c0_314 = arith.constant 0 : index
    %c0_315 = arith.constant 0 : index
    %778 = vector.load %arg72[%c0_313, %c0_314, %c0_315] : memref<1x1x8xf32, #tpu.memory_space<vmem>>, vector<1x1x8xf32>
    tpu.vector_store %arg72[%c0_313, %c0_314, %c0_315], %777 {strides = array<i32>} : memref<1x1x8xf32, #tpu.memory_space<vmem>>, vector<1x1x8xf32>,
    return
  }
  func.func @transform_0(%arg0: i32) -> (i32, i32, i32) {
    %c0_i32 = arith.constant 0 : i32
    %c0_i32_0 = arith.constant 0 : i32
    %c0_i32_1 = arith.constant 0 : i32
    return %arg0, %c0_i32, %c0_i32_0 : i32, i32, i32
  }
  func.func @transform_1(%arg0: i32) -> (i32, i32) {
    %c0_i32 = arith.constant 0 : i32
    %c0_i32_0 = arith.constant 0 : i32
    %c0_i32_1 = arith.constant 0 : i32
    return %c0_i32, %c0_i32_0 : i32, i32
  }
  func.func @transform_2(%arg0: i32) -> (i32, i32) {
    %c0_i32 = arith.constant 0 : i32
    %c0_i32_0 = arith.constant 0 : i32
    %c0_i32_1 = arith.constant 0 : i32
    return %c0_i32, %c0_i32_0 : i32, i32
  }
  func.func @transform_3(%arg0: i32) -> (i32, i32) {
    %c0_i32 = arith.constant 0 : i32
    %c0_i32_0 = arith.constant 0 : i32
    %c0_i32_1 = arith.constant 0 : i32
    return %c0_i32, %c0_i32_0 : i32, i32
  }
  func.func @transform_4(%arg0: i32) -> (i32, i32) {
    %c0_i32 = arith.constant 0 : i32
    %c0_i32_0 = arith.constant 0 : i32
    %c0_i32_1 = arith.constant 0 : i32
    return %c0_i32, %c0_i32_0 : i32, i32
  }
  func.func @transform_5(%arg0: i32) -> (i32, i32, i32) {
    %c0_i32 = arith.constant 0 : i32
    %c0_i32_0 = arith.constant 0 : i32
    %c0_i32_1 = arith.constant 0 : i32
    %c0_i32_2 = arith.constant 0 : i32
    return %c0_i32, %c0_i32_0, %c0_i32_1 : i32, i32, i32
  }
  func.func @transform_6(%arg0: i32) -> (i32, i32, i32) {
    %c0_i32 = arith.constant 0 : i32
    %c0_i32_0 = arith.constant 0 : i32
    %c0_i32_1 = arith.constant 0 : i32
    %c0_i32_2 = arith.constant 0 : i32
    return %c0_i32, %c0_i32_0, %c0_i32_1 : i32, i32, i32
  }
  func.func @transform_7(%arg0: i32) -> (i32, i32) {
    %c0_i32 = arith.constant 0 : i32
    %c0_i32_0 = arith.constant 0 : i32
    %c0_i32_1 = arith.constant 0 : i32
    return %c0_i32, %c0_i32_0 : i32, i32
  }
  func.func @transform_8(%arg0: i32) -> (i32, i32) {
    %c0_i32 = arith.constant 0 : i32
    %c0_i32_0 = arith.constant 0 : i32
    %c0_i32_1 = arith.constant 0 : i32
    return %c0_i32, %c0_i32_0 : i32, i32
  }
  func.func @transform_9(%arg0: i32) -> (i32, i32) {
    %c0_i32 = arith.constant 0 : i32
    %c0_i32_0 = arith.constant 0 : i32
    %c0_i32_1 = arith.constant 0 : i32
    return %c0_i32, %c0_i32_0 : i32, i32
  }
  func.func @transform_10(%arg0: i32) -> (i32, i32) {
    %c0_i32 = arith.constant 0 : i32
    %c0_i32_0 = arith.constant 0 : i32
    %c0_i32_1 = arith.constant 0 : i32
    return %c0_i32, %c0_i32_0 : i32, i32
  }
  func.func @transform_11(%arg0: i32) -> (i32, i32) {
    %c0_i32 = arith.constant 0 : i32
    %c0_i32_0 = arith.constant 0 : i32
    %c0_i32_1 = arith.constant 0 : i32
    return %c0_i32, %c0_i32_0 : i32, i32
  }
  func.func @transform_12(%arg0: i32) -> (i32, i32) {
    %c0_i32 = arith.constant 0 : i32
    %c0_i32_0 = arith.constant 0 : i32
    %c0_i32_1 = arith.constant 0 : i32
    return %c0_i32, %c0_i32_0 : i32, i32
  }
  func.func @transform_13(%arg0: i32) -> (i32, i32) {
    %c0_i32 = arith.constant 0 : i32
    %c0_i32_0 = arith.constant 0 : i32
    %c0_i32_1 = arith.constant 0 : i32
    return %c0_i32, %c0_i32_0 : i32, i32
  }
  func.func @transform_14(%arg0: i32) -> (i32, i32) {
    %c0_i32 = arith.constant 0 : i32
    %c0_i32_0 = arith.constant 0 : i32
    %c0_i32_1 = arith.constant 0 : i32
    return %c0_i32, %c0_i32_0 : i32, i32
  }
  func.func @transform_15(%arg0: i32) -> (i32, i32) {
    %c0_i32 = arith.constant 0 : i32
    %c0_i32_0 = arith.constant 0 : i32
    %c0_i32_1 = arith.constant 0 : i32
    return %c0_i32, %c0_i32_0 : i32, i32
  }
  func.func @transform_16(%arg0: i32) -> (i32, i32) {
    %c0_i32 = arith.constant 0 : i32
    %c0_i32_0 = arith.constant 0 : i32
    %c0_i32_1 = arith.constant 0 : i32
    return %c0_i32, %c0_i32_0 : i32, i32
  }
  func.func @transform_17(%arg0: i32) -> (i32, i32) {
    %c0_i32 = arith.constant 0 : i32
    %c0_i32_0 = arith.constant 0 : i32
    %c0_i32_1 = arith.constant 0 : i32
    return %c0_i32, %c0_i32_0 : i32, i32
  }
  func.func @transform_18(%arg0: i32) -> (i32, i32) {
    %c0_i32 = arith.constant 0 : i32
    %c0_i32_0 = arith.constant 0 : i32
    %c0_i32_1 = arith.constant 0 : i32
    return %c0_i32, %c0_i32_0 : i32, i32
  }
  func.func @transform_19(%arg0: i32) -> (i32, i32) {
    %c0_i32 = arith.constant 0 : i32
    %c0_i32_0 = arith.constant 0 : i32
    %c0_i32_1 = arith.constant 0 : i32
    return %c0_i32, %c0_i32_0 : i32, i32
  }
  func.func @transform_20(%arg0: i32) -> (i32, i32) {
    %c0_i32 = arith.constant 0 : i32
    %c0_i32_0 = arith.constant 0 : i32
    %c0_i32_1 = arith.constant 0 : i32
    return %c0_i32, %c0_i32_0 : i32, i32
  }
  func.func @transform_21(%arg0: i32) -> (i32, i32) {
    %c0_i32 = arith.constant 0 : i32
    %c0_i32_0 = arith.constant 0 : i32
    %c0_i32_1 = arith.constant 0 : i32
    return %c0_i32, %c0_i32_0 : i32, i32
  }
  func.func @transform_22(%arg0: i32) -> (i32, i32) {
    %c0_i32 = arith.constant 0 : i32
    %c0_i32_0 = arith.constant 0 : i32
    %c0_i32_1 = arith.constant 0 : i32
    return %c0_i32, %c0_i32_0 : i32, i32
  }
  func.func @transform_23(%arg0: i32) -> (i32, i32) {
    %c0_i32 = arith.constant 0 : i32
    %c0_i32_0 = arith.constant 0 : i32
    %c0_i32_1 = arith.constant 0 : i32
    return %c0_i32, %c0_i32_0 : i32, i32
  }
  func.func @transform_24(%arg0: i32) -> (i32, i32) {
    %c0_i32 = arith.constant 0 : i32
    %c0_i32_0 = arith.constant 0 : i32
    %c0_i32_1 = arith.constant 0 : i32
    return %c0_i32, %c0_i32_0 : i32, i32
  }
  func.func @transform_25(%arg0: i32) -> (i32, i32) {
    %c0_i32 = arith.constant 0 : i32
    %c0_i32_0 = arith.constant 0 : i32
    %c0_i32_1 = arith.constant 0 : i32
    return %c0_i32, %c0_i32_0 : i32, i32
  }
  func.func @transform_26(%arg0: i32) -> (i32, i32) {
    %c0_i32 = arith.constant 0 : i32
    %c0_i32_0 = arith.constant 0 : i32
    %c0_i32_1 = arith.constant 0 : i32
    return %c0_i32, %c0_i32_0 : i32, i32
  }
  func.func @transform_27(%arg0: i32) -> (i32, i32) {
    %c0_i32 = arith.constant 0 : i32
    %c0_i32_0 = arith.constant 0 : i32
    %c0_i32_1 = arith.constant 0 : i32
    return %c0_i32, %c0_i32_0 : i32, i32
  }
  func.func @transform_28(%arg0: i32) -> (i32, i32) {
    %c0_i32 = arith.constant 0 : i32
    %c0_i32_0 = arith.constant 0 : i32
    %c0_i32_1 = arith.constant 0 : i32
    return %c0_i32, %c0_i32_0 : i32, i32
  }
  func.func @transform_29(%arg0: i32) -> (i32, i32) {
    %c0_i32 = arith.constant 0 : i32
    %c0_i32_0 = arith.constant 0 : i32
    %c0_i32_1 = arith.constant 0 : i32
    return %c0_i32, %c0_i32_0 : i32, i32
  }
  func.func @transform_30(%arg0: i32) -> (i32, i32) {
    %c0_i32 = arith.constant 0 : i32
    %c0_i32_0 = arith.constant 0 : i32
    %c0_i32_1 = arith.constant 0 : i32
    return %c0_i32, %c0_i32_0 : i32, i32
  }
  func.func @transform_31(%arg0: i32) -> (i32, i32) {
    %c0_i32 = arith.constant 0 : i32
    %c0_i32_0 = arith.constant 0 : i32
    %c0_i32_1 = arith.constant 0 : i32
    return %c0_i32, %c0_i32_0 : i32, i32
  }
  func.func @transform_32(%arg0: i32) -> (i32, i32) {
    %c0_i32 = arith.constant 0 : i32
    %c0_i32_0 = arith.constant 0 : i32
    %c0_i32_1 = arith.constant 0 : i32
    return %c0_i32, %c0_i32_0 : i32, i32
  }
  func.func @transform_33(%arg0: i32) -> (i32, i32) {
    %c0_i32 = arith.constant 0 : i32
    %c0_i32_0 = arith.constant 0 : i32
    %c0_i32_1 = arith.constant 0 : i32
    return %c0_i32, %c0_i32_0 : i32, i32
  }
  func.func @transform_34(%arg0: i32) -> (i32, i32) {
    %c0_i32 = arith.constant 0 : i32
    %c0_i32_0 = arith.constant 0 : i32
    %c0_i32_1 = arith.constant 0 : i32
    return %c0_i32, %c0_i32_0 : i32, i32
  }
  func.func @transform_35(%arg0: i32) -> (i32, i32, i32) {
    %c0_i32 = arith.constant 0 : i32
    %c0_i32_0 = arith.constant 0 : i32
    %c0_i32_1 = arith.constant 0 : i32
    %c0_i32_2 = arith.constant 0 : i32
    return %c0_i32, %c0_i32_0, %c0_i32_1 : i32, i32, i32
  }
  func.func @transform_36(%arg0: i32) -> (i32, i32, i32) {
    %c0_i32 = arith.constant 0 : i32
    %c0_i32_0 = arith.constant 0 : i32
    %c0_i32_1 = arith.constant 0 : i32
    %c0_i32_2 = arith.constant 0 : i32
    return %c0_i32, %c0_i32_0, %c0_i32_1 : i32, i32, i32
  }
  func.func @transform_37(%arg0: i32) -> (i32, i32) {
    %c0_i32 = arith.constant 0 : i32
    %c0_i32_0 = arith.constant 0 : i32
    %c0_i32_1 = arith.constant 0 : i32
    return %c0_i32, %c0_i32_0 : i32, i32
  }
  func.func @transform_38(%arg0: i32) -> (i32, i32) {
    %c0_i32 = arith.constant 0 : i32
    %c0_i32_0 = arith.constant 0 : i32
    %c0_i32_1 = arith.constant 0 : i32
    return %c0_i32, %c0_i32_0 : i32, i32
  }
  func.func @transform_39(%arg0: i32) -> (i32, i32) {
    %c0_i32 = arith.constant 0 : i32
    %c0_i32_0 = arith.constant 0 : i32
    %c0_i32_1 = arith.constant 0 : i32
    return %c0_i32, %c0_i32_0 : i32, i32
  }
  func.func @transform_40(%arg0: i32) -> (i32, i32) {
    %c0_i32 = arith.constant 0 : i32
    %c0_i32_0 = arith.constant 0 : i32
    %c0_i32_1 = arith.constant 0 : i32
    return %c0_i32, %c0_i32_0 : i32, i32
  }
  func.func @transform_41(%arg0: i32) -> (i32, i32) {
    %c0_i32 = arith.constant 0 : i32
    %c0_i32_0 = arith.constant 0 : i32
    %c0_i32_1 = arith.constant 0 : i32
    return %c0_i32, %c0_i32_0 : i32, i32
  }
  func.func @transform_42(%arg0: i32) -> (i32, i32) {
    %c0_i32 = arith.constant 0 : i32
    %c0_i32_0 = arith.constant 0 : i32
    %c0_i32_1 = arith.constant 0 : i32
    return %c0_i32, %c0_i32_0 : i32, i32
  }
  func.func @transform_43(%arg0: i32) -> (i32, i32) {
    %c0_i32 = arith.constant 0 : i32
    %c0_i32_0 = arith.constant 0 : i32
    %c0_i32_1 = arith.constant 0 : i32
    return %c0_i32, %c0_i32_0 : i32, i32
  }
  func.func @transform_44(%arg0: i32) -> (i32, i32) {
    %c0_i32 = arith.constant 0 : i32
    %c0_i32_0 = arith.constant 0 : i32
    %c0_i32_1 = arith.constant 0 : i32
    return %c0_i32, %c0_i32_0 : i32, i32
  }
  func.func @transform_45(%arg0: i32) -> (i32, i32) {
    %c0_i32 = arith.constant 0 : i32
    %c0_i32_0 = arith.constant 0 : i32
    %c0_i32_1 = arith.constant 0 : i32
    return %c0_i32, %c0_i32_0 : i32, i32
  }
  func.func @transform_46(%arg0: i32) -> (i32, i32) {
    %c0_i32 = arith.constant 0 : i32
    %c0_i32_0 = arith.constant 0 : i32
    %c0_i32_1 = arith.constant 0 : i32
    return %c0_i32, %c0_i32_0 : i32, i32
  }
  func.func @transform_47(%arg0: i32) -> (i32, i32) {
    %c0_i32 = arith.constant 0 : i32
    %c0_i32_0 = arith.constant 0 : i32
    %c0_i32_1 = arith.constant 0 : i32
    return %c0_i32, %c0_i32_0 : i32, i32
  }
  func.func @transform_48(%arg0: i32) -> (i32, i32) {
    %c0_i32 = arith.constant 0 : i32
    %c0_i32_0 = arith.constant 0 : i32
    %c0_i32_1 = arith.constant 0 : i32
    return %c0_i32, %c0_i32_0 : i32, i32
  }
  func.func @transform_49(%arg0: i32) -> (i32, i32) {
    %c0_i32 = arith.constant 0 : i32
    %c0_i32_0 = arith.constant 0 : i32
    %c0_i32_1 = arith.constant 0 : i32
    return %c0_i32, %c0_i32_0 : i32, i32
  }
  func.func @transform_50(%arg0: i32) -> (i32, i32) {
    %c0_i32 = arith.constant 0 : i32
    %c0_i32_0 = arith.constant 0 : i32
    %c0_i32_1 = arith.constant 0 : i32
    return %c0_i32, %c0_i32_0 : i32, i32
  }
  func.func @transform_51(%arg0: i32) -> (i32, i32) {
    %c0_i32 = arith.constant 0 : i32
    %c0_i32_0 = arith.constant 0 : i32
    %c0_i32_1 = arith.constant 0 : i32
    return %c0_i32, %c0_i32_0 : i32, i32
  }
  func.func @transform_52(%arg0: i32) -> (i32, i32) {
    %c0_i32 = arith.constant 0 : i32
    %c0_i32_0 = arith.constant 0 : i32
    %c0_i32_1 = arith.constant 0 : i32
    return %c0_i32, %c0_i32_0 : i32, i32
  }
  func.func @transform_53(%arg0: i32) -> (i32, i32) {
    %c0_i32 = arith.constant 0 : i32
    %c0_i32_0 = arith.constant 0 : i32
    %c0_i32_1 = arith.constant 0 : i32
    return %c0_i32, %c0_i32_0 : i32, i32
  }
  func.func @transform_54(%arg0: i32) -> (i32, i32) {
    %c0_i32 = arith.constant 0 : i32
    %c0_i32_0 = arith.constant 0 : i32
    %c0_i32_1 = arith.constant 0 : i32
    return %c0_i32, %c0_i32_0 : i32, i32
  }
  func.func @transform_55(%arg0: i32) -> (i32, i32) {
    %c0_i32 = arith.constant 0 : i32
    %c0_i32_0 = arith.constant 0 : i32
    %c0_i32_1 = arith.constant 0 : i32
    return %c0_i32, %c0_i32_0 : i32, i32
  }
  func.func @transform_56(%arg0: i32) -> (i32, i32) {
    %c0_i32 = arith.constant 0 : i32
    %c0_i32_0 = arith.constant 0 : i32
    %c0_i32_1 = arith.constant 0 : i32
    return %c0_i32, %c0_i32_0 : i32, i32
  }
  func.func @transform_57(%arg0: i32) -> (i32, i32) {
    %c0_i32 = arith.constant 0 : i32
    %c0_i32_0 = arith.constant 0 : i32
    %c0_i32_1 = arith.constant 0 : i32
    return %c0_i32, %c0_i32_0 : i32, i32
  }
  func.func @transform_58(%arg0: i32) -> (i32, i32) {
    %c0_i32 = arith.constant 0 : i32
    %c0_i32_0 = arith.constant 0 : i32
    %c0_i32_1 = arith.constant 0 : i32
    return %c0_i32, %c0_i32_0 : i32, i32
  }
  func.func @transform_59(%arg0: i32) -> (i32, i32) {
    %c0_i32 = arith.constant 0 : i32
    %c0_i32_0 = arith.constant 0 : i32
    %c0_i32_1 = arith.constant 0 : i32
    return %c0_i32, %c0_i32_0 : i32, i32
  }
  func.func @transform_60(%arg0: i32) -> (i32, i32) {
    %c0_i32 = arith.constant 0 : i32
    %c0_i32_0 = arith.constant 0 : i32
    %c0_i32_1 = arith.constant 0 : i32
    return %c0_i32, %c0_i32_0 : i32, i32
  }
  func.func @transform_61(%arg0: i32) -> (i32, i32) {
    %c0_i32 = arith.constant 0 : i32
    %c0_i32_0 = arith.constant 0 : i32
    %c0_i32_1 = arith.constant 0 : i32
    return %c0_i32, %c0_i32_0 : i32, i32
  }
  func.func @transform_62(%arg0: i32) -> (i32, i32) {
    %c0_i32 = arith.constant 0 : i32
    %c0_i32_0 = arith.constant 0 : i32
    %c0_i32_1 = arith.constant 0 : i32
    return %c0_i32, %c0_i32_0 : i32, i32
  }
  func.func @transform_63(%arg0: i32) -> (i32, i32) {
    %c0_i32 = arith.constant 0 : i32
    %c0_i32_0 = arith.constant 0 : i32
    %c0_i32_1 = arith.constant 0 : i32
    return %c0_i32, %c0_i32_0 : i32, i32
  }
  func.func @transform_64(%arg0: i32) -> (i32, i32) {
    %c0_i32 = arith.constant 0 : i32
    %c0_i32_0 = arith.constant 0 : i32
    %c0_i32_1 = arith.constant 0 : i32
    return %c0_i32, %c0_i32_0 : i32, i32
  }
  func.func @transform_65(%arg0: i32) -> (i32, i32) {
    %c0_i32 = arith.constant 0 : i32
    %c0_i32_0 = arith.constant 0 : i32
    %c0_i32_1 = arith.constant 0 : i32
    return %c0_i32, %c0_i32_0 : i32, i32
  }
  func.func @transform_66(%arg0: i32) -> (i32, i32) {
    %c0_i32 = arith.constant 0 : i32
    %c0_i32_0 = arith.constant 0 : i32
    %c0_i32_1 = arith.constant 0 : i32
    return %c0_i32, %c0_i32_0 : i32, i32
  }
  func.func @transform_67(%arg0: i32) -> (i32, i32) {
    %c0_i32 = arith.constant 0 : i32
    %c0_i32_0 = arith.constant 0 : i32
    %c0_i32_1 = arith.constant 0 : i32
    return %c0_i32, %c0_i32_0 : i32, i32
  }
  func.func @transform_68(%arg0: i32) -> (i32, i32) {
    %c0_i32 = arith.constant 0 : i32
    %c0_i32_0 = arith.constant 0 : i32
    %c0_i32_1 = arith.constant 0 : i32
    return %c0_i32, %c0_i32_0 : i32, i32
  }
  func.func @transform_69(%arg0: i32) -> (i32, i32) {
    %c0_i32 = arith.constant 0 : i32
    %c0_i32_0 = arith.constant 0 : i32
    %c0_i32_1 = arith.constant 0 : i32
    return %c0_i32, %c0_i32_0 : i32, i32
  }
  func.func @transform_70(%arg0: i32) -> (i32, i32) {
    %c0_i32 = arith.constant 0 : i32
    %c0_i32_0 = arith.constant 0 : i32
    %c0_i32_1 = arith.constant 0 : i32
    return %c0_i32, %c0_i32_0 : i32, i32
  }
  func.func @transform_71(%arg0: i32) -> (i32, i32, i32) {
    %c0_i32 = arith.constant 0 : i32
    %c0_i32_0 = arith.constant 0 : i32
    %c0_i32_1 = arith.constant 0 : i32
    return %arg0, %c0_i32, %c0_i32_0 : i32, i32, i32
  }
}

</mosaic_0001>

<llo_original>
// kernel: _lambda_.1
$region0: #{_lambda_.1}
  #allocation0 [shape = 'u32[]', space=smem, size = 0x4, offset = 0x4, fixed_abs, tag = 'smem constant byte address 0x4 - core index']
  #allocation1 [shape = 'u32[144,128]{1,0:T(1,128)}', space=vmem, size = 0x12000, scoped, tag = 'internal scratch']
  %s0 = inlined_call_operand.smem [shape: u32[72], index: -1, kind: input, shape index: {}]
  %s1 = sld [smem:[%s0]]
  %s2 = scalar_lea.smem %s0, 1
  %s3 = sld [smem:[%s2]]
  %s4 = scalar_lea.smem %s0, 2
  %s5 = sld [smem:[%s4]]
  %s6 = scalar_lea.smem %s0, 3
  %s7 = sld [smem:[%s6]]
  %s8 = scalar_lea.smem %s0, 4
  %s9 = sld [smem:[%s8]]
  %s10 = scalar_lea.smem %s0, 5
  %s11 = sld [smem:[%s10]]
  %s12 = scalar_lea.smem %s0, 6
  %s13 = sld [smem:[%s12]]
  %s14 = scalar_lea.smem %s0, 7
  %s15 = sld [smem:[%s14]]
  %s16 = scalar_lea.smem %s0, 8
  %s17 = sld [smem:[%s16]]
  %s18 = scalar_lea.smem %s0, 9
  %s19 = sld [smem:[%s18]]
  %s20 = scalar_lea.smem %s0, 10
  %s21 = sld [smem:[%s20]]
  %s22 = scalar_lea.smem %s0, 11
  %s23 = sld [smem:[%s22]]
  %s24 = scalar_lea.smem %s0, 12
  %s25 = sld [smem:[%s24]]
  %s26 = scalar_lea.smem %s0, 13
  %s27 = sld [smem:[%s26]]
  %s28 = scalar_lea.smem %s0, 14
  %s29 = sld [smem:[%s28]]
  %s30 = scalar_lea.smem %s0, 15
  %s31 = sld [smem:[%s30]]
  %s32 = scalar_lea.smem %s0, 16
  %s33 = sld [smem:[%s32]]
  %s34 = scalar_lea.smem %s0, 17
  %s35 = sld [smem:[%s34]]
  %s36 = scalar_lea.smem %s0, 18
  %s37 = sld [smem:[%s36]]
  %s38 = scalar_lea.smem %s0, 19
  %s39 = sld [smem:[%s38]]
  %s40 = scalar_lea.smem %s0, 20
  %s41 = sld [smem:[%s40]]
  %s42 = scalar_lea.smem %s0, 21
  %s43 = sld [smem:[%s42]]
  %s44 = scalar_lea.smem %s0, 22
  %s45 = sld [smem:[%s44]]
  %s46 = scalar_lea.smem %s0, 23
  %s47 = sld [smem:[%s46]]
  %s48 = scalar_lea.smem %s0, 24
  %s49 = sld [smem:[%s48]]
  %s50 = scalar_lea.smem %s0, 25
  %s51 = sld [smem:[%s50]]
  %s52 = scalar_lea.smem %s0, 26
  %s53 = sld [smem:[%s52]]
  %s54 = scalar_lea.smem %s0, 27
  %s55 = sld [smem:[%s54]]
  %s56 = scalar_lea.smem %s0, 28
  %s57 = sld [smem:[%s56]]
  %s58 = scalar_lea.smem %s0, 29
  %s59 = sld [smem:[%s58]]
  %s60 = scalar_lea.smem %s0, 30
  %s61 = sld [smem:[%s60]]
  %s62 = scalar_lea.smem %s0, 31
  %s63 = sld [smem:[%s62]]
  %s64 = scalar_lea.smem %s0, 32
  %s65 = sld [smem:[%s64]]
  %s66 = scalar_lea.smem %s0, 33
  %s67 = sld [smem:[%s66]]
  %s68 = scalar_lea.smem %s0, 34
  %s69 = sld [smem:[%s68]]
  %s70 = scalar_lea.smem %s0, 35
  %s71 = sld [smem:[%s70]]
  %s72 = scalar_lea.smem %s0, 36
  %s73 = sld [smem:[%s72]]
  %s74 = scalar_lea.smem %s0, 37
  %s75 = sld [smem:[%s74]]
  %s76 = scalar_lea.smem %s0, 38
  %s77 = sld [smem:[%s76]]
  %s78 = scalar_lea.smem %s0, 39
  %s79 = sld [smem:[%s78]]
  %s80 = scalar_lea.smem %s0, 40
  %s81 = sld [smem:[%s80]]
  %s82 = scalar_lea.smem %s0, 41
  %s83 = sld [smem:[%s82]]
  %s84 = scalar_lea.smem %s0, 42
  %s85 = sld [smem:[%s84]]
  %s86 = scalar_lea.smem %s0, 43
  %s87 = sld [smem:[%s86]]
  %s88 = scalar_lea.smem %s0, 44
  %s89 = sld [smem:[%s88]]
  %s90 = scalar_lea.smem %s0, 45
  %s91 = sld [smem:[%s90]]
  %s92 = scalar_lea.smem %s0, 46
  %s93 = sld [smem:[%s92]]
  %s94 = scalar_lea.smem %s0, 47
  %s95 = sld [smem:[%s94]]
  %s96 = scalar_lea.smem %s0, 48
  %s97 = sld [smem:[%s96]]
  %s98 = scalar_lea.smem %s0, 49
  %s99 = sld [smem:[%s98]]
  %s100 = scalar_lea.smem %s0, 50
  %s101 = sld [smem:[%s100]]
  %s102 = scalar_lea.smem %s0, 51
  %s103 = sld [smem:[%s102]]
  %s104 = scalar_lea.smem %s0, 52
  %s105 = sld [smem:[%s104]]
  %s106 = scalar_lea.smem %s0, 53
  %s107 = sld [smem:[%s106]]
  %s108 = scalar_lea.smem %s0, 54
  %s109 = sld [smem:[%s108]]
  %s110 = scalar_lea.smem %s0, 55
  %s111 = sld [smem:[%s110]]
  %s112 = scalar_lea.smem %s0, 56
  %s113 = sld [smem:[%s112]]
  %s114 = scalar_lea.smem %s0, 57
  %s115 = sld [smem:[%s114]]
  %s116 = scalar_lea.smem %s0, 58
  %s117 = sld [smem:[%s116]]
  %s118 = scalar_lea.smem %s0, 59
  %s119 = sld [smem:[%s118]]
  %s120 = scalar_lea.smem %s0, 60
  %s121 = sld [smem:[%s120]]
  %s122 = scalar_lea.smem %s0, 61
  %s123 = sld [smem:[%s122]]
  %s124 = scalar_lea.smem %s0, 62
  %s125 = sld [smem:[%s124]]
  %s126 = scalar_lea.smem %s0, 63
  %s127 = sld [smem:[%s126]]
  %s128 = scalar_lea.smem %s0, 64
  %s129 = sld [smem:[%s128]]
  %s130 = scalar_lea.smem %s0, 65
  %s131 = sld [smem:[%s130]]
  %s132 = scalar_lea.smem %s0, 66
  %s133 = sld [smem:[%s132]]
  %s134 = scalar_lea.smem %s0, 67
  %s135 = sld [smem:[%s134]]
  %s136 = scalar_lea.smem %s0, 68
  %s137 = sld [smem:[%s136]]
  %s138 = scalar_lea.smem %s0, 69
  %s139 = sld [smem:[%s138]]
  %s140 = scalar_lea.smem %s0, 70
  %s141 = sld [smem:[%s140]]
  %s142 = scalar_lea.smem %s0, 71
  %s143 = sld [smem:[%s142]]
  %s144 = sld [smem:[#allocation0]]
  $region317: #{_lambda_.1} parent=0
    _
  %s146 = ssub.s32 1, %s144
  %s147 = scalar_select 0, %s146, %s144
  loop: start=0, step=1, limit=4
  $region2: #{_lambda_.1} parent=0 // loop_pre_header
    _
  $region3: #{_lambda_.1} parent=0 // loop_header
    %s149 = sphi 0, %s153
    %p150 = scmp.ge.s32.totalorder %s149, 4
    %s159 = sphi 0, %s161
    %s162 = sphi 0, %s159
    %s163 = sphi 0, %s162
    %s179 = sphi 0, %s163
    %s183 = sphi 0, %s183
    %s185 = sphi 0, %s183
    %s186 = sphi 0, %s185
    %s200 = sphi 0, %s186
    %s204 = sphi 0, %s204
    %s206 = sphi 0, %s204
    %s207 = sphi 0, %s206
    %s221 = sphi 0, %s207
    %s225 = sphi 0, %s225
    %s227 = sphi 0, %s225
    %s228 = sphi 0, %s227
    %s242 = sphi 0, %s228
    %s246 = sphi 0, %s246
    %s248 = sphi 0, %s246
    %s249 = sphi 0, %s248
    %s263 = sphi 0, %s249
    %s267 = sphi 0, %s267
    %s269 = sphi 0, %s267
    %s270 = sphi 0, %s269
    %s284 = sphi 0, %s270
    %s288 = sphi 0, %s288
    %s290 = sphi 0, %s288
    %s291 = sphi 0, %s290
    %s305 = sphi 0, %s291
    %s309 = sphi 0, %s309
    %s311 = sphi 0, %s309
    %s312 = sphi 0, %s311
    %s326 = sphi 0, %s312
    %s330 = sphi 0, %s330
    %s332 = sphi 0, %s330
    %s333 = sphi 0, %s332
    %s347 = sphi 0, %s333
    %s351 = sphi 0, %s351
    %s353 = sphi 0, %s351
    %s354 = sphi 0, %s353
    %s368 = sphi 0, %s354
    %s372 = sphi 0, %s372
    %s374 = sphi 0, %s372
    %s375 = sphi 0, %s374
    %s389 = sphi 0, %s375
    %s393 = sphi 0, %s393
    %s395 = sphi 0, %s393
    %s396 = sphi 0, %s395
    %s410 = sphi 0, %s396
    %s414 = sphi 0, %s414
    %s416 = sphi 0, %s414
    %s417 = sphi 0, %s416
    %s431 = sphi 0, %s417
    %s435 = sphi 0, %s435
    %s437 = sphi 0, %s435
    %s438 = sphi 0, %s437
    %s452 = sphi 0, %s438
    %s456 = sphi 0, %s456
    %s458 = sphi 0, %s456
    %s459 = sphi 0, %s458
    %s473 = sphi 0, %s459
    %s477 = sphi 0, %s477
    %s479 = sphi 0, %s477
    %s480 = sphi 0, %s479
    %s494 = sphi 0, %s480
    %s498 = sphi 0, %s498
    %s500 = sphi 0, %s498
    %s501 = sphi 0, %s500
    %s515 = sphi 0, %s501
    %s519 = sphi 0, %s519
    %s521 = sphi 0, %s519
    %s522 = sphi 0, %s521
    %s536 = sphi 0, %s522
    %s540 = sphi 0, %s540
    %s542 = sphi 0, %s540
    %s543 = sphi 0, %s542
    %s557 = sphi 0, %s543
    %s561 = sphi 0, %s561
    %s563 = sphi 0, %s561
    %s564 = sphi 0, %s563
    %s578 = sphi 0, %s564
    %s582 = sphi 0, %s582
    %s584 = sphi 0, %s582
    %s585 = sphi 0, %s584
    %s599 = sphi 0, %s585
    %s603 = sphi 0, %s603
    %s605 = sphi 0, %s603
    %s606 = sphi 0, %s605
    %s620 = sphi 0, %s606
    %s624 = sphi 0, %s624
    %s626 = sphi 0, %s624
    %s627 = sphi 0, %s626
    %s641 = sphi 0, %s627
    %s645 = sphi 0, %s645
    %s647 = sphi 0, %s645
    %s648 = sphi 0, %s647
    %s662 = sphi 0, %s648
    %s666 = sphi 0, %s666
    %s668 = sphi 0, %s666
    %s669 = sphi 0, %s668
    %s683 = sphi 0, %s669
    %s687 = sphi 0, %s687
    %s689 = sphi 0, %s687
    %s690 = sphi 0, %s689
    %s704 = sphi 0, %s690
    %s708 = sphi 0, %s708
    %s710 = sphi 0, %s708
    %s711 = sphi 0, %s710
    %s725 = sphi 0, %s711
    %s729 = sphi 0, %s729
    %s731 = sphi 0, %s729
    %s732 = sphi 0, %s731
    %s746 = sphi 0, %s732
    %s750 = sphi 0, %s750
    %s752 = sphi 0, %s750
    %s753 = sphi 0, %s752
    %s767 = sphi 0, %s753
    %s771 = sphi 0, %s771
    %s773 = sphi 0, %s771
    %s774 = sphi 0, %s773
    %s788 = sphi 0, %s774
    %s792 = sphi 0, %s792
    %s794 = sphi 0, %s792
    %s795 = sphi 0, %s794
    %s809 = sphi 0, %s795
    %s813 = sphi 0, %s813
    %s815 = sphi 0, %s813
    %s816 = sphi 0, %s815
    %s830 = sphi 0, %s816
    %s834 = sphi 0, %s834
    %s836 = sphi 0, %s834
    %s837 = sphi 0, %s836
    %s851 = sphi 0, %s837
    %s855 = sphi 0, %s855
    %s857 = sphi 0, %s855
    %s858 = sphi 0, %s857
    %s872 = sphi 0, %s858
    %s876 = sphi 0, %s876
    %s878 = sphi 0, %s876
    %s879 = sphi 0, %s878
    %s893 = sphi 0, %s879
    %s897 = sphi 0, %s897
    %s899 = sphi 0, %s897
    %s900 = sphi 0, %s899
    %s914 = sphi 0, %s900
    %s918 = sphi 0, %s918
    %s920 = sphi 0, %s918
    %s921 = sphi 0, %s920
    %s935 = sphi 0, %s921
    %s939 = sphi 0, %s939
    %s941 = sphi 0, %s939
    %s942 = sphi 0, %s941
    %s956 = sphi 0, %s942
    %s960 = sphi 0, %s960
    %s962 = sphi 0, %s960
    %s963 = sphi 0, %s962
    %s977 = sphi 0, %s963
    %s981 = sphi 0, %s981
    %s983 = sphi 0, %s981
    %s984 = sphi 0, %s983
    %s998 = sphi 0, %s984
    %s1002 = sphi 0, %s1002
    %s1004 = sphi 0, %s1002
    %s1005 = sphi 0, %s1004
    %s1019 = sphi 0, %s1005
    %s1023 = sphi 0, %s1023
    %s1025 = sphi 0, %s1023
    %s1026 = sphi 0, %s1025
    %s1040 = sphi 0, %s1026
    %s1044 = sphi 0, %s1044
    %s1046 = sphi 0, %s1044
    %s1047 = sphi 0, %s1046
    %s1061 = sphi 0, %s1047
    %s1065 = sphi 0, %s1065
    %s1067 = sphi 0, %s1065
    %s1068 = sphi 0, %s1067
    %s1082 = sphi 0, %s1068
    %s1086 = sphi 0, %s1086
    %s1088 = sphi 0, %s1086
    %s1089 = sphi 0, %s1088
    %s1103 = sphi 0, %s1089
    %s1107 = sphi 0, %s1107
    %s1109 = sphi 0, %s1107
    %s1110 = sphi 0, %s1109
    %s1124 = sphi 0, %s1110
    %s1128 = sphi 0, %s1128
    %s1130 = sphi 0, %s1128
    %s1131 = sphi 0, %s1130
    %s1145 = sphi 0, %s1131
    %s1149 = sphi 0, %s1149
    %s1151 = sphi 0, %s1149
    %s1152 = sphi 0, %s1151
    %s1166 = sphi 0, %s1152
    %s1170 = sphi 0, %s1170
    %s1172 = sphi 0, %s1170
    %s1173 = sphi 0, %s1172
    %s1187 = sphi 0, %s1173
    %s1191 = sphi 0, %s1191
    %s1193 = sphi 0, %s1191
    %s1194 = sphi 0, %s1193
    %s1208 = sphi 0, %s1194
    %s1212 = sphi 0, %s1212
    %s1214 = sphi 0, %s1212
    %s1215 = sphi 0, %s1214
    %s1229 = sphi 0, %s1215
    %s1233 = sphi 0, %s1233
    %s1235 = sphi 0, %s1233
    %s1236 = sphi 0, %s1235
    %s1250 = sphi 0, %s1236
    %s1254 = sphi 0, %s1254
    %s1256 = sphi 0, %s1254
    %s1257 = sphi 0, %s1256
    %s1271 = sphi 0, %s1257
    %s1275 = sphi 0, %s1275
    %s1277 = sphi 0, %s1275
    %s1278 = sphi 0, %s1277
    %s1292 = sphi 0, %s1278
    %s1296 = sphi 0, %s1296
    %s1298 = sphi 0, %s1296
    %s1299 = sphi 0, %s1298
    %s1313 = sphi 0, %s1299
    %s1317 = sphi 0, %s1317
    %s1319 = sphi 0, %s1317
    %s1320 = sphi 0, %s1319
    %s1334 = sphi 0, %s1320
    %s1338 = sphi 0, %s1338
    %s1340 = sphi 0, %s1338
    %s1341 = sphi 0, %s1340
    %s1355 = sphi 0, %s1341
    %s1359 = sphi 0, %s1359
    %s1361 = sphi 0, %s1359
    %s1362 = sphi 0, %s1361
    %s1376 = sphi 0, %s1362
    %s1380 = sphi 0, %s1380
    %s1382 = sphi 0, %s1380
    %s1383 = sphi 0, %s1382
    %s1397 = sphi 0, %s1383
    %s1401 = sphi 0, %s1401
    %s1403 = sphi 0, %s1401
    %s1404 = sphi 0, %s1403
    %s1418 = sphi 0, %s1404
    %s1422 = sphi 0, %s1422
    %s1424 = sphi 0, %s1422
    %s1425 = sphi 0, %s1424
    %s1439 = sphi 0, %s1425
    %s1443 = sphi 0, %s1443
    %s1445 = sphi 0, %s1443
    %s1446 = sphi 0, %s1445
    %s1460 = sphi 0, %s1446
    %s1464 = sphi 0, %s1464
    %s1466 = sphi 0, %s1464
    %s1467 = sphi 0, %s1466
    %s1481 = sphi 0, %s1467
    %s1485 = sphi 0, %s1485
    %s1487 = sphi 0, %s1485
    %s1488 = sphi 0, %s1487
    %s1502 = sphi 0, %s1488
    %s1506 = sphi 0, %s1506
    %s1508 = sphi 0, %s1506
    %s1509 = sphi 0, %s1508
    %s1523 = sphi 0, %s1509
    %s1527 = sphi 0, %s1527
    %s1529 = sphi 0, %s1527
    %s1530 = sphi 0, %s1529
    %s1544 = sphi 0, %s1530
    %s1548 = sphi 0, %s1548
    %s1550 = sphi 0, %s1548
    %s1551 = sphi 0, %s1550
    %s1565 = sphi 0, %s1551
    %s1569 = sphi 0, %s1569
    %s1571 = sphi 0, %s1569
    %s1572 = sphi 0, %s1571
    %s1586 = sphi 0, %s1572
    %s1590 = sphi 0, %s1590
    %s1592 = sphi 0, %s1590
    %s1593 = sphi 0, %s1592
    %s1607 = sphi 0, %s1593
    %s1611 = sphi 0, %s1611
    %s1613 = sphi 0, %s1611
    %s1614 = sphi 0, %s1613
    %s1628 = sphi 0, %s1614
    %s1632 = sphi 0, %s1632
    %s1634 = sphi 0, %s1632
    %s1635 = sphi 0, %s1634
    %s1649 = sphi 0, %s1635
    %s1655 = sphi 0, %s1657
    %s1658 = sphi 0, %s1655
    %s1659 = sphi 0, %s1658
    %s1675 = sphi 0, %s1659
  $region4: #{_lambda_.1} parent=0 // loop_header_branch
    %152 = sbr.rel (%p150) target = $region8
  $region5: #{_lambda_.1} parent=0 // loop_body
    %s154 = ssub.s32 %s149, 1
    %s155 = ssub.s32 %s149, 2
    %s156 = sadd.s32 %s149, 1
    %s157 = ssub.s32 %s149, %s156
    %p158 = scmp.eq.s32.totalorder %s157, 0
    %s160 = sadd.s32 %s159, 1
    %s161 = scalar_select %p158, %s159, %s160
    %p164 = pneg %p158
    %p165 = scmp.eq.s32.totalorder %s149, 1
    %p166 = por %p164, %p165
    %p167 = scmp.ne.s32.totalorder %s159, %s162
    %p168 = scmp.eq.s32.totalorder %s149, 0
    %p169 = por %p167, %p168
    %p170 = scmp.ne.s32.totalorder %s159, %s162
    %p171 = scmp.eq.s32.totalorder %s154, 1
    %p172 = por %p170, %p171
    %p173 = scmp.ne.s32.totalorder %s162, %s163
    %p174 = scmp.eq.s32.totalorder %s154, 0
    %p175 = por %p173, %p174
    %p176 = scmp.ne.s32.totalorder %s162, %s163
    %p177 = scmp.eq.s32.totalorder %s155, 1
    %p178 = por %p176, %p177
    %p180 = scmp.ne.s32.totalorder %s163, %s179
    %p181 = scmp.eq.s32.totalorder %s155, 0
    %p182 = por %p180, %p181
    %s184 = sadd.s32 %s183, 1
    %p187 = scmp.eq.s32.totalorder %s149, 1
    %p188 = scmp.ne.s32.totalorder %s183, %s185
    %p189 = scmp.eq.s32.totalorder %s149, 0
    %p190 = por %p188, %p189
    %p191 = scmp.ne.s32.totalorder %s183, %s185
    %p192 = scmp.eq.s32.totalorder %s154, 1
    %p193 = por %p191, %p192
    %p194 = scmp.ne.s32.totalorder %s185, %s186
    %p195 = scmp.eq.s32.totalorder %s154, 0
    %p196 = por %p194, %p195
    %p197 = scmp.ne.s32.totalorder %s185, %s186
    %p198 = scmp.eq.s32.totalorder %s155, 1
    %p199 = por %p197, %p198
    %p201 = scmp.ne.s32.totalorder %s186, %s200
    %p202 = scmp.eq.s32.totalorder %s155, 0
    %p203 = por %p201, %p202
    %s205 = sadd.s32 %s204, 1
    %p208 = scmp.eq.s32.totalorder %s149, 1
    %p209 = scmp.ne.s32.totalorder %s204, %s206
    %p210 = scmp.eq.s32.totalorder %s149, 0
    %p211 = por %p209, %p210
    %p212 = scmp.ne.s32.totalorder %s204, %s206
    %p213 = scmp.eq.s32.totalorder %s154, 1
    %p214 = por %p212, %p213
    %p215 = scmp.ne.s32.totalorder %s206, %s207
    %p216 = scmp.eq.s32.totalorder %s154, 0
    %p217 = por %p215, %p216
    %p218 = scmp.ne.s32.totalorder %s206, %s207
    %p219 = scmp.eq.s32.totalorder %s155, 1
    %p220 = por %p218, %p219
    %p222 = scmp.ne.s32.totalorder %s207, %s221
    %p223 = scmp.eq.s32.totalorder %s155, 0
    %p224 = por %p222, %p223
    %s226 = sadd.s32 %s225, 1
    %p229 = scmp.eq.s32.totalorder %s149, 1
    %p230 = scmp.ne.s32.totalorder %s225, %s227
    %p231 = scmp.eq.s32.totalorder %s149, 0
    %p232 = por %p230, %p231
    %p233 = scmp.ne.s32.totalorder %s225, %s227
    %p234 = scmp.eq.s32.totalorder %s154, 1
    %p235 = por %p233, %p234
    %p236 = scmp.ne.s32.totalorder %s227, %s228
    %p237 = scmp.eq.s32.totalorder %s154, 0
    %p238 = por %p236, %p237
    %p239 = scmp.ne.s32.totalorder %s227, %s228
    %p240 = scmp.eq.s32.totalorder %s155, 1
    %p241 = por %p239, %p240
    %p243 = scmp.ne.s32.totalorder %s228, %s242
    %p244 = scmp.eq.s32.totalorder %s155, 0
    %p245 = por %p243, %p244
    %s247 = sadd.s32 %s246, 1
    %p250 = scmp.eq.s32.totalorder %s149, 1
    %p251 = scmp.ne.s32.totalorder %s246, %s248
    %p252 = scmp.eq.s32.totalorder %s149, 0
    %p253 = por %p251, %p252
    %p254 = scmp.ne.s32.totalorder %s246, %s248
    %p255 = scmp.eq.s32.totalorder %s154, 1
    %p256 = por %p254, %p255
    %p257 = scmp.ne.s32.totalorder %s248, %s249
    %p258 = scmp.eq.s32.totalorder %s154, 0
    %p259 = por %p257, %p258
    %p260 = scmp.ne.s32.totalorder %s248, %s249
    %p261 = scmp.eq.s32.totalorder %s155, 1
    %p262 = por %p260, %p261
    %p264 = scmp.ne.s32.totalorder %s249, %s263
    %p265 = scmp.eq.s32.totalorder %s155, 0
    %p266 = por %p264, %p265
    %s268 = sadd.s32 %s267, 1
    %p271 = scmp.eq.s32.totalorder %s149, 1
    %p272 = scmp.ne.s32.totalorder %s267, %s269
    %p273 = scmp.eq.s32.totalorder %s149, 0
    %p274 = por %p272, %p273
    %p275 = scmp.ne.s32.totalorder %s267, %s269
    %p276 = scmp.eq.s32.totalorder %s154, 1
    %p277 = por %p275, %p276
    %p278 = scmp.ne.s32.totalorder %s269, %s270
    %p279 = scmp.eq.s32.totalorder %s154, 0
    %p280 = por %p278, %p279
    %p281 = scmp.ne.s32.totalorder %s269, %s270
    %p282 = scmp.eq.s32.totalorder %s155, 1
    %p283 = por %p281, %p282
    %p285 = scmp.ne.s32.totalorder %s270, %s284
    %p286 = scmp.eq.s32.totalorder %s155, 0
    %p287 = por %p285, %p286
    %s289 = sadd.s32 %s288, 1
    %p292 = scmp.eq.s32.totalorder %s149, 1
    %p293 = scmp.ne.s32.totalorder %s288, %s290
    %p294 = scmp.eq.s32.totalorder %s149, 0
    %p295 = por %p293, %p294
    %p296 = scmp.ne.s32.totalorder %s288, %s290
    %p297 = scmp.eq.s32.totalorder %s154, 1
    %p298 = por %p296, %p297
    %p299 = scmp.ne.s32.totalorder %s290, %s291
    %p300 = scmp.eq.s32.totalorder %s154, 0
    %p301 = por %p299, %p300
    %p302 = scmp.ne.s32.totalorder %s290, %s291
    %p303 = scmp.eq.s32.totalorder %s155, 1
    %p304 = por %p302, %p303
    %p306 = scmp.ne.s32.totalorder %s291, %s305
    %p307 = scmp.eq.s32.totalorder %s155, 0
    %p308 = por %p306, %p307
    %s310 = sadd.s32 %s309, 1
    %p313 = scmp.eq.s32.totalorder %s149, 1
    %p314 = scmp.ne.s32.totalorder %s309, %s311
    %p315 = scmp.eq.s32.totalorder %s149, 0
    %p316 = por %p314, %p315
    %p317 = scmp.ne.s32.totalorder %s309, %s311
    %p318 = scmp.eq.s32.totalorder %s154, 1
    %p319 = por %p317, %p318
    %p320 = scmp.ne.s32.totalorder %s311, %s312
    %p321 = scmp.eq.s32.totalorder %s154, 0
    %p322 = por %p320, %p321
    %p323 = scmp.ne.s32.totalorder %s311, %s312
    %p324 = scmp.eq.s32.totalorder %s155, 1
    %p325 = por %p323, %p324
    %p327 = scmp.ne.s32.totalorder %s312, %s326
    %p328 = scmp.eq.s32.totalorder %s155, 0
    %p329 = por %p327, %p328
    %s331 = sadd.s32 %s330, 1
    %p334 = scmp.eq.s32.totalorder %s149, 1
    %p335 = scmp.ne.s32.totalorder %s330, %s332
    %p336 = scmp.eq.s32.totalorder %s149, 0
    %p337 = por %p335, %p336
    %p338 = scmp.ne.s32.totalorder %s330, %s332
    %p339 = scmp.eq.s32.totalorder %s154, 1
    %p340 = por %p338, %p339
    %p341 = scmp.ne.s32.totalorder %s332, %s333
    %p342 = scmp.eq.s32.totalorder %s154, 0
    %p343 = por %p341, %p342
    %p344 = scmp.ne.s32.totalorder %s332, %s333
    %p345 = scmp.eq.s32.totalorder %s155, 1
    %p346 = por %p344, %p345
    %p348 = scmp.ne.s32.totalorder %s333, %s347
    %p349 = scmp.eq.s32.totalorder %s155, 0
    %p350 = por %p348, %p349
    %s352 = sadd.s32 %s351, 1
    %p355 = scmp.eq.s32.totalorder %s149, 1
    %p356 = scmp.ne.s32.totalorder %s351, %s353
    %p357 = scmp.eq.s32.totalorder %s149, 0
    %p358 = por %p356, %p357
    %p359 = scmp.ne.s32.totalorder %s351, %s353
    %p360 = scmp.eq.s32.totalorder %s154, 1
    %p361 = por %p359, %p360
    %p362 = scmp.ne.s32.totalorder %s353, %s354
    %p363 = scmp.eq.s32.totalorder %s154, 0
    %p364 = por %p362, %p363
    %p365 = scmp.ne.s32.totalorder %s353, %s354
    %p366 = scmp.eq.s32.totalorder %s155, 1
    %p367 = por %p365, %p366
    %p369 = scmp.ne.s32.totalorder %s354, %s368
    %p370 = scmp.eq.s32.totalorder %s155, 0
    %p371 = por %p369, %p370
    %s373 = sadd.s32 %s372, 1
    %p376 = scmp.eq.s32.totalorder %s149, 1
    %p377 = scmp.ne.s32.totalorder %s372, %s374
    %p378 = scmp.eq.s32.totalorder %s149, 0
    %p379 = por %p377, %p378
    %p380 = scmp.ne.s32.totalorder %s372, %s374
    %p381 = scmp.eq.s32.totalorder %s154, 1
    %p382 = por %p380, %p381
    %p383 = scmp.ne.s32.totalorder %s374, %s375
    %p384 = scmp.eq.s32.totalorder %s154, 0
    %p385 = por %p383, %p384
    %p386 = scmp.ne.s32.totalorder %s374, %s375
    %p387 = scmp.eq.s32.totalorder %s155, 1
    %p388 = por %p386, %p387
    %p390 = scmp.ne.s32.totalorder %s375, %s389
    %p391 = scmp.eq.s32.totalorder %s155, 0
    %p392 = por %p390, %p391
    %s394 = sadd.s32 %s393, 1
    %p397 = scmp.eq.s32.totalorder %s149, 1
    %p398 = scmp.ne.s32.totalorder %s393, %s395
    %p399 = scmp.eq.s32.totalorder %s149, 0
    %p400 = por %p398, %p399
    %p401 = scmp.ne.s32.totalorder %s393, %s395
    %p402 = scmp.eq.s32.totalorder %s154, 1
    %p403 = por %p401, %p402
    %p404 = scmp.ne.s32.totalorder %s395, %s396
    %p405 = scmp.eq.s32.totalorder %s154, 0
    %p406 = por %p404, %p405
    %p407 = scmp.ne.s32.totalorder %s395, %s396
    %p408 = scmp.eq.s32.totalorder %s155, 1
    %p409 = por %p407, %p408
    %p411 = scmp.ne.s32.totalorder %s396, %s410
    %p412 = scmp.eq.s32.totalorder %s155, 0
    %p413 = por %p411, %p412
    %s415 = sadd.s32 %s414, 1
    %p418 = scmp.eq.s32.totalorder %s149, 1
    %p419 = scmp.ne.s32.totalorder %s414, %s416
    %p420 = scmp.eq.s32.totalorder %s149, 0
    %p421 = por %p419, %p420
    %p422 = scmp.ne.s32.totalorder %s414, %s416
    %p423 = scmp.eq.s32.totalorder %s154, 1
    %p424 = por %p422, %p423
    %p425 = scmp.ne.s32.totalorder %s416, %s417
    %p426 = scmp.eq.s32.totalorder %s154, 0
    %p427 = por %p425, %p426
    %p428 = scmp.ne.s32.totalorder %s416, %s417
    %p429 = scmp.eq.s32.totalorder %s155, 1
    %p430 = por %p428, %p429
    %p432 = scmp.ne.s32.totalorder %s417, %s431
    %p433 = scmp.eq.s32.totalorder %s155, 0
    %p434 = por %p432, %p433
    %s436 = sadd.s32 %s435, 1
    %p439 = scmp.eq.s32.totalorder %s149, 1
    %p440 = scmp.ne.s32.totalorder %s435, %s437
    %p441 = scmp.eq.s32.totalorder %s149, 0
    %p442 = por %p440, %p441
    %p443 = scmp.ne.s32.totalorder %s435, %s437
    %p444 = scmp.eq.s32.totalorder %s154, 1
    %p445 = por %p443, %p444
    %p446 = scmp.ne.s32.totalorder %s437, %s438
    %p447 = scmp.eq.s32.totalorder %s154, 0
    %p448 = por %p446, %p447
    %p449 = scmp.ne.s32.totalorder %s437, %s438
    %p450 = scmp.eq.s32.totalorder %s155, 1
    %p451 = por %p449, %p450
    %p453 = scmp.ne.s32.totalorder %s438, %s452
    %p454 = scmp.eq.s32.totalorder %s155, 0
    %p455 = por %p453, %p454
    %s457 = sadd.s32 %s456, 1
    %p460 = scmp.eq.s32.totalorder %s149, 1
    %p461 = scmp.ne.s32.totalorder %s456, %s458
    %p462 = scmp.eq.s32.totalorder %s149, 0
    %p463 = por %p461, %p462
    %p464 = scmp.ne.s32.totalorder %s456, %s458
    %p465 = scmp.eq.s32.totalorder %s154, 1
    %p466 = por %p464, %p465
    %p467 = scmp.ne.s32.totalorder %s458, %s459
    %p468 = scmp.eq.s32.totalorder %s154, 0
    %p469 = por %p467, %p468
    %p470 = scmp.ne.s32.totalorder %s458, %s459
    %p471 = scmp.eq.s32.totalorder %s155, 1
    %p472 = por %p470, %p471
    %p474 = scmp.ne.s32.totalorder %s459, %s473
    %p475 = scmp.eq.s32.totalorder %s155, 0
    %p476 = por %p474, %p475
    %s478 = sadd.s32 %s477, 1
    %p481 = scmp.eq.s32.totalorder %s149, 1
    %p482 = scmp.ne.s32.totalorder %s477, %s479
    %p483 = scmp.eq.s32.totalorder %s149, 0
    %p484 = por %p482, %p483
    %p485 = scmp.ne.s32.totalorder %s477, %s479
    %p486 = scmp.eq.s32.totalorder %s154, 1
    %p487 = por %p485, %p486
    %p488 = scmp.ne.s32.totalorder %s479, %s480
    %p489 = scmp.eq.s32.totalorder %s154, 0
    %p490 = por %p488, %p489
    %p491 = scmp.ne.s32.totalorder %s479, %s480
    %p492 = scmp.eq.s32.totalorder %s155, 1
    %p493 = por %p491, %p492
    %p495 = scmp.ne.s32.totalorder %s480, %s494
    %p496 = scmp.eq.s32.totalorder %s155, 0
    %p497 = por %p495, %p496
    %s499 = sadd.s32 %s498, 1
    %p502 = scmp.eq.s32.totalorder %s149, 1
    %p503 = scmp.ne.s32.totalorder %s498, %s500
    %p504 = scmp.eq.s32.totalorder %s149, 0
    %p505 = por %p503, %p504
    %p506 = scmp.ne.s32.totalorder %s498, %s500
    %p507 = scmp.eq.s32.totalorder %s154, 1
    %p508 = por %p506, %p507
    %p509 = scmp.ne.s32.totalorder %s500, %s501
    %p510 = scmp.eq.s32.totalorder %s154, 0
    %p511 = por %p509, %p510
    %p512 = scmp.ne.s32.totalorder %s500, %s501
    %p513 = scmp.eq.s32.totalorder %s155, 1
    %p514 = por %p512, %p513
    %p516 = scmp.ne.s32.totalorder %s501, %s515
    %p517 = scmp.eq.s32.totalorder %s155, 0
    %p518 = por %p516, %p517
    %s520 = sadd.s32 %s519, 1
    %p523 = scmp.eq.s32.totalorder %s149, 1
    %p524 = scmp.ne.s32.totalorder %s519, %s521
    %p525 = scmp.eq.s32.totalorder %s149, 0
    %p526 = por %p524, %p525
    %p527 = scmp.ne.s32.totalorder %s519, %s521
    %p528 = scmp.eq.s32.totalorder %s154, 1
    %p529 = por %p527, %p528
    %p530 = scmp.ne.s32.totalorder %s521, %s522
    %p531 = scmp.eq.s32.totalorder %s154, 0
    %p532 = por %p530, %p531
    %p533 = scmp.ne.s32.totalorder %s521, %s522
    %p534 = scmp.eq.s32.totalorder %s155, 1
    %p535 = por %p533, %p534
    %p537 = scmp.ne.s32.totalorder %s522, %s536
    %p538 = scmp.eq.s32.totalorder %s155, 0
    %p539 = por %p537, %p538
    %s541 = sadd.s32 %s540, 1
    %p544 = scmp.eq.s32.totalorder %s149, 1
    %p545 = scmp.ne.s32.totalorder %s540, %s542
    %p546 = scmp.eq.s32.totalorder %s149, 0
    %p547 = por %p545, %p546
    %p548 = scmp.ne.s32.totalorder %s540, %s542
    %p549 = scmp.eq.s32.totalorder %s154, 1
    %p550 = por %p548, %p549
    %p551 = scmp.ne.s32.totalorder %s542, %s543
    %p552 = scmp.eq.s32.totalorder %s154, 0
    %p553 = por %p551, %p552
    %p554 = scmp.ne.s32.totalorder %s542, %s543
    %p555 = scmp.eq.s32.totalorder %s155, 1
    %p556 = por %p554, %p555
    %p558 = scmp.ne.s32.totalorder %s543, %s557
    %p559 = scmp.eq.s32.totalorder %s155, 0
    %p560 = por %p558, %p559
    %s562 = sadd.s32 %s561, 1
    %p565 = scmp.eq.s32.totalorder %s149, 1
    %p566 = scmp.ne.s32.totalorder %s561, %s563
    %p567 = scmp.eq.s32.totalorder %s149, 0
    %p568 = por %p566, %p567
    %p569 = scmp.ne.s32.totalorder %s561, %s563
    %p570 = scmp.eq.s32.totalorder %s154, 1
    %p571 = por %p569, %p570
    %p572 = scmp.ne.s32.totalorder %s563, %s564
    %p573 = scmp.eq.s32.totalorder %s154, 0
    %p574 = por %p572, %p573
    %p575 = scmp.ne.s32.totalorder %s563, %s564
    %p576 = scmp.eq.s32.totalorder %s155, 1
    %p577 = por %p575, %p576
    %p579 = scmp.ne.s32.totalorder %s564, %s578
    %p580 = scmp.eq.s32.totalorder %s155, 0
    %p581 = por %p579, %p580
    %s583 = sadd.s32 %s582, 1
    %p586 = scmp.eq.s32.totalorder %s149, 1
    %p587 = scmp.ne.s32.totalorder %s582, %s584
    %p588 = scmp.eq.s32.totalorder %s149, 0
    %p589 = por %p587, %p588
    %p590 = scmp.ne.s32.totalorder %s582, %s584
    %p591 = scmp.eq.s32.totalorder %s154, 1
    %p592 = por %p590, %p591
    %p593 = scmp.ne.s32.totalorder %s584, %s585
    %p594 = scmp.eq.s32.totalorder %s154, 0
    %p595 = por %p593, %p594
    %p596 = scmp.ne.s32.totalorder %s584, %s585
    %p597 = scmp.eq.s32.totalorder %s155, 1
    %p598 = por %p596, %p597
    %p600 = scmp.ne.s32.totalorder %s585, %s599
    %p601 = scmp.eq.s32.totalorder %s155, 0
    %p602 = por %p600, %p601
    %s604 = sadd.s32 %s603, 1
    %p607 = scmp.eq.s32.totalorder %s149, 1
    %p608 = scmp.ne.s32.totalorder %s603, %s605
    %p609 = scmp.eq.s32.totalorder %s149, 0
    %p610 = por %p608, %p609
    %p611 = scmp.ne.s32.totalorder %s603, %s605
    %p612 = scmp.eq.s32.totalorder %s154, 1
    %p613 = por %p611, %p612
    %p614 = scmp.ne.s32.totalorder %s605, %s606
    %p615 = scmp.eq.s32.totalorder %s154, 0
    %p616 = por %p614, %p615
    %p617 = scmp.ne.s32.totalorder %s605, %s606
    %p618 = scmp.eq.s32.totalorder %s155, 1
    %p619 = por %p617, %p618
    %p621 = scmp.ne.s32.totalorder %s606, %s620
    %p622 = scmp.eq.s32.totalorder %s155, 0
    %p623 = por %p621, %p622
    %s625 = sadd.s32 %s624, 1
    %p628 = scmp.eq.s32.totalorder %s149, 1
    %p629 = scmp.ne.s32.totalorder %s624, %s626
    %p630 = scmp.eq.s32.totalorder %s149, 0
    %p631 = por %p629, %p630
    %p632 = scmp.ne.s32.totalorder %s624, %s626
    %p633 = scmp.eq.s32.totalorder %s154, 1
    %p634 = por %p632, %p633
    %p635 = scmp.ne.s32.totalorder %s626, %s627
    %p636 = scmp.eq.s32.totalorder %s154, 0
    %p637 = por %p635, %p636
    %p638 = scmp.ne.s32.totalorder %s626, %s627
    %p639 = scmp.eq.s32.totalorder %s155, 1
    %p640 = por %p638, %p639
    %p642 = scmp.ne.s32.totalorder %s627, %s641
    %p643 = scmp.eq.s32.totalorder %s155, 0
    %p644 = por %p642, %p643
    %s646 = sadd.s32 %s645, 1
    %p649 = scmp.eq.s32.totalorder %s149, 1
    %p650 = scmp.ne.s32.totalorder %s645, %s647
    %p651 = scmp.eq.s32.totalorder %s149, 0
    %p652 = por %p650, %p651
    %p653 = scmp.ne.s32.totalorder %s645, %s647
    %p654 = scmp.eq.s32.totalorder %s154, 1
    %p655 = por %p653, %p654
    %p656 = scmp.ne.s32.totalorder %s647, %s648
    %p657 = scmp.eq.s32.totalorder %s154, 0
    %p658 = por %p656, %p657
    %p659 = scmp.ne.s32.totalorder %s647, %s648
    %p660 = scmp.eq.s32.totalorder %s155, 1
    %p661 = por %p659, %p660
    %p663 = scmp.ne.s32.totalorder %s648, %s662
    %p664 = scmp.eq.s32.totalorder %s155, 0
    %p665 = por %p663, %p664
    %s667 = sadd.s32 %s666, 1
    %p670 = scmp.eq.s32.totalorder %s149, 1
    %p671 = scmp.ne.s32.totalorder %s666, %s668
    %p672 = scmp.eq.s32.totalorder %s149, 0
    %p673 = por %p671, %p672
    %p674 = scmp.ne.s32.totalorder %s666, %s668
    %p675 = scmp.eq.s32.totalorder %s154, 1
    %p676 = por %p674, %p675
    %p677 = scmp.ne.s32.totalorder %s668, %s669
    %p678 = scmp.eq.s32.totalorder %s154, 0
    %p679 = por %p677, %p678
    %p680 = scmp.ne.s32.totalorder %s668, %s669
    %p681 = scmp.eq.s32.totalorder %s155, 1
    %p682 = por %p680, %p681
    %p684 = scmp.ne.s32.totalorder %s669, %s683
    %p685 = scmp.eq.s32.totalorder %s155, 0
    %p686 = por %p684, %p685
    %s688 = sadd.s32 %s687, 1
    %p691 = scmp.eq.s32.totalorder %s149, 1
    %p692 = scmp.ne.s32.totalorder %s687, %s689
    %p693 = scmp.eq.s32.totalorder %s149, 0
    %p694 = por %p692, %p693
    %p695 = scmp.ne.s32.totalorder %s687, %s689
    %p696 = scmp.eq.s32.totalorder %s154, 1
    %p697 = por %p695, %p696
    %p698 = scmp.ne.s32.totalorder %s689, %s690
    %p699 = scmp.eq.s32.totalorder %s154, 0
    %p700 = por %p698, %p699
    %p701 = scmp.ne.s32.totalorder %s689, %s690
    %p702 = scmp.eq.s32.totalorder %s155, 1
    %p703 = por %p701, %p702
    %p705 = scmp.ne.s32.totalorder %s690, %s704
    %p706 = scmp.eq.s32.totalorder %s155, 0
    %p707 = por %p705, %p706
    %s709 = sadd.s32 %s708, 1
    %p712 = scmp.eq.s32.totalorder %s149, 1
    %p713 = scmp.ne.s32.totalorder %s708, %s710
    %p714 = scmp.eq.s32.totalorder %s149, 0
    %p715 = por %p713, %p714
    %p716 = scmp.ne.s32.totalorder %s708, %s710
    %p717 = scmp.eq.s32.totalorder %s154, 1
    %p718 = por %p716, %p717
    %p719 = scmp.ne.s32.totalorder %s710, %s711
    %p720 = scmp.eq.s32.totalorder %s154, 0
    %p721 = por %p719, %p720
    %p722 = scmp.ne.s32.totalorder %s710, %s711
    %p723 = scmp.eq.s32.totalorder %s155, 1
    %p724 = por %p722, %p723
    %p726 = scmp.ne.s32.totalorder %s711, %s725
    %p727 = scmp.eq.s32.totalorder %s155, 0
    %p728 = por %p726, %p727
    %s730 = sadd.s32 %s729, 1
    %p733 = scmp.eq.s32.totalorder %s149, 1
    %p734 = scmp.ne.s32.totalorder %s729, %s731
    %p735 = scmp.eq.s32.totalorder %s149, 0
    %p736 = por %p734, %p735
    %p737 = scmp.ne.s32.totalorder %s729, %s731
    %p738 = scmp.eq.s32.totalorder %s154, 1
    %p739 = por %p737, %p738
    %p740 = scmp.ne.s32.totalorder %s731, %s732
    %p741 = scmp.eq.s32.totalorder %s154, 0
    %p742 = por %p740, %p741
    %p743 = scmp.ne.s32.totalorder %s731, %s732
    %p744 = scmp.eq.s32.totalorder %s155, 1
    %p745 = por %p743, %p744
    %p747 = scmp.ne.s32.totalorder %s732, %s746
    %p748 = scmp.eq.s32.totalorder %s155, 0
    %p749 = por %p747, %p748
    %s751 = sadd.s32 %s750, 1
    %p754 = scmp.eq.s32.totalorder %s149, 1
    %p755 = scmp.ne.s32.totalorder %s750, %s752
    %p756 = scmp.eq.s32.totalorder %s149, 0
    %p757 = por %p755, %p756
    %p758 = scmp.ne.s32.totalorder %s750, %s752
    %p759 = scmp.eq.s32.totalorder %s154, 1
    %p760 = por %p758, %p759
    %p761 = scmp.ne.s32.totalorder %s752, %s753
    %p762 = scmp.eq.s32.totalorder %s154, 0
    %p763 = por %p761, %p762
    %p764 = scmp.ne.s32.totalorder %s752, %s753
    %p765 = scmp.eq.s32.totalorder %s155, 1
    %p766 = por %p764, %p765
    %p768 = scmp.ne.s32.totalorder %s753, %s767
    %p769 = scmp.eq.s32.totalorder %s155, 0
    %p770 = por %p768, %p769
    %s772 = sadd.s32 %s771, 1
    %p775 = scmp.eq.s32.totalorder %s149, 1
    %p776 = scmp.ne.s32.totalorder %s771, %s773
    %p777 = scmp.eq.s32.totalorder %s149, 0
    %p778 = por %p776, %p777
    %p779 = scmp.ne.s32.totalorder %s771, %s773
    %p780 = scmp.eq.s32.totalorder %s154, 1
    %p781 = por %p779, %p780
    %p782 = scmp.ne.s32.totalorder %s773, %s774
    %p783 = scmp.eq.s32.totalorder %s154, 0
    %p784 = por %p782, %p783
    %p785 = scmp.ne.s32.totalorder %s773, %s774
    %p786 = scmp.eq.s32.totalorder %s155, 1
    %p787 = por %p785, %p786
    %p789 = scmp.ne.s32.totalorder %s774, %s788
    %p790 = scmp.eq.s32.totalorder %s155, 0
    %p791 = por %p789, %p790
    %s793 = sadd.s32 %s792, 1
    %p796 = scmp.eq.s32.totalorder %s149, 1
    %p797 = scmp.ne.s32.totalorder %s792, %s794
    %p798 = scmp.eq.s32.totalorder %s149, 0
    %p799 = por %p797, %p798
    %p800 = scmp.ne.s32.totalorder %s792, %s794
    %p801 = scmp.eq.s32.totalorder %s154, 1
    %p802 = por %p800, %p801
    %p803 = scmp.ne.s32.totalorder %s794, %s795
    %p804 = scmp.eq.s32.totalorder %s154, 0
    %p805 = por %p803, %p804
    %p806 = scmp.ne.s32.totalorder %s794, %s795
    %p807 = scmp.eq.s32.totalorder %s155, 1
    %p808 = por %p806, %p807
    %p810 = scmp.ne.s32.totalorder %s795, %s809
    %p811 = scmp.eq.s32.totalorder %s155, 0
    %p812 = por %p810, %p811
    %s814 = sadd.s32 %s813, 1
    %p817 = scmp.eq.s32.totalorder %s149, 1
    %p818 = scmp.ne.s32.totalorder %s813, %s815
    %p819 = scmp.eq.s32.totalorder %s149, 0
    %p820 = por %p818, %p819
    %p821 = scmp.ne.s32.totalorder %s813, %s815
    %p822 = scmp.eq.s32.totalorder %s154, 1
    %p823 = por %p821, %p822
    %p824 = scmp.ne.s32.totalorder %s815, %s816
    %p825 = scmp.eq.s32.totalorder %s154, 0
    %p826 = por %p824, %p825
    %p827 = scmp.ne.s32.totalorder %s815, %s816
    %p828 = scmp.eq.s32.totalorder %s155, 1
    %p829 = por %p827, %p828
    %p831 = scmp.ne.s32.totalorder %s816, %s830
    %p832 = scmp.eq.s32.totalorder %s155, 0
    %p833 = por %p831, %p832
    %s835 = sadd.s32 %s834, 1
    %p838 = scmp.eq.s32.totalorder %s149, 1
    %p839 = scmp.ne.s32.totalorder %s834, %s836
    %p840 = scmp.eq.s32.totalorder %s149, 0
    %p841 = por %p839, %p840
    %p842 = scmp.ne.s32.totalorder %s834, %s836
    %p843 = scmp.eq.s32.totalorder %s154, 1
    %p844 = por %p842, %p843
    %p845 = scmp.ne.s32.totalorder %s836, %s837
    %p846 = scmp.eq.s32.totalorder %s154, 0
    %p847 = por %p845, %p846
    %p848 = scmp.ne.s32.totalorder %s836, %s837
    %p849 = scmp.eq.s32.totalorder %s155, 1
    %p850 = por %p848, %p849
    %p852 = scmp.ne.s32.totalorder %s837, %s851
    %p853 = scmp.eq.s32.totalorder %s155, 0
    %p854 = por %p852, %p853
    %s856 = sadd.s32 %s855, 1
    %p859 = scmp.eq.s32.totalorder %s149, 1
    %p860 = scmp.ne.s32.totalorder %s855, %s857
    %p861 = scmp.eq.s32.totalorder %s149, 0
    %p862 = por %p860, %p861
    %p863 = scmp.ne.s32.totalorder %s855, %s857
    %p864 = scmp.eq.s32.totalorder %s154, 1
    %p865 = por %p863, %p864
    %p866 = scmp.ne.s32.totalorder %s857, %s858
    %p867 = scmp.eq.s32.totalorder %s154, 0
    %p868 = por %p866, %p867
    %p869 = scmp.ne.s32.totalorder %s857, %s858
    %p870 = scmp.eq.s32.totalorder %s155, 1
    %p871 = por %p869, %p870
    %p873 = scmp.ne.s32.totalorder %s858, %s872
    %p874 = scmp.eq.s32.totalorder %s155, 0
    %p875 = por %p873, %p874
    %s877 = sadd.s32 %s876, 1
    %p880 = scmp.eq.s32.totalorder %s149, 1
    %p881 = scmp.ne.s32.totalorder %s876, %s878
    %p882 = scmp.eq.s32.totalorder %s149, 0
    %p883 = por %p881, %p882
    %p884 = scmp.ne.s32.totalorder %s876, %s878
    %p885 = scmp.eq.s32.totalorder %s154, 1
    %p886 = por %p884, %p885
    %p887 = scmp.ne.s32.totalorder %s878, %s879
    %p888 = scmp.eq.s32.totalorder %s154, 0
    %p889 = por %p887, %p888
    %p890 = scmp.ne.s32.totalorder %s878, %s879
    %p891 = scmp.eq.s32.totalorder %s155, 1
    %p892 = por %p890, %p891
    %p894 = scmp.ne.s32.totalorder %s879, %s893
    %p895 = scmp.eq.s32.totalorder %s155, 0
    %p896 = por %p894, %p895
    %s898 = sadd.s32 %s897, 1
    %p901 = scmp.eq.s32.totalorder %s149, 1
    %p902 = scmp.ne.s32.totalorder %s897, %s899
    %p903 = scmp.eq.s32.totalorder %s149, 0
    %p904 = por %p902, %p903
    %p905 = scmp.ne.s32.totalorder %s897, %s899
    %p906 = scmp.eq.s32.totalorder %s154, 1
    %p907 = por %p905, %p906
    %p908 = scmp.ne.s32.totalorder %s899, %s900
    %p909 = scmp.eq.s32.totalorder %s154, 0
    %p910 = por %p908, %p909
    %p911 = scmp.ne.s32.totalorder %s899, %s900
    %p912 = scmp.eq.s32.totalorder %s155, 1
    %p913 = por %p911, %p912
    %p915 = scmp.ne.s32.totalorder %s900, %s914
    %p916 = scmp.eq.s32.totalorder %s155, 0
    %p917 = por %p915, %p916
    %s919 = sadd.s32 %s918, 1
    %p922 = scmp.eq.s32.totalorder %s149, 1
    %p923 = scmp.ne.s32.totalorder %s918, %s920
    %p924 = scmp.eq.s32.totalorder %s149, 0
    %p925 = por %p923, %p924
    %p926 = scmp.ne.s32.totalorder %s918, %s920
    %p927 = scmp.eq.s32.totalorder %s154, 1
    %p928 = por %p926, %p927
    %p929 = scmp.ne.s32.totalorder %s920, %s921
    %p930 = scmp.eq.s32.totalorder %s154, 0
    %p931 = por %p929, %p930
    %p932 = scmp.ne.s32.totalorder %s920, %s921
    %p933 = scmp.eq.s32.totalorder %s155, 1
    %p934 = por %p932, %p933
    %p936 = scmp.ne.s32.totalorder %s921, %s935
    %p937 = scmp.eq.s32.totalorder %s155, 0
    %p938 = por %p936, %p937
    %s940 = sadd.s32 %s939, 1
    %p943 = scmp.eq.s32.totalorder %s149, 1
    %p944 = scmp.ne.s32.totalorder %s939, %s941
    %p945 = scmp.eq.s32.totalorder %s149, 0
    %p946 = por %p944, %p945
    %p947 = scmp.ne.s32.totalorder %s939, %s941
    %p948 = scmp.eq.s32.totalorder %s154, 1
    %p949 = por %p947, %p948
    %p950 = scmp.ne.s32.totalorder %s941, %s942
    %p951 = scmp.eq.s32.totalorder %s154, 0
    %p952 = por %p950, %p951
    %p953 = scmp.ne.s32.totalorder %s941, %s942
    %p954 = scmp.eq.s32.totalorder %s155, 1
    %p955 = por %p953, %p954
    %p957 = scmp.ne.s32.totalorder %s942, %s956
    %p958 = scmp.eq.s32.totalorder %s155, 0
    %p959 = por %p957, %p958
    %s961 = sadd.s32 %s960, 1
    %p964 = scmp.eq.s32.totalorder %s149, 1
    %p965 = scmp.ne.s32.totalorder %s960, %s962
    %p966 = scmp.eq.s32.totalorder %s149, 0
    %p967 = por %p965, %p966
    %p968 = scmp.ne.s32.totalorder %s960, %s962
    %p969 = scmp.eq.s32.totalorder %s154, 1
    %p970 = por %p968, %p969
    %p971 = scmp.ne.s32.totalorder %s962, %s963
    %p972 = scmp.eq.s32.totalorder %s154, 0
    %p973 = por %p971, %p972
    %p974 = scmp.ne.s32.totalorder %s962, %s963
    %p975 = scmp.eq.s32.totalorder %s155, 1
    %p976 = por %p974, %p975
    %p978 = scmp.ne.s32.totalorder %s963, %s977
    %p979 = scmp.eq.s32.totalorder %s155, 0
    %p980 = por %p978, %p979
    %s982 = sadd.s32 %s981, 1
    %p985 = scmp.eq.s32.totalorder %s149, 1
    %p986 = scmp.ne.s32.totalorder %s981, %s983
    %p987 = scmp.eq.s32.totalorder %s149, 0
    %p988 = por %p986, %p987
    %p989 = scmp.ne.s32.totalorder %s981, %s983
    %p990 = scmp.eq.s32.totalorder %s154, 1
    %p991 = por %p989, %p990
    %p992 = scmp.ne.s32.totalorder %s983, %s984
    %p993 = scmp.eq.s32.totalorder %s154, 0
    %p994 = por %p992, %p993
    %p995 = scmp.ne.s32.totalorder %s983, %s984
    %p996 = scmp.eq.s32.totalorder %s155, 1
    %p997 = por %p995, %p996
    %p999 = scmp.ne.s32.totalorder %s984, %s998
    %p1000 = scmp.eq.s32.totalorder %s155, 0
    %p1001 = por %p999, %p1000
    %s1003 = sadd.s32 %s1002, 1
    %p1006 = scmp.eq.s32.totalorder %s149, 1
    %p1007 = scmp.ne.s32.totalorder %s1002, %s1004
    %p1008 = scmp.eq.s32.totalorder %s149, 0
    %p1009 = por %p1007, %p1008
    %p1010 = scmp.ne.s32.totalorder %s1002, %s1004
    %p1011 = scmp.eq.s32.totalorder %s154, 1
    %p1012 = por %p1010, %p1011
    %p1013 = scmp.ne.s32.totalorder %s1004, %s1005
    %p1014 = scmp.eq.s32.totalorder %s154, 0
    %p1015 = por %p1013, %p1014
    %p1016 = scmp.ne.s32.totalorder %s1004, %s1005
    %p1017 = scmp.eq.s32.totalorder %s155, 1
    %p1018 = por %p1016, %p1017
    %p1020 = scmp.ne.s32.totalorder %s1005, %s1019
    %p1021 = scmp.eq.s32.totalorder %s155, 0
    %p1022 = por %p1020, %p1021
    %s1024 = sadd.s32 %s1023, 1
    %p1027 = scmp.eq.s32.totalorder %s149, 1
    %p1028 = scmp.ne.s32.totalorder %s1023, %s1025
    %p1029 = scmp.eq.s32.totalorder %s149, 0
    %p1030 = por %p1028, %p1029
    %p1031 = scmp.ne.s32.totalorder %s1023, %s1025
    %p1032 = scmp.eq.s32.totalorder %s154, 1
    %p1033 = por %p1031, %p1032
    %p1034 = scmp.ne.s32.totalorder %s1025, %s1026
    %p1035 = scmp.eq.s32.totalorder %s154, 0
    %p1036 = por %p1034, %p1035
    %p1037 = scmp.ne.s32.totalorder %s1025, %s1026
    %p1038 = scmp.eq.s32.totalorder %s155, 1
    %p1039 = por %p1037, %p1038
    %p1041 = scmp.ne.s32.totalorder %s1026, %s1040
    %p1042 = scmp.eq.s32.totalorder %s155, 0
    %p1043 = por %p1041, %p1042
    %s1045 = sadd.s32 %s1044, 1
    %p1048 = scmp.eq.s32.totalorder %s149, 1
    %p1049 = scmp.ne.s32.totalorder %s1044, %s1046
    %p1050 = scmp.eq.s32.totalorder %s149, 0
    %p1051 = por %p1049, %p1050
    %p1052 = scmp.ne.s32.totalorder %s1044, %s1046
    %p1053 = scmp.eq.s32.totalorder %s154, 1
    %p1054 = por %p1052, %p1053
    %p1055 = scmp.ne.s32.totalorder %s1046, %s1047
    %p1056 = scmp.eq.s32.totalorder %s154, 0
    %p1057 = por %p1055, %p1056
    %p1058 = scmp.ne.s32.totalorder %s1046, %s1047
    %p1059 = scmp.eq.s32.totalorder %s155, 1
    %p1060 = por %p1058, %p1059
    %p1062 = scmp.ne.s32.totalorder %s1047, %s1061
    %p1063 = scmp.eq.s32.totalorder %s155, 0
    %p1064 = por %p1062, %p1063
    %s1066 = sadd.s32 %s1065, 1
    %p1069 = scmp.eq.s32.totalorder %s149, 1
    %p1070 = scmp.ne.s32.totalorder %s1065, %s1067
    %p1071 = scmp.eq.s32.totalorder %s149, 0
    %p1072 = por %p1070, %p1071
    %p1073 = scmp.ne.s32.totalorder %s1065, %s1067
    %p1074 = scmp.eq.s32.totalorder %s154, 1
    %p1075 = por %p1073, %p1074
    %p1076 = scmp.ne.s32.totalorder %s1067, %s1068
    %p1077 = scmp.eq.s32.totalorder %s154, 0
    %p1078 = por %p1076, %p1077
    %p1079 = scmp.ne.s32.totalorder %s1067, %s1068
    %p1080 = scmp.eq.s32.totalorder %s155, 1
    %p1081 = por %p1079, %p1080
    %p1083 = scmp.ne.s32.totalorder %s1068, %s1082
    %p1084 = scmp.eq.s32.totalorder %s155, 0
    %p1085 = por %p1083, %p1084
    %s1087 = sadd.s32 %s1086, 1
    %p1090 = scmp.eq.s32.totalorder %s149, 1
    %p1091 = scmp.ne.s32.totalorder %s1086, %s1088
    %p1092 = scmp.eq.s32.totalorder %s149, 0
    %p1093 = por %p1091, %p1092
    %p1094 = scmp.ne.s32.totalorder %s1086, %s1088
    %p1095 = scmp.eq.s32.totalorder %s154, 1
    %p1096 = por %p1094, %p1095
    %p1097 = scmp.ne.s32.totalorder %s1088, %s1089
    %p1098 = scmp.eq.s32.totalorder %s154, 0
    %p1099 = por %p1097, %p1098
    %p1100 = scmp.ne.s32.totalorder %s1088, %s1089
    %p1101 = scmp.eq.s32.totalorder %s155, 1
    %p1102 = por %p1100, %p1101
    %p1104 = scmp.ne.s32.totalorder %s1089, %s1103
    %p1105 = scmp.eq.s32.totalorder %s155, 0
    %p1106 = por %p1104, %p1105
    %s1108 = sadd.s32 %s1107, 1
    %p1111 = scmp.eq.s32.totalorder %s149, 1
    %p1112 = scmp.ne.s32.totalorder %s1107, %s1109
    %p1113 = scmp.eq.s32.totalorder %s149, 0
    %p1114 = por %p1112, %p1113
    %p1115 = scmp.ne.s32.totalorder %s1107, %s1109
    %p1116 = scmp.eq.s32.totalorder %s154, 1
    %p1117 = por %p1115, %p1116
    %p1118 = scmp.ne.s32.totalorder %s1109, %s1110
    %p1119 = scmp.eq.s32.totalorder %s154, 0
    %p1120 = por %p1118, %p1119
    %p1121 = scmp.ne.s32.totalorder %s1109, %s1110
    %p1122 = scmp.eq.s32.totalorder %s155, 1
    %p1123 = por %p1121, %p1122
    %p1125 = scmp.ne.s32.totalorder %s1110, %s1124
    %p1126 = scmp.eq.s32.totalorder %s155, 0
    %p1127 = por %p1125, %p1126
    %s1129 = sadd.s32 %s1128, 1
    %p1132 = scmp.eq.s32.totalorder %s149, 1
    %p1133 = scmp.ne.s32.totalorder %s1128, %s1130
    %p1134 = scmp.eq.s32.totalorder %s149, 0
    %p1135 = por %p1133, %p1134
    %p1136 = scmp.ne.s32.totalorder %s1128, %s1130
    %p1137 = scmp.eq.s32.totalorder %s154, 1
    %p1138 = por %p1136, %p1137
    %p1139 = scmp.ne.s32.totalorder %s1130, %s1131
    %p1140 = scmp.eq.s32.totalorder %s154, 0
    %p1141 = por %p1139, %p1140
    %p1142 = scmp.ne.s32.totalorder %s1130, %s1131
    %p1143 = scmp.eq.s32.totalorder %s155, 1
    %p1144 = por %p1142, %p1143
    %p1146 = scmp.ne.s32.totalorder %s1131, %s1145
    %p1147 = scmp.eq.s32.totalorder %s155, 0
    %p1148 = por %p1146, %p1147
    %s1150 = sadd.s32 %s1149, 1
    %p1153 = scmp.eq.s32.totalorder %s149, 1
    %p1154 = scmp.ne.s32.totalorder %s1149, %s1151
    %p1155 = scmp.eq.s32.totalorder %s149, 0
    %p1156 = por %p1154, %p1155
    %p1157 = scmp.ne.s32.totalorder %s1149, %s1151
    %p1158 = scmp.eq.s32.totalorder %s154, 1
    %p1159 = por %p1157, %p1158
    %p1160 = scmp.ne.s32.totalorder %s1151, %s1152
    %p1161 = scmp.eq.s32.totalorder %s154, 0
    %p1162 = por %p1160, %p1161
    %p1163 = scmp.ne.s32.totalorder %s1151, %s1152
    %p1164 = scmp.eq.s32.totalorder %s155, 1
    %p1165 = por %p1163, %p1164
    %p1167 = scmp.ne.s32.totalorder %s1152, %s1166
    %p1168 = scmp.eq.s32.totalorder %s155, 0
    %p1169 = por %p1167, %p1168
    %s1171 = sadd.s32 %s1170, 1
    %p1174 = scmp.eq.s32.totalorder %s149, 1
    %p1175 = scmp.ne.s32.totalorder %s1170, %s1172
    %p1176 = scmp.eq.s32.totalorder %s149, 0
    %p1177 = por %p1175, %p1176
    %p1178 = scmp.ne.s32.totalorder %s1170, %s1172
    %p1179 = scmp.eq.s32.totalorder %s154, 1
    %p1180 = por %p1178, %p1179
    %p1181 = scmp.ne.s32.totalorder %s1172, %s1173
    %p1182 = scmp.eq.s32.totalorder %s154, 0
    %p1183 = por %p1181, %p1182
    %p1184 = scmp.ne.s32.totalorder %s1172, %s1173
    %p1185 = scmp.eq.s32.totalorder %s155, 1
    %p1186 = por %p1184, %p1185
    %p1188 = scmp.ne.s32.totalorder %s1173, %s1187
    %p1189 = scmp.eq.s32.totalorder %s155, 0
    %p1190 = por %p1188, %p1189
    %s1192 = sadd.s32 %s1191, 1
    %p1195 = scmp.eq.s32.totalorder %s149, 1
    %p1196 = scmp.ne.s32.totalorder %s1191, %s1193
    %p1197 = scmp.eq.s32.totalorder %s149, 0
    %p1198 = por %p1196, %p1197
    %p1199 = scmp.ne.s32.totalorder %s1191, %s1193
    %p1200 = scmp.eq.s32.totalorder %s154, 1
    %p1201 = por %p1199, %p1200
    %p1202 = scmp.ne.s32.totalorder %s1193, %s1194
    %p1203 = scmp.eq.s32.totalorder %s154, 0
    %p1204 = por %p1202, %p1203
    %p1205 = scmp.ne.s32.totalorder %s1193, %s1194
    %p1206 = scmp.eq.s32.totalorder %s155, 1
    %p1207 = por %p1205, %p1206
    %p1209 = scmp.ne.s32.totalorder %s1194, %s1208
    %p1210 = scmp.eq.s32.totalorder %s155, 0
    %p1211 = por %p1209, %p1210
    %s1213 = sadd.s32 %s1212, 1
    %p1216 = scmp.eq.s32.totalorder %s149, 1
    %p1217 = scmp.ne.s32.totalorder %s1212, %s1214
    %p1218 = scmp.eq.s32.totalorder %s149, 0
    %p1219 = por %p1217, %p1218
    %p1220 = scmp.ne.s32.totalorder %s1212, %s1214
    %p1221 = scmp.eq.s32.totalorder %s154, 1
    %p1222 = por %p1220, %p1221
    %p1223 = scmp.ne.s32.totalorder %s1214, %s1215
    %p1224 = scmp.eq.s32.totalorder %s154, 0
    %p1225 = por %p1223, %p1224
    %p1226 = scmp.ne.s32.totalorder %s1214, %s1215
    %p1227 = scmp.eq.s32.totalorder %s155, 1
    %p1228 = por %p1226, %p1227
    %p1230 = scmp.ne.s32.totalorder %s1215, %s1229
    %p1231 = scmp.eq.s32.totalorder %s155, 0
    %p1232 = por %p1230, %p1231
    %s1234 = sadd.s32 %s1233, 1
    %p1237 = scmp.eq.s32.totalorder %s149, 1
    %p1238 = scmp.ne.s32.totalorder %s1233, %s1235
    %p1239 = scmp.eq.s32.totalorder %s149, 0
    %p1240 = por %p1238, %p1239
    %p1241 = scmp.ne.s32.totalorder %s1233, %s1235
    %p1242 = scmp.eq.s32.totalorder %s154, 1
    %p1243 = por %p1241, %p1242
    %p1244 = scmp.ne.s32.totalorder %s1235, %s1236
    %p1245 = scmp.eq.s32.totalorder %s154, 0
    %p1246 = por %p1244, %p1245
    %p1247 = scmp.ne.s32.totalorder %s1235, %s1236
    %p1248 = scmp.eq.s32.totalorder %s155, 1
    %p1249 = por %p1247, %p1248
    %p1251 = scmp.ne.s32.totalorder %s1236, %s1250
    %p1252 = scmp.eq.s32.totalorder %s155, 0
    %p1253 = por %p1251, %p1252
    %s1255 = sadd.s32 %s1254, 1
    %p1258 = scmp.eq.s32.totalorder %s149, 1
    %p1259 = scmp.ne.s32.totalorder %s1254, %s1256
    %p1260 = scmp.eq.s32.totalorder %s149, 0
    %p1261 = por %p1259, %p1260
    %p1262 = scmp.ne.s32.totalorder %s1254, %s1256
    %p1263 = scmp.eq.s32.totalorder %s154, 1
    %p1264 = por %p1262, %p1263
    %p1265 = scmp.ne.s32.totalorder %s1256, %s1257
    %p1266 = scmp.eq.s32.totalorder %s154, 0
    %p1267 = por %p1265, %p1266
    %p1268 = scmp.ne.s32.totalorder %s1256, %s1257
    %p1269 = scmp.eq.s32.totalorder %s155, 1
    %p1270 = por %p1268, %p1269
    %p1272 = scmp.ne.s32.totalorder %s1257, %s1271
    %p1273 = scmp.eq.s32.totalorder %s155, 0
    %p1274 = por %p1272, %p1273
    %s1276 = sadd.s32 %s1275, 1
    %p1279 = scmp.eq.s32.totalorder %s149, 1
    %p1280 = scmp.ne.s32.totalorder %s1275, %s1277
    %p1281 = scmp.eq.s32.totalorder %s149, 0
    %p1282 = por %p1280, %p1281
    %p1283 = scmp.ne.s32.totalorder %s1275, %s1277
    %p1284 = scmp.eq.s32.totalorder %s154, 1
    %p1285 = por %p1283, %p1284
    %p1286 = scmp.ne.s32.totalorder %s1277, %s1278
    %p1287 = scmp.eq.s32.totalorder %s154, 0
    %p1288 = por %p1286, %p1287
    %p1289 = scmp.ne.s32.totalorder %s1277, %s1278
    %p1290 = scmp.eq.s32.totalorder %s155, 1
    %p1291 = por %p1289, %p1290
    %p1293 = scmp.ne.s32.totalorder %s1278, %s1292
    %p1294 = scmp.eq.s32.totalorder %s155, 0
    %p1295 = por %p1293, %p1294
    %s1297 = sadd.s32 %s1296, 1
    %p1300 = scmp.eq.s32.totalorder %s149, 1
    %p1301 = scmp.ne.s32.totalorder %s1296, %s1298
    %p1302 = scmp.eq.s32.totalorder %s149, 0
    %p1303 = por %p1301, %p1302
    %p1304 = scmp.ne.s32.totalorder %s1296, %s1298
    %p1305 = scmp.eq.s32.totalorder %s154, 1
    %p1306 = por %p1304, %p1305
    %p1307 = scmp.ne.s32.totalorder %s1298, %s1299
    %p1308 = scmp.eq.s32.totalorder %s154, 0
    %p1309 = por %p1307, %p1308
    %p1310 = scmp.ne.s32.totalorder %s1298, %s1299
    %p1311 = scmp.eq.s32.totalorder %s155, 1
    %p1312 = por %p1310, %p1311
    %p1314 = scmp.ne.s32.totalorder %s1299, %s1313
    %p1315 = scmp.eq.s32.totalorder %s155, 0
    %p1316 = por %p1314, %p1315
    %s1318 = sadd.s32 %s1317, 1
    %p1321 = scmp.eq.s32.totalorder %s149, 1
    %p1322 = scmp.ne.s32.totalorder %s1317, %s1319
    %p1323 = scmp.eq.s32.totalorder %s149, 0
    %p1324 = por %p1322, %p1323
    %p1325 = scmp.ne.s32.totalorder %s1317, %s1319
    %p1326 = scmp.eq.s32.totalorder %s154, 1
    %p1327 = por %p1325, %p1326
    %p1328 = scmp.ne.s32.totalorder %s1319, %s1320
    %p1329 = scmp.eq.s32.totalorder %s154, 0
    %p1330 = por %p1328, %p1329
    %p1331 = scmp.ne.s32.totalorder %s1319, %s1320
    %p1332 = scmp.eq.s32.totalorder %s155, 1
    %p1333 = por %p1331, %p1332
    %p1335 = scmp.ne.s32.totalorder %s1320, %s1334
    %p1336 = scmp.eq.s32.totalorder %s155, 0
    %p1337 = por %p1335, %p1336
    %s1339 = sadd.s32 %s1338, 1
    %p1342 = scmp.eq.s32.totalorder %s149, 1
    %p1343 = scmp.ne.s32.totalorder %s1338, %s1340
    %p1344 = scmp.eq.s32.totalorder %s149, 0
    %p1345 = por %p1343, %p1344
    %p1346 = scmp.ne.s32.totalorder %s1338, %s1340
    %p1347 = scmp.eq.s32.totalorder %s154, 1
    %p1348 = por %p1346, %p1347
    %p1349 = scmp.ne.s32.totalorder %s1340, %s1341
    %p1350 = scmp.eq.s32.totalorder %s154, 0
    %p1351 = por %p1349, %p1350
    %p1352 = scmp.ne.s32.totalorder %s1340, %s1341
    %p1353 = scmp.eq.s32.totalorder %s155, 1
    %p1354 = por %p1352, %p1353
    %p1356 = scmp.ne.s32.totalorder %s1341, %s1355
    %p1357 = scmp.eq.s32.totalorder %s155, 0
    %p1358 = por %p1356, %p1357
    %s1360 = sadd.s32 %s1359, 1
    %p1363 = scmp.eq.s32.totalorder %s149, 1
    %p1364 = scmp.ne.s32.totalorder %s1359, %s1361
    %p1365 = scmp.eq.s32.totalorder %s149, 0
    %p1366 = por %p1364, %p1365
    %p1367 = scmp.ne.s32.totalorder %s1359, %s1361
    %p1368 = scmp.eq.s32.totalorder %s154, 1
    %p1369 = por %p1367, %p1368
    %p1370 = scmp.ne.s32.totalorder %s1361, %s1362
    %p1371 = scmp.eq.s32.totalorder %s154, 0
    %p1372 = por %p1370, %p1371
    %p1373 = scmp.ne.s32.totalorder %s1361, %s1362
    %p1374 = scmp.eq.s32.totalorder %s155, 1
    %p1375 = por %p1373, %p1374
    %p1377 = scmp.ne.s32.totalorder %s1362, %s1376
    %p1378 = scmp.eq.s32.totalorder %s155, 0
    %p1379 = por %p1377, %p1378
    %s1381 = sadd.s32 %s1380, 1
    %p1384 = scmp.eq.s32.totalorder %s149, 1
    %p1385 = scmp.ne.s32.totalorder %s1380, %s1382
    %p1386 = scmp.eq.s32.totalorder %s149, 0
    %p1387 = por %p1385, %p1386
    %p1388 = scmp.ne.s32.totalorder %s1380, %s1382
    %p1389 = scmp.eq.s32.totalorder %s154, 1
    %p1390 = por %p1388, %p1389
    %p1391 = scmp.ne.s32.totalorder %s1382, %s1383
    %p1392 = scmp.eq.s32.totalorder %s154, 0
    %p1393 = por %p1391, %p1392
    %p1394 = scmp.ne.s32.totalorder %s1382, %s1383
    %p1395 = scmp.eq.s32.totalorder %s155, 1
    %p1396 = por %p1394, %p1395
    %p1398 = scmp.ne.s32.totalorder %s1383, %s1397
    %p1399 = scmp.eq.s32.totalorder %s155, 0
    %p1400 = por %p1398, %p1399
    %s1402 = sadd.s32 %s1401, 1
    %p1405 = scmp.eq.s32.totalorder %s149, 1
    %p1406 = scmp.ne.s32.totalorder %s1401, %s1403
    %p1407 = scmp.eq.s32.totalorder %s149, 0
    %p1408 = por %p1406, %p1407
    %p1409 = scmp.ne.s32.totalorder %s1401, %s1403
    %p1410 = scmp.eq.s32.totalorder %s154, 1
    %p1411 = por %p1409, %p1410
    %p1412 = scmp.ne.s32.totalorder %s1403, %s1404
    %p1413 = scmp.eq.s32.totalorder %s154, 0
    %p1414 = por %p1412, %p1413
    %p1415 = scmp.ne.s32.totalorder %s1403, %s1404
    %p1416 = scmp.eq.s32.totalorder %s155, 1
    %p1417 = por %p1415, %p1416
    %p1419 = scmp.ne.s32.totalorder %s1404, %s1418
    %p1420 = scmp.eq.s32.totalorder %s155, 0
    %p1421 = por %p1419, %p1420
    %s1423 = sadd.s32 %s1422, 1
    %p1426 = scmp.eq.s32.totalorder %s149, 1
    %p1427 = scmp.ne.s32.totalorder %s1422, %s1424
    %p1428 = scmp.eq.s32.totalorder %s149, 0
    %p1429 = por %p1427, %p1428
    %p1430 = scmp.ne.s32.totalorder %s1422, %s1424
    %p1431 = scmp.eq.s32.totalorder %s154, 1
    %p1432 = por %p1430, %p1431
    %p1433 = scmp.ne.s32.totalorder %s1424, %s1425
    %p1434 = scmp.eq.s32.totalorder %s154, 0
    %p1435 = por %p1433, %p1434
    %p1436 = scmp.ne.s32.totalorder %s1424, %s1425
    %p1437 = scmp.eq.s32.totalorder %s155, 1
    %p1438 = por %p1436, %p1437
    %p1440 = scmp.ne.s32.totalorder %s1425, %s1439
    %p1441 = scmp.eq.s32.totalorder %s155, 0
    %p1442 = por %p1440, %p1441
    %s1444 = sadd.s32 %s1443, 1
    %p1447 = scmp.eq.s32.totalorder %s149, 1
    %p1448 = scmp.ne.s32.totalorder %s1443, %s1445
    %p1449 = scmp.eq.s32.totalorder %s149, 0
    %p1450 = por %p1448, %p1449
    %p1451 = scmp.ne.s32.totalorder %s1443, %s1445
    %p1452 = scmp.eq.s32.totalorder %s154, 1
    %p1453 = por %p1451, %p1452
    %p1454 = scmp.ne.s32.totalorder %s1445, %s1446
    %p1455 = scmp.eq.s32.totalorder %s154, 0
    %p1456 = por %p1454, %p1455
    %p1457 = scmp.ne.s32.totalorder %s1445, %s1446
    %p1458 = scmp.eq.s32.totalorder %s155, 1
    %p1459 = por %p1457, %p1458
    %p1461 = scmp.ne.s32.totalorder %s1446, %s1460
    %p1462 = scmp.eq.s32.totalorder %s155, 0
    %p1463 = por %p1461, %p1462
    %s1465 = sadd.s32 %s1464, 1
    %p1468 = scmp.eq.s32.totalorder %s149, 1
    %p1469 = scmp.ne.s32.totalorder %s1464, %s1466
    %p1470 = scmp.eq.s32.totalorder %s149, 0
    %p1471 = por %p1469, %p1470
    %p1472 = scmp.ne.s32.totalorder %s1464, %s1466
    %p1473 = scmp.eq.s32.totalorder %s154, 1
    %p1474 = por %p1472, %p1473
    %p1475 = scmp.ne.s32.totalorder %s1466, %s1467
    %p1476 = scmp.eq.s32.totalorder %s154, 0
    %p1477 = por %p1475, %p1476
    %p1478 = scmp.ne.s32.totalorder %s1466, %s1467
    %p1479 = scmp.eq.s32.totalorder %s155, 1
    %p1480 = por %p1478, %p1479
    %p1482 = scmp.ne.s32.totalorder %s1467, %s1481
    %p1483 = scmp.eq.s32.totalorder %s155, 0
    %p1484 = por %p1482, %p1483
    %s1486 = sadd.s32 %s1485, 1
    %p1489 = scmp.eq.s32.totalorder %s149, 1
    %p1490 = scmp.ne.s32.totalorder %s1485, %s1487
    %p1491 = scmp.eq.s32.totalorder %s149, 0
    %p1492 = por %p1490, %p1491
    %p1493 = scmp.ne.s32.totalorder %s1485, %s1487
    %p1494 = scmp.eq.s32.totalorder %s154, 1
    %p1495 = por %p1493, %p1494
    %p1496 = scmp.ne.s32.totalorder %s1487, %s1488
    %p1497 = scmp.eq.s32.totalorder %s154, 0
    %p1498 = por %p1496, %p1497
    %p1499 = scmp.ne.s32.totalorder %s1487, %s1488
    %p1500 = scmp.eq.s32.totalorder %s155, 1
    %p1501 = por %p1499, %p1500
    %p1503 = scmp.ne.s32.totalorder %s1488, %s1502
    %p1504 = scmp.eq.s32.totalorder %s155, 0
    %p1505 = por %p1503, %p1504
    %s1507 = sadd.s32 %s1506, 1
    %p1510 = scmp.eq.s32.totalorder %s149, 1
    %p1511 = scmp.ne.s32.totalorder %s1506, %s1508
    %p1512 = scmp.eq.s32.totalorder %s149, 0
    %p1513 = por %p1511, %p1512
    %p1514 = scmp.ne.s32.totalorder %s1506, %s1508
    %p1515 = scmp.eq.s32.totalorder %s154, 1
    %p1516 = por %p1514, %p1515
    %p1517 = scmp.ne.s32.totalorder %s1508, %s1509
    %p1518 = scmp.eq.s32.totalorder %s154, 0
    %p1519 = por %p1517, %p1518
    %p1520 = scmp.ne.s32.totalorder %s1508, %s1509
    %p1521 = scmp.eq.s32.totalorder %s155, 1
    %p1522 = por %p1520, %p1521
    %p1524 = scmp.ne.s32.totalorder %s1509, %s1523
    %p1525 = scmp.eq.s32.totalorder %s155, 0
    %p1526 = por %p1524, %p1525
    %s1528 = sadd.s32 %s1527, 1
    %p1531 = scmp.eq.s32.totalorder %s149, 1
    %p1532 = scmp.ne.s32.totalorder %s1527, %s1529
    %p1533 = scmp.eq.s32.totalorder %s149, 0
    %p1534 = por %p1532, %p1533
    %p1535 = scmp.ne.s32.totalorder %s1527, %s1529
    %p1536 = scmp.eq.s32.totalorder %s154, 1
    %p1537 = por %p1535, %p1536
    %p1538 = scmp.ne.s32.totalorder %s1529, %s1530
    %p1539 = scmp.eq.s32.totalorder %s154, 0
    %p1540 = por %p1538, %p1539
    %p1541 = scmp.ne.s32.totalorder %s1529, %s1530
    %p1542 = scmp.eq.s32.totalorder %s155, 1
    %p1543 = por %p1541, %p1542
    %p1545 = scmp.ne.s32.totalorder %s1530, %s1544
    %p1546 = scmp.eq.s32.totalorder %s155, 0
    %p1547 = por %p1545, %p1546
    %s1549 = sadd.s32 %s1548, 1
    %p1552 = scmp.eq.s32.totalorder %s149, 1
    %p1553 = scmp.ne.s32.totalorder %s1548, %s1550
    %p1554 = scmp.eq.s32.totalorder %s149, 0
    %p1555 = por %p1553, %p1554
    %p1556 = scmp.ne.s32.totalorder %s1548, %s1550
    %p1557 = scmp.eq.s32.totalorder %s154, 1
    %p1558 = por %p1556, %p1557
    %p1559 = scmp.ne.s32.totalorder %s1550, %s1551
    %p1560 = scmp.eq.s32.totalorder %s154, 0
    %p1561 = por %p1559, %p1560
    %p1562 = scmp.ne.s32.totalorder %s1550, %s1551
    %p1563 = scmp.eq.s32.totalorder %s155, 1
    %p1564 = por %p1562, %p1563
    %p1566 = scmp.ne.s32.totalorder %s1551, %s1565
    %p1567 = scmp.eq.s32.totalorder %s155, 0
    %p1568 = por %p1566, %p1567
    %s1570 = sadd.s32 %s1569, 1
    %p1573 = scmp.eq.s32.totalorder %s149, 1
    %p1574 = scmp.ne.s32.totalorder %s1569, %s1571
    %p1575 = scmp.eq.s32.totalorder %s149, 0
    %p1576 = por %p1574, %p1575
    %p1577 = scmp.ne.s32.totalorder %s1569, %s1571
    %p1578 = scmp.eq.s32.totalorder %s154, 1
    %p1579 = por %p1577, %p1578
    %p1580 = scmp.ne.s32.totalorder %s1571, %s1572
    %p1581 = scmp.eq.s32.totalorder %s154, 0
    %p1582 = por %p1580, %p1581
    %p1583 = scmp.ne.s32.totalorder %s1571, %s1572
    %p1584 = scmp.eq.s32.totalorder %s155, 1
    %p1585 = por %p1583, %p1584
    %p1587 = scmp.ne.s32.totalorder %s1572, %s1586
    %p1588 = scmp.eq.s32.totalorder %s155, 0
    %p1589 = por %p1587, %p1588
    %s1591 = sadd.s32 %s1590, 1
    %p1594 = scmp.eq.s32.totalorder %s149, 1
    %p1595 = scmp.ne.s32.totalorder %s1590, %s1592
    %p1596 = scmp.eq.s32.totalorder %s149, 0
    %p1597 = por %p1595, %p1596
    %p1598 = scmp.ne.s32.totalorder %s1590, %s1592
    %p1599 = scmp.eq.s32.totalorder %s154, 1
    %p1600 = por %p1598, %p1599
    %p1601 = scmp.ne.s32.totalorder %s1592, %s1593
    %p1602 = scmp.eq.s32.totalorder %s154, 0
    %p1603 = por %p1601, %p1602
    %p1604 = scmp.ne.s32.totalorder %s1592, %s1593
    %p1605 = scmp.eq.s32.totalorder %s155, 1
    %p1606 = por %p1604, %p1605
    %p1608 = scmp.ne.s32.totalorder %s1593, %s1607
    %p1609 = scmp.eq.s32.totalorder %s155, 0
    %p1610 = por %p1608, %p1609
    %s1612 = sadd.s32 %s1611, 1
    %p1615 = scmp.eq.s32.totalorder %s149, 1
    %p1616 = scmp.ne.s32.totalorder %s1611, %s1613
    %p1617 = scmp.eq.s32.totalorder %s149, 0
    %p1618 = por %p1616, %p1617
    %p1619 = scmp.ne.s32.totalorder %s1611, %s1613
    %p1620 = scmp.eq.s32.totalorder %s154, 1
    %p1621 = por %p1619, %p1620
    %p1622 = scmp.ne.s32.totalorder %s1613, %s1614
    %p1623 = scmp.eq.s32.totalorder %s154, 0
    %p1624 = por %p1622, %p1623
    %p1625 = scmp.ne.s32.totalorder %s1613, %s1614
    %p1626 = scmp.eq.s32.totalorder %s155, 1
    %p1627 = por %p1625, %p1626
    %p1629 = scmp.ne.s32.totalorder %s1614, %s1628
    %p1630 = scmp.eq.s32.totalorder %s155, 0
    %p1631 = por %p1629, %p1630
    %s1633 = sadd.s32 %s1632, 1
    %p1636 = scmp.eq.s32.totalorder %s149, 1
    %p1637 = scmp.ne.s32.totalorder %s1632, %s1634
    %p1638 = scmp.eq.s32.totalorder %s149, 0
    %p1639 = por %p1637, %p1638
    %p1640 = scmp.ne.s32.totalorder %s1632, %s1634
    %p1641 = scmp.eq.s32.totalorder %s154, 1
    %p1642 = por %p1640, %p1641
    %p1643 = scmp.ne.s32.totalorder %s1634, %s1635
    %p1644 = scmp.eq.s32.totalorder %s154, 0
    %p1645 = por %p1643, %p1644
    %p1646 = scmp.ne.s32.totalorder %s1634, %s1635
    %p1647 = scmp.eq.s32.totalorder %s155, 1
    %p1648 = por %p1646, %p1647
    %p1650 = scmp.ne.s32.totalorder %s1635, %s1649
    %p1651 = scmp.eq.s32.totalorder %s155, 0
    %p1652 = por %p1650, %p1651
    %s1653 = ssub.s32 %s149, %s156
    %p1654 = scmp.eq.s32.totalorder %s1653, 0
    %s1656 = sadd.s32 %s1655, 1
    %s1657 = scalar_select %p1654, %s1655, %s1656
    %p1660 = pneg %p1654
    %p1661 = scmp.eq.s32.totalorder %s149, 1
    %p1662 = por %p1660, %p1661
    %p1663 = scmp.ne.s32.totalorder %s1655, %s1658
    %p1664 = scmp.eq.s32.totalorder %s149, 0
    %p1665 = por %p1663, %p1664
    %p1666 = scmp.ne.s32.totalorder %s1655, %s1658
    %p1667 = scmp.eq.s32.totalorder %s154, 1
    %p1668 = por %p1666, %p1667
    %p1669 = scmp.ne.s32.totalorder %s1658, %s1659
    %p1670 = scmp.eq.s32.totalorder %s154, 0
    %p1671 = por %p1669, %p1670
    %p1672 = scmp.ne.s32.totalorder %s1658, %s1659
    %p1673 = scmp.eq.s32.totalorder %s155, 1
    %p1674 = por %p1672, %p1673
    %p1676 = scmp.ne.s32.totalorder %s1659, %s1675
    %p1677 = scmp.eq.s32.totalorder %s155, 0
    %p1678 = por %p1676, %p1677
    %p1679 = scmp.le.s32.totalorder 1, %s149
    %p1680 = scmp.lt.s32.totalorder %s149, 3
    %p1681 = pnand %p1679, %p1680
    %p1682 = pneg %p1681
    // Predicated region
    $region9: #{_lambda_.1} parent=5 // pred_check
      _
    $region10: #{_lambda_.1} parent=5 // pred_check_branch
      %1684 = sbr.rel (%p1681) target = $region12
    $region11: #{_lambda_.1} parent=5 // pred_region
      %s1685 = ssub.s32 %s149, 1
      // Predicated region
      $region13: #{_lambda_.1} parent=11 // pred_check
        %p1686 = pneg %p196
      $region14: #{_lambda_.1} parent=11 // pred_check_branch
        %1688 = sbr.rel (%p1686) target = $region16
      $region15: #{_lambda_.1} parent=11 // pred_region
        _
      $region16: #{_lambda_.1} parent=11 // pred_fallthru
        _
      // Predicated region
      $region17: #{_lambda_.1} parent=11 // pred_check
        %p1689 = pneg %p217
      $region18: #{_lambda_.1} parent=11 // pred_check_branch
        %1691 = sbr.rel (%p1689) target = $region20
      $region19: #{_lambda_.1} parent=11 // pred_region
        _
      $region20: #{_lambda_.1} parent=11 // pred_fallthru
        _
      // Predicated region
      $region21: #{_lambda_.1} parent=11 // pred_check
        %p1692 = pneg %p238
      $region22: #{_lambda_.1} parent=11 // pred_check_branch
        %1694 = sbr.rel (%p1692) target = $region24
      $region23: #{_lambda_.1} parent=11 // pred_region
        _
      $region24: #{_lambda_.1} parent=11 // pred_fallthru
        _
      // Predicated region
      $region25: #{_lambda_.1} parent=11 // pred_check
        %p1695 = pneg %p259
      $region26: #{_lambda_.1} parent=11 // pred_check_branch
        %1697 = sbr.rel (%p1695) target = $region28
      $region27: #{_lambda_.1} parent=11 // pred_region
        _
      $region28: #{_lambda_.1} parent=11 // pred_fallthru
        _
      // Predicated region
      $region29: #{_lambda_.1} parent=11 // pred_check
        %p1698 = pneg %p280
      $region30: #{_lambda_.1} parent=11 // pred_check_branch
        %1700 = sbr.rel (%p1698) target = $region32
      $region31: #{_lambda_.1} parent=11 // pred_region
        _
      $region32: #{_lambda_.1} parent=11 // pred_fallthru
        _
      // Predicated region
      $region33: #{_lambda_.1} parent=11 // pred_check
        %p1701 = pneg %p301
      $region34: #{_lambda_.1} parent=11 // pred_check_branch
        %1703 = sbr.rel (%p1701) target = $region36
      $region35: #{_lambda_.1} parent=11 // pred_region
        _
      $region36: #{_lambda_.1} parent=11 // pred_fallthru
        _
      // Predicated region
      $region37: #{_lambda_.1} parent=11 // pred_check
        %p1704 = pneg %p322
      $region38: #{_lambda_.1} parent=11 // pred_check_branch
        %1706 = sbr.rel (%p1704) target = $region40
      $region39: #{_lambda_.1} parent=11 // pred_region
        _
      $region40: #{_lambda_.1} parent=11 // pred_fallthru
        _
      // Predicated region
      $region41: #{_lambda_.1} parent=11 // pred_check
        %p1707 = pneg %p343
      $region42: #{_lambda_.1} parent=11 // pred_check_branch
        %1709 = sbr.rel (%p1707) target = $region44
      $region43: #{_lambda_.1} parent=11 // pred_region
        _
      $region44: #{_lambda_.1} parent=11 // pred_fallthru
        _
      // Predicated region
      $region45: #{_lambda_.1} parent=11 // pred_check
        %p1710 = pneg %p364
      $region46: #{_lambda_.1} parent=11 // pred_check_branch
        %1712 = sbr.rel (%p1710) target = $region48
      $region47: #{_lambda_.1} parent=11 // pred_region
        _
      $region48: #{_lambda_.1} parent=11 // pred_fallthru
        _
      // Predicated region
      $region49: #{_lambda_.1} parent=11 // pred_check
        %p1713 = pneg %p385
      $region50: #{_lambda_.1} parent=11 // pred_check_branch
        %1715 = sbr.rel (%p1713) target = $region52
      $region51: #{_lambda_.1} parent=11 // pred_region
        _
      $region52: #{_lambda_.1} parent=11 // pred_fallthru
        _
      // Predicated region
      $region53: #{_lambda_.1} parent=11 // pred_check
        %p1716 = pneg %p406
      $region54: #{_lambda_.1} parent=11 // pred_check_branch
        %1718 = sbr.rel (%p1716) target = $region56
      $region55: #{_lambda_.1} parent=11 // pred_region
        _
      $region56: #{_lambda_.1} parent=11 // pred_fallthru
        _
      // Predicated region
      $region57: #{_lambda_.1} parent=11 // pred_check
        %p1719 = pneg %p427
      $region58: #{_lambda_.1} parent=11 // pred_check_branch
        %1721 = sbr.rel (%p1719) target = $region60
      $region59: #{_lambda_.1} parent=11 // pred_region
        _
      $region60: #{_lambda_.1} parent=11 // pred_fallthru
        _
      // Predicated region
      $region61: #{_lambda_.1} parent=11 // pred_check
        %p1722 = pneg %p448
      $region62: #{_lambda_.1} parent=11 // pred_check_branch
        %1724 = sbr.rel (%p1722) target = $region64
      $region63: #{_lambda_.1} parent=11 // pred_region
        _
      $region64: #{_lambda_.1} parent=11 // pred_fallthru
        _
      // Predicated region
      $region65: #{_lambda_.1} parent=11 // pred_check
        %p1725 = pneg %p469
      $region66: #{_lambda_.1} parent=11 // pred_check_branch
        %1727 = sbr.rel (%p1725) target = $region68
      $region67: #{_lambda_.1} parent=11 // pred_region
        _
      $region68: #{_lambda_.1} parent=11 // pred_fallthru
        _
      // Predicated region
      $region69: #{_lambda_.1} parent=11 // pred_check
        %p1728 = pneg %p490
      $region70: #{_lambda_.1} parent=11 // pred_check_branch
        %1730 = sbr.rel (%p1728) target = $region72
      $region71: #{_lambda_.1} parent=11 // pred_region
        _
      $region72: #{_lambda_.1} parent=11 // pred_fallthru
        _
      // Predicated region
      $region73: #{_lambda_.1} parent=11 // pred_check
        %p1731 = pneg %p511
      $region74: #{_lambda_.1} parent=11 // pred_check_branch
        %1733 = sbr.rel (%p1731) target = $region76
      $region75: #{_lambda_.1} parent=11 // pred_region
        _
      $region76: #{_lambda_.1} parent=11 // pred_fallthru
        _
      // Predicated region
      $region77: #{_lambda_.1} parent=11 // pred_check
        %p1734 = pneg %p532
      $region78: #{_lambda_.1} parent=11 // pred_check_branch
        %1736 = sbr.rel (%p1734) target = $region80
      $region79: #{_lambda_.1} parent=11 // pred_region
        _
      $region80: #{_lambda_.1} parent=11 // pred_fallthru
        _
      // Predicated region
      $region81: #{_lambda_.1} parent=11 // pred_check
        %p1737 = pneg %p553
      $region82: #{_lambda_.1} parent=11 // pred_check_branch
        %1739 = sbr.rel (%p1737) target = $region84
      $region83: #{_lambda_.1} parent=11 // pred_region
        _
      $region84: #{_lambda_.1} parent=11 // pred_fallthru
        _
      // Predicated region
      $region85: #{_lambda_.1} parent=11 // pred_check
        %p1740 = pneg %p574
      $region86: #{_lambda_.1} parent=11 // pred_check_branch
        %1742 = sbr.rel (%p1740) target = $region88
      $region87: #{_lambda_.1} parent=11 // pred_region
        _
      $region88: #{_lambda_.1} parent=11 // pred_fallthru
        _
      // Predicated region
      $region89: #{_lambda_.1} parent=11 // pred_check
        %p1743 = pneg %p595
      $region90: #{_lambda_.1} parent=11 // pred_check_branch
        %1745 = sbr.rel (%p1743) target = $region92
      $region91: #{_lambda_.1} parent=11 // pred_region
        _
      $region92: #{_lambda_.1} parent=11 // pred_fallthru
        _
      // Predicated region
      $region93: #{_lambda_.1} parent=11 // pred_check
        %p1746 = pneg %p616
      $region94: #{_lambda_.1} parent=11 // pred_check_branch
        %1748 = sbr.rel (%p1746) target = $region96
      $region95: #{_lambda_.1} parent=11 // pred_region
        _
      $region96: #{_lambda_.1} parent=11 // pred_fallthru
        _
      // Predicated region
      $region97: #{_lambda_.1} parent=11 // pred_check
        %p1749 = pneg %p637
      $region98: #{_lambda_.1} parent=11 // pred_check_branch
        %1751 = sbr.rel (%p1749) target = $region100
      $region99: #{_lambda_.1} parent=11 // pred_region
        _
      $region100: #{_lambda_.1} parent=11 // pred_fallthru
        _
      // Predicated region
      $region101: #{_lambda_.1} parent=11 // pred_check
        %p1752 = pneg %p658
      $region102: #{_lambda_.1} parent=11 // pred_check_branch
        %1754 = sbr.rel (%p1752) target = $region104
      $region103: #{_lambda_.1} parent=11 // pred_region
        _
      $region104: #{_lambda_.1} parent=11 // pred_fallthru
        _
      // Predicated region
      $region105: #{_lambda_.1} parent=11 // pred_check
        %p1755 = pneg %p679
      $region106: #{_lambda_.1} parent=11 // pred_check_branch
        %1757 = sbr.rel (%p1755) target = $region108
      $region107: #{_lambda_.1} parent=11 // pred_region
        _
      $region108: #{_lambda_.1} parent=11 // pred_fallthru
        _
      // Predicated region
      $region109: #{_lambda_.1} parent=11 // pred_check
        %p1758 = pneg %p700
      $region110: #{_lambda_.1} parent=11 // pred_check_branch
        %1760 = sbr.rel (%p1758) target = $region112
      $region111: #{_lambda_.1} parent=11 // pred_region
        _
      $region112: #{_lambda_.1} parent=11 // pred_fallthru
        _
      // Predicated region
      $region113: #{_lambda_.1} parent=11 // pred_check
        %p1761 = pneg %p721
      $region114: #{_lambda_.1} parent=11 // pred_check_branch
        %1763 = sbr.rel (%p1761) target = $region116
      $region115: #{_lambda_.1} parent=11 // pred_region
        _
      $region116: #{_lambda_.1} parent=11 // pred_fallthru
        _
      // Predicated region
      $region117: #{_lambda_.1} parent=11 // pred_check
        %p1764 = pneg %p742
      $region118: #{_lambda_.1} parent=11 // pred_check_branch
        %1766 = sbr.rel (%p1764) target = $region120
      $region119: #{_lambda_.1} parent=11 // pred_region
        _
      $region120: #{_lambda_.1} parent=11 // pred_fallthru
        _
      // Predicated region
      $region121: #{_lambda_.1} parent=11 // pred_check
        %p1767 = pneg %p763
      $region122: #{_lambda_.1} parent=11 // pred_check_branch
        %1769 = sbr.rel (%p1767) target = $region124
      $region123: #{_lambda_.1} parent=11 // pred_region
        _
      $region124: #{_lambda_.1} parent=11 // pred_fallthru
        _
      // Predicated region
      $region125: #{_lambda_.1} parent=11 // pred_check
        %p1770 = pneg %p784
      $region126: #{_lambda_.1} parent=11 // pred_check_branch
        %1772 = sbr.rel (%p1770) target = $region128
      $region127: #{_lambda_.1} parent=11 // pred_region
        _
      $region128: #{_lambda_.1} parent=11 // pred_fallthru
        _
      // Predicated region
      $region129: #{_lambda_.1} parent=11 // pred_check
        %p1773 = pneg %p805
      $region130: #{_lambda_.1} parent=11 // pred_check_branch
        %1775 = sbr.rel (%p1773) target = $region132
      $region131: #{_lambda_.1} parent=11 // pred_region
        _
      $region132: #{_lambda_.1} parent=11 // pred_fallthru
        _
      // Predicated region
      $region133: #{_lambda_.1} parent=11 // pred_check
        %p1776 = pneg %p826
      $region134: #{_lambda_.1} parent=11 // pred_check_branch
        %1778 = sbr.rel (%p1776) target = $region136
      $region135: #{_lambda_.1} parent=11 // pred_region
        _
      $region136: #{_lambda_.1} parent=11 // pred_fallthru
        _
      // Predicated region
      $region137: #{_lambda_.1} parent=11 // pred_check
        %p1779 = pneg %p847
      $region138: #{_lambda_.1} parent=11 // pred_check_branch
        %1781 = sbr.rel (%p1779) target = $region140
      $region139: #{_lambda_.1} parent=11 // pred_region
        _
      $region140: #{_lambda_.1} parent=11 // pred_fallthru
        _
      // Predicated region
      $region141: #{_lambda_.1} parent=11 // pred_check
        %p1782 = pneg %p868
      $region142: #{_lambda_.1} parent=11 // pred_check_branch
        %1784 = sbr.rel (%p1782) target = $region144
      $region143: #{_lambda_.1} parent=11 // pred_region
        _
      $region144: #{_lambda_.1} parent=11 // pred_fallthru
        _
      // Predicated region
      $region145: #{_lambda_.1} parent=11 // pred_check
        %p1785 = pneg %p889
      $region146: #{_lambda_.1} parent=11 // pred_check_branch
        %1787 = sbr.rel (%p1785) target = $region148
      $region147: #{_lambda_.1} parent=11 // pred_region
        _
      $region148: #{_lambda_.1} parent=11 // pred_fallthru
        _
      // Predicated region
      $region149: #{_lambda_.1} parent=11 // pred_check
        %p1788 = pneg %p910
      $region150: #{_lambda_.1} parent=11 // pred_check_branch
        %1790 = sbr.rel (%p1788) target = $region152
      $region151: #{_lambda_.1} parent=11 // pred_region
        _
      $region152: #{_lambda_.1} parent=11 // pred_fallthru
        _
      // Predicated region
      $region153: #{_lambda_.1} parent=11 // pred_check
        %p1791 = pneg %p931
      $region154: #{_lambda_.1} parent=11 // pred_check_branch
        %1793 = sbr.rel (%p1791) target = $region156
      $region155: #{_lambda_.1} parent=11 // pred_region
        _
      $region156: #{_lambda_.1} parent=11 // pred_fallthru
        _
      // Predicated region
      $region157: #{_lambda_.1} parent=11 // pred_check
        %p1794 = pneg %p952
      $region158: #{_lambda_.1} parent=11 // pred_check_branch
        %1796 = sbr.rel (%p1794) target = $region160
      $region159: #{_lambda_.1} parent=11 // pred_region
        _
      $region160: #{_lambda_.1} parent=11 // pred_fallthru
        _
      // Predicated region
      $region161: #{_lambda_.1} parent=11 // pred_check
        %p1797 = pneg %p973
      $region162: #{_lambda_.1} parent=11 // pred_check_branch
        %1799 = sbr.rel (%p1797) target = $region164
      $region163: #{_lambda_.1} parent=11 // pred_region
        _
      $region164: #{_lambda_.1} parent=11 // pred_fallthru
        _
      // Predicated region
      $region165: #{_lambda_.1} parent=11 // pred_check
        %p1800 = pneg %p994
      $region166: #{_lambda_.1} parent=11 // pred_check_branch
        %1802 = sbr.rel (%p1800) target = $region168
      $region167: #{_lambda_.1} parent=11 // pred_region
        _
      $region168: #{_lambda_.1} parent=11 // pred_fallthru
        _
      // Predicated region
      $region169: #{_lambda_.1} parent=11 // pred_check
        %p1803 = pneg %p1015
      $region170: #{_lambda_.1} parent=11 // pred_check_branch
        %1805 = sbr.rel (%p1803) target = $region172
      $region171: #{_lambda_.1} parent=11 // pred_region
        _
      $region172: #{_lambda_.1} parent=11 // pred_fallthru
        _
      // Predicated region
      $region173: #{_lambda_.1} parent=11 // pred_check
        %p1806 = pneg %p1036
      $region174: #{_lambda_.1} parent=11 // pred_check_branch
        %1808 = sbr.rel (%p1806) target = $region176
      $region175: #{_lambda_.1} parent=11 // pred_region
        _
      $region176: #{_lambda_.1} parent=11 // pred_fallthru
        _
      // Predicated region
      $region177: #{_lambda_.1} parent=11 // pred_check
        %p1809 = pneg %p1057
      $region178: #{_lambda_.1} parent=11 // pred_check_branch
        %1811 = sbr.rel (%p1809) target = $region180
      $region179: #{_lambda_.1} parent=11 // pred_region
        _
      $region180: #{_lambda_.1} parent=11 // pred_fallthru
        _
      // Predicated region
      $region181: #{_lambda_.1} parent=11 // pred_check
        %p1812 = pneg %p1078
      $region182: #{_lambda_.1} parent=11 // pred_check_branch
        %1814 = sbr.rel (%p1812) target = $region184
      $region183: #{_lambda_.1} parent=11 // pred_region
        _
      $region184: #{_lambda_.1} parent=11 // pred_fallthru
        _
      // Predicated region
      $region185: #{_lambda_.1} parent=11 // pred_check
        %p1815 = pneg %p1099
      $region186: #{_lambda_.1} parent=11 // pred_check_branch
        %1817 = sbr.rel (%p1815) target = $region188
      $region187: #{_lambda_.1} parent=11 // pred_region
        _
      $region188: #{_lambda_.1} parent=11 // pred_fallthru
        _
      // Predicated region
      $region189: #{_lambda_.1} parent=11 // pred_check
        %p1818 = pneg %p1120
      $region190: #{_lambda_.1} parent=11 // pred_check_branch
        %1820 = sbr.rel (%p1818) target = $region192
      $region191: #{_lambda_.1} parent=11 // pred_region
        _
      $region192: #{_lambda_.1} parent=11 // pred_fallthru
        _
      // Predicated region
      $region193: #{_lambda_.1} parent=11 // pred_check
        %p1821 = pneg %p1141
      $region194: #{_lambda_.1} parent=11 // pred_check_branch
        %1823 = sbr.rel (%p1821) target = $region196
      $region195: #{_lambda_.1} parent=11 // pred_region
        _
      $region196: #{_lambda_.1} parent=11 // pred_fallthru
        _
      // Predicated region
      $region197: #{_lambda_.1} parent=11 // pred_check
        %p1824 = pneg %p1162
      $region198: #{_lambda_.1} parent=11 // pred_check_branch
        %1826 = sbr.rel (%p1824) target = $region200
      $region199: #{_lambda_.1} parent=11 // pred_region
        _
      $region200: #{_lambda_.1} parent=11 // pred_fallthru
        _
      // Predicated region
      $region201: #{_lambda_.1} parent=11 // pred_check
        %p1827 = pneg %p1183
      $region202: #{_lambda_.1} parent=11 // pred_check_branch
        %1829 = sbr.rel (%p1827) target = $region204
      $region203: #{_lambda_.1} parent=11 // pred_region
        _
      $region204: #{_lambda_.1} parent=11 // pred_fallthru
        _
      // Predicated region
      $region205: #{_lambda_.1} parent=11 // pred_check
        %p1830 = pneg %p1204
      $region206: #{_lambda_.1} parent=11 // pred_check_branch
        %1832 = sbr.rel (%p1830) target = $region208
      $region207: #{_lambda_.1} parent=11 // pred_region
        _
      $region208: #{_lambda_.1} parent=11 // pred_fallthru
        _
      // Predicated region
      $region209: #{_lambda_.1} parent=11 // pred_check
        %p1833 = pneg %p1225
      $region210: #{_lambda_.1} parent=11 // pred_check_branch
        %1835 = sbr.rel (%p1833) target = $region212
      $region211: #{_lambda_.1} parent=11 // pred_region
        _
      $region212: #{_lambda_.1} parent=11 // pred_fallthru
        _
      // Predicated region
      $region213: #{_lambda_.1} parent=11 // pred_check
        %p1836 = pneg %p1246
      $region214: #{_lambda_.1} parent=11 // pred_check_branch
        %1838 = sbr.rel (%p1836) target = $region216
      $region215: #{_lambda_.1} parent=11 // pred_region
        _
      $region216: #{_lambda_.1} parent=11 // pred_fallthru
        _
      // Predicated region
      $region217: #{_lambda_.1} parent=11 // pred_check
        %p1839 = pneg %p1267
      $region218: #{_lambda_.1} parent=11 // pred_check_branch
        %1841 = sbr.rel (%p1839) target = $region220
      $region219: #{_lambda_.1} parent=11 // pred_region
        _
      $region220: #{_lambda_.1} parent=11 // pred_fallthru
        _
      // Predicated region
      $region221: #{_lambda_.1} parent=11 // pred_check
        %p1842 = pneg %p1288
      $region222: #{_lambda_.1} parent=11 // pred_check_branch
        %1844 = sbr.rel (%p1842) target = $region224
      $region223: #{_lambda_.1} parent=11 // pred_region
        _
      $region224: #{_lambda_.1} parent=11 // pred_fallthru
        _
      // Predicated region
      $region225: #{_lambda_.1} parent=11 // pred_check
        %p1845 = pneg %p1309
      $region226: #{_lambda_.1} parent=11 // pred_check_branch
        %1847 = sbr.rel (%p1845) target = $region228
      $region227: #{_lambda_.1} parent=11 // pred_region
        _
      $region228: #{_lambda_.1} parent=11 // pred_fallthru
        _
      // Predicated region
      $region229: #{_lambda_.1} parent=11 // pred_check
        %p1848 = pneg %p1330
      $region230: #{_lambda_.1} parent=11 // pred_check_branch
        %1850 = sbr.rel (%p1848) target = $region232
      $region231: #{_lambda_.1} parent=11 // pred_region
        _
      $region232: #{_lambda_.1} parent=11 // pred_fallthru
        _
      // Predicated region
      $region233: #{_lambda_.1} parent=11 // pred_check
        %p1851 = pneg %p1351
      $region234: #{_lambda_.1} parent=11 // pred_check_branch
        %1853 = sbr.rel (%p1851) target = $region236
      $region235: #{_lambda_.1} parent=11 // pred_region
        _
      $region236: #{_lambda_.1} parent=11 // pred_fallthru
        _
      // Predicated region
      $region237: #{_lambda_.1} parent=11 // pred_check
        %p1854 = pneg %p1372
      $region238: #{_lambda_.1} parent=11 // pred_check_branch
        %1856 = sbr.rel (%p1854) target = $region240
      $region239: #{_lambda_.1} parent=11 // pred_region
        _
      $region240: #{_lambda_.1} parent=11 // pred_fallthru
        _
      // Predicated region
      $region241: #{_lambda_.1} parent=11 // pred_check
        %p1857 = pneg %p1393
      $region242: #{_lambda_.1} parent=11 // pred_check_branch
        %1859 = sbr.rel (%p1857) target = $region244
      $region243: #{_lambda_.1} parent=11 // pred_region
        _
      $region244: #{_lambda_.1} parent=11 // pred_fallthru
        _
      // Predicated region
      $region245: #{_lambda_.1} parent=11 // pred_check
        %p1860 = pneg %p1414
      $region246: #{_lambda_.1} parent=11 // pred_check_branch
        %1862 = sbr.rel (%p1860) target = $region248
      $region247: #{_lambda_.1} parent=11 // pred_region
        _
      $region248: #{_lambda_.1} parent=11 // pred_fallthru
        _
      // Predicated region
      $region249: #{_lambda_.1} parent=11 // pred_check
        %p1863 = pneg %p1435
      $region250: #{_lambda_.1} parent=11 // pred_check_branch
        %1865 = sbr.rel (%p1863) target = $region252
      $region251: #{_lambda_.1} parent=11 // pred_region
        _
      $region252: #{_lambda_.1} parent=11 // pred_fallthru
        _
      // Predicated region
      $region253: #{_lambda_.1} parent=11 // pred_check
        %p1866 = pneg %p1456
      $region254: #{_lambda_.1} parent=11 // pred_check_branch
        %1868 = sbr.rel (%p1866) target = $region256
      $region255: #{_lambda_.1} parent=11 // pred_region
        _
      $region256: #{_lambda_.1} parent=11 // pred_fallthru
        _
      // Predicated region
      $region257: #{_lambda_.1} parent=11 // pred_check
        %p1869 = pneg %p1477
      $region258: #{_lambda_.1} parent=11 // pred_check_branch
        %1871 = sbr.rel (%p1869) target = $region260
      $region259: #{_lambda_.1} parent=11 // pred_region
        _
      $region260: #{_lambda_.1} parent=11 // pred_fallthru
        _
      // Predicated region
      $region261: #{_lambda_.1} parent=11 // pred_check
        %p1872 = pneg %p1498
      $region262: #{_lambda_.1} parent=11 // pred_check_branch
        %1874 = sbr.rel (%p1872) target = $region264
      $region263: #{_lambda_.1} parent=11 // pred_region
        _
      $region264: #{_lambda_.1} parent=11 // pred_fallthru
        _
      // Predicated region
      $region265: #{_lambda_.1} parent=11 // pred_check
        %p1875 = pneg %p1519
      $region266: #{_lambda_.1} parent=11 // pred_check_branch
        %1877 = sbr.rel (%p1875) target = $region268
      $region267: #{_lambda_.1} parent=11 // pred_region
        _
      $region268: #{_lambda_.1} parent=11 // pred_fallthru
        _
      // Predicated region
      $region269: #{_lambda_.1} parent=11 // pred_check
        %p1878 = pneg %p1540
      $region270: #{_lambda_.1} parent=11 // pred_check_branch
        %1880 = sbr.rel (%p1878) target = $region272
      $region271: #{_lambda_.1} parent=11 // pred_region
        _
      $region272: #{_lambda_.1} parent=11 // pred_fallthru
        _
      // Predicated region
      $region273: #{_lambda_.1} parent=11 // pred_check
        %p1881 = pneg %p1561
      $region274: #{_lambda_.1} parent=11 // pred_check_branch
        %1883 = sbr.rel (%p1881) target = $region276
      $region275: #{_lambda_.1} parent=11 // pred_region
        _
      $region276: #{_lambda_.1} parent=11 // pred_fallthru
        _
      // Predicated region
      $region277: #{_lambda_.1} parent=11 // pred_check
        %p1884 = pneg %p1582
      $region278: #{_lambda_.1} parent=11 // pred_check_branch
        %1886 = sbr.rel (%p1884) target = $region280
      $region279: #{_lambda_.1} parent=11 // pred_region
        _
      $region280: #{_lambda_.1} parent=11 // pred_fallthru
        _
      // Predicated region
      $region281: #{_lambda_.1} parent=11 // pred_check
        %p1887 = pneg %p1603
      $region282: #{_lambda_.1} parent=11 // pred_check_branch
        %1889 = sbr.rel (%p1887) target = $region284
      $region283: #{_lambda_.1} parent=11 // pred_region
        _
      $region284: #{_lambda_.1} parent=11 // pred_fallthru
        _
      // Predicated region
      $region285: #{_lambda_.1} parent=11 // pred_check
        %p1890 = pneg %p1624
      $region286: #{_lambda_.1} parent=11 // pred_check_branch
        %1892 = sbr.rel (%p1890) target = $region288
      $region287: #{_lambda_.1} parent=11 // pred_region
        _
      $region288: #{_lambda_.1} parent=11 // pred_fallthru
        _
      // Predicated region
      $region289: #{_lambda_.1} parent=11 // pred_check
        %p1893 = pneg %p1645
      $region290: #{_lambda_.1} parent=11 // pred_check_branch
        %1895 = sbr.rel (%p1893) target = $region292
      $region291: #{_lambda_.1} parent=11 // pred_region
        _
      $region292: #{_lambda_.1} parent=11 // pred_fallthru
        _
    $region12: #{_lambda_.1} parent=5 // pred_fallthru
      _
    %p1896 = scmp.lt.s32.totalorder %s149, 2
    // Predicated region
    $region293: #{_lambda_.1} parent=5 // pred_check
      %p1897 = pneg %p1896
    $region294: #{_lambda_.1} parent=5 // pred_check_branch
      %1899 = sbr.rel (%p1897) target = $region296
    $region295: #{_lambda_.1} parent=5 // pred_region
      // Predicated region
      $region297: #{_lambda_.1} parent=295 // pred_check
        %p1900 = pneg %p169
      $region298: #{_lambda_.1} parent=295 // pred_check_branch
        %1902 = sbr.rel (%p1900) target = $region300
      $region299: #{_lambda_.1} parent=295 // pred_region
        %p1903 = scmp.lt.s32.totalorder %s149, 1
        %s1904 = scalar_select %p1903, %s149, 1
        %s1905 = smul.addr %s1904, 8
        %s1906 = smul.addr %s1905, 8
        %s1907 = scalar_lea.vmem %s1, %s1906
      $region300: #{_lambda_.1} parent=295 // pred_fallthru
        _
    $region296: #{_lambda_.1} parent=5 // pred_fallthru
      _
    %p1908 = scmp.le.s32.totalorder 1, %s149
    %p1909 = scmp.lt.s32.totalorder %s149, 3
    %p1910 = pnand %p1908, %p1909
    %p1911 = pneg %p1910
    // Predicated region
    $region301: #{_lambda_.1} parent=5 // pred_check
      _
    $region302: #{_lambda_.1} parent=5 // pred_check_branch
      %1913 = sbr.rel (%p1910) target = $region304
    $region303: #{_lambda_.1} parent=5 // pred_region
      %s1914 = ssub.s32 %s149, 1
      %p1915 = scmp.lt.s32.totalorder %s154, 1
      %s1916 = scalar_select %p1915, %s154, 1
      %s1917 = smul.addr %s1916, 8
      %s1918 = smul.addr %s1917, 8
      %s1919 = scalar_lea.vmem %s1, %s1918
      %p1920 = pneg %p175
      %p1921 = pneg %p172
      %p1922 = pneg %p196
      %p1923 = pneg %p193
      %p1924 = pneg %p217
      %p1925 = pneg %p214
      %p1926 = pneg %p238
      %p1927 = pneg %p235
      %p1928 = pneg %p259
      %p1929 = pneg %p256
      %p1930 = pneg %p280
      %p1931 = pneg %p277
      %p1932 = pneg %p301
      %p1933 = pneg %p298
      %p1934 = pneg %p322
      %p1935 = pneg %p319
      %p1936 = pneg %p343
      %p1937 = pneg %p340
      %p1938 = pneg %p364
      %p1939 = pneg %p361
      %p1940 = pneg %p385
      %p1941 = pneg %p382
      %p1942 = pneg %p406
      %p1943 = pneg %p403
      %p1944 = pneg %p427
      %p1945 = pneg %p424
      %p1946 = pneg %p448
      %p1947 = pneg %p445
      %p1948 = pneg %p469
      %p1949 = pneg %p466
      %p1950 = pneg %p490
      %p1951 = pneg %p487
      %p1952 = pneg %p511
      %p1953 = pneg %p508
      %p1954 = pneg %p532
      %p1955 = pneg %p529
      %p1956 = pneg %p553
      %p1957 = pneg %p550
      %p1958 = pneg %p574
      %p1959 = pneg %p571
      %p1960 = pneg %p595
      %p1961 = pneg %p592
      %p1962 = pneg %p616
      %p1963 = pneg %p613
      %p1964 = pneg %p637
      %p1965 = pneg %p634
      %p1966 = pneg %p658
      %p1967 = pneg %p655
      %p1968 = pneg %p679
      %p1969 = pneg %p676
      %p1970 = pneg %p700
      %p1971 = pneg %p697
      %p1972 = pneg %p721
      %p1973 = pneg %p718
      %p1974 = pneg %p742
      %p1975 = pneg %p739
      %p1976 = pneg %p763
      %p1977 = pneg %p760
      %p1978 = pneg %p784
      %p1979 = pneg %p781
      %p1980 = pneg %p805
      %p1981 = pneg %p802
      %p1982 = pneg %p826
      %p1983 = pneg %p823
      %p1984 = pneg %p847
      %p1985 = pneg %p844
      %p1986 = pneg %p868
      %p1987 = pneg %p865
      %p1988 = pneg %p889
      %p1989 = pneg %p886
      %p1990 = pneg %p910
      %p1991 = pneg %p907
      %p1992 = pneg %p931
      %p1993 = pneg %p928
      %p1994 = pneg %p952
      %p1995 = pneg %p949
      %p1996 = pneg %p973
      %p1997 = pneg %p970
      %p1998 = pneg %p994
      %p1999 = pneg %p991
      %p2000 = pneg %p1015
      %p2001 = pneg %p1012
      %p2002 = pneg %p1036
      %p2003 = pneg %p1033
      %p2004 = pneg %p1057
      %p2005 = pneg %p1054
      %p2006 = pneg %p1078
      %p2007 = pneg %p1075
      %p2008 = pneg %p1099
      %p2009 = pneg %p1096
      %p2010 = pneg %p1120
      %p2011 = pneg %p1117
      %p2012 = pneg %p1141
      %p2013 = pneg %p1138
      %p2014 = pneg %p1162
      %p2015 = pneg %p1159
      %p2016 = pneg %p1183
      %p2017 = pneg %p1180
      %p2018 = pneg %p1204
      %p2019 = pneg %p1201
      %p2020 = pneg %p1225
      %p2021 = pneg %p1222
      %p2022 = pneg %p1246
      %p2023 = pneg %p1243
      %p2024 = pneg %p1267
      %p2025 = pneg %p1264
      %p2026 = pneg %p1288
      %p2027 = pneg %p1285
      %p2028 = pneg %p1309
      %p2029 = pneg %p1306
      %p2030 = pneg %p1330
      %p2031 = pneg %p1327
      %p2032 = pneg %p1351
      %p2033 = pneg %p1348
      %p2034 = pneg %p1372
      %p2035 = pneg %p1369
      %p2036 = pneg %p1393
      %p2037 = pneg %p1390
      %p2038 = pneg %p1414
      %p2039 = pneg %p1411
      %p2040 = pneg %p1435
      %p2041 = pneg %p1432
      %p2042 = pneg %p1456
      %p2043 = pneg %p1453
      %p2044 = pneg %p1477
      %p2045 = pneg %p1474
      %p2046 = pneg %p1498
      %p2047 = pneg %p1495
      %p2048 = pneg %p1519
      %p2049 = pneg %p1516
      %p2050 = pneg %p1540
      %p2051 = pneg %p1537
      %p2052 = pneg %p1561
      %p2053 = pneg %p1558
      %p2054 = pneg %p1582
      %p2055 = pneg %p1579
      %p2056 = pneg %p1603
      %p2057 = pneg %p1600
      %p2058 = pneg %p1624
      %p2059 = pneg %p1621
      %p2060 = pneg %p1645
      %p2061 = pneg %p1642
      %p2062 = pneg %p1671
      %p2063 = pneg %p1668
      %p2064 = scmp.lt.s32.totalorder %s154, 1
      %s2065 = scalar_select %p2064, %s154, 1
      %s2066 = scalar_lea.vmem %s143, %s2065
      %p2067 = scmp.lt.s32.totalorder %s154, 1
      %s2068 = scalar_select %p2067, %s154, 1
      %s2069 = smul.addr %s2068, 8
      %s2070 = smul.addr %s2069, 8
      %s2071 = scalar_lea.vmem %s1, %s2070
      %p2072 = scmp.lt.s32.totalorder %s154, 1
      %s2073 = scalar_select %p2072, %s154, 1
      %s2074 = scalar_lea.vmem %s143, %s2073
      %v2076 = vld [vmem:[%s2071] sm:$0xff]
      %v2077 = vld [vmem:[%s2071 + $0x8] sm:$0xff]
      %v2078 = vld [vmem:[%s2071 + $0x10] sm:$0xff]
      %v2079 = vld [vmem:[%s2071 + $0x18] sm:$0xff]
      %v2080 = vld [vmem:[%s2071 + $0x20] sm:$0xff]
      %v2081 = vld [vmem:[%s2071 + $0x28] sm:$0xff]
      %v2082 = vld [vmem:[%s2071 + $0x30] sm:$0xff]
      %v2083 = vld [vmem:[%s2071 + $0x38] sm:$0xff]
      %v2084 = vpack.c.bf16 %v2077, %v2076
      %v2085 = vpack.c.bf16 %v2079, %v2078
      %v2086 = vpack.c.bf16 %v2081, %v2080
      %v2087 = vpack.c.bf16 %v2083, %v2082
      %v2088 = vld [vmem:[%s3] sm:$0xf]
      %v2089 = vld [vmem:[%s3 + $0x4] sm:$0xf]
      %v2090 = vld [vmem:[%s3 + $0x8] sm:$0xf]
      %v2091 = vld [vmem:[%s3 + $0xc] sm:$0xf]
      %v2092 = vld [vmem:[%s3 + $0x10] sm:$0xf]
      %v2093 = vld [vmem:[%s3 + $0x14] sm:$0xf]
      %v2094 = vld [vmem:[%s5] sm:$0x1]
      %v2096 = vlaneseq
      %v2097 = vshrl.u32 %v2096, 7
      %v2098 = vsub.s32 0, %v2097
      %v2099 = vrot.slane %v2094, %v2098
      %v2107 = vunpack.c.l.b16 %v2088
      %v2108 = vunpack.c.l.b16 %v2089
      %v2109 = vunpack.c.l.b16 %v2090
      %v2110 = vunpack.c.l.b16 %v2091
      %v2111 = vunpack.c.l.b16 %v2092
      %v2112 = vunpack.c.l.b16 %v2093
      %v2113 = vpack.c.b16 %v2108, %v2107
      %v2114 = vpack.c.b16 %v2110, %v2109
      %v2115 = vpack.c.b16 %v2112, %v2111
      %vm2119 = vcmask 392192
      %v2121 = vsel %vm2119, %v2084, 0
      %v2124 = vsel %vm2119, %v2085, 0
      %v2127 = vsel %vm2119, %v2086, 0
      %v2130 = vsel %vm2119, %v2087, 0
      %2132 = vmatprep.subr.bf16.mxu0 0
      %2133 = vmatpush1.bf16.msra.mxu0 0
      %2134 = vmatprep.subr.bf16.mxu0 0
      %2135 = vmatpush1.bf16.msra.mxu0 0
      %2136 = vmatprep.subr.bf16.mxu0 0
      %2137 = vmatpush1.bf16.msra.mxu0 0
      %2138 = vmatprep.subr.bf16.mxu0 0
      %2139 = vmatpush1.bf16.msra.mxu0 0
      %2140 = vmatprep.subr.bf16.mxu0 0
      %2141 = vmatpush1.bf16.msra.mxu0 0
      %2142 = vmatprep.subr.bf16.mxu0 0
      %2143 = vmatpush1.bf16.msra.mxu0 %v2115
      %2144 = vmatprep.subr.bf16.mxu0 0
      %2145 = vmatpush1.bf16.msra.mxu0 %v2114
      %2146 = vmatprep.subr.bf16.mxu0 0
      %2147 = vmatpush1.bf16.msra.mxu0 %v2113
      %2148 = vmatprep.subr.bf16.mxu0 0
      %2149 = vmatpush2.bf16.msra.mxu0 0
      %2150 = vmatprep.subr.bf16.mxu0 0
      %2151 = vmatpush2.bf16.msra.mxu0 0
      %2152 = vmatprep.subr.bf16.mxu0 0
      %2153 = vmatpush2.bf16.msra.mxu0 0
      %2154 = vmatprep.subr.bf16.mxu0 0
      %2155 = vmatpush2.bf16.msra.mxu0 0
      %2156 = vmatprep.subr.bf16.mxu0 0
      %2157 = vmatpush2.bf16.msra.mxu0 0
      %2158 = vmatprep.subr.bf16.mxu0 0
      %2159 = vmatpush2.bf16.msra.mxu0 0
      %2160 = vmatprep.subr.bf16.mxu0 0
      %2161 = vmatpush2.bf16.msra.mxu0 0
      %2162 = vmatprep.subr.bf16.mxu0 0
      %2163 = vmatpush2.bf16.msra.mxu0 0
      %2164 = vmatprep.mubr.bf16.mxu0 0
      %2165 = vmatmul.mubr.bf16.gmra.mxu0 %v2121
      %v2166 = vpop.f32.mrf.mxu0
      %v2167 = vadd.f32 %v2099, %v2166
      %v2168 = vpop.f32.mrf.mxu0
      %v2169 = vpop.f32.mrf.mxu0
      %v2170 = vadd.f32 %v2099, %v2169
      %v2171 = vpop.f32.mrf.mxu0
      %2172 = vmatprep.mubr.bf16.mxu0 0
      %2173 = vmatmul.mubr.bf16.gmra.mxu0 %v2124
      %v2174 = vpop.f32.mrf.mxu0
      %v2175 = vadd.f32 %v2099, %v2174
      %v2176 = vpop.f32.mrf.mxu0
      %v2177 = vpop.f32.mrf.mxu0
      %v2178 = vadd.f32 %v2099, %v2177
      %v2179 = vpop.f32.mrf.mxu0
      %2180 = vmatprep.mubr.bf16.mxu0 0
      %2181 = vmatmul.mubr.bf16.gmra.mxu0 %v2127
      %v2182 = vpop.f32.mrf.mxu0
      %v2183 = vadd.f32 %v2099, %v2182
      %v2184 = vpop.f32.mrf.mxu0
      %v2185 = vpop.f32.mrf.mxu0
      %v2186 = vadd.f32 %v2099, %v2185
      %v2187 = vpop.f32.mrf.mxu0
      %2188 = vmatprep.mubr.bf16.mxu0 0
      %2189 = vmatmul.mubr.bf16.gmra.mxu0 %v2130
      %v2190 = vpop.f32.mrf.mxu0
      %v2191 = vadd.f32 %v2099, %v2190
      %v2192 = vpop.f32.mrf.mxu0
      %v2193 = vpop.f32.mrf.mxu0
      %v2194 = vadd.f32 %v2099, %v2193
      %v2195 = vpop.f32.mrf.mxu0
      %2196 = vdwg.mxu0
      %v2197 = vld [vmem:[%s7] sm:$0x1]
      %v2198 = vld [vmem:[%s9] sm:$0x1]
      %vm2199 = vcmask 261120
      %v2200 = vsel %vm2199, %v2167, 0.0
      %2201 = vadd.xlane.f32.xlu0 %v2200
      %v2202 = vpop.xlane.xlu0 %2201
      %v2203 = vsel %vm2199, %v2170, 0.0
      %2204 = vadd.xlane.f32.xlu0 %v2203
      %v2205 = vpop.xlane.xlu0 %2204
      %v2206 = vsel %vm2199, %v2175, 0.0
      %2207 = vadd.xlane.f32.xlu0 %v2206
      %v2208 = vpop.xlane.xlu0 %2207
      %v2209 = vsel %vm2199, %v2178, 0.0
      %2210 = vadd.xlane.f32.xlu0 %v2209
      %v2211 = vpop.xlane.xlu0 %2210
      %v2212 = vsel %vm2199, %v2183, 0.0
      %2213 = vadd.xlane.f32.xlu0 %v2212
      %v2214 = vpop.xlane.xlu0 %2213
      %v2215 = vsel %vm2199, %v2186, 0.0
      %2216 = vadd.xlane.f32.xlu0 %v2215
      %v2217 = vpop.xlane.xlu0 %2216
      %v2218 = vsel %vm2199, %v2191, 0.0
      %2219 = vadd.xlane.f32.xlu0 %v2218
      %v2220 = vpop.xlane.xlu0 %2219
      %v2221 = vsel %vm2199, %v2194, 0.0
      %2222 = vadd.xlane.f32.xlu0 %v2221
      %v2223 = vpop.xlane.xlu0 %2222
      %v2224 = vrcp.pop 32.0
      %v2225 = vmul.f32 %v2202, %v2224
      %v2226 = vmul.f32 %v2205, %v2224
      %v2227 = vmul.f32 %v2208, %v2224
      %v2228 = vmul.f32 %v2211, %v2224
      %v2229 = vmul.f32 %v2214, %v2224
      %v2230 = vmul.f32 %v2217, %v2224
      %v2231 = vmul.f32 %v2220, %v2224
      %v2232 = vmul.f32 %v2223, %v2224
      %v2233 = vsub.f32 %v2167, %v2225
      %v2234 = vsub.f32 %v2170, %v2226
      %v2235 = vsub.f32 %v2175, %v2227
      %v2236 = vsub.f32 %v2178, %v2228
      %v2237 = vsub.f32 %v2183, %v2229
      %v2238 = vsub.f32 %v2186, %v2230
      %v2239 = vsub.f32 %v2191, %v2231
      %v2240 = vsub.f32 %v2194, %v2232
      %v2241 = vmul.f32 %v2233, %v2233
      %v2242 = vmul.f32 %v2234, %v2234
      %v2243 = vmul.f32 %v2235, %v2235
      %v2244 = vmul.f32 %v2236, %v2236
      %v2245 = vmul.f32 %v2237, %v2237
      %v2246 = vmul.f32 %v2238, %v2238
      %v2247 = vmul.f32 %v2239, %v2239
      %v2248 = vmul.f32 %v2240, %v2240
      %v2249 = vsel %vm2199, %v2241, 0.0
      %2250 = vadd.xlane.f32.xlu0 %v2249
      %v2251 = vpop.xlane.xlu0 %2250
      %v2252 = vsel %vm2199, %v2242, 0.0
      %2253 = vadd.xlane.f32.xlu0 %v2252
      %v2254 = vpop.xlane.xlu0 %2253
      %v2255 = vsel %vm2199, %v2243, 0.0
      %2256 = vadd.xlane.f32.xlu0 %v2255
      %v2257 = vpop.xlane.xlu0 %2256
      %v2258 = vsel %vm2199, %v2244, 0.0
      %2259 = vadd.xlane.f32.xlu0 %v2258
      %v2260 = vpop.xlane.xlu0 %2259
      %v2261 = vsel %vm2199, %v2245, 0.0
      %2262 = vadd.xlane.f32.xlu0 %v2261
      %v2263 = vpop.xlane.xlu0 %2262
      %v2264 = vsel %vm2199, %v2246, 0.0
      %2265 = vadd.xlane.f32.xlu0 %v2264
      %v2266 = vpop.xlane.xlu0 %2265
      %v2267 = vsel %vm2199, %v2247, 0.0
      %2268 = vadd.xlane.f32.xlu0 %v2267
      %v2269 = vpop.xlane.xlu0 %2268
      %v2270 = vsel %vm2199, %v2248, 0.0
      %2271 = vadd.xlane.f32.xlu0 %v2270
      %v2272 = vpop.xlane.xlu0 %2271
      %v2273 = vmul.f32 %v2251, %v2224
      %v2274 = vmul.f32 %v2254, %v2224
      %v2275 = vmul.f32 %v2257, %v2224
      %v2276 = vmul.f32 %v2260, %v2224
      %v2277 = vmul.f32 %v2263, %v2224
      %v2278 = vmul.f32 %v2266, %v2224
      %v2279 = vmul.f32 %v2269, %v2224
      %v2280 = vmul.f32 %v2272, %v2224
      %v2281 = vadd.f32 %v2273, 1e-05
      %v2282 = vadd.f32 %v2274, 1e-05
      %v2283 = vadd.f32 %v2275, 1e-05
      %v2284 = vadd.f32 %v2276, 1e-05
      %v2285 = vadd.f32 %v2277, 1e-05
      %v2286 = vadd.f32 %v2278, 1e-05
      %v2287 = vadd.f32 %v2279, 1e-05
      %v2288 = vadd.f32 %v2280, 1e-05
      %v2289 = vrsqrt.pop %v2281
      %v2290 = vrsqrt.pop %v2282
      %v2291 = vrsqrt.pop %v2283
      %v2292 = vrsqrt.pop %v2284
      %v2293 = vrsqrt.pop %v2285
      %v2294 = vrsqrt.pop %v2286
      %v2295 = vrsqrt.pop %v2287
      %v2296 = vrsqrt.pop %v2288
      %v2297 = vmul.f32 %v2233, %v2289
      %v2298 = vmul.f32 %v2234, %v2290
      %v2299 = vmul.f32 %v2235, %v2291
      %v2300 = vmul.f32 %v2236, %v2292
      %v2301 = vmul.f32 %v2237, %v2293
      %v2302 = vmul.f32 %v2238, %v2294
      %v2303 = vmul.f32 %v2239, %v2295
      %v2304 = vmul.f32 %v2240, %v2296
      %v2306 = vlaneseq
      %v2307 = vshrl.u32 %v2306, 7
      %v2308 = vsub.s32 0, %v2307
      %v2309 = vrot.slane %v2197, %v2308
      %v2311 = vmul.f32 %v2297, %v2309
      %v2312 = vmul.f32 %v2298, %v2309
      %v2313 = vmul.f32 %v2299, %v2309
      %v2314 = vmul.f32 %v2300, %v2309
      %v2315 = vmul.f32 %v2301, %v2309
      %v2316 = vmul.f32 %v2302, %v2309
      %v2317 = vmul.f32 %v2303, %v2309
      %v2318 = vmul.f32 %v2304, %v2309
      %v2320 = vlaneseq
      %v2321 = vshrl.u32 %v2320, 7
      %v2322 = vsub.s32 0, %v2321
      %v2323 = vrot.slane %v2198, %v2322
      %v2325 = vadd.f32 %v2311, %v2323
      %v2326 = vadd.f32 %v2312, %v2323
      %v2327 = vadd.f32 %v2313, %v2323
      %v2328 = vadd.f32 %v2314, %v2323
      %v2329 = vadd.f32 %v2315, %v2323
      %v2330 = vadd.f32 %v2316, %v2323
      %v2331 = vadd.f32 %v2317, %v2323
      %v2332 = vadd.f32 %v2318, %v2323
      %v2333 = vld [vmem:[%s15] sm:$0x1]
      %v2334 = vld [vmem:[%s17] sm:$0x1]
      %v2335 = vsel %vm2199, %v2325, 0.0
      %2336 = vadd.xlane.f32.xlu0 %v2335
      %v2337 = vpop.xlane.xlu0 %2336
      %v2338 = vsel %vm2199, %v2326, 0.0
      %2339 = vadd.xlane.f32.xlu0 %v2338
      %v2340 = vpop.xlane.xlu0 %2339
      %v2341 = vsel %vm2199, %v2327, 0.0
      %2342 = vadd.xlane.f32.xlu0 %v2341
      %v2343 = vpop.xlane.xlu0 %2342
      %v2344 = vsel %vm2199, %v2328, 0.0
      %2345 = vadd.xlane.f32.xlu0 %v2344
      %v2346 = vpop.xlane.xlu0 %2345
      %v2347 = vsel %vm2199, %v2329, 0.0
      %2348 = vadd.xlane.f32.xlu0 %v2347
      %v2349 = vpop.xlane.xlu0 %2348
      %v2350 = vsel %vm2199, %v2330, 0.0
      %2351 = vadd.xlane.f32.xlu0 %v2350
      %v2352 = vpop.xlane.xlu0 %2351
      %v2353 = vsel %vm2199, %v2331, 0.0
      %2354 = vadd.xlane.f32.xlu0 %v2353
      %v2355 = vpop.xlane.xlu0 %2354
      %v2356 = vsel %vm2199, %v2332, 0.0
      %2357 = vadd.xlane.f32.xlu0 %v2356
      %v2358 = vpop.xlane.xlu0 %2357
      %v2359 = vmul.f32 %v2337, %v2224
      %v2360 = vmul.f32 %v2340, %v2224
      %v2361 = vmul.f32 %v2343, %v2224
      %v2362 = vmul.f32 %v2346, %v2224
      %v2363 = vmul.f32 %v2349, %v2224
      %v2364 = vmul.f32 %v2352, %v2224
      %v2365 = vmul.f32 %v2355, %v2224
      %v2366 = vmul.f32 %v2358, %v2224
      %v2367 = vsub.f32 %v2325, %v2359
      %v2368 = vsub.f32 %v2326, %v2360
      %v2369 = vsub.f32 %v2327, %v2361
      %v2370 = vsub.f32 %v2328, %v2362
      %v2371 = vsub.f32 %v2329, %v2363
      %v2372 = vsub.f32 %v2330, %v2364
      %v2373 = vsub.f32 %v2331, %v2365
      %v2374 = vsub.f32 %v2332, %v2366
      %v2375 = vmul.f32 %v2367, %v2367
      %v2376 = vmul.f32 %v2368, %v2368
      %v2377 = vmul.f32 %v2369, %v2369
      %v2378 = vmul.f32 %v2370, %v2370
      %v2379 = vmul.f32 %v2371, %v2371
      %v2380 = vmul.f32 %v2372, %v2372
      %v2381 = vmul.f32 %v2373, %v2373
      %v2382 = vmul.f32 %v2374, %v2374
      %v2383 = vsel %vm2199, %v2375, 0.0
      %2384 = vadd.xlane.f32.xlu0 %v2383
      %v2385 = vpop.xlane.xlu0 %2384
      %v2386 = vsel %vm2199, %v2376, 0.0
      %2387 = vadd.xlane.f32.xlu0 %v2386
      %v2388 = vpop.xlane.xlu0 %2387
      %v2389 = vsel %vm2199, %v2377, 0.0
      %2390 = vadd.xlane.f32.xlu0 %v2389
      %v2391 = vpop.xlane.xlu0 %2390
      %v2392 = vsel %vm2199, %v2378, 0.0
      %2393 = vadd.xlane.f32.xlu0 %v2392
      %v2394 = vpop.xlane.xlu0 %2393
      %v2395 = vsel %vm2199, %v2379, 0.0
      %2396 = vadd.xlane.f32.xlu0 %v2395
      %v2397 = vpop.xlane.xlu0 %2396
      %v2398 = vsel %vm2199, %v2380, 0.0
      %2399 = vadd.xlane.f32.xlu0 %v2398
      %v2400 = vpop.xlane.xlu0 %2399
      %v2401 = vsel %vm2199, %v2381, 0.0
      %2402 = vadd.xlane.f32.xlu0 %v2401
      %v2403 = vpop.xlane.xlu0 %2402
      %v2404 = vsel %vm2199, %v2382, 0.0
      %2405 = vadd.xlane.f32.xlu0 %v2404
      %v2406 = vpop.xlane.xlu0 %2405
      %v2407 = vmul.f32 %v2385, %v2224
      %v2408 = vmul.f32 %v2388, %v2224
      %v2409 = vmul.f32 %v2391, %v2224
      %v2410 = vmul.f32 %v2394, %v2224
      %v2411 = vmul.f32 %v2397, %v2224
      %v2412 = vmul.f32 %v2400, %v2224
      %v2413 = vmul.f32 %v2403, %v2224
      %v2414 = vmul.f32 %v2406, %v2224
      %v2415 = vadd.f32 %v2407, 1e-05
      %v2416 = vadd.f32 %v2408, 1e-05
      %v2417 = vadd.f32 %v2409, 1e-05
      %v2418 = vadd.f32 %v2410, 1e-05
      %v2419 = vadd.f32 %v2411, 1e-05
      %v2420 = vadd.f32 %v2412, 1e-05
      %v2421 = vadd.f32 %v2413, 1e-05
      %v2422 = vadd.f32 %v2414, 1e-05
      %v2423 = vrsqrt.pop %v2415
      %v2424 = vrsqrt.pop %v2416
      %v2425 = vrsqrt.pop %v2417
      %v2426 = vrsqrt.pop %v2418
      %v2427 = vrsqrt.pop %v2419
      %v2428 = vrsqrt.pop %v2420
      %v2429 = vrsqrt.pop %v2421
      %v2430 = vrsqrt.pop %v2422
      %v2431 = vmul.f32 %v2367, %v2423
      %v2432 = vmul.f32 %v2368, %v2424
      %v2433 = vmul.f32 %v2369, %v2425
      %v2434 = vmul.f32 %v2370, %v2426
      %v2435 = vmul.f32 %v2371, %v2427
      %v2436 = vmul.f32 %v2372, %v2428
      %v2437 = vmul.f32 %v2373, %v2429
      %v2438 = vmul.f32 %v2374, %v2430
      %v2440 = vlaneseq
      %v2441 = vshrl.u32 %v2440, 7
      %v2442 = vsub.s32 0, %v2441
      %v2443 = vrot.slane %v2333, %v2442
      %v2445 = vmul.f32 %v2431, %v2443
      %v2446 = vmul.f32 %v2432, %v2443
      %v2447 = vmul.f32 %v2433, %v2443
      %v2448 = vmul.f32 %v2434, %v2443
      %v2449 = vmul.f32 %v2435, %v2443
      %v2450 = vmul.f32 %v2436, %v2443
      %v2451 = vmul.f32 %v2437, %v2443
      %v2452 = vmul.f32 %v2438, %v2443
      %v2454 = vlaneseq
      %v2455 = vshrl.u32 %v2454, 7
      %v2456 = vsub.s32 0, %v2455
      %v2457 = vrot.slane %v2334, %v2456
      %v2459 = vadd.f32 %v2445, %v2457
      %v2460 = vadd.f32 %v2446, %v2457
      %v2461 = vadd.f32 %v2447, %v2457
      %v2462 = vadd.f32 %v2448, %v2457
      %v2463 = vadd.f32 %v2449, %v2457
      %v2464 = vadd.f32 %v2450, %v2457
      %v2465 = vadd.f32 %v2451, %v2457
      %v2466 = vadd.f32 %v2452, %v2457
      %v2467 = vpack.c.bf16 %v2460, %v2459
      %v2468 = vpack.c.bf16 %v2462, %v2461
      %v2469 = vpack.c.bf16 %v2464, %v2463
      %v2470 = vpack.c.bf16 %v2466, %v2465
      %v2471 = vld [vmem:[%s19] sm:$0xf]
      %v2472 = vld [vmem:[%s19 + $0x4] sm:$0xf]
      %v2473 = vld [vmem:[%s19 + $0x8] sm:$0xf]
      %v2474 = vld [vmem:[%s19 + $0xc] sm:$0xf]
      %v2475 = vld [vmem:[%s21] sm:$0x1]
      %v2477 = vlaneseq
      %v2478 = vshrl.u32 %v2477, 7
      %v2479 = vsub.s32 0, %v2478
      %v2480 = vrot.slane %v2475, %v2479
      %v2486 = vunpack.c.l.b16 %v2471
      %v2487 = vunpack.c.l.b16 %v2472
      %v2488 = vunpack.c.l.b16 %v2473
      %v2489 = vunpack.c.l.b16 %v2474
      %v2490 = vpack.c.b16 %v2487, %v2486
      %v2491 = vpack.c.b16 %v2489, %v2488
      %v2495 = vsel %vm2199, %v2467, 0
      %v2498 = vsel %vm2199, %v2468, 0
      %v2501 = vsel %vm2199, %v2469, 0
      %v2504 = vsel %vm2199, %v2470, 0
      %2506 = vmatprep.subr.bf16.mxu0 0
      %2507 = vmatpush1.bf16.msra.mxu0 0
      %2508 = vmatprep.subr.bf16.mxu0 0
      %2509 = vmatpush1.bf16.msra.mxu0 0
      %2510 = vmatprep.subr.bf16.mxu0 0
      %2511 = vmatpush1.bf16.msra.mxu0 0
      %2512 = vmatprep.subr.bf16.mxu0 0
      %2513 = vmatpush1.bf16.msra.mxu0 0
      %2514 = vmatprep.subr.bf16.mxu0 0
      %2515 = vmatpush1.bf16.msra.mxu0 0
      %2516 = vmatprep.subr.bf16.mxu0 0
      %2517 = vmatpush1.bf16.msra.mxu0 0
      %2518 = vmatprep.subr.bf16.mxu0 0
      %2519 = vmatpush1.bf16.msra.mxu0 %v2491
      %2520 = vmatprep.subr.bf16.mxu0 0
      %2521 = vmatpush1.bf16.msra.mxu0 %v2490
      %2522 = vmatprep.subr.bf16.mxu0 0
      %2523 = vmatpush2.bf16.msra.mxu0 0
      %2524 = vmatprep.subr.bf16.mxu0 0
      %2525 = vmatpush2.bf16.msra.mxu0 0
      %2526 = vmatprep.subr.bf16.mxu0 0
      %2527 = vmatpush2.bf16.msra.mxu0 0
      %2528 = vmatprep.subr.bf16.mxu0 0
      %2529 = vmatpush2.bf16.msra.mxu0 0
      %2530 = vmatprep.subr.bf16.mxu0 0
      %2531 = vmatpush2.bf16.msra.mxu0 0
      %2532 = vmatprep.subr.bf16.mxu0 0
      %2533 = vmatpush2.bf16.msra.mxu0 0
      %2534 = vmatprep.subr.bf16.mxu0 0
      %2535 = vmatpush2.bf16.msra.mxu0 0
      %2536 = vmatprep.subr.bf16.mxu0 0
      %2537 = vmatpush2.bf16.msra.mxu0 0
      %2538 = vmatprep.mubr.bf16.mxu0 0
      %2539 = vmatmul.mubr.bf16.gmra.mxu0 %v2495
      %v2540 = vpop.f32.mrf.mxu0
      %v2541 = vadd.f32 %v2480, %v2540
      %v2542 = vpop.f32.mrf.mxu0
      %v2543 = vpop.f32.mrf.mxu0
      %v2544 = vadd.f32 %v2480, %v2543
      %v2545 = vpop.f32.mrf.mxu0
      %2546 = vmatprep.mubr.bf16.mxu0 0
      %2547 = vmatmul.mubr.bf16.gmra.mxu0 %v2498
      %v2548 = vpop.f32.mrf.mxu0
      %v2549 = vadd.f32 %v2480, %v2548
      %v2550 = vpop.f32.mrf.mxu0
      %v2551 = vpop.f32.mrf.mxu0
      %v2552 = vadd.f32 %v2480, %v2551
      %v2553 = vpop.f32.mrf.mxu0
      %2554 = vmatprep.mubr.bf16.mxu0 0
      %2555 = vmatmul.mubr.bf16.gmra.mxu0 %v2501
      %v2556 = vpop.f32.mrf.mxu0
      %v2557 = vadd.f32 %v2480, %v2556
      %v2558 = vpop.f32.mrf.mxu0
      %v2559 = vpop.f32.mrf.mxu0
      %v2560 = vadd.f32 %v2480, %v2559
      %v2561 = vpop.f32.mrf.mxu0
      %2562 = vmatprep.mubr.bf16.mxu0 0
      %2563 = vmatmul.mubr.bf16.gmra.mxu0 %v2504
      %v2564 = vpop.f32.mrf.mxu0
      %v2565 = vadd.f32 %v2480, %v2564
      %v2566 = vpop.f32.mrf.mxu0
      %v2567 = vpop.f32.mrf.mxu0
      %v2568 = vadd.f32 %v2480, %v2567
      %v2569 = vpop.f32.mrf.mxu0
      %2570 = vdwg.mxu0
      %v2571 = vpack.c.bf16 %v2544, %v2541
      %v2572 = vpack.c.bf16 %v2552, %v2549
      %v2573 = vpack.c.bf16 %v2560, %v2557
      %v2574 = vpack.c.bf16 %v2568, %v2565
      %v2575 = vld [vmem:[%s11] sm:$0xf]
      %v2576 = vld [vmem:[%s11 + $0x4] sm:$0xf]
      %v2577 = vld [vmem:[%s11 + $0x8] sm:$0xf]
      %v2578 = vld [vmem:[%s11 + $0xc] sm:$0xf]
      %v2579 = vld [vmem:[%s11 + $0x10] sm:$0xf]
      %v2580 = vld [vmem:[%s11 + $0x14] sm:$0xf]
      %v2581 = vld [vmem:[%s11 + $0x18] sm:$0xf]
      %v2582 = vld [vmem:[%s11 + $0x1c] sm:$0xf]
      %v2583 = vunpack.c.l.bf16 %v2575
      %v2584 = vunpack.c.l.bf16 %v2576
      %v2585 = vunpack.c.l.bf16 %v2577
      %v2586 = vunpack.c.l.bf16 %v2578
      %v2587 = vunpack.c.l.bf16 %v2579
      %v2588 = vunpack.c.l.bf16 %v2580
      %v2589 = vunpack.c.l.bf16 %v2581
      %v2590 = vunpack.c.l.bf16 %v2582
      %2595 = vrot.lane.b32.xlu0 %v2571, 96
      %v2596 = vpop.permute.xlu0 %2595
      %2597 = vrot.lane.b32.xlu0 %v2572, 96
      %v2598 = vpop.permute.xlu0 %2597
      %2599 = vrot.lane.b32.xlu0 %v2573, 96
      %v2600 = vpop.permute.xlu0 %2599
      %2601 = vrot.lane.b32.xlu0 %v2574, 96
      %v2602 = vpop.permute.xlu0 %2601
      %vm2603 = vcmask 130048
      %v2605 = vsel %vm2603, %v2571, 0
      %v2608 = vsel %vm2603, %v2572, 0
      %v2611 = vsel %vm2603, %v2573, 0
      %v2614 = vsel %vm2603, %v2574, 0
      %v2617 = vsel %vm2603, %v2596, 0
      %v2620 = vsel %vm2603, %v2598, 0
      %v2623 = vsel %vm2603, %v2600, 0
      %v2626 = vsel %vm2603, %v2602, 0
      %2628 = vmatprep.subr.bf16.mxu0 0
      %2629 = vmatpush1.bf16.xpose.msra.mxu0 0
      %2630 = vmatprep.subr.bf16.mxu0 0
      %2631 = vmatpush1.bf16.xpose.msra.mxu0 0
      %2632 = vmatprep.subr.bf16.mxu0 0
      %2633 = vmatpush1.bf16.xpose.msra.mxu0 0
      %2634 = vmatprep.subr.bf16.mxu0 0
      %2635 = vmatpush1.bf16.xpose.msra.mxu0 0
      %2636 = vmatprep.subr.bf16.mxu0 0
      %2637 = vmatpush1.bf16.xpose.msra.mxu0 %v2626
      %2638 = vmatprep.subr.bf16.mxu0 0
      %2639 = vmatpush1.bf16.xpose.msra.mxu0 %v2623
      %2640 = vmatprep.subr.bf16.mxu0 0
      %2641 = vmatpush1.bf16.xpose.msra.mxu0 %v2620
      %2642 = vmatprep.subr.bf16.mxu0 0
      %2643 = vmatpush1.bf16.xpose.msra.mxu0 %v2617
      %2644 = vmatprep.subr.bf16.mxu0 0
      %2645 = vmatpush2.bf16.xpose.msra.mxu0 0
      %2646 = vmatprep.subr.bf16.mxu0 0
      %2647 = vmatpush2.bf16.xpose.msra.mxu0 0
      %2648 = vmatprep.subr.bf16.mxu0 0
      %2649 = vmatpush2.bf16.xpose.msra.mxu0 0
      %2650 = vmatprep.subr.bf16.mxu0 0
      %2651 = vmatpush2.bf16.xpose.msra.mxu0 0
      %2652 = vmatprep.subr.bf16.mxu0 0
      %2653 = vmatpush2.bf16.xpose.msra.mxu0 0
      %2654 = vmatprep.subr.bf16.mxu0 0
      %2655 = vmatpush2.bf16.xpose.msra.mxu0 0
      %2656 = vmatprep.subr.bf16.mxu0 0
      %2657 = vmatpush2.bf16.xpose.msra.mxu0 0
      %2658 = vmatprep.subr.bf16.mxu0 0
      %2659 = vmatpush2.bf16.xpose.msra.mxu0 0
      %2660 = vmatprep.mubr.bf16.mxu0 0
      %2661 = vmatmul.mubr.bf16.gmra.mxu0 %v2605
      %v2662 = vpop.f32.mrf.mxu0
      %v2663 = vadd.f32 %v2583, %v2662
      %v2664 = vpop.f32.mrf.mxu0
      %v2665 = vpop.f32.mrf.mxu0
      %v2666 = vadd.f32 %v2584, %v2665
      %v2667 = vpop.f32.mrf.mxu0
      %2668 = vmatprep.mubr.bf16.mxu0 0
      %2669 = vmatmul.mubr.bf16.gmra.mxu0 %v2608
      %v2670 = vpop.f32.mrf.mxu0
      %v2671 = vadd.f32 %v2585, %v2670
      %v2672 = vpop.f32.mrf.mxu0
      %v2673 = vpop.f32.mrf.mxu0
      %v2674 = vadd.f32 %v2586, %v2673
      %v2675 = vpop.f32.mrf.mxu0
      %2676 = vmatprep.mubr.bf16.mxu0 0
      %2677 = vmatmul.mubr.bf16.gmra.mxu0 %v2611
      %v2678 = vpop.f32.mrf.mxu0
      %v2679 = vadd.f32 %v2587, %v2678
      %v2680 = vpop.f32.mrf.mxu0
      %v2681 = vpop.f32.mrf.mxu0
      %v2682 = vadd.f32 %v2588, %v2681
      %v2683 = vpop.f32.mrf.mxu0
      %2684 = vmatprep.mubr.bf16.mxu0 0
      %2685 = vmatmul.mubr.bf16.gmra.mxu0 %v2614
      %v2686 = vpop.f32.mrf.mxu0
      %v2687 = vadd.f32 %v2589, %v2686
      %v2688 = vpop.f32.mrf.mxu0
      %v2689 = vpop.f32.mrf.mxu0
      %v2690 = vadd.f32 %v2590, %v2689
      %v2691 = vpop.f32.mrf.mxu0
      %2692 = vdwg.mxu0
      %vm2693 = vcmask 523264
      %v2694 = vsel %vm2693, %v2663, -inf
      %2695 = vmax.xlane.f32.xlu0 %v2694
      %v2696 = vpop.xlane.xlu0 %2695
      %v2697 = vsel %vm2693, %v2666, -inf
      %2698 = vmax.xlane.f32.xlu0 %v2697
      %v2699 = vpop.xlane.xlu0 %2698
      %v2700 = vsel %vm2693, %v2671, -inf
      %2701 = vmax.xlane.f32.xlu0 %v2700
      %v2702 = vpop.xlane.xlu0 %2701
      %v2703 = vsel %vm2693, %v2674, -inf
      %2704 = vmax.xlane.f32.xlu0 %v2703
      %v2705 = vpop.xlane.xlu0 %2704
      %v2706 = vsel %vm2693, %v2679, -inf
      %2707 = vmax.xlane.f32.xlu0 %v2706
      %v2708 = vpop.xlane.xlu0 %2707
      %v2709 = vsel %vm2693, %v2682, -inf
      %2710 = vmax.xlane.f32.xlu0 %v2709
      %v2711 = vpop.xlane.xlu0 %2710
      %v2712 = vsel %vm2693, %v2687, -inf
      %2713 = vmax.xlane.f32.xlu0 %v2712
      %v2714 = vpop.xlane.xlu0 %2713
      %v2715 = vsel %vm2693, %v2690, -inf
      %2716 = vmax.xlane.f32.xlu0 %v2715
      %v2717 = vpop.xlane.xlu0 %2716
      %v2718 = vsub.f32 %v2663, %v2696
      %v2719 = vsub.f32 %v2666, %v2699
      %v2720 = vsub.f32 %v2671, %v2702
      %v2721 = vsub.f32 %v2674, %v2705
      %v2722 = vsub.f32 %v2679, %v2708
      %v2723 = vsub.f32 %v2682, %v2711
      %v2724 = vsub.f32 %v2687, %v2714
      %v2725 = vsub.f32 %v2690, %v2717
      %v2726 = vmul.f32 %v2718, 1.442695
      %v2727 = vpow.pop %v2726
      %v2728 = vmul.f32 %v2719, 1.442695
      %v2729 = vpow.pop %v2728
      %v2730 = vmul.f32 %v2720, 1.442695
      %v2731 = vpow.pop %v2730
      %v2732 = vmul.f32 %v2721, 1.442695
      %v2733 = vpow.pop %v2732
      %v2734 = vmul.f32 %v2722, 1.442695
      %v2735 = vpow.pop %v2734
      %v2736 = vmul.f32 %v2723, 1.442695
      %v2737 = vpow.pop %v2736
      %v2738 = vmul.f32 %v2724, 1.442695
      %v2739 = vpow.pop %v2738
      %v2740 = vmul.f32 %v2725, 1.442695
      %v2741 = vpow.pop %v2740
      %v2742 = vsel %vm2693, %v2727, 0.0
      %2743 = vadd.xlane.f32.xlu0 %v2742
      %v2744 = vpop.xlane.xlu0 %2743
      %v2745 = vsel %vm2693, %v2729, 0.0
      %2746 = vadd.xlane.f32.xlu0 %v2745
      %v2747 = vpop.xlane.xlu0 %2746
      %v2748 = vsel %vm2693, %v2731, 0.0
      %2749 = vadd.xlane.f32.xlu0 %v2748
      %v2750 = vpop.xlane.xlu0 %2749
      %v2751 = vsel %vm2693, %v2733, 0.0
      %2752 = vadd.xlane.f32.xlu0 %v2751
      %v2753 = vpop.xlane.xlu0 %2752
      %v2754 = vsel %vm2693, %v2735, 0.0
      %2755 = vadd.xlane.f32.xlu0 %v2754
      %v2756 = vpop.xlane.xlu0 %2755
      %v2757 = vsel %vm2693, %v2737, 0.0
      %2758 = vadd.xlane.f32.xlu0 %v2757
      %v2759 = vpop.xlane.xlu0 %2758
      %v2760 = vsel %vm2693, %v2739, 0.0
      %2761 = vadd.xlane.f32.xlu0 %v2760
      %v2762 = vpop.xlane.xlu0 %2761
      %v2763 = vsel %vm2693, %v2741, 0.0
      %2764 = vadd.xlane.f32.xlu0 %v2763
      %v2765 = vpop.xlane.xlu0 %2764
      %v2766 = vrcp.pop %v2744
      %v2767 = vrcp.pop %v2747
      %v2768 = vrcp.pop %v2750
      %v2769 = vrcp.pop %v2753
      %v2770 = vrcp.pop %v2756
      %v2771 = vrcp.pop %v2759
      %v2772 = vrcp.pop %v2762
      %v2773 = vrcp.pop %v2765
      %v2774 = vmul.f32 %v2727, %v2766
      %v2775 = vmul.f32 %v2729, %v2767
      %v2776 = vmul.f32 %v2731, %v2768
      %v2777 = vmul.f32 %v2733, %v2769
      %v2778 = vmul.f32 %v2735, %v2770
      %v2779 = vmul.f32 %v2737, %v2771
      %v2780 = vmul.f32 %v2739, %v2772
      %v2781 = vmul.f32 %v2741, %v2773
      %v2782 = vpack.c.bf16 %v2775, %v2774
      %v2783 = vpack.c.bf16 %v2777, %v2776
      %v2784 = vpack.c.bf16 %v2779, %v2778
      %v2785 = vpack.c.bf16 %v2781, %v2780
      %2786 = vrot.lane.b32.xlu0 %v2571, 64
      %v2787 = vpop.permute.xlu0 %2786
      %2788 = vrot.lane.b32.xlu0 %v2572, 64
      %v2789 = vpop.permute.xlu0 %2788
      %2790 = vrot.lane.b32.xlu0 %v2573, 64
      %v2791 = vpop.permute.xlu0 %2790
      %2792 = vrot.lane.b32.xlu0 %v2574, 64
      %v2793 = vpop.permute.xlu0 %2792
      %v2799 = vsel %vm2693, %v2782, 0
      %v2802 = vsel %vm2693, %v2783, 0
      %v2805 = vsel %vm2693, %v2784, 0
      %v2808 = vsel %vm2693, %v2785, 0
      %2810 = vmatprep.subr.bf16.mxu0 0
      %2811 = vmatpush1.bf16.msra.mxu0 0
      %2812 = vmatprep.subr.bf16.mxu0 0
      %2813 = vmatpush1.bf16.msra.mxu0 0
      %2814 = vmatprep.subr.bf16.mxu0 0
      %2815 = vmatpush1.bf16.msra.mxu0 0
      %2816 = vmatprep.subr.bf16.mxu0 0
      %2817 = vmatpush1.bf16.msra.mxu0 0
      %2818 = vmatprep.subr.bf16.mxu0 0
      %2819 = vmatpush1.bf16.msra.mxu0 %v2793
      %2820 = vmatprep.subr.bf16.mxu0 0
      %2821 = vmatpush1.bf16.msra.mxu0 %v2791
      %2822 = vmatprep.subr.bf16.mxu0 0
      %2823 = vmatpush1.bf16.msra.mxu0 %v2789
      %2824 = vmatprep.subr.bf16.mxu0 0
      %2825 = vmatpush1.bf16.msra.mxu0 %v2787
      %2826 = vmatprep.subr.bf16.mxu0 0
      %2827 = vmatpush2.bf16.msra.mxu0 0
      %2828 = vmatprep.subr.bf16.mxu0 0
      %2829 = vmatpush2.bf16.msra.mxu0 0
      %2830 = vmatprep.subr.bf16.mxu0 0
      %2831 = vmatpush2.bf16.msra.mxu0 0
      %2832 = vmatprep.subr.bf16.mxu0 0
      %2833 = vmatpush2.bf16.msra.mxu0 0
      %2834 = vmatprep.subr.bf16.mxu0 0
      %2835 = vmatpush2.bf16.msra.mxu0 0
      %2836 = vmatprep.subr.bf16.mxu0 0
      %2837 = vmatpush2.bf16.msra.mxu0 0
      %2838 = vmatprep.subr.bf16.mxu0 0
      %2839 = vmatpush2.bf16.msra.mxu0 0
      %2840 = vmatprep.subr.bf16.mxu0 0
      %2841 = vmatpush2.bf16.msra.mxu0 0
      %2842 = vmatprep.mubr.bf16.mxu0 0
      %2843 = vmatmul.mubr.bf16.gmra.mxu0 %v2799
      %v2844 = vpop.f32.mrf.mxu0
      %v2845 = vadd.f32 0.0, %v2844
      %v2846 = vpop.f32.mrf.mxu0
      %v2847 = vpop.f32.mrf.mxu0
      %v2848 = vadd.f32 0.0, %v2847
      %v2849 = vpop.f32.mrf.mxu0
      %2850 = vmatprep.mubr.bf16.mxu0 0
      %2851 = vmatmul.mubr.bf16.gmra.mxu0 %v2802
      %v2852 = vpop.f32.mrf.mxu0
      %v2853 = vadd.f32 0.0, %v2852
      %v2854 = vpop.f32.mrf.mxu0
      %v2855 = vpop.f32.mrf.mxu0
      %v2856 = vadd.f32 0.0, %v2855
      %v2857 = vpop.f32.mrf.mxu0
      %2858 = vmatprep.mubr.bf16.mxu0 0
      %2859 = vmatmul.mubr.bf16.gmra.mxu0 %v2805
      %v2860 = vpop.f32.mrf.mxu0
      %v2861 = vadd.f32 0.0, %v2860
      %v2862 = vpop.f32.mrf.mxu0
      %v2863 = vpop.f32.mrf.mxu0
      %v2864 = vadd.f32 0.0, %v2863
      %v2865 = vpop.f32.mrf.mxu0
      %2866 = vmatprep.mubr.bf16.mxu0 0
      %2867 = vmatmul.mubr.bf16.gmra.mxu0 %v2808
      %v2868 = vpop.f32.mrf.mxu0
      %v2869 = vadd.f32 0.0, %v2868
      %v2870 = vpop.f32.mrf.mxu0
      %v2871 = vpop.f32.mrf.mxu0
      %v2872 = vadd.f32 0.0, %v2871
      %v2873 = vpop.f32.mrf.mxu0
      %2874 = vdwg.mxu0
      %s2875 = scalar_lea.vmem %s11, 32
      %v2876 = vld [vmem:[%s2875] sm:$0xf]
      %v2877 = vld [vmem:[%s2875 + $0x4] sm:$0xf]
      %v2878 = vld [vmem:[%s2875 + $0x8] sm:$0xf]
      %v2879 = vld [vmem:[%s2875 + $0xc] sm:$0xf]
      %v2880 = vld [vmem:[%s2875 + $0x10] sm:$0xf]
      %v2881 = vld [vmem:[%s2875 + $0x14] sm:$0xf]
      %v2882 = vld [vmem:[%s2875 + $0x18] sm:$0xf]
      %v2883 = vld [vmem:[%s2875 + $0x1c] sm:$0xf]
      %v2884 = vunpack.c.l.bf16 %v2876
      %v2885 = vunpack.c.l.bf16 %v2877
      %v2886 = vunpack.c.l.bf16 %v2878
      %v2887 = vunpack.c.l.bf16 %v2879
      %v2888 = vunpack.c.l.bf16 %v2880
      %v2889 = vunpack.c.l.bf16 %v2881
      %v2890 = vunpack.c.l.bf16 %v2882
      %v2891 = vunpack.c.l.bf16 %v2883
      %2892 = vrot.lane.b32.xlu0 %v2571, 112
      %v2893 = vpop.permute.xlu0 %2892
      %2894 = vrot.lane.b32.xlu0 %v2572, 112
      %v2895 = vpop.permute.xlu0 %2894
      %2896 = vrot.lane.b32.xlu0 %v2573, 112
      %v2897 = vpop.permute.xlu0 %2896
      %2898 = vrot.lane.b32.xlu0 %v2574, 112
      %v2899 = vpop.permute.xlu0 %2898
      %2900 = vrot.lane.b32.xlu0 %v2571, 80
      %v2901 = vpop.permute.xlu0 %2900
      %2902 = vrot.lane.b32.xlu0 %v2572, 80
      %v2903 = vpop.permute.xlu0 %2902
      %2904 = vrot.lane.b32.xlu0 %v2573, 80
      %v2905 = vpop.permute.xlu0 %2904
      %2906 = vrot.lane.b32.xlu0 %v2574, 80
      %v2907 = vpop.permute.xlu0 %2906
      %v2909 = vsel %vm2603, %v2893, 0
      %v2912 = vsel %vm2603, %v2895, 0
      %v2915 = vsel %vm2603, %v2897, 0
      %v2918 = vsel %vm2603, %v2899, 0
      %v2921 = vsel %vm2603, %v2901, 0
      %v2924 = vsel %vm2603, %v2903, 0
      %v2927 = vsel %vm2603, %v2905, 0
      %v2930 = vsel %vm2603, %v2907, 0
      %2932 = vmatprep.subr.bf16.mxu0 0
      %2933 = vmatpush1.bf16.xpose.msra.mxu0 0
      %2934 = vmatprep.subr.bf16.mxu0 0
      %2935 = vmatpush1.bf16.xpose.msra.mxu0 0
      %2936 = vmatprep.subr.bf16.mxu0 0
      %2937 = vmatpush1.bf16.xpose.msra.mxu0 0
      %2938 = vmatprep.subr.bf16.mxu0 0
      %2939 = vmatpush1.bf16.xpose.msra.mxu0 0
      %2940 = vmatprep.subr.bf16.mxu0 0
      %2941 = vmatpush1.bf16.xpose.msra.mxu0 %v2930
      %2942 = vmatprep.subr.bf16.mxu0 0
      %2943 = vmatpush1.bf16.xpose.msra.mxu0 %v2927
      %2944 = vmatprep.subr.bf16.mxu0 0
      %2945 = vmatpush1.bf16.xpose.msra.mxu0 %v2924
      %2946 = vmatprep.subr.bf16.mxu0 0
      %2947 = vmatpush1.bf16.xpose.msra.mxu0 %v2921
      %2948 = vmatprep.subr.bf16.mxu0 0
      %2949 = vmatpush2.bf16.xpose.msra.mxu0 0
      %2950 = vmatprep.subr.bf16.mxu0 0
      %2951 = vmatpush2.bf16.xpose.msra.mxu0 0
      %2952 = vmatprep.subr.bf16.mxu0 0
      %2953 = vmatpush2.bf16.xpose.msra.mxu0 0
      %2954 = vmatprep.subr.bf16.mxu0 0
      %2955 = vmatpush2.bf16.xpose.msra.mxu0 0
      %2956 = vmatprep.subr.bf16.mxu0 0
      %2957 = vmatpush2.bf16.xpose.msra.mxu0 0
      %2958 = vmatprep.subr.bf16.mxu0 0
      %2959 = vmatpush2.bf16.xpose.msra.mxu0 0
      %2960 = vmatprep.subr.bf16.mxu0 0
      %2961 = vmatpush2.bf16.xpose.msra.mxu0 0
      %2962 = vmatprep.subr.bf16.mxu0 0
      %2963 = vmatpush2.bf16.xpose.msra.mxu0 0
      %2964 = vmatprep.mubr.bf16.mxu0 0
      %2965 = vmatmul.mubr.bf16.gmra.mxu0 %v2909
      %v2966 = vpop.f32.mrf.mxu0
      %v2967 = vadd.f32 %v2884, %v2966
      %v2968 = vpop.f32.mrf.mxu0
      %v2969 = vpop.f32.mrf.mxu0
      %v2970 = vadd.f32 %v2885, %v2969
      %v2971 = vpop.f32.mrf.mxu0
      %2972 = vmatprep.mubr.bf16.mxu0 0
      %2973 = vmatmul.mubr.bf16.gmra.mxu0 %v2912
      %v2974 = vpop.f32.mrf.mxu0
      %v2975 = vadd.f32 %v2886, %v2974
      %v2976 = vpop.f32.mrf.mxu0
      %v2977 = vpop.f32.mrf.mxu0
      %v2978 = vadd.f32 %v2887, %v2977
      %v2979 = vpop.f32.mrf.mxu0
      %2980 = vmatprep.mubr.bf16.mxu0 0
      %2981 = vmatmul.mubr.bf16.gmra.mxu0 %v2915
      %v2982 = vpop.f32.mrf.mxu0
      %v2983 = vadd.f32 %v2888, %v2982
      %v2984 = vpop.f32.mrf.mxu0
      %v2985 = vpop.f32.mrf.mxu0
      %v2986 = vadd.f32 %v2889, %v2985
      %v2987 = vpop.f32.mrf.mxu0
      %2988 = vmatprep.mubr.bf16.mxu0 0
      %2989 = vmatmul.mubr.bf16.gmra.mxu0 %v2918
      %v2990 = vpop.f32.mrf.mxu0
      %v2991 = vadd.f32 %v2890, %v2990
      %v2992 = vpop.f32.mrf.mxu0
      %v2993 = vpop.f32.mrf.mxu0
      %v2994 = vadd.f32 %v2891, %v2993
      %v2995 = vpop.f32.mrf.mxu0
      %2996 = vdwg.mxu0
      %v2997 = vsel %vm2693, %v2967, -inf
      %2998 = vmax.xlane.f32.xlu0 %v2997
      %v2999 = vpop.xlane.xlu0 %2998
      %v3000 = vsel %vm2693, %v2970, -inf
      %3001 = vmax.xlane.f32.xlu0 %v3000
      %v3002 = vpop.xlane.xlu0 %3001
      %v3003 = vsel %vm2693, %v2975, -inf
      %3004 = vmax.xlane.f32.xlu0 %v3003
      %v3005 = vpop.xlane.xlu0 %3004
      %v3006 = vsel %vm2693, %v2978, -inf
      %3007 = vmax.xlane.f32.xlu0 %v3006
      %v3008 = vpop.xlane.xlu0 %3007
      %v3009 = vsel %vm2693, %v2983, -inf
      %3010 = vmax.xlane.f32.xlu0 %v3009
      %v3011 = vpop.xlane.xlu0 %3010
      %v3012 = vsel %vm2693, %v2986, -inf
      %3013 = vmax.xlane.f32.xlu0 %v3012
      %v3014 = vpop.xlane.xlu0 %3013
      %v3015 = vsel %vm2693, %v2991, -inf
      %3016 = vmax.xlane.f32.xlu0 %v3015
      %v3017 = vpop.xlane.xlu0 %3016
      %v3018 = vsel %vm2693, %v2994, -inf
      %3019 = vmax.xlane.f32.xlu0 %v3018
      %v3020 = vpop.xlane.xlu0 %3019
      %v3021 = vsub.f32 %v2967, %v2999
      %v3022 = vsub.f32 %v2970, %v3002
      %v3023 = vsub.f32 %v2975, %v3005
      %v3024 = vsub.f32 %v2978, %v3008
      %v3025 = vsub.f32 %v2983, %v3011
      %v3026 = vsub.f32 %v2986, %v3014
      %v3027 = vsub.f32 %v2991, %v3017
      %v3028 = vsub.f32 %v2994, %v3020
      %v3029 = vmul.f32 %v3021, 1.442695
      %v3030 = vpow.pop %v3029
      %v3031 = vmul.f32 %v3022, 1.442695
      %v3032 = vpow.pop %v3031
      %v3033 = vmul.f32 %v3023, 1.442695
      %v3034 = vpow.pop %v3033
      %v3035 = vmul.f32 %v3024, 1.442695
      %v3036 = vpow.pop %v3035
      %v3037 = vmul.f32 %v3025, 1.442695
      %v3038 = vpow.pop %v3037
      %v3039 = vmul.f32 %v3026, 1.442695
      %v3040 = vpow.pop %v3039
      %v3041 = vmul.f32 %v3027, 1.442695
      %v3042 = vpow.pop %v3041
      %v3043 = vmul.f32 %v3028, 1.442695
      %v3044 = vpow.pop %v3043
      %v3045 = vsel %vm2693, %v3030, 0.0
      %3046 = vadd.xlane.f32.xlu0 %v3045
      %v3047 = vpop.xlane.xlu0 %3046
      %v3048 = vsel %vm2693, %v3032, 0.0
      %3049 = vadd.xlane.f32.xlu0 %v3048
      %v3050 = vpop.xlane.xlu0 %3049
      %v3051 = vsel %vm2693, %v3034, 0.0
      %3052 = vadd.xlane.f32.xlu0 %v3051
      %v3053 = vpop.xlane.xlu0 %3052
      %v3054 = vsel %vm2693, %v3036, 0.0
      %3055 = vadd.xlane.f32.xlu0 %v3054
      %v3056 = vpop.xlane.xlu0 %3055
      %v3057 = vsel %vm2693, %v3038, 0.0
      %3058 = vadd.xlane.f32.xlu0 %v3057
      %v3059 = vpop.xlane.xlu0 %3058
      %v3060 = vsel %vm2693, %v3040, 0.0
      %3061 = vadd.xlane.f32.xlu0 %v3060
      %v3062 = vpop.xlane.xlu0 %3061
      %v3063 = vsel %vm2693, %v3042, 0.0
      %3064 = vadd.xlane.f32.xlu0 %v3063
      %v3065 = vpop.xlane.xlu0 %3064
      %v3066 = vsel %vm2693, %v3044, 0.0
      %3067 = vadd.xlane.f32.xlu0 %v3066
      %v3068 = vpop.xlane.xlu0 %3067
      %v3069 = vrcp.pop %v3047
      %v3070 = vrcp.pop %v3050
      %v3071 = vrcp.pop %v3053
      %v3072 = vrcp.pop %v3056
      %v3073 = vrcp.pop %v3059
      %v3074 = vrcp.pop %v3062
      %v3075 = vrcp.pop %v3065
      %v3076 = vrcp.pop %v3068
      %v3077 = vmul.f32 %v3030, %v3069
      %v3078 = vmul.f32 %v3032, %v3070
      %v3079 = vmul.f32 %v3034, %v3071
      %v3080 = vmul.f32 %v3036, %v3072
      %v3081 = vmul.f32 %v3038, %v3073
      %v3082 = vmul.f32 %v3040, %v3074
      %v3083 = vmul.f32 %v3042, %v3075
      %v3084 = vmul.f32 %v3044, %v3076
      %v3085 = vpack.c.bf16 %v3078, %v3077
      %v3086 = vpack.c.bf16 %v3080, %v3079
      %v3087 = vpack.c.bf16 %v3082, %v3081
      %v3088 = vpack.c.bf16 %v3084, %v3083
      %3089 = vrot.lane.b32.xlu0 %v2571, 48
      %v3090 = vpop.permute.xlu0 %3089
      %3091 = vrot.lane.b32.xlu0 %v2572, 48
      %v3092 = vpop.permute.xlu0 %3091
      %3093 = vrot.lane.b32.xlu0 %v2573, 48
      %v3094 = vpop.permute.xlu0 %3093
      %3095 = vrot.lane.b32.xlu0 %v2574, 48
      %v3096 = vpop.permute.xlu0 %3095
      %v3102 = vsel %vm2693, %v3085, 0
      %v3105 = vsel %vm2693, %v3086, 0
      %v3108 = vsel %vm2693, %v3087, 0
      %v3111 = vsel %vm2693, %v3088, 0
      %3113 = vmatprep.subr.bf16.mxu0 0
      %3114 = vmatpush1.bf16.msra.mxu0 0
      %3115 = vmatprep.subr.bf16.mxu0 0
      %3116 = vmatpush1.bf16.msra.mxu0 0
      %3117 = vmatprep.subr.bf16.mxu0 0
      %3118 = vmatpush1.bf16.msra.mxu0 0
      %3119 = vmatprep.subr.bf16.mxu0 0
      %3120 = vmatpush1.bf16.msra.mxu0 0
      %3121 = vmatprep.subr.bf16.mxu0 0
      %3122 = vmatpush1.bf16.msra.mxu0 %v3096
      %3123 = vmatprep.subr.bf16.mxu0 0
      %3124 = vmatpush1.bf16.msra.mxu0 %v3094
      %3125 = vmatprep.subr.bf16.mxu0 0
      %3126 = vmatpush1.bf16.msra.mxu0 %v3092
      %3127 = vmatprep.subr.bf16.mxu0 0
      %3128 = vmatpush1.bf16.msra.mxu0 %v3090
      %3129 = vmatprep.subr.bf16.mxu0 0
      %3130 = vmatpush2.bf16.msra.mxu0 0
      %3131 = vmatprep.subr.bf16.mxu0 0
      %3132 = vmatpush2.bf16.msra.mxu0 0
      %3133 = vmatprep.subr.bf16.mxu0 0
      %3134 = vmatpush2.bf16.msra.mxu0 0
      %3135 = vmatprep.subr.bf16.mxu0 0
      %3136 = vmatpush2.bf16.msra.mxu0 0
      %3137 = vmatprep.subr.bf16.mxu0 0
      %3138 = vmatpush2.bf16.msra.mxu0 0
      %3139 = vmatprep.subr.bf16.mxu0 0
      %3140 = vmatpush2.bf16.msra.mxu0 0
      %3141 = vmatprep.subr.bf16.mxu0 0
      %3142 = vmatpush2.bf16.msra.mxu0 0
      %3143 = vmatprep.subr.bf16.mxu0 0
      %3144 = vmatpush2.bf16.msra.mxu0 0
      %3145 = vmatprep.mubr.bf16.mxu0 0
      %3146 = vmatmul.mubr.bf16.gmra.mxu0 %v3102
      %v3147 = vpop.f32.mrf.mxu0
      %v3148 = vadd.f32 0.0, %v3147
      %v3149 = vpop.f32.mrf.mxu0
      %v3150 = vpop.f32.mrf.mxu0
      %v3151 = vadd.f32 0.0, %v3150
      %v3152 = vpop.f32.mrf.mxu0
      %3153 = vmatprep.mubr.bf16.mxu0 0
      %3154 = vmatmul.mubr.bf16.gmra.mxu0 %v3105
      %v3155 = vpop.f32.mrf.mxu0
      %v3156 = vadd.f32 0.0, %v3155
      %v3157 = vpop.f32.mrf.mxu0
      %v3158 = vpop.f32.mrf.mxu0
      %v3159 = vadd.f32 0.0, %v3158
      %v3160 = vpop.f32.mrf.mxu0
      %3161 = vmatprep.mubr.bf16.mxu0 0
      %3162 = vmatmul.mubr.bf16.gmra.mxu0 %v3108
      %v3163 = vpop.f32.mrf.mxu0
      %v3164 = vadd.f32 0.0, %v3163
      %v3165 = vpop.f32.mrf.mxu0
      %v3166 = vpop.f32.mrf.mxu0
      %v3167 = vadd.f32 0.0, %v3166
      %v3168 = vpop.f32.mrf.mxu0
      %3169 = vmatprep.mubr.bf16.mxu0 0
      %3170 = vmatmul.mubr.bf16.gmra.mxu0 %v3111
      %v3171 = vpop.f32.mrf.mxu0
      %v3172 = vadd.f32 0.0, %v3171
      %v3173 = vpop.f32.mrf.mxu0
      %v3174 = vpop.f32.mrf.mxu0
      %v3175 = vadd.f32 0.0, %v3174
      %v3176 = vpop.f32.mrf.mxu0
      %3177 = vdwg.mxu0
      %3186 = vrot.lane.b32.xlu0 %v3148, 16
      %v3187 = vpop.permute.xlu0 %3186
      %3188 = vrot.lane.b32.xlu0 %v3151, 16
      %v3189 = vpop.permute.xlu0 %3188
      %3190 = vrot.lane.b32.xlu0 %v3156, 16
      %v3191 = vpop.permute.xlu0 %3190
      %3192 = vrot.lane.b32.xlu0 %v3159, 16
      %v3193 = vpop.permute.xlu0 %3192
      %3194 = vrot.lane.b32.xlu0 %v3164, 16
      %v3195 = vpop.permute.xlu0 %3194
      %3196 = vrot.lane.b32.xlu0 %v3167, 16
      %v3197 = vpop.permute.xlu0 %3196
      %3198 = vrot.lane.b32.xlu0 %v3172, 16
      %v3199 = vpop.permute.xlu0 %3198
      %3200 = vrot.lane.b32.xlu0 %v3175, 16
      %v3201 = vpop.permute.xlu0 %3200
      %v3210 = vsel %vm2603, %v2845, %v3187
      %v3211 = vsel %vm2603, %v2848, %v3189
      %v3212 = vsel %vm2603, %v2853, %v3191
      %v3213 = vsel %vm2603, %v2856, %v3193
      %v3214 = vsel %vm2603, %v2861, %v3195
      %v3215 = vsel %vm2603, %v2864, %v3197
      %v3216 = vsel %vm2603, %v2869, %v3199
      %v3217 = vsel %vm2603, %v2872, %v3201
      %v3218 = vpack.c.bf16 %v3211, %v3210
      %v3219 = vpack.c.bf16 %v3213, %v3212
      %v3220 = vpack.c.bf16 %v3215, %v3214
      %v3221 = vpack.c.bf16 %v3217, %v3216
      %v3222 = vld [vmem:[%s23] sm:$0xf]
      %v3223 = vld [vmem:[%s23 + $0x4] sm:$0xf]
      %v3224 = vld [vmem:[%s23 + $0x8] sm:$0xf]
      %v3225 = vld [vmem:[%s23 + $0xc] sm:$0xf]
      %v3230 = vunpack.c.l.b16 %v3222
      %v3231 = vunpack.c.l.b16 %v3223
      %v3232 = vunpack.c.l.b16 %v3224
      %v3233 = vunpack.c.l.b16 %v3225
      %v3234 = vpack.c.b16 %v3231, %v3230
      %v3235 = vpack.c.b16 %v3233, %v3232
      %v3239 = vsel %vm2199, %v3218, 0
      %v3242 = vsel %vm2199, %v3219, 0
      %v3245 = vsel %vm2199, %v3220, 0
      %v3248 = vsel %vm2199, %v3221, 0
      %3250 = vmatprep.subr.bf16.mxu0 0
      %3251 = vmatpush1.bf16.msra.mxu0 0
      %3252 = vmatprep.subr.bf16.mxu0 0
      %3253 = vmatpush1.bf16.msra.mxu0 0
      %3254 = vmatprep.subr.bf16.mxu0 0
      %3255 = vmatpush1.bf16.msra.mxu0 0
      %3256 = vmatprep.subr.bf16.mxu0 0
      %3257 = vmatpush1.bf16.msra.mxu0 0
      %3258 = vmatprep.subr.bf16.mxu0 0
      %3259 = vmatpush1.bf16.msra.mxu0 0
      %3260 = vmatprep.subr.bf16.mxu0 0
      %3261 = vmatpush1.bf16.msra.mxu0 0
      %3262 = vmatprep.subr.bf16.mxu0 0
      %3263 = vmatpush1.bf16.msra.mxu0 %v3235
      %3264 = vmatprep.subr.bf16.mxu0 0
      %3265 = vmatpush1.bf16.msra.mxu0 %v3234
      %3266 = vmatprep.subr.bf16.mxu0 0
      %3267 = vmatpush2.bf16.msra.mxu0 0
      %3268 = vmatprep.subr.bf16.mxu0 0
      %3269 = vmatpush2.bf16.msra.mxu0 0
      %3270 = vmatprep.subr.bf16.mxu0 0
      %3271 = vmatpush2.bf16.msra.mxu0 0
      %3272 = vmatprep.subr.bf16.mxu0 0
      %3273 = vmatpush2.bf16.msra.mxu0 0
      %3274 = vmatprep.subr.bf16.mxu0 0
      %3275 = vmatpush2.bf16.msra.mxu0 0
      %3276 = vmatprep.subr.bf16.mxu0 0
      %3277 = vmatpush2.bf16.msra.mxu0 0
      %3278 = vmatprep.subr.bf16.mxu0 0
      %3279 = vmatpush2.bf16.msra.mxu0 0
      %3280 = vmatprep.subr.bf16.mxu0 0
      %3281 = vmatpush2.bf16.msra.mxu0 0
      %3282 = vmatprep.mubr.bf16.mxu0 0
      %3283 = vmatmul.mubr.bf16.gmra.mxu0 %v3239
      %v3284 = vpop.f32.mrf.mxu0
      %v3285 = vadd.f32 0.0, %v3284
      %v3286 = vpop.f32.mrf.mxu0
      %v3287 = vpop.f32.mrf.mxu0
      %v3288 = vadd.f32 0.0, %v3287
      %v3289 = vpop.f32.mrf.mxu0
      %3290 = vmatprep.mubr.bf16.mxu0 0
      %3291 = vmatmul.mubr.bf16.gmra.mxu0 %v3242
      %v3292 = vpop.f32.mrf.mxu0
      %v3293 = vadd.f32 0.0, %v3292
      %v3294 = vpop.f32.mrf.mxu0
      %v3295 = vpop.f32.mrf.mxu0
      %v3296 = vadd.f32 0.0, %v3295
      %v3297 = vpop.f32.mrf.mxu0
      %3298 = vmatprep.mubr.bf16.mxu0 0
      %3299 = vmatmul.mubr.bf16.gmra.mxu0 %v3245
      %v3300 = vpop.f32.mrf.mxu0
      %v3301 = vadd.f32 0.0, %v3300
      %v3302 = vpop.f32.mrf.mxu0
      %v3303 = vpop.f32.mrf.mxu0
      %v3304 = vadd.f32 0.0, %v3303
      %v3305 = vpop.f32.mrf.mxu0
      %3306 = vmatprep.mubr.bf16.mxu0 0
      %3307 = vmatmul.mubr.bf16.gmra.mxu0 %v3248
      %v3308 = vpop.f32.mrf.mxu0
      %v3309 = vadd.f32 0.0, %v3308
      %v3310 = vpop.f32.mrf.mxu0
      %v3311 = vpop.f32.mrf.mxu0
      %v3312 = vadd.f32 0.0, %v3311
      %v3313 = vpop.f32.mrf.mxu0
      %3314 = vdwg.mxu0
      %v3315 = vadd.f32 %v2325, %v3285
      %v3316 = vadd.f32 %v2326, %v3288
      %v3317 = vadd.f32 %v2327, %v3293
      %v3318 = vadd.f32 %v2328, %v3296
      %v3319 = vadd.f32 %v2329, %v3301
      %v3320 = vadd.f32 %v2330, %v3304
      %v3321 = vadd.f32 %v2331, %v3309
      %v3322 = vadd.f32 %v2332, %v3312
      %v3323 = vld [vmem:[%s25] sm:$0x1]
      %v3325 = vlaneseq
      %v3326 = vshrl.u32 %v3325, 7
      %v3327 = vsub.s32 0, %v3326
      %v3328 = vrot.slane %v3323, %v3327
      %v3330 = vadd.f32 %v3315, %v3328
      %v3331 = vadd.f32 %v3316, %v3328
      %v3332 = vadd.f32 %v3317, %v3328
      %v3333 = vadd.f32 %v3318, %v3328
      %v3334 = vadd.f32 %v3319, %v3328
      %v3335 = vadd.f32 %v3320, %v3328
      %v3336 = vadd.f32 %v3321, %v3328
      %v3337 = vadd.f32 %v3322, %v3328
      %v3338 = vld [vmem:[%s27] sm:$0x1]
      %v3339 = vld [vmem:[%s29] sm:$0x1]
      %v3340 = vsel %vm2199, %v3330, 0.0
      %3341 = vadd.xlane.f32.xlu0 %v3340
      %v3342 = vpop.xlane.xlu0 %3341
      %v3343 = vsel %vm2199, %v3331, 0.0
      %3344 = vadd.xlane.f32.xlu0 %v3343
      %v3345 = vpop.xlane.xlu0 %3344
      %v3346 = vsel %vm2199, %v3332, 0.0
      %3347 = vadd.xlane.f32.xlu0 %v3346
      %v3348 = vpop.xlane.xlu0 %3347
      %v3349 = vsel %vm2199, %v3333, 0.0
      %3350 = vadd.xlane.f32.xlu0 %v3349
      %v3351 = vpop.xlane.xlu0 %3350
      %v3352 = vsel %vm2199, %v3334, 0.0
      %3353 = vadd.xlane.f32.xlu0 %v3352
      %v3354 = vpop.xlane.xlu0 %3353
      %v3355 = vsel %vm2199, %v3335, 0.0
      %3356 = vadd.xlane.f32.xlu0 %v3355
      %v3357 = vpop.xlane.xlu0 %3356
      %v3358 = vsel %vm2199, %v3336, 0.0
      %3359 = vadd.xlane.f32.xlu0 %v3358
      %v3360 = vpop.xlane.xlu0 %3359
      %v3361 = vsel %vm2199, %v3337, 0.0
      %3362 = vadd.xlane.f32.xlu0 %v3361
      %v3363 = vpop.xlane.xlu0 %3362
      %v3364 = vmul.f32 %v3342, %v2224
      %v3365 = vmul.f32 %v3345, %v2224
      %v3366 = vmul.f32 %v3348, %v2224
      %v3367 = vmul.f32 %v3351, %v2224
      %v3368 = vmul.f32 %v3354, %v2224
      %v3369 = vmul.f32 %v3357, %v2224
      %v3370 = vmul.f32 %v3360, %v2224
      %v3371 = vmul.f32 %v3363, %v2224
      %v3372 = vsub.f32 %v3330, %v3364
      %v3373 = vsub.f32 %v3331, %v3365
      %v3374 = vsub.f32 %v3332, %v3366
      %v3375 = vsub.f32 %v3333, %v3367
      %v3376 = vsub.f32 %v3334, %v3368
      %v3377 = vsub.f32 %v3335, %v3369
      %v3378 = vsub.f32 %v3336, %v3370
      %v3379 = vsub.f32 %v3337, %v3371
      %v3380 = vmul.f32 %v3372, %v3372
      %v3381 = vmul.f32 %v3373, %v3373
      %v3382 = vmul.f32 %v3374, %v3374
      %v3383 = vmul.f32 %v3375, %v3375
      %v3384 = vmul.f32 %v3376, %v3376
      %v3385 = vmul.f32 %v3377, %v3377
      %v3386 = vmul.f32 %v3378, %v3378
      %v3387 = vmul.f32 %v3379, %v3379
      %v3388 = vsel %vm2199, %v3380, 0.0
      %3389 = vadd.xlane.f32.xlu0 %v3388
      %v3390 = vpop.xlane.xlu0 %3389
      %v3391 = vsel %vm2199, %v3381, 0.0
      %3392 = vadd.xlane.f32.xlu0 %v3391
      %v3393 = vpop.xlane.xlu0 %3392
      %v3394 = vsel %vm2199, %v3382, 0.0
      %3395 = vadd.xlane.f32.xlu0 %v3394
      %v3396 = vpop.xlane.xlu0 %3395
      %v3397 = vsel %vm2199, %v3383, 0.0
      %3398 = vadd.xlane.f32.xlu0 %v3397
      %v3399 = vpop.xlane.xlu0 %3398
      %v3400 = vsel %vm2199, %v3384, 0.0
      %3401 = vadd.xlane.f32.xlu0 %v3400
      %v3402 = vpop.xlane.xlu0 %3401
      %v3403 = vsel %vm2199, %v3385, 0.0
      %3404 = vadd.xlane.f32.xlu0 %v3403
      %v3405 = vpop.xlane.xlu0 %3404
      %v3406 = vsel %vm2199, %v3386, 0.0
      %3407 = vadd.xlane.f32.xlu0 %v3406
      %v3408 = vpop.xlane.xlu0 %3407
      %v3409 = vsel %vm2199, %v3387, 0.0
      %3410 = vadd.xlane.f32.xlu0 %v3409
      %v3411 = vpop.xlane.xlu0 %3410
      %v3412 = vmul.f32 %v3390, %v2224
      %v3413 = vmul.f32 %v3393, %v2224
      %v3414 = vmul.f32 %v3396, %v2224
      %v3415 = vmul.f32 %v3399, %v2224
      %v3416 = vmul.f32 %v3402, %v2224
      %v3417 = vmul.f32 %v3405, %v2224
      %v3418 = vmul.f32 %v3408, %v2224
      %v3419 = vmul.f32 %v3411, %v2224
      %v3420 = vadd.f32 %v3412, 1e-05
      %v3421 = vadd.f32 %v3413, 1e-05
      %v3422 = vadd.f32 %v3414, 1e-05
      %v3423 = vadd.f32 %v3415, 1e-05
      %v3424 = vadd.f32 %v3416, 1e-05
      %v3425 = vadd.f32 %v3417, 1e-05
      %v3426 = vadd.f32 %v3418, 1e-05
      %v3427 = vadd.f32 %v3419, 1e-05
      %v3428 = vrsqrt.pop %v3420
      %v3429 = vrsqrt.pop %v3421
      %v3430 = vrsqrt.pop %v3422
      %v3431 = vrsqrt.pop %v3423
      %v3432 = vrsqrt.pop %v3424
      %v3433 = vrsqrt.pop %v3425
      %v3434 = vrsqrt.pop %v3426
      %v3435 = vrsqrt.pop %v3427
      %v3436 = vmul.f32 %v3372, %v3428
      %v3437 = vmul.f32 %v3373, %v3429
      %v3438 = vmul.f32 %v3374, %v3430
      %v3439 = vmul.f32 %v3375, %v3431
      %v3440 = vmul.f32 %v3376, %v3432
      %v3441 = vmul.f32 %v3377, %v3433
      %v3442 = vmul.f32 %v3378, %v3434
      %v3443 = vmul.f32 %v3379, %v3435
      %v3445 = vlaneseq
      %v3446 = vshrl.u32 %v3445, 7
      %v3447 = vsub.s32 0, %v3446
      %v3448 = vrot.slane %v3338, %v3447
      %v3450 = vmul.f32 %v3436, %v3448
      %v3451 = vmul.f32 %v3437, %v3448
      %v3452 = vmul.f32 %v3438, %v3448
      %v3453 = vmul.f32 %v3439, %v3448
      %v3454 = vmul.f32 %v3440, %v3448
      %v3455 = vmul.f32 %v3441, %v3448
      %v3456 = vmul.f32 %v3442, %v3448
      %v3457 = vmul.f32 %v3443, %v3448
      %v3459 = vlaneseq
      %v3460 = vshrl.u32 %v3459, 7
      %v3461 = vsub.s32 0, %v3460
      %v3462 = vrot.slane %v3339, %v3461
      %v3464 = vadd.f32 %v3450, %v3462
      %v3465 = vadd.f32 %v3451, %v3462
      %v3466 = vadd.f32 %v3452, %v3462
      %v3467 = vadd.f32 %v3453, %v3462
      %v3468 = vadd.f32 %v3454, %v3462
      %v3469 = vadd.f32 %v3455, %v3462
      %v3470 = vadd.f32 %v3456, %v3462
      %v3471 = vadd.f32 %v3457, %v3462
      %v3472 = vpack.c.bf16 %v3465, %v3464
      %v3473 = vpack.c.bf16 %v3467, %v3466
      %v3474 = vpack.c.bf16 %v3469, %v3468
      %v3475 = vpack.c.bf16 %v3471, %v3470
      %v3476 = vld [vmem:[%s31] sm:$0xf]
      %v3477 = vld [vmem:[%s31 + $0x4] sm:$0xf]
      %v3478 = vld [vmem:[%s31 + $0x8] sm:$0xf]
      %v3479 = vld [vmem:[%s31 + $0xc] sm:$0xf]
      %v3480 = vld [vmem:[%s33] sm:$0x1]
      %v3482 = vlaneseq
      %v3483 = vshrl.u32 %v3482, 7
      %v3484 = vsub.s32 0, %v3483
      %v3485 = vrot.slane %v3480, %v3484
      %v3491 = vunpack.c.l.b16 %v3476
      %v3492 = vunpack.c.l.b16 %v3477
      %v3493 = vunpack.c.l.b16 %v3478
      %v3494 = vunpack.c.l.b16 %v3479
      %v3495 = vpack.c.b16 %v3492, %v3491
      %v3496 = vpack.c.b16 %v3494, %v3493
      %v3500 = vsel %vm2199, %v3472, 0
      %v3503 = vsel %vm2199, %v3473, 0
      %v3506 = vsel %vm2199, %v3474, 0
      %v3509 = vsel %vm2199, %v3475, 0
      %3511 = vmatprep.subr.bf16.mxu0 0
      %3512 = vmatpush1.bf16.msra.mxu0 0
      %3513 = vmatprep.subr.bf16.mxu0 0
      %3514 = vmatpush1.bf16.msra.mxu0 0
      %3515 = vmatprep.subr.bf16.mxu0 0
      %3516 = vmatpush1.bf16.msra.mxu0 0
      %3517 = vmatprep.subr.bf16.mxu0 0
      %3518 = vmatpush1.bf16.msra.mxu0 0
      %3519 = vmatprep.subr.bf16.mxu0 0
      %3520 = vmatpush1.bf16.msra.mxu0 0
      %3521 = vmatprep.subr.bf16.mxu0 0
      %3522 = vmatpush1.bf16.msra.mxu0 0
      %3523 = vmatprep.subr.bf16.mxu0 0
      %3524 = vmatpush1.bf16.msra.mxu0 %v3496
      %3525 = vmatprep.subr.bf16.mxu0 0
      %3526 = vmatpush1.bf16.msra.mxu0 %v3495
      %3527 = vmatprep.subr.bf16.mxu0 0
      %3528 = vmatpush2.bf16.msra.mxu0 0
      %3529 = vmatprep.subr.bf16.mxu0 0
      %3530 = vmatpush2.bf16.msra.mxu0 0
      %3531 = vmatprep.subr.bf16.mxu0 0
      %3532 = vmatpush2.bf16.msra.mxu0 0
      %3533 = vmatprep.subr.bf16.mxu0 0
      %3534 = vmatpush2.bf16.msra.mxu0 0
      %3535 = vmatprep.subr.bf16.mxu0 0
      %3536 = vmatpush2.bf16.msra.mxu0 0
      %3537 = vmatprep.subr.bf16.mxu0 0
      %3538 = vmatpush2.bf16.msra.mxu0 0
      %3539 = vmatprep.subr.bf16.mxu0 0
      %3540 = vmatpush2.bf16.msra.mxu0 0
      %3541 = vmatprep.subr.bf16.mxu0 0
      %3542 = vmatpush2.bf16.msra.mxu0 0
      %3543 = vmatprep.mubr.bf16.mxu0 0
      %3544 = vmatmul.mubr.bf16.gmra.mxu0 %v3500
      %v3545 = vpop.f32.mrf.mxu0
      %v3546 = vadd.f32 %v3485, %v3545
      %v3547 = vpop.f32.mrf.mxu0
      %v3548 = vpop.f32.mrf.mxu0
      %v3549 = vadd.f32 %v3485, %v3548
      %v3550 = vpop.f32.mrf.mxu0
      %3551 = vmatprep.mubr.bf16.mxu0 0
      %3552 = vmatmul.mubr.bf16.gmra.mxu0 %v3503
      %v3553 = vpop.f32.mrf.mxu0
      %v3554 = vadd.f32 %v3485, %v3553
      %v3555 = vpop.f32.mrf.mxu0
      %v3556 = vpop.f32.mrf.mxu0
      %v3557 = vadd.f32 %v3485, %v3556
      %v3558 = vpop.f32.mrf.mxu0
      %3559 = vmatprep.mubr.bf16.mxu0 0
      %3560 = vmatmul.mubr.bf16.gmra.mxu0 %v3506
      %v3561 = vpop.f32.mrf.mxu0
      %v3562 = vadd.f32 %v3485, %v3561
      %v3563 = vpop.f32.mrf.mxu0
      %v3564 = vpop.f32.mrf.mxu0
      %v3565 = vadd.f32 %v3485, %v3564
      %v3566 = vpop.f32.mrf.mxu0
      %3567 = vmatprep.mubr.bf16.mxu0 0
      %3568 = vmatmul.mubr.bf16.gmra.mxu0 %v3509
      %v3569 = vpop.f32.mrf.mxu0
      %v3570 = vadd.f32 %v3485, %v3569
      %v3571 = vpop.f32.mrf.mxu0
      %v3572 = vpop.f32.mrf.mxu0
      %v3573 = vadd.f32 %v3485, %v3572
      %v3574 = vpop.f32.mrf.mxu0
      %3575 = vdwg.mxu0
      %v3576 = vmul.f32 %v3546, 0.5
      %v3577 = vmul.f32 %v3549, 0.5
      %v3578 = vmul.f32 %v3554, 0.5
      %v3579 = vmul.f32 %v3557, 0.5
      %v3580 = vmul.f32 %v3562, 0.5
      %v3581 = vmul.f32 %v3565, 0.5
      %v3582 = vmul.f32 %v3570, 0.5
      %v3583 = vmul.f32 %v3573, 0.5
      %v3584 = vmul.f32 %v3546, 0.044715
      %v3585 = vmul.f32 %v3549, 0.044715
      %v3586 = vmul.f32 %v3554, 0.044715
      %v3587 = vmul.f32 %v3557, 0.044715
      %v3588 = vmul.f32 %v3562, 0.044715
      %v3589 = vmul.f32 %v3565, 0.044715
      %v3590 = vmul.f32 %v3570, 0.044715
      %v3591 = vmul.f32 %v3573, 0.044715
      %v3592 = vmul.f32 %v3584, %v3546
      %v3593 = vmul.f32 %v3585, %v3549
      %v3594 = vmul.f32 %v3586, %v3554
      %v3595 = vmul.f32 %v3587, %v3557
      %v3596 = vmul.f32 %v3588, %v3562
      %v3597 = vmul.f32 %v3589, %v3565
      %v3598 = vmul.f32 %v3590, %v3570
      %v3599 = vmul.f32 %v3591, %v3573
      %v3600 = vmul.f32 %v3592, %v3546
      %v3601 = vmul.f32 %v3593, %v3549
      %v3602 = vmul.f32 %v3594, %v3554
      %v3603 = vmul.f32 %v3595, %v3557
      %v3604 = vmul.f32 %v3596, %v3562
      %v3605 = vmul.f32 %v3597, %v3565
      %v3606 = vmul.f32 %v3598, %v3570
      %v3607 = vmul.f32 %v3599, %v3573
      %v3608 = vadd.f32 %v3546, %v3600
      %v3609 = vadd.f32 %v3549, %v3601
      %v3610 = vadd.f32 %v3554, %v3602
      %v3611 = vadd.f32 %v3557, %v3603
      %v3612 = vadd.f32 %v3562, %v3604
      %v3613 = vadd.f32 %v3565, %v3605
      %v3614 = vadd.f32 %v3570, %v3606
      %v3615 = vadd.f32 %v3573, %v3607
      %v3616 = vmul.f32 %v3608, 0.7978846
      %v3617 = vmul.f32 %v3609, 0.7978846
      %v3618 = vmul.f32 %v3610, 0.7978846
      %v3619 = vmul.f32 %v3611, 0.7978846
      %v3620 = vmul.f32 %v3612, 0.7978846
      %v3621 = vmul.f32 %v3613, 0.7978846
      %v3622 = vmul.f32 %v3614, 0.7978846
      %v3623 = vmul.f32 %v3615, 0.7978846
      %v3624 = vtanh.pop %v3616
      %v3625 = vtanh.pop %v3617
      %v3626 = vtanh.pop %v3618
      %v3627 = vtanh.pop %v3619
      %v3628 = vtanh.pop %v3620
      %v3629 = vtanh.pop %v3621
      %v3630 = vtanh.pop %v3622
      %v3631 = vtanh.pop %v3623
      %v3632 = vadd.f32 %v3624, 1.0
      %v3633 = vadd.f32 %v3625, 1.0
      %v3634 = vadd.f32 %v3626, 1.0
      %v3635 = vadd.f32 %v3627, 1.0
      %v3636 = vadd.f32 %v3628, 1.0
      %v3637 = vadd.f32 %v3629, 1.0
      %v3638 = vadd.f32 %v3630, 1.0
      %v3639 = vadd.f32 %v3631, 1.0
      %v3640 = vmul.f32 %v3576, %v3632
      %v3641 = vmul.f32 %v3577, %v3633
      %v3642 = vmul.f32 %v3578, %v3634
      %v3643 = vmul.f32 %v3579, %v3635
      %v3644 = vmul.f32 %v3580, %v3636
      %v3645 = vmul.f32 %v3581, %v3637
      %v3646 = vmul.f32 %v3582, %v3638
      %v3647 = vmul.f32 %v3583, %v3639
      %v3648 = vpack.c.bf16 %v3641, %v3640
      %v3649 = vpack.c.bf16 %v3643, %v3642
      %v3650 = vpack.c.bf16 %v3645, %v3644
      %v3651 = vpack.c.bf16 %v3647, %v3646
      %v3652 = vld [vmem:[%s35] sm:$0xf]
      %v3653 = vld [vmem:[%s35 + $0x4] sm:$0xf]
      %v3654 = vld [vmem:[%s35 + $0x8] sm:$0xf]
      %v3655 = vld [vmem:[%s35 + $0xc] sm:$0xf]
      %v3656 = vld [vmem:[%s35 + $0x10] sm:$0xf]
      %v3657 = vld [vmem:[%s35 + $0x14] sm:$0xf]
      %v3658 = vld [vmem:[%s35 + $0x18] sm:$0xf]
      %v3659 = vld [vmem:[%s35 + $0x1c] sm:$0xf]
      %v3660 = vld [vmem:[%s35 + $0x20] sm:$0xf]
      %v3661 = vld [vmem:[%s35 + $0x24] sm:$0xf]
      %v3662 = vld [vmem:[%s35 + $0x28] sm:$0xf]
      %v3663 = vld [vmem:[%s35 + $0x2c] sm:$0xf]
      %v3664 = vld [vmem:[%s35 + $0x30] sm:$0xf]
      %v3665 = vld [vmem:[%s35 + $0x34] sm:$0xf]
      %v3666 = vld [vmem:[%s35 + $0x38] sm:$0xf]
      %v3667 = vld [vmem:[%s35 + $0x3c] sm:$0xf]
      %v3668 = vld [vmem:[%s37] sm:$0x1]
      %v3670 = vlaneseq
      %v3671 = vshrl.u32 %v3670, 7
      %v3672 = vsub.s32 0, %v3671
      %v3673 = vrot.slane %v3668, %v3672
      %v3691 = vunpack.c.l.b16 %v3652
      %v3692 = vunpack.c.l.b16 %v3653
      %v3693 = vunpack.c.l.b16 %v3654
      %v3694 = vunpack.c.l.b16 %v3655
      %v3695 = vunpack.c.l.b16 %v3656
      %v3696 = vunpack.c.l.b16 %v3657
      %v3697 = vunpack.c.l.b16 %v3658
      %v3698 = vunpack.c.l.b16 %v3659
      %v3699 = vunpack.c.l.b16 %v3660
      %v3700 = vunpack.c.l.b16 %v3661
      %v3701 = vunpack.c.l.b16 %v3662
      %v3702 = vunpack.c.l.b16 %v3663
      %v3703 = vunpack.c.l.b16 %v3664
      %v3704 = vunpack.c.l.b16 %v3665
      %v3705 = vunpack.c.l.b16 %v3666
      %v3706 = vunpack.c.l.b16 %v3667
      %v3707 = vpack.c.b16 %v3692, %v3691
      %v3708 = vpack.c.b16 %v3694, %v3693
      %v3709 = vpack.c.b16 %v3696, %v3695
      %v3710 = vpack.c.b16 %v3698, %v3697
      %v3711 = vpack.c.b16 %v3700, %v3699
      %v3712 = vpack.c.b16 %v3702, %v3701
      %v3713 = vpack.c.b16 %v3704, %v3703
      %v3714 = vpack.c.b16 %v3706, %v3705
      %3723 = vmatprep.subr.bf16.mxu0 0
      %3724 = vmatpush1.bf16.msra.mxu0 %v3714
      %3725 = vmatprep.subr.bf16.mxu0 0
      %3726 = vmatpush1.bf16.msra.mxu0 %v3713
      %3727 = vmatprep.subr.bf16.mxu0 0
      %3728 = vmatpush1.bf16.msra.mxu0 %v3712
      %3729 = vmatprep.subr.bf16.mxu0 0
      %3730 = vmatpush1.bf16.msra.mxu0 %v3711
      %3731 = vmatprep.subr.bf16.mxu0 0
      %3732 = vmatpush1.bf16.msra.mxu0 %v3710
      %3733 = vmatprep.subr.bf16.mxu0 0
      %3734 = vmatpush1.bf16.msra.mxu0 %v3709
      %3735 = vmatprep.subr.bf16.mxu0 0
      %3736 = vmatpush1.bf16.msra.mxu0 %v3708
      %3737 = vmatprep.subr.bf16.mxu0 0
      %3738 = vmatpush1.bf16.msra.mxu0 %v3707
      %3739 = vmatprep.subr.bf16.mxu0 0
      %3740 = vmatpush2.bf16.msra.mxu0 0
      %3741 = vmatprep.subr.bf16.mxu0 0
      %3742 = vmatpush2.bf16.msra.mxu0 0
      %3743 = vmatprep.subr.bf16.mxu0 0
      %3744 = vmatpush2.bf16.msra.mxu0 0
      %3745 = vmatprep.subr.bf16.mxu0 0
      %3746 = vmatpush2.bf16.msra.mxu0 0
      %3747 = vmatprep.subr.bf16.mxu0 0
      %3748 = vmatpush2.bf16.msra.mxu0 0
      %3749 = vmatprep.subr.bf16.mxu0 0
      %3750 = vmatpush2.bf16.msra.mxu0 0
      %3751 = vmatprep.subr.bf16.mxu0 0
      %3752 = vmatpush2.bf16.msra.mxu0 0
      %3753 = vmatprep.subr.bf16.mxu0 0
      %3754 = vmatpush2.bf16.msra.mxu0 0
      %3755 = vmatprep.mubr.bf16.mxu0 0
      %3756 = vmatmul.mubr.bf16.gmra.mxu0 %v3648
      %v3757 = vpop.f32.mrf.mxu0
      %v3758 = vadd.f32 %v3673, %v3757
      %v3759 = vpop.f32.mrf.mxu0
      %v3760 = vpop.f32.mrf.mxu0
      %v3761 = vadd.f32 %v3673, %v3760
      %v3762 = vpop.f32.mrf.mxu0
      %3763 = vmatprep.mubr.bf16.mxu0 0
      %3764 = vmatmul.mubr.bf16.gmra.mxu0 %v3649
      %v3765 = vpop.f32.mrf.mxu0
      %v3766 = vadd.f32 %v3673, %v3765
      %v3767 = vpop.f32.mrf.mxu0
      %v3768 = vpop.f32.mrf.mxu0
      %v3769 = vadd.f32 %v3673, %v3768
      %v3770 = vpop.f32.mrf.mxu0
      %3771 = vmatprep.mubr.bf16.mxu0 0
      %3772 = vmatmul.mubr.bf16.gmra.mxu0 %v3650
      %v3773 = vpop.f32.mrf.mxu0
      %v3774 = vadd.f32 %v3673, %v3773
      %v3775 = vpop.f32.mrf.mxu0
      %v3776 = vpop.f32.mrf.mxu0
      %v3777 = vadd.f32 %v3673, %v3776
      %v3778 = vpop.f32.mrf.mxu0
      %3779 = vmatprep.mubr.bf16.mxu0 0
      %3780 = vmatmul.mubr.bf16.gmra.mxu0 %v3651
      %v3781 = vpop.f32.mrf.mxu0
      %v3782 = vadd.f32 %v3673, %v3781
      %v3783 = vpop.f32.mrf.mxu0
      %v3784 = vpop.f32.mrf.mxu0
      %v3785 = vadd.f32 %v3673, %v3784
      %v3786 = vpop.f32.mrf.mxu0
      %3787 = vdwg.mxu0
      %v3788 = vadd.f32 %v3330, %v3758
      %v3789 = vadd.f32 %v3331, %v3761
      %v3790 = vadd.f32 %v3332, %v3766
      %v3791 = vadd.f32 %v3333, %v3769
      %v3792 = vadd.f32 %v3334, %v3774
      %v3793 = vadd.f32 %v3335, %v3777
      %v3794 = vadd.f32 %v3336, %v3782
      %v3795 = vadd.f32 %v3337, %v3785
      %v3796 = vld [vmem:[%s39] sm:$0x1]
      %v3797 = vld [vmem:[%s41] sm:$0x1]
      %v3798 = vsel %vm2199, %v3788, 0.0
      %3799 = vadd.xlane.f32.xlu0 %v3798
      %v3800 = vpop.xlane.xlu0 %3799
      %v3801 = vsel %vm2199, %v3789, 0.0
      %3802 = vadd.xlane.f32.xlu0 %v3801
      %v3803 = vpop.xlane.xlu0 %3802
      %v3804 = vsel %vm2199, %v3790, 0.0
      %3805 = vadd.xlane.f32.xlu0 %v3804
      %v3806 = vpop.xlane.xlu0 %3805
      %v3807 = vsel %vm2199, %v3791, 0.0
      %3808 = vadd.xlane.f32.xlu0 %v3807
      %v3809 = vpop.xlane.xlu0 %3808
      %v3810 = vsel %vm2199, %v3792, 0.0
      %3811 = vadd.xlane.f32.xlu0 %v3810
      %v3812 = vpop.xlane.xlu0 %3811
      %v3813 = vsel %vm2199, %v3793, 0.0
      %3814 = vadd.xlane.f32.xlu0 %v3813
      %v3815 = vpop.xlane.xlu0 %3814
      %v3816 = vsel %vm2199, %v3794, 0.0
      %3817 = vadd.xlane.f32.xlu0 %v3816
      %v3818 = vpop.xlane.xlu0 %3817
      %v3819 = vsel %vm2199, %v3795, 0.0
      %3820 = vadd.xlane.f32.xlu0 %v3819
      %v3821 = vpop.xlane.xlu0 %3820
      %v3822 = vmul.f32 %v3800, %v2224
      %v3823 = vmul.f32 %v3803, %v2224
      %v3824 = vmul.f32 %v3806, %v2224
      %v3825 = vmul.f32 %v3809, %v2224
      %v3826 = vmul.f32 %v3812, %v2224
      %v3827 = vmul.f32 %v3815, %v2224
      %v3828 = vmul.f32 %v3818, %v2224
      %v3829 = vmul.f32 %v3821, %v2224
      %v3830 = vsub.f32 %v3788, %v3822
      %v3831 = vsub.f32 %v3789, %v3823
      %v3832 = vsub.f32 %v3790, %v3824
      %v3833 = vsub.f32 %v3791, %v3825
      %v3834 = vsub.f32 %v3792, %v3826
      %v3835 = vsub.f32 %v3793, %v3827
      %v3836 = vsub.f32 %v3794, %v3828
      %v3837 = vsub.f32 %v3795, %v3829
      %v3838 = vmul.f32 %v3830, %v3830
      %v3839 = vmul.f32 %v3831, %v3831
      %v3840 = vmul.f32 %v3832, %v3832
      %v3841 = vmul.f32 %v3833, %v3833
      %v3842 = vmul.f32 %v3834, %v3834
      %v3843 = vmul.f32 %v3835, %v3835
      %v3844 = vmul.f32 %v3836, %v3836
      %v3845 = vmul.f32 %v3837, %v3837
      %v3846 = vsel %vm2199, %v3838, 0.0
      %3847 = vadd.xlane.f32.xlu0 %v3846
      %v3848 = vpop.xlane.xlu0 %3847
      %v3849 = vsel %vm2199, %v3839, 0.0
      %3850 = vadd.xlane.f32.xlu0 %v3849
      %v3851 = vpop.xlane.xlu0 %3850
      %v3852 = vsel %vm2199, %v3840, 0.0
      %3853 = vadd.xlane.f32.xlu0 %v3852
      %v3854 = vpop.xlane.xlu0 %3853
      %v3855 = vsel %vm2199, %v3841, 0.0
      %3856 = vadd.xlane.f32.xlu0 %v3855
      %v3857 = vpop.xlane.xlu0 %3856
      %v3858 = vsel %vm2199, %v3842, 0.0
      %3859 = vadd.xlane.f32.xlu0 %v3858
      %v3860 = vpop.xlane.xlu0 %3859
      %v3861 = vsel %vm2199, %v3843, 0.0
      %3862 = vadd.xlane.f32.xlu0 %v3861
      %v3863 = vpop.xlane.xlu0 %3862
      %v3864 = vsel %vm2199, %v3844, 0.0
      %3865 = vadd.xlane.f32.xlu0 %v3864
      %v3866 = vpop.xlane.xlu0 %3865
      %v3867 = vsel %vm2199, %v3845, 0.0
      %3868 = vadd.xlane.f32.xlu0 %v3867
      %v3869 = vpop.xlane.xlu0 %3868
      %v3870 = vmul.f32 %v3848, %v2224
      %v3871 = vmul.f32 %v3851, %v2224
      %v3872 = vmul.f32 %v3854, %v2224
      %v3873 = vmul.f32 %v3857, %v2224
      %v3874 = vmul.f32 %v3860, %v2224
      %v3875 = vmul.f32 %v3863, %v2224
      %v3876 = vmul.f32 %v3866, %v2224
      %v3877 = vmul.f32 %v3869, %v2224
      %v3878 = vadd.f32 %v3870, 1e-05
      %v3879 = vadd.f32 %v3871, 1e-05
      %v3880 = vadd.f32 %v3872, 1e-05
      %v3881 = vadd.f32 %v3873, 1e-05
      %v3882 = vadd.f32 %v3874, 1e-05
      %v3883 = vadd.f32 %v3875, 1e-05
      %v3884 = vadd.f32 %v3876, 1e-05
      %v3885 = vadd.f32 %v3877, 1e-05
      %v3886 = vrsqrt.pop %v3878
      %v3887 = vrsqrt.pop %v3879
      %v3888 = vrsqrt.pop %v3880
      %v3889 = vrsqrt.pop %v3881
      %v3890 = vrsqrt.pop %v3882
      %v3891 = vrsqrt.pop %v3883
      %v3892 = vrsqrt.pop %v3884
      %v3893 = vrsqrt.pop %v3885
      %v3894 = vmul.f32 %v3830, %v3886
      %v3895 = vmul.f32 %v3831, %v3887
      %v3896 = vmul.f32 %v3832, %v3888
      %v3897 = vmul.f32 %v3833, %v3889
      %v3898 = vmul.f32 %v3834, %v3890
      %v3899 = vmul.f32 %v3835, %v3891
      %v3900 = vmul.f32 %v3836, %v3892
      %v3901 = vmul.f32 %v3837, %v3893
      %v3903 = vlaneseq
      %v3904 = vshrl.u32 %v3903, 7
      %v3905 = vsub.s32 0, %v3904
      %v3906 = vrot.slane %v3796, %v3905
      %v3908 = vmul.f32 %v3894, %v3906
      %v3909 = vmul.f32 %v3895, %v3906
      %v3910 = vmul.f32 %v3896, %v3906
      %v3911 = vmul.f32 %v3897, %v3906
      %v3912 = vmul.f32 %v3898, %v3906
      %v3913 = vmul.f32 %v3899, %v3906
      %v3914 = vmul.f32 %v3900, %v3906
      %v3915 = vmul.f32 %v3901, %v3906
      %v3917 = vlaneseq
      %v3918 = vshrl.u32 %v3917, 7
      %v3919 = vsub.s32 0, %v3918
      %v3920 = vrot.slane %v3797, %v3919
      %v3922 = vadd.f32 %v3908, %v3920
      %v3923 = vadd.f32 %v3909, %v3920
      %v3924 = vadd.f32 %v3910, %v3920
      %v3925 = vadd.f32 %v3911, %v3920
      %v3926 = vadd.f32 %v3912, %v3920
      %v3927 = vadd.f32 %v3913, %v3920
      %v3928 = vadd.f32 %v3914, %v3920
      %v3929 = vadd.f32 %v3915, %v3920
      %v3930 = vpack.c.bf16 %v3923, %v3922
      %v3931 = vpack.c.bf16 %v3925, %v3924
      %v3932 = vpack.c.bf16 %v3927, %v3926
      %v3933 = vpack.c.bf16 %v3929, %v3928
      %v3934 = vld [vmem:[%s43] sm:$0xf]
      %v3935 = vld [vmem:[%s43 + $0x4] sm:$0xf]
      %v3936 = vld [vmem:[%s43 + $0x8] sm:$0xf]
      %v3937 = vld [vmem:[%s43 + $0xc] sm:$0xf]
      %v3938 = vld [vmem:[%s45] sm:$0x1]
      %v3940 = vlaneseq
      %v3941 = vshrl.u32 %v3940, 7
      %v3942 = vsub.s32 0, %v3941
      %v3943 = vrot.slane %v3938, %v3942
      %v3949 = vunpack.c.l.b16 %v3934
      %v3950 = vunpack.c.l.b16 %v3935
      %v3951 = vunpack.c.l.b16 %v3936
      %v3952 = vunpack.c.l.b16 %v3937
      %v3953 = vpack.c.b16 %v3950, %v3949
      %v3954 = vpack.c.b16 %v3952, %v3951
      %v3958 = vsel %vm2199, %v3930, 0
      %v3961 = vsel %vm2199, %v3931, 0
      %v3964 = vsel %vm2199, %v3932, 0
      %v3967 = vsel %vm2199, %v3933, 0
      %3969 = vmatprep.subr.bf16.mxu0 0
      %3970 = vmatpush1.bf16.msra.mxu0 0
      %3971 = vmatprep.subr.bf16.mxu0 0
      %3972 = vmatpush1.bf16.msra.mxu0 0
      %3973 = vmatprep.subr.bf16.mxu0 0
      %3974 = vmatpush1.bf16.msra.mxu0 0
      %3975 = vmatprep.subr.bf16.mxu0 0
      %3976 = vmatpush1.bf16.msra.mxu0 0
      %3977 = vmatprep.subr.bf16.mxu0 0
      %3978 = vmatpush1.bf16.msra.mxu0 0
      %3979 = vmatprep.subr.bf16.mxu0 0
      %3980 = vmatpush1.bf16.msra.mxu0 0
      %3981 = vmatprep.subr.bf16.mxu0 0
      %3982 = vmatpush1.bf16.msra.mxu0 %v3954
      %3983 = vmatprep.subr.bf16.mxu0 0
      %3984 = vmatpush1.bf16.msra.mxu0 %v3953
      %3985 = vmatprep.subr.bf16.mxu0 0
      %3986 = vmatpush2.bf16.msra.mxu0 0
      %3987 = vmatprep.subr.bf16.mxu0 0
      %3988 = vmatpush2.bf16.msra.mxu0 0
      %3989 = vmatprep.subr.bf16.mxu0 0
      %3990 = vmatpush2.bf16.msra.mxu0 0
      %3991 = vmatprep.subr.bf16.mxu0 0
      %3992 = vmatpush2.bf16.msra.mxu0 0
      %3993 = vmatprep.subr.bf16.mxu0 0
      %3994 = vmatpush2.bf16.msra.mxu0 0
      %3995 = vmatprep.subr.bf16.mxu0 0
      %3996 = vmatpush2.bf16.msra.mxu0 0
      %3997 = vmatprep.subr.bf16.mxu0 0
      %3998 = vmatpush2.bf16.msra.mxu0 0
      %3999 = vmatprep.subr.bf16.mxu0 0
      %4000 = vmatpush2.bf16.msra.mxu0 0
      %4001 = vmatprep.mubr.bf16.mxu0 0
      %4002 = vmatmul.mubr.bf16.gmra.mxu0 %v3958
      %v4003 = vpop.f32.mrf.mxu0
      %v4004 = vadd.f32 %v3943, %v4003
      %v4005 = vpop.f32.mrf.mxu0
      %v4006 = vpop.f32.mrf.mxu0
      %v4007 = vadd.f32 %v3943, %v4006
      %v4008 = vpop.f32.mrf.mxu0
      %4009 = vmatprep.mubr.bf16.mxu0 0
      %4010 = vmatmul.mubr.bf16.gmra.mxu0 %v3961
      %v4011 = vpop.f32.mrf.mxu0
      %v4012 = vadd.f32 %v3943, %v4011
      %v4013 = vpop.f32.mrf.mxu0
      %v4014 = vpop.f32.mrf.mxu0
      %v4015 = vadd.f32 %v3943, %v4014
      %v4016 = vpop.f32.mrf.mxu0
      %4017 = vmatprep.mubr.bf16.mxu0 0
      %4018 = vmatmul.mubr.bf16.gmra.mxu0 %v3964
      %v4019 = vpop.f32.mrf.mxu0
      %v4020 = vadd.f32 %v3943, %v4019
      %v4021 = vpop.f32.mrf.mxu0
      %v4022 = vpop.f32.mrf.mxu0
      %v4023 = vadd.f32 %v3943, %v4022
      %v4024 = vpop.f32.mrf.mxu0
      %4025 = vmatprep.mubr.bf16.mxu0 0
      %4026 = vmatmul.mubr.bf16.gmra.mxu0 %v3967
      %v4027 = vpop.f32.mrf.mxu0
      %v4028 = vadd.f32 %v3943, %v4027
      %v4029 = vpop.f32.mrf.mxu0
      %v4030 = vpop.f32.mrf.mxu0
      %v4031 = vadd.f32 %v3943, %v4030
      %v4032 = vpop.f32.mrf.mxu0
      %4033 = vdwg.mxu0
      %v4034 = vpack.c.bf16 %v4007, %v4004
      %v4035 = vpack.c.bf16 %v4015, %v4012
      %v4036 = vpack.c.bf16 %v4023, %v4020
      %v4037 = vpack.c.bf16 %v4031, %v4028
      %v4038 = vld [vmem:[%s13] sm:$0xf]
      %v4039 = vld [vmem:[%s13 + $0x4] sm:$0xf]
      %v4040 = vld [vmem:[%s13 + $0x8] sm:$0xf]
      %v4041 = vld [vmem:[%s13 + $0xc] sm:$0xf]
      %v4042 = vld [vmem:[%s13 + $0x10] sm:$0xf]
      %v4043 = vld [vmem:[%s13 + $0x14] sm:$0xf]
      %v4044 = vld [vmem:[%s13 + $0x18] sm:$0xf]
      %v4045 = vld [vmem:[%s13 + $0x1c] sm:$0xf]
      %v4046 = vunpack.c.l.bf16 %v4038
      %v4047 = vunpack.c.l.bf16 %v4039
      %v4048 = vunpack.c.l.bf16 %v4040
      %v4049 = vunpack.c.l.bf16 %v4041
      %v4050 = vunpack.c.l.bf16 %v4042
      %v4051 = vunpack.c.l.bf16 %v4043
      %v4052 = vunpack.c.l.bf16 %v4044
      %v4053 = vunpack.c.l.bf16 %v4045
      %4058 = vrot.lane.b32.xlu0 %v4034, 96
      %v4059 = vpop.permute.xlu0 %4058
      %4060 = vrot.lane.b32.xlu0 %v4035, 96
      %v4061 = vpop.permute.xlu0 %4060
      %4062 = vrot.lane.b32.xlu0 %v4036, 96
      %v4063 = vpop.permute.xlu0 %4062
      %4064 = vrot.lane.b32.xlu0 %v4037, 96
      %v4065 = vpop.permute.xlu0 %4064
      %v4067 = vsel %vm2603, %v4034, 0
      %v4070 = vsel %vm2603, %v4035, 0
      %v4073 = vsel %vm2603, %v4036, 0
      %v4076 = vsel %vm2603, %v4037, 0
      %v4079 = vsel %vm2603, %v4059, 0
      %v4082 = vsel %vm2603, %v4061, 0
      %v4085 = vsel %vm2603, %v4063, 0
      %v4088 = vsel %vm2603, %v4065, 0
      %4090 = vmatprep.subr.bf16.mxu0 0
      %4091 = vmatpush1.bf16.xpose.msra.mxu0 0
      %4092 = vmatprep.subr.bf16.mxu0 0
      %4093 = vmatpush1.bf16.xpose.msra.mxu0 0
      %4094 = vmatprep.subr.bf16.mxu0 0
      %4095 = vmatpush1.bf16.xpose.msra.mxu0 0
      %4096 = vmatprep.subr.bf16.mxu0 0
      %4097 = vmatpush1.bf16.xpose.msra.mxu0 0
      %4098 = vmatprep.subr.bf16.mxu0 0
      %4099 = vmatpush1.bf16.xpose.msra.mxu0 %v4088
      %4100 = vmatprep.subr.bf16.mxu0 0
      %4101 = vmatpush1.bf16.xpose.msra.mxu0 %v4085
      %4102 = vmatprep.subr.bf16.mxu0 0
      %4103 = vmatpush1.bf16.xpose.msra.mxu0 %v4082
      %4104 = vmatprep.subr.bf16.mxu0 0
      %4105 = vmatpush1.bf16.xpose.msra.mxu0 %v4079
      %4106 = vmatprep.subr.bf16.mxu0 0
      %4107 = vmatpush2.bf16.xpose.msra.mxu0 0
      %4108 = vmatprep.subr.bf16.mxu0 0
      %4109 = vmatpush2.bf16.xpose.msra.mxu0 0
      %4110 = vmatprep.subr.bf16.mxu0 0
      %4111 = vmatpush2.bf16.xpose.msra.mxu0 0
      %4112 = vmatprep.subr.bf16.mxu0 0
      %4113 = vmatpush2.bf16.xpose.msra.mxu0 0
      %4114 = vmatprep.subr.bf16.mxu0 0
      %4115 = vmatpush2.bf16.xpose.msra.mxu0 0
      %4116 = vmatprep.subr.bf16.mxu0 0
      %4117 = vmatpush2.bf16.xpose.msra.mxu0 0
      %4118 = vmatprep.subr.bf16.mxu0 0
      %4119 = vmatpush2.bf16.xpose.msra.mxu0 0
      %4120 = vmatprep.subr.bf16.mxu0 0
      %4121 = vmatpush2.bf16.xpose.msra.mxu0 0
      %4122 = vmatprep.mubr.bf16.mxu0 0
      %4123 = vmatmul.mubr.bf16.gmra.mxu0 %v4067
      %v4124 = vpop.f32.mrf.mxu0
      %v4125 = vadd.f32 %v4046, %v4124
      %v4126 = vpop.f32.mrf.mxu0
      %v4127 = vpop.f32.mrf.mxu0
      %v4128 = vadd.f32 %v4047, %v4127
      %v4129 = vpop.f32.mrf.mxu0
      %4130 = vmatprep.mubr.bf16.mxu0 0
      %4131 = vmatmul.mubr.bf16.gmra.mxu0 %v4070
      %v4132 = vpop.f32.mrf.mxu0
      %v4133 = vadd.f32 %v4048, %v4132
      %v4134 = vpop.f32.mrf.mxu0
      %v4135 = vpop.f32.mrf.mxu0
      %v4136 = vadd.f32 %v4049, %v4135
      %v4137 = vpop.f32.mrf.mxu0
      %4138 = vmatprep.mubr.bf16.mxu0 0
      %4139 = vmatmul.mubr.bf16.gmra.mxu0 %v4073
      %v4140 = vpop.f32.mrf.mxu0
      %v4141 = vadd.f32 %v4050, %v4140
      %v4142 = vpop.f32.mrf.mxu0
      %v4143 = vpop.f32.mrf.mxu0
      %v4144 = vadd.f32 %v4051, %v4143
      %v4145 = vpop.f32.mrf.mxu0
      %4146 = vmatprep.mubr.bf16.mxu0 0
      %4147 = vmatmul.mubr.bf16.gmra.mxu0 %v4076
      %v4148 = vpop.f32.mrf.mxu0
      %v4149 = vadd.f32 %v4052, %v4148
      %v4150 = vpop.f32.mrf.mxu0
      %v4151 = vpop.f32.mrf.mxu0
      %v4152 = vadd.f32 %v4053, %v4151
      %v4153 = vpop.f32.mrf.mxu0
      %4154 = vdwg.mxu0
      %v4155 = vsel %vm2693, %v4125, -inf
      %4156 = vmax.xlane.f32.xlu0 %v4155
      %v4157 = vpop.xlane.xlu0 %4156
      %v4158 = vsel %vm2693, %v4128, -inf
      %4159 = vmax.xlane.f32.xlu0 %v4158
      %v4160 = vpop.xlane.xlu0 %4159
      %v4161 = vsel %vm2693, %v4133, -inf
      %4162 = vmax.xlane.f32.xlu0 %v4161
      %v4163 = vpop.xlane.xlu0 %4162
      %v4164 = vsel %vm2693, %v4136, -inf
      %4165 = vmax.xlane.f32.xlu0 %v4164
      %v4166 = vpop.xlane.xlu0 %4165
      %v4167 = vsel %vm2693, %v4141, -inf
      %4168 = vmax.xlane.f32.xlu0 %v4167
      %v4169 = vpop.xlane.xlu0 %4168
      %v4170 = vsel %vm2693, %v4144, -inf
      %4171 = vmax.xlane.f32.xlu0 %v4170
      %v4172 = vpop.xlane.xlu0 %4171
      %v4173 = vsel %vm2693, %v4149, -inf
      %4174 = vmax.xlane.f32.xlu0 %v4173
      %v4175 = vpop.xlane.xlu0 %4174
      %v4176 = vsel %vm2693, %v4152, -inf
      %4177 = vmax.xlane.f32.xlu0 %v4176
      %v4178 = vpop.xlane.xlu0 %4177
      %v4179 = vsub.f32 %v4125, %v4157
      %v4180 = vsub.f32 %v4128, %v4160
      %v4181 = vsub.f32 %v4133, %v4163
      %v4182 = vsub.f32 %v4136, %v4166
      %v4183 = vsub.f32 %v4141, %v4169
      %v4184 = vsub.f32 %v4144, %v4172
      %v4185 = vsub.f32 %v4149, %v4175
      %v4186 = vsub.f32 %v4152, %v4178
      %v4187 = vmul.f32 %v4179, 1.442695
      %v4188 = vpow.pop %v4187
      %v4189 = vmul.f32 %v4180, 1.442695
      %v4190 = vpow.pop %v4189
      %v4191 = vmul.f32 %v4181, 1.442695
      %v4192 = vpow.pop %v4191
      %v4193 = vmul.f32 %v4182, 1.442695
      %v4194 = vpow.pop %v4193
      %v4195 = vmul.f32 %v4183, 1.442695
      %v4196 = vpow.pop %v4195
      %v4197 = vmul.f32 %v4184, 1.442695
      %v4198 = vpow.pop %v4197
      %v4199 = vmul.f32 %v4185, 1.442695
      %v4200 = vpow.pop %v4199
      %v4201 = vmul.f32 %v4186, 1.442695
      %v4202 = vpow.pop %v4201
      %v4203 = vsel %vm2693, %v4188, 0.0
      %4204 = vadd.xlane.f32.xlu0 %v4203
      %v4205 = vpop.xlane.xlu0 %4204
      %v4206 = vsel %vm2693, %v4190, 0.0
      %4207 = vadd.xlane.f32.xlu0 %v4206
      %v4208 = vpop.xlane.xlu0 %4207
      %v4209 = vsel %vm2693, %v4192, 0.0
      %4210 = vadd.xlane.f32.xlu0 %v4209
      %v4211 = vpop.xlane.xlu0 %4210
      %v4212 = vsel %vm2693, %v4194, 0.0
      %4213 = vadd.xlane.f32.xlu0 %v4212
      %v4214 = vpop.xlane.xlu0 %4213
      %v4215 = vsel %vm2693, %v4196, 0.0
      %4216 = vadd.xlane.f32.xlu0 %v4215
      %v4217 = vpop.xlane.xlu0 %4216
      %v4218 = vsel %vm2693, %v4198, 0.0
      %4219 = vadd.xlane.f32.xlu0 %v4218
      %v4220 = vpop.xlane.xlu0 %4219
      %v4221 = vsel %vm2693, %v4200, 0.0
      %4222 = vadd.xlane.f32.xlu0 %v4221
      %v4223 = vpop.xlane.xlu0 %4222
      %v4224 = vsel %vm2693, %v4202, 0.0
      %4225 = vadd.xlane.f32.xlu0 %v4224
      %v4226 = vpop.xlane.xlu0 %4225
      %v4227 = vrcp.pop %v4205
      %v4228 = vrcp.pop %v4208
      %v4229 = vrcp.pop %v4211
      %v4230 = vrcp.pop %v4214
      %v4231 = vrcp.pop %v4217
      %v4232 = vrcp.pop %v4220
      %v4233 = vrcp.pop %v4223
      %v4234 = vrcp.pop %v4226
      %v4235 = vmul.f32 %v4188, %v4227
      %v4236 = vmul.f32 %v4190, %v4228
      %v4237 = vmul.f32 %v4192, %v4229
      %v4238 = vmul.f32 %v4194, %v4230
      %v4239 = vmul.f32 %v4196, %v4231
      %v4240 = vmul.f32 %v4198, %v4232
      %v4241 = vmul.f32 %v4200, %v4233
      %v4242 = vmul.f32 %v4202, %v4234
      %v4243 = vpack.c.bf16 %v4236, %v4235
      %v4244 = vpack.c.bf16 %v4238, %v4237
      %v4245 = vpack.c.bf16 %v4240, %v4239
      %v4246 = vpack.c.bf16 %v4242, %v4241
      %4247 = vrot.lane.b32.xlu0 %v4034, 64
      %v4248 = vpop.permute.xlu0 %4247
      %4249 = vrot.lane.b32.xlu0 %v4035, 64
      %v4250 = vpop.permute.xlu0 %4249
      %4251 = vrot.lane.b32.xlu0 %v4036, 64
      %v4252 = vpop.permute.xlu0 %4251
      %4253 = vrot.lane.b32.xlu0 %v4037, 64
      %v4254 = vpop.permute.xlu0 %4253
      %v4260 = vsel %vm2693, %v4243, 0
      %v4263 = vsel %vm2693, %v4244, 0
      %v4266 = vsel %vm2693, %v4245, 0
      %v4269 = vsel %vm2693, %v4246, 0
      %4271 = vmatprep.subr.bf16.mxu0 0
      %4272 = vmatpush1.bf16.msra.mxu0 0
      %4273 = vmatprep.subr.bf16.mxu0 0
      %4274 = vmatpush1.bf16.msra.mxu0 0
      %4275 = vmatprep.subr.bf16.mxu0 0
      %4276 = vmatpush1.bf16.msra.mxu0 0
      %4277 = vmatprep.subr.bf16.mxu0 0
      %4278 = vmatpush1.bf16.msra.mxu0 0
      %4279 = vmatprep.subr.bf16.mxu0 0
      %4280 = vmatpush1.bf16.msra.mxu0 %v4254
      %4281 = vmatprep.subr.bf16.mxu0 0
      %4282 = vmatpush1.bf16.msra.mxu0 %v4252
      %4283 = vmatprep.subr.bf16.mxu0 0
      %4284 = vmatpush1.bf16.msra.mxu0 %v4250
      %4285 = vmatprep.subr.bf16.mxu0 0
      %4286 = vmatpush1.bf16.msra.mxu0 %v4248
      %4287 = vmatprep.subr.bf16.mxu0 0
      %4288 = vmatpush2.bf16.msra.mxu0 0
      %4289 = vmatprep.subr.bf16.mxu0 0
      %4290 = vmatpush2.bf16.msra.mxu0 0
      %4291 = vmatprep.subr.bf16.mxu0 0
      %4292 = vmatpush2.bf16.msra.mxu0 0
      %4293 = vmatprep.subr.bf16.mxu0 0
      %4294 = vmatpush2.bf16.msra.mxu0 0
      %4295 = vmatprep.subr.bf16.mxu0 0
      %4296 = vmatpush2.bf16.msra.mxu0 0
      %4297 = vmatprep.subr.bf16.mxu0 0
      %4298 = vmatpush2.bf16.msra.mxu0 0
      %4299 = vmatprep.subr.bf16.mxu0 0
      %4300 = vmatpush2.bf16.msra.mxu0 0
      %4301 = vmatprep.subr.bf16.mxu0 0
      %4302 = vmatpush2.bf16.msra.mxu0 0
      %4303 = vmatprep.mubr.bf16.mxu0 0
      %4304 = vmatmul.mubr.bf16.gmra.mxu0 %v4260
      %v4305 = vpop.f32.mrf.mxu0
      %v4306 = vadd.f32 0.0, %v4305
      %v4307 = vpop.f32.mrf.mxu0
      %v4308 = vpop.f32.mrf.mxu0
      %v4309 = vadd.f32 0.0, %v4308
      %v4310 = vpop.f32.mrf.mxu0
      %4311 = vmatprep.mubr.bf16.mxu0 0
      %4312 = vmatmul.mubr.bf16.gmra.mxu0 %v4263
      %v4313 = vpop.f32.mrf.mxu0
      %v4314 = vadd.f32 0.0, %v4313
      %v4315 = vpop.f32.mrf.mxu0
      %v4316 = vpop.f32.mrf.mxu0
      %v4317 = vadd.f32 0.0, %v4316
      %v4318 = vpop.f32.mrf.mxu0
      %4319 = vmatprep.mubr.bf16.mxu0 0
      %4320 = vmatmul.mubr.bf16.gmra.mxu0 %v4266
      %v4321 = vpop.f32.mrf.mxu0
      %v4322 = vadd.f32 0.0, %v4321
      %v4323 = vpop.f32.mrf.mxu0
      %v4324 = vpop.f32.mrf.mxu0
      %v4325 = vadd.f32 0.0, %v4324
      %v4326 = vpop.f32.mrf.mxu0
      %4327 = vmatprep.mubr.bf16.mxu0 0
      %4328 = vmatmul.mubr.bf16.gmra.mxu0 %v4269
      %v4329 = vpop.f32.mrf.mxu0
      %v4330 = vadd.f32 0.0, %v4329
      %v4331 = vpop.f32.mrf.mxu0
      %v4332 = vpop.f32.mrf.mxu0
      %v4333 = vadd.f32 0.0, %v4332
      %v4334 = vpop.f32.mrf.mxu0
      %4335 = vdwg.mxu0
      %s4336 = scalar_lea.vmem %s13, 32
      %v4337 = vld [vmem:[%s4336] sm:$0xf]
      %v4338 = vld [vmem:[%s4336 + $0x4] sm:$0xf]
      %v4339 = vld [vmem:[%s4336 + $0x8] sm:$0xf]
      %v4340 = vld [vmem:[%s4336 + $0xc] sm:$0xf]
      %v4341 = vld [vmem:[%s4336 + $0x10] sm:$0xf]
      %v4342 = vld [vmem:[%s4336 + $0x14] sm:$0xf]
      %v4343 = vld [vmem:[%s4336 + $0x18] sm:$0xf]
      %v4344 = vld [vmem:[%s4336 + $0x1c] sm:$0xf]
      %v4345 = vunpack.c.l.bf16 %v4337
      %v4346 = vunpack.c.l.bf16 %v4338
      %v4347 = vunpack.c.l.bf16 %v4339
      %v4348 = vunpack.c.l.bf16 %v4340
      %v4349 = vunpack.c.l.bf16 %v4341
      %v4350 = vunpack.c.l.bf16 %v4342
      %v4351 = vunpack.c.l.bf16 %v4343
      %v4352 = vunpack.c.l.bf16 %v4344
      %4353 = vrot.lane.b32.xlu0 %v4034, 112
      %v4354 = vpop.permute.xlu0 %4353
      %4355 = vrot.lane.b32.xlu0 %v4035, 112
      %v4356 = vpop.permute.xlu0 %4355
      %4357 = vrot.lane.b32.xlu0 %v4036, 112
      %v4358 = vpop.permute.xlu0 %4357
      %4359 = vrot.lane.b32.xlu0 %v4037, 112
      %v4360 = vpop.permute.xlu0 %4359
      %4361 = vrot.lane.b32.xlu0 %v4034, 80
      %v4362 = vpop.permute.xlu0 %4361
      %4363 = vrot.lane.b32.xlu0 %v4035, 80
      %v4364 = vpop.permute.xlu0 %4363
      %4365 = vrot.lane.b32.xlu0 %v4036, 80
      %v4366 = vpop.permute.xlu0 %4365
      %4367 = vrot.lane.b32.xlu0 %v4037, 80
      %v4368 = vpop.permute.xlu0 %4367
      %v4370 = vsel %vm2603, %v4354, 0
      %v4373 = vsel %vm2603, %v4356, 0
      %v4376 = vsel %vm2603, %v4358, 0
      %v4379 = vsel %vm2603, %v4360, 0
      %v4382 = vsel %vm2603, %v4362, 0
      %v4385 = vsel %vm2603, %v4364, 0
      %v4388 = vsel %vm2603, %v4366, 0
      %v4391 = vsel %vm2603, %v4368, 0
      %4393 = vmatprep.subr.bf16.mxu0 0
      %4394 = vmatpush1.bf16.xpose.msra.mxu0 0
      %4395 = vmatprep.subr.bf16.mxu0 0
      %4396 = vmatpush1.bf16.xpose.msra.mxu0 0
      %4397 = vmatprep.subr.bf16.mxu0 0
      %4398 = vmatpush1.bf16.xpose.msra.mxu0 0
      %4399 = vmatprep.subr.bf16.mxu0 0
      %4400 = vmatpush1.bf16.xpose.msra.mxu0 0
      %4401 = vmatprep.subr.bf16.mxu0 0
      %4402 = vmatpush1.bf16.xpose.msra.mxu0 %v4391
      %4403 = vmatprep.subr.bf16.mxu0 0
      %4404 = vmatpush1.bf16.xpose.msra.mxu0 %v4388
      %4405 = vmatprep.subr.bf16.mxu0 0
      %4406 = vmatpush1.bf16.xpose.msra.mxu0 %v4385
      %4407 = vmatprep.subr.bf16.mxu0 0
      %4408 = vmatpush1.bf16.xpose.msra.mxu0 %v4382
      %4409 = vmatprep.subr.bf16.mxu0 0
      %4410 = vmatpush2.bf16.xpose.msra.mxu0 0
      %4411 = vmatprep.subr.bf16.mxu0 0
      %4412 = vmatpush2.bf16.xpose.msra.mxu0 0
      %4413 = vmatprep.subr.bf16.mxu0 0
      %4414 = vmatpush2.bf16.xpose.msra.mxu0 0
      %4415 = vmatprep.subr.bf16.mxu0 0
      %4416 = vmatpush2.bf16.xpose.msra.mxu0 0
      %4417 = vmatprep.subr.bf16.mxu0 0
      %4418 = vmatpush2.bf16.xpose.msra.mxu0 0
      %4419 = vmatprep.subr.bf16.mxu0 0
      %4420 = vmatpush2.bf16.xpose.msra.mxu0 0
      %4421 = vmatprep.subr.bf16.mxu0 0
      %4422 = vmatpush2.bf16.xpose.msra.mxu0 0
      %4423 = vmatprep.subr.bf16.mxu0 0
      %4424 = vmatpush2.bf16.xpose.msra.mxu0 0
      %4425 = vmatprep.mubr.bf16.mxu0 0
      %4426 = vmatmul.mubr.bf16.gmra.mxu0 %v4370
      %v4427 = vpop.f32.mrf.mxu0
      %v4428 = vadd.f32 %v4345, %v4427
      %v4429 = vpop.f32.mrf.mxu0
      %v4430 = vpop.f32.mrf.mxu0
      %v4431 = vadd.f32 %v4346, %v4430
      %v4432 = vpop.f32.mrf.mxu0
      %4433 = vmatprep.mubr.bf16.mxu0 0
      %4434 = vmatmul.mubr.bf16.gmra.mxu0 %v4373
      %v4435 = vpop.f32.mrf.mxu0
      %v4436 = vadd.f32 %v4347, %v4435
      %v4437 = vpop.f32.mrf.mxu0
      %v4438 = vpop.f32.mrf.mxu0
      %v4439 = vadd.f32 %v4348, %v4438
      %v4440 = vpop.f32.mrf.mxu0
      %4441 = vmatprep.mubr.bf16.mxu0 0
      %4442 = vmatmul.mubr.bf16.gmra.mxu0 %v4376
      %v4443 = vpop.f32.mrf.mxu0
      %v4444 = vadd.f32 %v4349, %v4443
      %v4445 = vpop.f32.mrf.mxu0
      %v4446 = vpop.f32.mrf.mxu0
      %v4447 = vadd.f32 %v4350, %v4446
      %v4448 = vpop.f32.mrf.mxu0
      %4449 = vmatprep.mubr.bf16.mxu0 0
      %4450 = vmatmul.mubr.bf16.gmra.mxu0 %v4379
      %v4451 = vpop.f32.mrf.mxu0
      %v4452 = vadd.f32 %v4351, %v4451
      %v4453 = vpop.f32.mrf.mxu0
      %v4454 = vpop.f32.mrf.mxu0
      %v4455 = vadd.f32 %v4352, %v4454
      %v4456 = vpop.f32.mrf.mxu0
      %4457 = vdwg.mxu0
      %v4458 = vsel %vm2693, %v4428, -inf
      %4459 = vmax.xlane.f32.xlu0 %v4458
      %v4460 = vpop.xlane.xlu0 %4459
      %v4461 = vsel %vm2693, %v4431, -inf
      %4462 = vmax.xlane.f32.xlu0 %v4461
      %v4463 = vpop.xlane.xlu0 %4462
      %v4464 = vsel %vm2693, %v4436, -inf
      %4465 = vmax.xlane.f32.xlu0 %v4464
      %v4466 = vpop.xlane.xlu0 %4465
      %v4467 = vsel %vm2693, %v4439, -inf
      %4468 = vmax.xlane.f32.xlu0 %v4467
      %v4469 = vpop.xlane.xlu0 %4468
      %v4470 = vsel %vm2693, %v4444, -inf
      %4471 = vmax.xlane.f32.xlu0 %v4470
      %v4472 = vpop.xlane.xlu0 %4471
      %v4473 = vsel %vm2693, %v4447, -inf
      %4474 = vmax.xlane.f32.xlu0 %v4473
      %v4475 = vpop.xlane.xlu0 %4474
      %v4476 = vsel %vm2693, %v4452, -inf
      %4477 = vmax.xlane.f32.xlu0 %v4476
      %v4478 = vpop.xlane.xlu0 %4477
      %v4479 = vsel %vm2693, %v4455, -inf
      %4480 = vmax.xlane.f32.xlu0 %v4479
      %v4481 = vpop.xlane.xlu0 %4480
      %v4482 = vsub.f32 %v4428, %v4460
      %v4483 = vsub.f32 %v4431, %v4463
      %v4484 = vsub.f32 %v4436, %v4466
      %v4485 = vsub.f32 %v4439, %v4469
      %v4486 = vsub.f32 %v4444, %v4472
      %v4487 = vsub.f32 %v4447, %v4475
      %v4488 = vsub.f32 %v4452, %v4478
      %v4489 = vsub.f32 %v4455, %v4481
      %v4490 = vmul.f32 %v4482, 1.442695
      %v4491 = vpow.pop %v4490
      %v4492 = vmul.f32 %v4483, 1.442695
      %v4493 = vpow.pop %v4492
      %v4494 = vmul.f32 %v4484, 1.442695
      %v4495 = vpow.pop %v4494
      %v4496 = vmul.f32 %v4485, 1.442695
      %v4497 = vpow.pop %v4496
      %v4498 = vmul.f32 %v4486, 1.442695
      %v4499 = vpow.pop %v4498
      %v4500 = vmul.f32 %v4487, 1.442695
      %v4501 = vpow.pop %v4500
      %v4502 = vmul.f32 %v4488, 1.442695
      %v4503 = vpow.pop %v4502
      %v4504 = vmul.f32 %v4489, 1.442695
      %v4505 = vpow.pop %v4504
      %v4506 = vsel %vm2693, %v4491, 0.0
      %4507 = vadd.xlane.f32.xlu0 %v4506
      %v4508 = vpop.xlane.xlu0 %4507
      %v4509 = vsel %vm2693, %v4493, 0.0
      %4510 = vadd.xlane.f32.xlu0 %v4509
      %v4511 = vpop.xlane.xlu0 %4510
      %v4512 = vsel %vm2693, %v4495, 0.0
      %4513 = vadd.xlane.f32.xlu0 %v4512
      %v4514 = vpop.xlane.xlu0 %4513
      %v4515 = vsel %vm2693, %v4497, 0.0
      %4516 = vadd.xlane.f32.xlu0 %v4515
      %v4517 = vpop.xlane.xlu0 %4516
      %v4518 = vsel %vm2693, %v4499, 0.0
      %4519 = vadd.xlane.f32.xlu0 %v4518
      %v4520 = vpop.xlane.xlu0 %4519
      %v4521 = vsel %vm2693, %v4501, 0.0
      %4522 = vadd.xlane.f32.xlu0 %v4521
      %v4523 = vpop.xlane.xlu0 %4522
      %v4524 = vsel %vm2693, %v4503, 0.0
      %4525 = vadd.xlane.f32.xlu0 %v4524
      %v4526 = vpop.xlane.xlu0 %4525
      %v4527 = vsel %vm2693, %v4505, 0.0
      %4528 = vadd.xlane.f32.xlu0 %v4527
      %v4529 = vpop.xlane.xlu0 %4528
      %v4530 = vrcp.pop %v4508
      %v4531 = vrcp.pop %v4511
      %v4532 = vrcp.pop %v4514
      %v4533 = vrcp.pop %v4517
      %v4534 = vrcp.pop %v4520
      %v4535 = vrcp.pop %v4523
      %v4536 = vrcp.pop %v4526
      %v4537 = vrcp.pop %v4529
      %v4538 = vmul.f32 %v4491, %v4530
      %v4539 = vmul.f32 %v4493, %v4531
      %v4540 = vmul.f32 %v4495, %v4532
      %v4541 = vmul.f32 %v4497, %v4533
      %v4542 = vmul.f32 %v4499, %v4534
      %v4543 = vmul.f32 %v4501, %v4535
      %v4544 = vmul.f32 %v4503, %v4536
      %v4545 = vmul.f32 %v4505, %v4537
      %v4546 = vpack.c.bf16 %v4539, %v4538
      %v4547 = vpack.c.bf16 %v4541, %v4540
      %v4548 = vpack.c.bf16 %v4543, %v4542
      %v4549 = vpack.c.bf16 %v4545, %v4544
      %4550 = vrot.lane.b32.xlu0 %v4034, 48
      %v4551 = vpop.permute.xlu0 %4550
      %4552 = vrot.lane.b32.xlu0 %v4035, 48
      %v4553 = vpop.permute.xlu0 %4552
      %4554 = vrot.lane.b32.xlu0 %v4036, 48
      %v4555 = vpop.permute.xlu0 %4554
      %4556 = vrot.lane.b32.xlu0 %v4037, 48
      %v4557 = vpop.permute.xlu0 %4556
      %v4563 = vsel %vm2693, %v4546, 0
      %v4566 = vsel %vm2693, %v4547, 0
      %v4569 = vsel %vm2693, %v4548, 0
      %v4572 = vsel %vm2693, %v4549, 0
      %4574 = vmatprep.subr.bf16.mxu0 0
      %4575 = vmatpush1.bf16.msra.mxu0 0
      %4576 = vmatprep.subr.bf16.mxu0 0
      %4577 = vmatpush1.bf16.msra.mxu0 0
      %4578 = vmatprep.subr.bf16.mxu0 0
      %4579 = vmatpush1.bf16.msra.mxu0 0
      %4580 = vmatprep.subr.bf16.mxu0 0
      %4581 = vmatpush1.bf16.msra.mxu0 0
      %4582 = vmatprep.subr.bf16.mxu0 0
      %4583 = vmatpush1.bf16.msra.mxu0 %v4557
      %4584 = vmatprep.subr.bf16.mxu0 0
      %4585 = vmatpush1.bf16.msra.mxu0 %v4555
      %4586 = vmatprep.subr.bf16.mxu0 0
      %4587 = vmatpush1.bf16.msra.mxu0 %v4553
      %4588 = vmatprep.subr.bf16.mxu0 0
      %4589 = vmatpush1.bf16.msra.mxu0 %v4551
      %4590 = vmatprep.subr.bf16.mxu0 0
      %4591 = vmatpush2.bf16.msra.mxu0 0
      %4592 = vmatprep.subr.bf16.mxu0 0
      %4593 = vmatpush2.bf16.msra.mxu0 0
      %4594 = vmatprep.subr.bf16.mxu0 0
      %4595 = vmatpush2.bf16.msra.mxu0 0
      %4596 = vmatprep.subr.bf16.mxu0 0
      %4597 = vmatpush2.bf16.msra.mxu0 0
      %4598 = vmatprep.subr.bf16.mxu0 0
      %4599 = vmatpush2.bf16.msra.mxu0 0
      %4600 = vmatprep.subr.bf16.mxu0 0
      %4601 = vmatpush2.bf16.msra.mxu0 0
      %4602 = vmatprep.subr.bf16.mxu0 0
      %4603 = vmatpush2.bf16.msra.mxu0 0
      %4604 = vmatprep.subr.bf16.mxu0 0
      %4605 = vmatpush2.bf16.msra.mxu0 0
      %4606 = vmatprep.mubr.bf16.mxu0 0
      %4607 = vmatmul.mubr.bf16.gmra.mxu0 %v4563
      %v4608 = vpop.f32.mrf.mxu0
      %v4609 = vadd.f32 0.0, %v4608
      %v4610 = vpop.f32.mrf.mxu0
      %v4611 = vpop.f32.mrf.mxu0
      %v4612 = vadd.f32 0.0, %v4611
      %v4613 = vpop.f32.mrf.mxu0
      %4614 = vmatprep.mubr.bf16.mxu0 0
      %4615 = vmatmul.mubr.bf16.gmra.mxu0 %v4566
      %v4616 = vpop.f32.mrf.mxu0
      %v4617 = vadd.f32 0.0, %v4616
      %v4618 = vpop.f32.mrf.mxu0
      %v4619 = vpop.f32.mrf.mxu0
      %v4620 = vadd.f32 0.0, %v4619
      %v4621 = vpop.f32.mrf.mxu0
      %4622 = vmatprep.mubr.bf16.mxu0 0
      %4623 = vmatmul.mubr.bf16.gmra.mxu0 %v4569
      %v4624 = vpop.f32.mrf.mxu0
      %v4625 = vadd.f32 0.0, %v4624
      %v4626 = vpop.f32.mrf.mxu0
      %v4627 = vpop.f32.mrf.mxu0
      %v4628 = vadd.f32 0.0, %v4627
      %v4629 = vpop.f32.mrf.mxu0
      %4630 = vmatprep.mubr.bf16.mxu0 0
      %4631 = vmatmul.mubr.bf16.gmra.mxu0 %v4572
      %v4632 = vpop.f32.mrf.mxu0
      %v4633 = vadd.f32 0.0, %v4632
      %v4634 = vpop.f32.mrf.mxu0
      %v4635 = vpop.f32.mrf.mxu0
      %v4636 = vadd.f32 0.0, %v4635
      %v4637 = vpop.f32.mrf.mxu0
      %4638 = vdwg.mxu0
      %4647 = vrot.lane.b32.xlu0 %v4609, 16
      %v4648 = vpop.permute.xlu0 %4647
      %4649 = vrot.lane.b32.xlu0 %v4612, 16
      %v4650 = vpop.permute.xlu0 %4649
      %4651 = vrot.lane.b32.xlu0 %v4617, 16
      %v4652 = vpop.permute.xlu0 %4651
      %4653 = vrot.lane.b32.xlu0 %v4620, 16
      %v4654 = vpop.permute.xlu0 %4653
      %4655 = vrot.lane.b32.xlu0 %v4625, 16
      %v4656 = vpop.permute.xlu0 %4655
      %4657 = vrot.lane.b32.xlu0 %v4628, 16
      %v4658 = vpop.permute.xlu0 %4657
      %4659 = vrot.lane.b32.xlu0 %v4633, 16
      %v4660 = vpop.permute.xlu0 %4659
      %4661 = vrot.lane.b32.xlu0 %v4636, 16
      %v4662 = vpop.permute.xlu0 %4661
      %v4671 = vsel %vm2603, %v4306, %v4648
      %v4672 = vsel %vm2603, %v4309, %v4650
      %v4673 = vsel %vm2603, %v4314, %v4652
      %v4674 = vsel %vm2603, %v4317, %v4654
      %v4675 = vsel %vm2603, %v4322, %v4656
      %v4676 = vsel %vm2603, %v4325, %v4658
      %v4677 = vsel %vm2603, %v4330, %v4660
      %v4678 = vsel %vm2603, %v4333, %v4662
      %v4679 = vpack.c.bf16 %v4672, %v4671
      %v4680 = vpack.c.bf16 %v4674, %v4673
      %v4681 = vpack.c.bf16 %v4676, %v4675
      %v4682 = vpack.c.bf16 %v4678, %v4677
      %v4683 = vld [vmem:[%s47] sm:$0xf]
      %v4684 = vld [vmem:[%s47 + $0x4] sm:$0xf]
      %v4685 = vld [vmem:[%s47 + $0x8] sm:$0xf]
      %v4686 = vld [vmem:[%s47 + $0xc] sm:$0xf]
      %v4691 = vunpack.c.l.b16 %v4683
      %v4692 = vunpack.c.l.b16 %v4684
      %v4693 = vunpack.c.l.b16 %v4685
      %v4694 = vunpack.c.l.b16 %v4686
      %v4695 = vpack.c.b16 %v4692, %v4691
      %v4696 = vpack.c.b16 %v4694, %v4693
      %v4700 = vsel %vm2199, %v4679, 0
      %v4703 = vsel %vm2199, %v4680, 0
      %v4706 = vsel %vm2199, %v4681, 0
      %v4709 = vsel %vm2199, %v4682, 0
      %4711 = vmatprep.subr.bf16.mxu0 0
      %4712 = vmatpush1.bf16.msra.mxu0 0
      %4713 = vmatprep.subr.bf16.mxu0 0
      %4714 = vmatpush1.bf16.msra.mxu0 0
      %4715 = vmatprep.subr.bf16.mxu0 0
      %4716 = vmatpush1.bf16.msra.mxu0 0
      %4717 = vmatprep.subr.bf16.mxu0 0
      %4718 = vmatpush1.bf16.msra.mxu0 0
      %4719 = vmatprep.subr.bf16.mxu0 0
      %4720 = vmatpush1.bf16.msra.mxu0 0
      %4721 = vmatprep.subr.bf16.mxu0 0
      %4722 = vmatpush1.bf16.msra.mxu0 0
      %4723 = vmatprep.subr.bf16.mxu0 0
      %4724 = vmatpush1.bf16.msra.mxu0 %v4696
      %4725 = vmatprep.subr.bf16.mxu0 0
      %4726 = vmatpush1.bf16.msra.mxu0 %v4695
      %4727 = vmatprep.subr.bf16.mxu0 0
      %4728 = vmatpush2.bf16.msra.mxu0 0
      %4729 = vmatprep.subr.bf16.mxu0 0
      %4730 = vmatpush2.bf16.msra.mxu0 0
      %4731 = vmatprep.subr.bf16.mxu0 0
      %4732 = vmatpush2.bf16.msra.mxu0 0
      %4733 = vmatprep.subr.bf16.mxu0 0
      %4734 = vmatpush2.bf16.msra.mxu0 0
      %4735 = vmatprep.subr.bf16.mxu0 0
      %4736 = vmatpush2.bf16.msra.mxu0 0
      %4737 = vmatprep.subr.bf16.mxu0 0
      %4738 = vmatpush2.bf16.msra.mxu0 0
      %4739 = vmatprep.subr.bf16.mxu0 0
      %4740 = vmatpush2.bf16.msra.mxu0 0
      %4741 = vmatprep.subr.bf16.mxu0 0
      %4742 = vmatpush2.bf16.msra.mxu0 0
      %4743 = vmatprep.mubr.bf16.mxu0 0
      %4744 = vmatmul.mubr.bf16.gmra.mxu0 %v4700
      %v4745 = vpop.f32.mrf.mxu0
      %v4746 = vadd.f32 0.0, %v4745
      %v4747 = vpop.f32.mrf.mxu0
      %v4748 = vpop.f32.mrf.mxu0
      %v4749 = vadd.f32 0.0, %v4748
      %v4750 = vpop.f32.mrf.mxu0
      %4751 = vmatprep.mubr.bf16.mxu0 0
      %4752 = vmatmul.mubr.bf16.gmra.mxu0 %v4703
      %v4753 = vpop.f32.mrf.mxu0
      %v4754 = vadd.f32 0.0, %v4753
      %v4755 = vpop.f32.mrf.mxu0
      %v4756 = vpop.f32.mrf.mxu0
      %v4757 = vadd.f32 0.0, %v4756
      %v4758 = vpop.f32.mrf.mxu0
      %4759 = vmatprep.mubr.bf16.mxu0 0
      %4760 = vmatmul.mubr.bf16.gmra.mxu0 %v4706
      %v4761 = vpop.f32.mrf.mxu0
      %v4762 = vadd.f32 0.0, %v4761
      %v4763 = vpop.f32.mrf.mxu0
      %v4764 = vpop.f32.mrf.mxu0
      %v4765 = vadd.f32 0.0, %v4764
      %v4766 = vpop.f32.mrf.mxu0
      %4767 = vmatprep.mubr.bf16.mxu0 0
      %4768 = vmatmul.mubr.bf16.gmra.mxu0 %v4709
      %v4769 = vpop.f32.mrf.mxu0
      %v4770 = vadd.f32 0.0, %v4769
      %v4771 = vpop.f32.mrf.mxu0
      %v4772 = vpop.f32.mrf.mxu0
      %v4773 = vadd.f32 0.0, %v4772
      %v4774 = vpop.f32.mrf.mxu0
      %4775 = vdwg.mxu0
      %v4776 = vadd.f32 %v3788, %v4746
      %v4777 = vadd.f32 %v3789, %v4749
      %v4778 = vadd.f32 %v3790, %v4754
      %v4779 = vadd.f32 %v3791, %v4757
      %v4780 = vadd.f32 %v3792, %v4762
      %v4781 = vadd.f32 %v3793, %v4765
      %v4782 = vadd.f32 %v3794, %v4770
      %v4783 = vadd.f32 %v3795, %v4773
      %v4784 = vld [vmem:[%s49] sm:$0x1]
      %v4786 = vlaneseq
      %v4787 = vshrl.u32 %v4786, 7
      %v4788 = vsub.s32 0, %v4787
      %v4789 = vrot.slane %v4784, %v4788
      %v4791 = vadd.f32 %v4776, %v4789
      %v4792 = vadd.f32 %v4777, %v4789
      %v4793 = vadd.f32 %v4778, %v4789
      %v4794 = vadd.f32 %v4779, %v4789
      %v4795 = vadd.f32 %v4780, %v4789
      %v4796 = vadd.f32 %v4781, %v4789
      %v4797 = vadd.f32 %v4782, %v4789
      %v4798 = vadd.f32 %v4783, %v4789
      %v4799 = vld [vmem:[%s51] sm:$0x1]
      %v4800 = vld [vmem:[%s53] sm:$0x1]
      %v4801 = vsel %vm2199, %v4791, 0.0
      %4802 = vadd.xlane.f32.xlu0 %v4801
      %v4803 = vpop.xlane.xlu0 %4802
      %v4804 = vsel %vm2199, %v4792, 0.0
      %4805 = vadd.xlane.f32.xlu0 %v4804
      %v4806 = vpop.xlane.xlu0 %4805
      %v4807 = vsel %vm2199, %v4793, 0.0
      %4808 = vadd.xlane.f32.xlu0 %v4807
      %v4809 = vpop.xlane.xlu0 %4808
      %v4810 = vsel %vm2199, %v4794, 0.0
      %4811 = vadd.xlane.f32.xlu0 %v4810
      %v4812 = vpop.xlane.xlu0 %4811
      %v4813 = vsel %vm2199, %v4795, 0.0
      %4814 = vadd.xlane.f32.xlu0 %v4813
      %v4815 = vpop.xlane.xlu0 %4814
      %v4816 = vsel %vm2199, %v4796, 0.0
      %4817 = vadd.xlane.f32.xlu0 %v4816
      %v4818 = vpop.xlane.xlu0 %4817
      %v4819 = vsel %vm2199, %v4797, 0.0
      %4820 = vadd.xlane.f32.xlu0 %v4819
      %v4821 = vpop.xlane.xlu0 %4820
      %v4822 = vsel %vm2199, %v4798, 0.0
      %4823 = vadd.xlane.f32.xlu0 %v4822
      %v4824 = vpop.xlane.xlu0 %4823
      %v4825 = vmul.f32 %v4803, %v2224
      %v4826 = vmul.f32 %v4806, %v2224
      %v4827 = vmul.f32 %v4809, %v2224
      %v4828 = vmul.f32 %v4812, %v2224
      %v4829 = vmul.f32 %v4815, %v2224
      %v4830 = vmul.f32 %v4818, %v2224
      %v4831 = vmul.f32 %v4821, %v2224
      %v4832 = vmul.f32 %v4824, %v2224
      %v4833 = vsub.f32 %v4791, %v4825
      %v4834 = vsub.f32 %v4792, %v4826
      %v4835 = vsub.f32 %v4793, %v4827
      %v4836 = vsub.f32 %v4794, %v4828
      %v4837 = vsub.f32 %v4795, %v4829
      %v4838 = vsub.f32 %v4796, %v4830
      %v4839 = vsub.f32 %v4797, %v4831
      %v4840 = vsub.f32 %v4798, %v4832
      %v4841 = vmul.f32 %v4833, %v4833
      %v4842 = vmul.f32 %v4834, %v4834
      %v4843 = vmul.f32 %v4835, %v4835
      %v4844 = vmul.f32 %v4836, %v4836
      %v4845 = vmul.f32 %v4837, %v4837
      %v4846 = vmul.f32 %v4838, %v4838
      %v4847 = vmul.f32 %v4839, %v4839
      %v4848 = vmul.f32 %v4840, %v4840
      %v4849 = vsel %vm2199, %v4841, 0.0
      %4850 = vadd.xlane.f32.xlu0 %v4849
      %v4851 = vpop.xlane.xlu0 %4850
      %v4852 = vsel %vm2199, %v4842, 0.0
      %4853 = vadd.xlane.f32.xlu0 %v4852
      %v4854 = vpop.xlane.xlu0 %4853
      %v4855 = vsel %vm2199, %v4843, 0.0
      %4856 = vadd.xlane.f32.xlu0 %v4855
      %v4857 = vpop.xlane.xlu0 %4856
      %v4858 = vsel %vm2199, %v4844, 0.0
      %4859 = vadd.xlane.f32.xlu0 %v4858
      %v4860 = vpop.xlane.xlu0 %4859
      %v4861 = vsel %vm2199, %v4845, 0.0
      %4862 = vadd.xlane.f32.xlu0 %v4861
      %v4863 = vpop.xlane.xlu0 %4862
      %v4864 = vsel %vm2199, %v4846, 0.0
      %4865 = vadd.xlane.f32.xlu0 %v4864
      %v4866 = vpop.xlane.xlu0 %4865
      %v4867 = vsel %vm2199, %v4847, 0.0
      %4868 = vadd.xlane.f32.xlu0 %v4867
      %v4869 = vpop.xlane.xlu0 %4868
      %v4870 = vsel %vm2199, %v4848, 0.0
      %4871 = vadd.xlane.f32.xlu0 %v4870
      %v4872 = vpop.xlane.xlu0 %4871
      %v4873 = vmul.f32 %v4851, %v2224
      %v4874 = vmul.f32 %v4854, %v2224
      %v4875 = vmul.f32 %v4857, %v2224
      %v4876 = vmul.f32 %v4860, %v2224
      %v4877 = vmul.f32 %v4863, %v2224
      %v4878 = vmul.f32 %v4866, %v2224
      %v4879 = vmul.f32 %v4869, %v2224
      %v4880 = vmul.f32 %v4872, %v2224
      %v4881 = vadd.f32 %v4873, 1e-05
      %v4882 = vadd.f32 %v4874, 1e-05
      %v4883 = vadd.f32 %v4875, 1e-05
      %v4884 = vadd.f32 %v4876, 1e-05
      %v4885 = vadd.f32 %v4877, 1e-05
      %v4886 = vadd.f32 %v4878, 1e-05
      %v4887 = vadd.f32 %v4879, 1e-05
      %v4888 = vadd.f32 %v4880, 1e-05
      %v4889 = vrsqrt.pop %v4881
      %v4890 = vrsqrt.pop %v4882
      %v4891 = vrsqrt.pop %v4883
      %v4892 = vrsqrt.pop %v4884
      %v4893 = vrsqrt.pop %v4885
      %v4894 = vrsqrt.pop %v4886
      %v4895 = vrsqrt.pop %v4887
      %v4896 = vrsqrt.pop %v4888
      %v4897 = vmul.f32 %v4833, %v4889
      %v4898 = vmul.f32 %v4834, %v4890
      %v4899 = vmul.f32 %v4835, %v4891
      %v4900 = vmul.f32 %v4836, %v4892
      %v4901 = vmul.f32 %v4837, %v4893
      %v4902 = vmul.f32 %v4838, %v4894
      %v4903 = vmul.f32 %v4839, %v4895
      %v4904 = vmul.f32 %v4840, %v4896
      %v4906 = vlaneseq
      %v4907 = vshrl.u32 %v4906, 7
      %v4908 = vsub.s32 0, %v4907
      %v4909 = vrot.slane %v4799, %v4908
      %v4911 = vmul.f32 %v4897, %v4909
      %v4912 = vmul.f32 %v4898, %v4909
      %v4913 = vmul.f32 %v4899, %v4909
      %v4914 = vmul.f32 %v4900, %v4909
      %v4915 = vmul.f32 %v4901, %v4909
      %v4916 = vmul.f32 %v4902, %v4909
      %v4917 = vmul.f32 %v4903, %v4909
      %v4918 = vmul.f32 %v4904, %v4909
      %v4920 = vlaneseq
      %v4921 = vshrl.u32 %v4920, 7
      %v4922 = vsub.s32 0, %v4921
      %v4923 = vrot.slane %v4800, %v4922
      %v4925 = vadd.f32 %v4911, %v4923
      %v4926 = vadd.f32 %v4912, %v4923
      %v4927 = vadd.f32 %v4913, %v4923
      %v4928 = vadd.f32 %v4914, %v4923
      %v4929 = vadd.f32 %v4915, %v4923
      %v4930 = vadd.f32 %v4916, %v4923
      %v4931 = vadd.f32 %v4917, %v4923
      %v4932 = vadd.f32 %v4918, %v4923
      %v4933 = vpack.c.bf16 %v4926, %v4925
      %v4934 = vpack.c.bf16 %v4928, %v4927
      %v4935 = vpack.c.bf16 %v4930, %v4929
      %v4936 = vpack.c.bf16 %v4932, %v4931
      %v4937 = vld [vmem:[%s55] sm:$0xf]
      %v4938 = vld [vmem:[%s55 + $0x4] sm:$0xf]
      %v4939 = vld [vmem:[%s55 + $0x8] sm:$0xf]
      %v4940 = vld [vmem:[%s55 + $0xc] sm:$0xf]
      %v4941 = vld [vmem:[%s57] sm:$0x1]
      %v4943 = vlaneseq
      %v4944 = vshrl.u32 %v4943, 7
      %v4945 = vsub.s32 0, %v4944
      %v4946 = vrot.slane %v4941, %v4945
      %v4952 = vunpack.c.l.b16 %v4937
      %v4953 = vunpack.c.l.b16 %v4938
      %v4954 = vunpack.c.l.b16 %v4939
      %v4955 = vunpack.c.l.b16 %v4940
      %v4956 = vpack.c.b16 %v4953, %v4952
      %v4957 = vpack.c.b16 %v4955, %v4954
      %v4961 = vsel %vm2199, %v4933, 0
      %v4964 = vsel %vm2199, %v4934, 0
      %v4967 = vsel %vm2199, %v4935, 0
      %v4970 = vsel %vm2199, %v4936, 0
      %4972 = vmatprep.subr.bf16.mxu0 0
      %4973 = vmatpush1.bf16.msra.mxu0 0
      %4974 = vmatprep.subr.bf16.mxu0 0
      %4975 = vmatpush1.bf16.msra.mxu0 0
      %4976 = vmatprep.subr.bf16.mxu0 0
      %4977 = vmatpush1.bf16.msra.mxu0 0
      %4978 = vmatprep.subr.bf16.mxu0 0
      %4979 = vmatpush1.bf16.msra.mxu0 0
      %4980 = vmatprep.subr.bf16.mxu0 0
      %4981 = vmatpush1.bf16.msra.mxu0 0
      %4982 = vmatprep.subr.bf16.mxu0 0
      %4983 = vmatpush1.bf16.msra.mxu0 0
      %4984 = vmatprep.subr.bf16.mxu0 0
      %4985 = vmatpush1.bf16.msra.mxu0 %v4957
      %4986 = vmatprep.subr.bf16.mxu0 0
      %4987 = vmatpush1.bf16.msra.mxu0 %v4956
      %4988 = vmatprep.subr.bf16.mxu0 0
      %4989 = vmatpush2.bf16.msra.mxu0 0
      %4990 = vmatprep.subr.bf16.mxu0 0
      %4991 = vmatpush2.bf16.msra.mxu0 0
      %4992 = vmatprep.subr.bf16.mxu0 0
      %4993 = vmatpush2.bf16.msra.mxu0 0
      %4994 = vmatprep.subr.bf16.mxu0 0
      %4995 = vmatpush2.bf16.msra.mxu0 0
      %4996 = vmatprep.subr.bf16.mxu0 0
      %4997 = vmatpush2.bf16.msra.mxu0 0
      %4998 = vmatprep.subr.bf16.mxu0 0
      %4999 = vmatpush2.bf16.msra.mxu0 0
      %5000 = vmatprep.subr.bf16.mxu0 0
      %5001 = vmatpush2.bf16.msra.mxu0 0
      %5002 = vmatprep.subr.bf16.mxu0 0
      %5003 = vmatpush2.bf16.msra.mxu0 0
      %5004 = vmatprep.mubr.bf16.mxu0 0
      %5005 = vmatmul.mubr.bf16.gmra.mxu0 %v4961
      %v5006 = vpop.f32.mrf.mxu0
      %v5007 = vadd.f32 %v4946, %v5006
      %v5008 = vpop.f32.mrf.mxu0
      %v5009 = vpop.f32.mrf.mxu0
      %v5010 = vadd.f32 %v4946, %v5009
      %v5011 = vpop.f32.mrf.mxu0
      %5012 = vmatprep.mubr.bf16.mxu0 0
      %5013 = vmatmul.mubr.bf16.gmra.mxu0 %v4964
      %v5014 = vpop.f32.mrf.mxu0
      %v5015 = vadd.f32 %v4946, %v5014
      %v5016 = vpop.f32.mrf.mxu0
      %v5017 = vpop.f32.mrf.mxu0
      %v5018 = vadd.f32 %v4946, %v5017
      %v5019 = vpop.f32.mrf.mxu0
      %5020 = vmatprep.mubr.bf16.mxu0 0
      %5021 = vmatmul.mubr.bf16.gmra.mxu0 %v4967
      %v5022 = vpop.f32.mrf.mxu0
      %v5023 = vadd.f32 %v4946, %v5022
      %v5024 = vpop.f32.mrf.mxu0
      %v5025 = vpop.f32.mrf.mxu0
      %v5026 = vadd.f32 %v4946, %v5025
      %v5027 = vpop.f32.mrf.mxu0
      %5028 = vmatprep.mubr.bf16.mxu0 0
      %5029 = vmatmul.mubr.bf16.gmra.mxu0 %v4970
      %v5030 = vpop.f32.mrf.mxu0
      %v5031 = vadd.f32 %v4946, %v5030
      %v5032 = vpop.f32.mrf.mxu0
      %v5033 = vpop.f32.mrf.mxu0
      %v5034 = vadd.f32 %v4946, %v5033
      %v5035 = vpop.f32.mrf.mxu0
      %5036 = vdwg.mxu0
      %v5037 = vmul.f32 %v5007, 0.5
      %v5038 = vmul.f32 %v5010, 0.5
      %v5039 = vmul.f32 %v5015, 0.5
      %v5040 = vmul.f32 %v5018, 0.5
      %v5041 = vmul.f32 %v5023, 0.5
      %v5042 = vmul.f32 %v5026, 0.5
      %v5043 = vmul.f32 %v5031, 0.5
      %v5044 = vmul.f32 %v5034, 0.5
      %v5045 = vmul.f32 %v5007, 0.044715
      %v5046 = vmul.f32 %v5010, 0.044715
      %v5047 = vmul.f32 %v5015, 0.044715
      %v5048 = vmul.f32 %v5018, 0.044715
      %v5049 = vmul.f32 %v5023, 0.044715
      %v5050 = vmul.f32 %v5026, 0.044715
      %v5051 = vmul.f32 %v5031, 0.044715
      %v5052 = vmul.f32 %v5034, 0.044715
      %v5053 = vmul.f32 %v5045, %v5007
      %v5054 = vmul.f32 %v5046, %v5010
      %v5055 = vmul.f32 %v5047, %v5015
      %v5056 = vmul.f32 %v5048, %v5018
      %v5057 = vmul.f32 %v5049, %v5023
      %v5058 = vmul.f32 %v5050, %v5026
      %v5059 = vmul.f32 %v5051, %v5031
      %v5060 = vmul.f32 %v5052, %v5034
      %v5061 = vmul.f32 %v5053, %v5007
      %v5062 = vmul.f32 %v5054, %v5010
      %v5063 = vmul.f32 %v5055, %v5015
      %v5064 = vmul.f32 %v5056, %v5018
      %v5065 = vmul.f32 %v5057, %v5023
      %v5066 = vmul.f32 %v5058, %v5026
      %v5067 = vmul.f32 %v5059, %v5031
      %v5068 = vmul.f32 %v5060, %v5034
      %v5069 = vadd.f32 %v5007, %v5061
      %v5070 = vadd.f32 %v5010, %v5062
      %v5071 = vadd.f32 %v5015, %v5063
      %v5072 = vadd.f32 %v5018, %v5064
      %v5073 = vadd.f32 %v5023, %v5065
      %v5074 = vadd.f32 %v5026, %v5066
      %v5075 = vadd.f32 %v5031, %v5067
      %v5076 = vadd.f32 %v5034, %v5068
      %v5077 = vmul.f32 %v5069, 0.7978846
      %v5078 = vmul.f32 %v5070, 0.7978846
      %v5079 = vmul.f32 %v5071, 0.7978846
      %v5080 = vmul.f32 %v5072, 0.7978846
      %v5081 = vmul.f32 %v5073, 0.7978846
      %v5082 = vmul.f32 %v5074, 0.7978846
      %v5083 = vmul.f32 %v5075, 0.7978846
      %v5084 = vmul.f32 %v5076, 0.7978846
      %v5085 = vtanh.pop %v5077
      %v5086 = vtanh.pop %v5078
      %v5087 = vtanh.pop %v5079
      %v5088 = vtanh.pop %v5080
      %v5089 = vtanh.pop %v5081
      %v5090 = vtanh.pop %v5082
      %v5091 = vtanh.pop %v5083
      %v5092 = vtanh.pop %v5084
      %v5093 = vadd.f32 %v5085, 1.0
      %v5094 = vadd.f32 %v5086, 1.0
      %v5095 = vadd.f32 %v5087, 1.0
      %v5096 = vadd.f32 %v5088, 1.0
      %v5097 = vadd.f32 %v5089, 1.0
      %v5098 = vadd.f32 %v5090, 1.0
      %v5099 = vadd.f32 %v5091, 1.0
      %v5100 = vadd.f32 %v5092, 1.0
      %v5101 = vmul.f32 %v5037, %v5093
      %v5102 = vmul.f32 %v5038, %v5094
      %v5103 = vmul.f32 %v5039, %v5095
      %v5104 = vmul.f32 %v5040, %v5096
      %v5105 = vmul.f32 %v5041, %v5097
      %v5106 = vmul.f32 %v5042, %v5098
      %v5107 = vmul.f32 %v5043, %v5099
      %v5108 = vmul.f32 %v5044, %v5100
      %v5109 = vpack.c.bf16 %v5102, %v5101
      %v5110 = vpack.c.bf16 %v5104, %v5103
      %v5111 = vpack.c.bf16 %v5106, %v5105
      %v5112 = vpack.c.bf16 %v5108, %v5107
      %v5113 = vld [vmem:[%s59] sm:$0xf]
      %v5114 = vld [vmem:[%s59 + $0x4] sm:$0xf]
      %v5115 = vld [vmem:[%s59 + $0x8] sm:$0xf]
      %v5116 = vld [vmem:[%s59 + $0xc] sm:$0xf]
      %v5117 = vld [vmem:[%s59 + $0x10] sm:$0xf]
      %v5118 = vld [vmem:[%s59 + $0x14] sm:$0xf]
      %v5119 = vld [vmem:[%s59 + $0x18] sm:$0xf]
      %v5120 = vld [vmem:[%s59 + $0x1c] sm:$0xf]
      %v5121 = vld [vmem:[%s59 + $0x20] sm:$0xf]
      %v5122 = vld [vmem:[%s59 + $0x24] sm:$0xf]
      %v5123 = vld [vmem:[%s59 + $0x28] sm:$0xf]
      %v5124 = vld [vmem:[%s59 + $0x2c] sm:$0xf]
      %v5125 = vld [vmem:[%s59 + $0x30] sm:$0xf]
      %v5126 = vld [vmem:[%s59 + $0x34] sm:$0xf]
      %v5127 = vld [vmem:[%s59 + $0x38] sm:$0xf]
      %v5128 = vld [vmem:[%s59 + $0x3c] sm:$0xf]
      %v5129 = vld [vmem:[%s61] sm:$0x1]
      %v5131 = vlaneseq
      %v5132 = vshrl.u32 %v5131, 7
      %v5133 = vsub.s32 0, %v5132
      %v5134 = vrot.slane %v5129, %v5133
      %v5152 = vunpack.c.l.b16 %v5113
      %v5153 = vunpack.c.l.b16 %v5114
      %v5154 = vunpack.c.l.b16 %v5115
      %v5155 = vunpack.c.l.b16 %v5116
      %v5156 = vunpack.c.l.b16 %v5117
      %v5157 = vunpack.c.l.b16 %v5118
      %v5158 = vunpack.c.l.b16 %v5119
      %v5159 = vunpack.c.l.b16 %v5120
      %v5160 = vunpack.c.l.b16 %v5121
      %v5161 = vunpack.c.l.b16 %v5122
      %v5162 = vunpack.c.l.b16 %v5123
      %v5163 = vunpack.c.l.b16 %v5124
      %v5164 = vunpack.c.l.b16 %v5125
      %v5165 = vunpack.c.l.b16 %v5126
      %v5166 = vunpack.c.l.b16 %v5127
      %v5167 = vunpack.c.l.b16 %v5128
      %v5168 = vpack.c.b16 %v5153, %v5152
      %v5169 = vpack.c.b16 %v5155, %v5154
      %v5170 = vpack.c.b16 %v5157, %v5156
      %v5171 = vpack.c.b16 %v5159, %v5158
      %v5172 = vpack.c.b16 %v5161, %v5160
      %v5173 = vpack.c.b16 %v5163, %v5162
      %v5174 = vpack.c.b16 %v5165, %v5164
      %v5175 = vpack.c.b16 %v5167, %v5166
      %5184 = vmatprep.subr.bf16.mxu0 0
      %5185 = vmatpush1.bf16.msra.mxu0 %v5175
      %5186 = vmatprep.subr.bf16.mxu0 0
      %5187 = vmatpush1.bf16.msra.mxu0 %v5174
      %5188 = vmatprep.subr.bf16.mxu0 0
      %5189 = vmatpush1.bf16.msra.mxu0 %v5173
      %5190 = vmatprep.subr.bf16.mxu0 0
      %5191 = vmatpush1.bf16.msra.mxu0 %v5172
      %5192 = vmatprep.subr.bf16.mxu0 0
      %5193 = vmatpush1.bf16.msra.mxu0 %v5171
      %5194 = vmatprep.subr.bf16.mxu0 0
      %5195 = vmatpush1.bf16.msra.mxu0 %v5170
      %5196 = vmatprep.subr.bf16.mxu0 0
      %5197 = vmatpush1.bf16.msra.mxu0 %v5169
      %5198 = vmatprep.subr.bf16.mxu0 0
      %5199 = vmatpush1.bf16.msra.mxu0 %v5168
      %5200 = vmatprep.subr.bf16.mxu0 0
      %5201 = vmatpush2.bf16.msra.mxu0 0
      %5202 = vmatprep.subr.bf16.mxu0 0
      %5203 = vmatpush2.bf16.msra.mxu0 0
      %5204 = vmatprep.subr.bf16.mxu0 0
      %5205 = vmatpush2.bf16.msra.mxu0 0
      %5206 = vmatprep.subr.bf16.mxu0 0
      %5207 = vmatpush2.bf16.msra.mxu0 0
      %5208 = vmatprep.subr.bf16.mxu0 0
      %5209 = vmatpush2.bf16.msra.mxu0 0
      %5210 = vmatprep.subr.bf16.mxu0 0
      %5211 = vmatpush2.bf16.msra.mxu0 0
      %5212 = vmatprep.subr.bf16.mxu0 0
      %5213 = vmatpush2.bf16.msra.mxu0 0
      %5214 = vmatprep.subr.bf16.mxu0 0
      %5215 = vmatpush2.bf16.msra.mxu0 0
      %5216 = vmatprep.mubr.bf16.mxu0 0
      %5217 = vmatmul.mubr.bf16.gmra.mxu0 %v5109
      %v5218 = vpop.f32.mrf.mxu0
      %v5219 = vadd.f32 %v5134, %v5218
      %v5220 = vpop.f32.mrf.mxu0
      %v5221 = vpop.f32.mrf.mxu0
      %v5222 = vadd.f32 %v5134, %v5221
      %v5223 = vpop.f32.mrf.mxu0
      %5224 = vmatprep.mubr.bf16.mxu0 0
      %5225 = vmatmul.mubr.bf16.gmra.mxu0 %v5110
      %v5226 = vpop.f32.mrf.mxu0
      %v5227 = vadd.f32 %v5134, %v5226
      %v5228 = vpop.f32.mrf.mxu0
      %v5229 = vpop.f32.mrf.mxu0
      %v5230 = vadd.f32 %v5134, %v5229
      %v5231 = vpop.f32.mrf.mxu0
      %5232 = vmatprep.mubr.bf16.mxu0 0
      %5233 = vmatmul.mubr.bf16.gmra.mxu0 %v5111
      %v5234 = vpop.f32.mrf.mxu0
      %v5235 = vadd.f32 %v5134, %v5234
      %v5236 = vpop.f32.mrf.mxu0
      %v5237 = vpop.f32.mrf.mxu0
      %v5238 = vadd.f32 %v5134, %v5237
      %v5239 = vpop.f32.mrf.mxu0
      %5240 = vmatprep.mubr.bf16.mxu0 0
      %5241 = vmatmul.mubr.bf16.gmra.mxu0 %v5112
      %v5242 = vpop.f32.mrf.mxu0
      %v5243 = vadd.f32 %v5134, %v5242
      %v5244 = vpop.f32.mrf.mxu0
      %v5245 = vpop.f32.mrf.mxu0
      %v5246 = vadd.f32 %v5134, %v5245
      %v5247 = vpop.f32.mrf.mxu0
      %5248 = vdwg.mxu0
      %v5249 = vadd.f32 %v4791, %v5219
      %v5250 = vadd.f32 %v4792, %v5222
      %v5251 = vadd.f32 %v4793, %v5227
      %v5252 = vadd.f32 %v4794, %v5230
      %v5253 = vadd.f32 %v4795, %v5235
      %v5254 = vadd.f32 %v4796, %v5238
      %v5255 = vadd.f32 %v4797, %v5243
      %v5256 = vadd.f32 %v4798, %v5246
      %v5257 = vld [vmem:[%s63] sm:$0xff]
      %v5258 = vld [vmem:[%s63 + $0x8] sm:$0xff]
      %v5259 = vld [vmem:[%s63 + $0x10] sm:$0xff]
      %v5260 = vld [vmem:[%s63 + $0x18] sm:$0xff]
      %v5261 = vld [vmem:[%s63 + $0x20] sm:$0xff]
      %v5262 = vld [vmem:[%s63 + $0x28] sm:$0xff]
      %v5263 = vld [vmem:[%s63 + $0x30] sm:$0xff]
      %v5264 = vld [vmem:[%s63 + $0x38] sm:$0xff]
      %v5266 = vsel %vm2693, %v5257, 0
      %v5269 = vsel %vm2693, %v5258, 0
      %v5272 = vsel %vm2693, %v5259, 0
      %v5275 = vsel %vm2693, %v5260, 0
      %v5278 = vsel %vm2693, %v5261, 0
      %v5281 = vsel %vm2693, %v5262, 0
      %v5284 = vsel %vm2693, %v5263, 0
      %v5287 = vsel %vm2693, %v5264, 0
      %5289 = vmatprep.subr.mxu0 0.0
      %5290 = vmatpush1.msra.mxu0 0.0
      %5291 = vmatprep.subr.mxu0 0.0
      %5292 = vmatpush1.msra.mxu0 0.0
      %5293 = vmatprep.subr.mxu0 0.0
      %5294 = vmatpush1.msra.mxu0 0.0
      %5295 = vmatprep.subr.mxu0 0.0
      %5296 = vmatpush1.msra.mxu0 0.0
      %5297 = vmatprep.subr.mxu0 0.0
      %5298 = vmatpush1.msra.mxu0 0.0
      %5299 = vmatprep.subr.mxu0 0.0
      %5300 = vmatpush1.msra.mxu0 0.0
      %5301 = vmatprep.subr.mxu0 0.0
      %5302 = vmatpush1.msra.mxu0 0.0
      %5303 = vmatprep.subr.mxu0 0.0
      %5304 = vmatpush1.msra.mxu0 0.0
      %5305 = vmatprep.subr.mxu0 0.0
      %5306 = vmatpush1.msra.mxu0 %v5256
      %5307 = vmatprep.subr.mxu0 0.0
      %5308 = vmatpush1.msra.mxu0 %v5255
      %5309 = vmatprep.subr.mxu0 0.0
      %5310 = vmatpush1.msra.mxu0 %v5254
      %5311 = vmatprep.subr.mxu0 0.0
      %5312 = vmatpush1.msra.mxu0 %v5253
      %5313 = vmatprep.subr.mxu0 0.0
      %5314 = vmatpush1.msra.mxu0 %v5252
      %5315 = vmatprep.subr.mxu0 0.0
      %5316 = vmatpush1.msra.mxu0 %v5251
      %5317 = vmatprep.subr.mxu0 0.0
      %5318 = vmatpush1.msra.mxu0 %v5250
      %5319 = vmatprep.subr.mxu0 0.0
      %5320 = vmatpush1.msra.mxu0 %v5249
      %5321 = vmatprep.subr.mxu0 0.0
      %5322 = vmatpush2.msra.mxu0 0.0
      %5323 = vmatprep.subr.mxu0 0.0
      %5324 = vmatpush2.msra.mxu0 0.0
      %5325 = vmatprep.subr.mxu0 0.0
      %5326 = vmatpush2.msra.mxu0 0.0
      %5327 = vmatprep.subr.mxu0 0.0
      %5328 = vmatpush2.msra.mxu0 0.0
      %5329 = vmatprep.subr.mxu0 0.0
      %5330 = vmatpush2.msra.mxu0 0.0
      %5331 = vmatprep.subr.mxu0 0.0
      %5332 = vmatpush2.msra.mxu0 0.0
      %5333 = vmatprep.subr.mxu0 0.0
      %5334 = vmatpush2.msra.mxu0 0.0
      %5335 = vmatprep.subr.mxu0 0.0
      %5336 = vmatpush2.msra.mxu0 0.0
      %5337 = vmatprep.subr.mxu0 0.0
      %5338 = vmatpush2.msra.mxu0 0.0
      %5339 = vmatprep.subr.mxu0 0.0
      %5340 = vmatpush2.msra.mxu0 0.0
      %5341 = vmatprep.subr.mxu0 0.0
      %5342 = vmatpush2.msra.mxu0 0.0
      %5343 = vmatprep.subr.mxu0 0.0
      %5344 = vmatpush2.msra.mxu0 0.0
      %5345 = vmatprep.subr.mxu0 0.0
      %5346 = vmatpush2.msra.mxu0 0.0
      %5347 = vmatprep.subr.mxu0 0.0
      %5348 = vmatpush2.msra.mxu0 0.0
      %5349 = vmatprep.subr.mxu0 0.0
      %5350 = vmatpush2.msra.mxu0 0.0
      %5351 = vmatprep.subr.mxu0 0.0
      %5352 = vmatpush2.msra.mxu0 0.0
      %5353 = vmatprep.mubr.f32.mxu0 0.0
      %5354 = vmatmul.mubr.f32.gmra.mxu0 %v5266
      %v5355 = vpop.f32.mrf.mxu0
      %v5356 = vadd.f32 0.0, %v5355
      %v5357 = vpop.f32.mrf.mxu0
      %5358 = vmatprep.mubr.f32.mxu0 0.0
      %5359 = vmatmul.mubr.f32.gmra.mxu0 %v5269
      %v5360 = vpop.f32.mrf.mxu0
      %v5361 = vadd.f32 0.0, %v5360
      %v5362 = vpop.f32.mrf.mxu0
      %5363 = vmatprep.mubr.f32.mxu0 0.0
      %5364 = vmatmul.mubr.f32.gmra.mxu0 %v5272
      %v5365 = vpop.f32.mrf.mxu0
      %v5366 = vadd.f32 0.0, %v5365
      %v5367 = vpop.f32.mrf.mxu0
      %5368 = vmatprep.mubr.f32.mxu0 0.0
      %5369 = vmatmul.mubr.f32.gmra.mxu0 %v5275
      %v5370 = vpop.f32.mrf.mxu0
      %v5371 = vadd.f32 0.0, %v5370
      %v5372 = vpop.f32.mrf.mxu0
      %5373 = vmatprep.mubr.f32.mxu0 0.0
      %5374 = vmatmul.mubr.f32.gmra.mxu0 %v5278
      %v5375 = vpop.f32.mrf.mxu0
      %v5376 = vadd.f32 0.0, %v5375
      %v5377 = vpop.f32.mrf.mxu0
      %5378 = vmatprep.mubr.f32.mxu0 0.0
      %5379 = vmatmul.mubr.f32.gmra.mxu0 %v5281
      %v5380 = vpop.f32.mrf.mxu0
      %v5381 = vadd.f32 0.0, %v5380
      %v5382 = vpop.f32.mrf.mxu0
      %5383 = vmatprep.mubr.f32.mxu0 0.0
      %5384 = vmatmul.mubr.f32.gmra.mxu0 %v5284
      %v5385 = vpop.f32.mrf.mxu0
      %v5386 = vadd.f32 0.0, %v5385
      %v5387 = vpop.f32.mrf.mxu0
      %5388 = vmatprep.mubr.f32.mxu0 0.0
      %5389 = vmatmul.mubr.f32.gmra.mxu0 %v5287
      %v5390 = vpop.f32.mrf.mxu0
      %v5391 = vadd.f32 0.0, %v5390
      %v5392 = vpop.f32.mrf.mxu0
      %5393 = vdwg.mxu0
      %5396 = vrot.lane.b32.xlu0 %v5366, 32
      %v5397 = vpop.permute.xlu0 %5396
      %5398 = vrot.lane.b32.xlu0 %v5371, 32
      %v5399 = vpop.permute.xlu0 %5398
      %5404 = vrot.lane.b32.xlu0 %v5376, 64
      %v5405 = vpop.permute.xlu0 %5404
      %5406 = vrot.lane.b32.xlu0 %v5381, 64
      %v5407 = vpop.permute.xlu0 %5406
      %5412 = vrot.lane.b32.xlu0 %v5386, 96
      %v5413 = vpop.permute.xlu0 %5412
      %5414 = vrot.lane.b32.xlu0 %v5391, 96
      %v5415 = vpop.permute.xlu0 %5414
      %v5418 = vsel %vm2199, %v5356, %v5397
      %v5419 = vsel %vm2199, %v5361, %v5399
      %v5420 = vsel %vm2693, %v5418, %v5405
      %v5421 = vsel %vm2693, %v5419, %v5407
      %vm5422 = vcmask 785408
      %v5423 = vsel %vm5422, %v5420, %v5413
      %v5424 = vsel %vm5422, %v5421, %v5415
      %v5425 = vld [vmem:[%s65] sm:$0x1]
      %v5426 = vld [vmem:[%s67] sm:$0x1]
      %5427 = vadd.xlane.f32.xlu0 %v5423
      %v5428 = vpop.xlane.xlu0 %5427
      %5429 = vadd.xlane.f32.xlu0 %v5424
      %v5430 = vpop.xlane.xlu0 %5429
      %v5431 = vrcp.pop 128.0
      %v5432 = vmul.f32 %v5428, %v5431
      %v5433 = vmul.f32 %v5430, %v5431
      %v5434 = vsub.f32 %v5423, %v5432
      %v5435 = vsub.f32 %v5424, %v5433
      %v5436 = vmul.f32 %v5434, %v5434
      %v5437 = vmul.f32 %v5435, %v5435
      %5438 = vadd.xlane.f32.xlu0 %v5436
      %v5439 = vpop.xlane.xlu0 %5438
      %5440 = vadd.xlane.f32.xlu0 %v5437
      %v5441 = vpop.xlane.xlu0 %5440
      %v5442 = vmul.f32 %v5439, %v5431
      %v5443 = vmul.f32 %v5441, %v5431
      %v5444 = vadd.f32 %v5442, 1e-05
      %v5445 = vadd.f32 %v5443, 1e-05
      %v5446 = vrsqrt.pop %v5444
      %v5447 = vrsqrt.pop %v5445
      %v5448 = vmul.f32 %v5434, %v5446
      %v5449 = vmul.f32 %v5435, %v5447
      %v5451 = vlaneseq
      %v5452 = vshrl.u32 %v5451, 7
      %v5453 = vsub.s32 0, %v5452
      %v5454 = vrot.slane %v5425, %v5453
      %v5456 = vmul.f32 %v5448, %v5454
      %v5457 = vmul.f32 %v5449, %v5454
      %v5459 = vlaneseq
      %v5460 = vshrl.u32 %v5459, 7
      %v5461 = vsub.s32 0, %v5460
      %v5462 = vrot.slane %v5426, %v5461
      %v5464 = vadd.f32 %v5456, %v5462
      %v5465 = vadd.f32 %v5457, %v5462
      %v5466 = vpack.c.bf16 %v5465, %v5464
      %v5467 = vld [vmem:[%s69] sm:$0xf]
      %v5468 = vld [vmem:[%s69 + $0x4] sm:$0xf]
      %v5469 = vld [vmem:[%s69 + $0x8] sm:$0xf]
      %v5470 = vld [vmem:[%s69 + $0xc] sm:$0xf]
      %v5471 = vld [vmem:[%s69 + $0x10] sm:$0xf]
      %v5472 = vld [vmem:[%s69 + $0x14] sm:$0xf]
      %v5473 = vld [vmem:[%s69 + $0x18] sm:$0xf]
      %v5474 = vld [vmem:[%s69 + $0x1c] sm:$0xf]
      %v5475 = vld [vmem:[%s69 + $0x20] sm:$0xf]
      %v5476 = vld [vmem:[%s69 + $0x24] sm:$0xf]
      %v5477 = vld [vmem:[%s69 + $0x28] sm:$0xf]
      %v5478 = vld [vmem:[%s69 + $0x2c] sm:$0xf]
      %v5479 = vld [vmem:[%s69 + $0x30] sm:$0xf]
      %v5480 = vld [vmem:[%s69 + $0x34] sm:$0xf]
      %v5481 = vld [vmem:[%s69 + $0x38] sm:$0xf]
      %v5482 = vld [vmem:[%s69 + $0x3c] sm:$0xf]
      %v5499 = vunpack.c.l.b16 %v5467
      %v5500 = vunpack.c.l.b16 %v5468
      %v5501 = vunpack.c.l.b16 %v5469
      %v5502 = vunpack.c.l.b16 %v5470
      %v5503 = vunpack.c.l.b16 %v5471
      %v5504 = vunpack.c.l.b16 %v5472
      %v5505 = vunpack.c.l.b16 %v5473
      %v5506 = vunpack.c.l.b16 %v5474
      %v5507 = vunpack.c.l.b16 %v5475
      %v5508 = vunpack.c.l.b16 %v5476
      %v5509 = vunpack.c.l.b16 %v5477
      %v5510 = vunpack.c.l.b16 %v5478
      %v5511 = vunpack.c.l.b16 %v5479
      %v5512 = vunpack.c.l.b16 %v5480
      %v5513 = vunpack.c.l.b16 %v5481
      %v5514 = vunpack.c.l.b16 %v5482
      %v5515 = vpack.c.b16 %v5500, %v5499
      %v5516 = vpack.c.b16 %v5502, %v5501
      %v5517 = vpack.c.b16 %v5504, %v5503
      %v5518 = vpack.c.b16 %v5506, %v5505
      %v5519 = vpack.c.b16 %v5508, %v5507
      %v5520 = vpack.c.b16 %v5510, %v5509
      %v5521 = vpack.c.b16 %v5512, %v5511
      %v5522 = vpack.c.b16 %v5514, %v5513
      %5531 = vmatprep.subr.bf16.mxu0 0
      %5532 = vmatpush1.bf16.msra.mxu0 %v5522
      %5533 = vmatprep.subr.bf16.mxu0 0
      %5534 = vmatpush1.bf16.msra.mxu0 %v5521
      %5535 = vmatprep.subr.bf16.mxu0 0
      %5536 = vmatpush1.bf16.msra.mxu0 %v5520
      %5537 = vmatprep.subr.bf16.mxu0 0
      %5538 = vmatpush1.bf16.msra.mxu0 %v5519
      %5539 = vmatprep.subr.bf16.mxu0 0
      %5540 = vmatpush1.bf16.msra.mxu0 %v5518
      %5541 = vmatprep.subr.bf16.mxu0 0
      %5542 = vmatpush1.bf16.msra.mxu0 %v5517
      %5543 = vmatprep.subr.bf16.mxu0 0
      %5544 = vmatpush1.bf16.msra.mxu0 %v5516
      %5545 = vmatprep.subr.bf16.mxu0 0
      %5546 = vmatpush1.bf16.msra.mxu0 %v5515
      %5547 = vmatprep.subr.bf16.mxu0 0
      %5548 = vmatpush2.bf16.msra.mxu0 0
      %5549 = vmatprep.subr.bf16.mxu0 0
      %5550 = vmatpush2.bf16.msra.mxu0 0
      %5551 = vmatprep.subr.bf16.mxu0 0
      %5552 = vmatpush2.bf16.msra.mxu0 0
      %5553 = vmatprep.subr.bf16.mxu0 0
      %5554 = vmatpush2.bf16.msra.mxu0 0
      %5555 = vmatprep.subr.bf16.mxu0 0
      %5556 = vmatpush2.bf16.msra.mxu0 0
      %5557 = vmatprep.subr.bf16.mxu0 0
      %5558 = vmatpush2.bf16.msra.mxu0 0
      %5559 = vmatprep.subr.bf16.mxu0 0
      %5560 = vmatpush2.bf16.msra.mxu0 0
      %5561 = vmatprep.subr.bf16.mxu0 0
      %5562 = vmatpush2.bf16.msra.mxu0 0
      %5563 = vmatprep.mubr.bf16.mxu0 0
      %5564 = vmatmul.mubr.bf16.gmra.mxu0 %v5466
      %v5565 = vpop.f32.mrf.mxu0
      %v5566 = vadd.f32 0.0, %v5565
      %v5567 = vpop.f32.mrf.mxu0
      %v5568 = vpop.f32.mrf.mxu0
      %v5569 = vadd.f32 0.0, %v5568
      %v5570 = vpop.f32.mrf.mxu0
      %5571 = vdwg.mxu0
      %v5572 = vld [vmem:[%s75] sm:$0x1]
      %v5573 = vld [vmem:[%s77] sm:$0x1]
      %v5574 = vsel %vm2693, %v5566, 0.0
      %5575 = vadd.xlane.f32.xlu0 %v5574
      %v5576 = vpop.xlane.xlu0 %5575
      %v5577 = vsel %vm2693, %v5569, 0.0
      %5578 = vadd.xlane.f32.xlu0 %v5577
      %v5579 = vpop.xlane.xlu0 %5578
      %v5580 = vrcp.pop 64.0
      %v5581 = vmul.f32 %v5576, %v5580
      %v5582 = vmul.f32 %v5579, %v5580
      %v5583 = vsub.f32 %v5566, %v5581
      %v5584 = vsub.f32 %v5569, %v5582
      %v5585 = vmul.f32 %v5583, %v5583
      %v5586 = vmul.f32 %v5584, %v5584
      %v5587 = vsel %vm2693, %v5585, 0.0
      %5588 = vadd.xlane.f32.xlu0 %v5587
      %v5589 = vpop.xlane.xlu0 %5588
      %v5590 = vsel %vm2693, %v5586, 0.0
      %5591 = vadd.xlane.f32.xlu0 %v5590
      %v5592 = vpop.xlane.xlu0 %5591
      %v5593 = vmul.f32 %v5589, %v5580
      %v5594 = vmul.f32 %v5592, %v5580
      %v5595 = vadd.f32 %v5593, 1e-05
      %v5596 = vadd.f32 %v5594, 1e-05
      %v5597 = vrsqrt.pop %v5595
      %v5598 = vrsqrt.pop %v5596
      %v5599 = vmul.f32 %v5583, %v5597
      %v5600 = vmul.f32 %v5584, %v5598
      %v5602 = vlaneseq
      %v5603 = vshrl.u32 %v5602, 7
      %v5604 = vsub.s32 0, %v5603
      %v5605 = vrot.slane %v5572, %v5604
      %v5607 = vmul.f32 %v5599, %v5605
      %v5608 = vmul.f32 %v5600, %v5605
      %v5610 = vlaneseq
      %v5611 = vshrl.u32 %v5610, 7
      %v5612 = vsub.s32 0, %v5611
      %v5613 = vrot.slane %v5573, %v5612
      %v5615 = vadd.f32 %v5607, %v5613
      %v5616 = vadd.f32 %v5608, %v5613
      %v5617 = vpack.c.bf16 %v5616, %v5615
      %v5618 = vld [vmem:[%s79] sm:$0xff]
      %v5619 = vld [vmem:[%s79 + $0x8] sm:$0xff]
      %v5620 = vld [vmem:[%s79 + $0x10] sm:$0xff]
      %v5621 = vld [vmem:[%s79 + $0x18] sm:$0xff]
      %v5622 = vld [vmem:[%s79 + $0x20] sm:$0xff]
      %v5623 = vld [vmem:[%s79 + $0x28] sm:$0xff]
      %v5624 = vld [vmem:[%s79 + $0x30] sm:$0xff]
      %v5625 = vld [vmem:[%s79 + $0x38] sm:$0xff]
      %v5626 = vld [vmem:[%s81] sm:$0x3]
      %v5628 = vlaneseq
      %v5629 = vshrl.u32 %v5628, 7
      %v5630 = vsub.s32 0, %v5629
      %v5631 = vrot.slane %v5626, %v5630
      %v5632 = vlaneseq
      %v5633 = vshrl.u32 %v5632, 7
      %v5634 = vsub.s32 1, %v5633
      %v5635 = vrot.slane %v5626, %v5634
      %v5646 = vunpack.c.l.b16 %v5618
      %v5647 = vunpack.c.h.b16 %v5618
      %v5648 = vunpack.c.l.b16 %v5619
      %v5649 = vunpack.c.h.b16 %v5619
      %v5650 = vunpack.c.l.b16 %v5620
      %v5651 = vunpack.c.h.b16 %v5620
      %v5652 = vunpack.c.l.b16 %v5621
      %v5653 = vunpack.c.h.b16 %v5621
      %v5654 = vunpack.c.l.b16 %v5622
      %v5655 = vunpack.c.h.b16 %v5622
      %v5656 = vunpack.c.l.b16 %v5623
      %v5657 = vunpack.c.h.b16 %v5623
      %v5658 = vunpack.c.l.b16 %v5624
      %v5659 = vunpack.c.h.b16 %v5624
      %v5660 = vunpack.c.l.b16 %v5625
      %v5661 = vunpack.c.h.b16 %v5625
      %v5662 = vpack.c.b16 %v5648, %v5646
      %v5663 = vpack.c.b16 %v5649, %v5647
      %v5664 = vpack.c.b16 %v5652, %v5650
      %v5665 = vpack.c.b16 %v5653, %v5651
      %v5666 = vpack.c.b16 %v5656, %v5654
      %v5667 = vpack.c.b16 %v5657, %v5655
      %v5668 = vpack.c.b16 %v5660, %v5658
      %v5669 = vpack.c.b16 %v5661, %v5659
      %v5679 = vsel %vm2693, %v5617, 0
      %5681 = vmatprep.subr.bf16.mxu0 0
      %5682 = vmatpush1.bf16.msra.mxu0 0
      %5683 = vmatprep.subr.bf16.mxu0 0
      %5684 = vmatpush1.bf16.msra.mxu0 0
      %5685 = vmatprep.subr.bf16.mxu0 0
      %5686 = vmatpush1.bf16.msra.mxu0 0
      %5687 = vmatprep.subr.bf16.mxu0 0
      %5688 = vmatpush1.bf16.msra.mxu0 0
      %5689 = vmatprep.subr.bf16.mxu0 %v5669
      %5690 = vmatpush1.bf16.msra.mxu0 %v5668
      %5691 = vmatprep.subr.bf16.mxu0 %v5667
      %5692 = vmatpush1.bf16.msra.mxu0 %v5666
      %5693 = vmatprep.subr.bf16.mxu0 %v5665
      %5694 = vmatpush1.bf16.msra.mxu0 %v5664
      %5695 = vmatprep.subr.bf16.mxu0 %v5663
      %5696 = vmatpush1.bf16.msra.mxu0 %v5662
      %5697 = vmatprep.subr.bf16.mxu0 0
      %5698 = vmatpush2.bf16.msra.mxu0 0
      %5699 = vmatprep.subr.bf16.mxu0 0
      %5700 = vmatpush2.bf16.msra.mxu0 0
      %5701 = vmatprep.subr.bf16.mxu0 0
      %5702 = vmatpush2.bf16.msra.mxu0 0
      %5703 = vmatprep.subr.bf16.mxu0 0
      %5704 = vmatpush2.bf16.msra.mxu0 0
      %5705 = vmatprep.subr.bf16.mxu0 0
      %5706 = vmatpush2.bf16.msra.mxu0 0
      %5707 = vmatprep.subr.bf16.mxu0 0
      %5708 = vmatpush2.bf16.msra.mxu0 0
      %5709 = vmatprep.subr.bf16.mxu0 0
      %5710 = vmatpush2.bf16.msra.mxu0 0
      %5711 = vmatprep.subr.bf16.mxu0 0
      %5712 = vmatpush2.bf16.msra.mxu0 0
      %5713 = vmatprep.mubr.bf16.mxu0 0
      %5714 = vmatmul.mubr.bf16.gmra.mxu0 %v5679
      %v5715 = vpop.f32.mrf.mxu0
      %v5716 = vadd.f32 %v5631, %v5715
      %v5717 = vpop.f32.mrf.mxu0
      %v5718 = vadd.f32 %v5635, %v5717
      %v5719 = vpop.f32.mrf.mxu0
      %v5720 = vadd.f32 %v5631, %v5719
      %v5721 = vpop.f32.mrf.mxu0
      %v5722 = vadd.f32 %v5635, %v5721
      %5723 = vdwg.mxu0
      %v5724 = vpack.c.bf16 %v5720, %v5716
      %v5725 = vpack.c.bf16 %v5722, %v5718
      %v5726 = vld [vmem:[%s71] sm:$0xf]
      %v5727 = vld [vmem:[%s71 + $0x4] sm:$0xf]
      %v5728 = vunpack.c.l.bf16 %v5726
      %v5729 = vunpack.c.l.bf16 %v5727
      %5731 = vrot.lane.b32.xlu0 %v5724, 64
      %v5732 = vpop.permute.xlu0 %5731
      %v5734 = vsel %vm2603, %v5724, 0
      %v5737 = vsel %vm2603, %v5732, 0
      %5739 = vmatprep.subr.bf16.mxu0 0
      %5740 = vmatpush1.bf16.xpose.msra.mxu0 0
      %5741 = vmatprep.subr.bf16.mxu0 0
      %5742 = vmatpush1.bf16.xpose.msra.mxu0 0
      %5743 = vmatprep.subr.bf16.mxu0 0
      %5744 = vmatpush1.bf16.xpose.msra.mxu0 0
      %5745 = vmatprep.subr.bf16.mxu0 0
      %5746 = vmatpush1.bf16.xpose.msra.mxu0 0
      %5747 = vmatprep.subr.bf16.mxu0 0
      %5748 = vmatpush1.bf16.xpose.msra.mxu0 0
      %5749 = vmatprep.subr.bf16.mxu0 0
      %5750 = vmatpush1.bf16.xpose.msra.mxu0 0
      %5751 = vmatprep.subr.bf16.mxu0 0
      %5752 = vmatpush1.bf16.xpose.msra.mxu0 0
      %5753 = vmatprep.subr.bf16.mxu0 0
      %5754 = vmatpush1.bf16.xpose.msra.mxu0 %v5737
      %5755 = vmatprep.subr.bf16.mxu0 0
      %5756 = vmatpush2.bf16.xpose.msra.mxu0 0
      %5757 = vmatprep.subr.bf16.mxu0 0
      %5758 = vmatpush2.bf16.xpose.msra.mxu0 0
      %5759 = vmatprep.subr.bf16.mxu0 0
      %5760 = vmatpush2.bf16.xpose.msra.mxu0 0
      %5761 = vmatprep.subr.bf16.mxu0 0
      %5762 = vmatpush2.bf16.xpose.msra.mxu0 0
      %5763 = vmatprep.subr.bf16.mxu0 0
      %5764 = vmatpush2.bf16.xpose.msra.mxu0 0
      %5765 = vmatprep.subr.bf16.mxu0 0
      %5766 = vmatpush2.bf16.xpose.msra.mxu0 0
      %5767 = vmatprep.subr.bf16.mxu0 0
      %5768 = vmatpush2.bf16.xpose.msra.mxu0 0
      %5769 = vmatprep.subr.bf16.mxu0 0
      %5770 = vmatpush2.bf16.xpose.msra.mxu0 0
      %5771 = vmatprep.mubr.bf16.mxu0 0
      %5772 = vmatmul.mubr.bf16.gmra.mxu0 %v5734
      %v5773 = vpop.f32.mrf.mxu0
      %v5774 = vadd.f32 %v5728, %v5773
      %v5775 = vpop.f32.mrf.mxu0
      %v5776 = vpop.f32.mrf.mxu0
      %v5777 = vadd.f32 %v5729, %v5776
      %v5778 = vpop.f32.mrf.mxu0
      %5779 = vdwg.mxu0
      %v5780 = vsel %vm2603, %v5774, -inf
      %5781 = vmax.xlane.f32.xlu0 %v5780
      %v5782 = vpop.xlane.xlu0 %5781
      %v5783 = vsel %vm2603, %v5777, -inf
      %5784 = vmax.xlane.f32.xlu0 %v5783
      %v5785 = vpop.xlane.xlu0 %5784
      %v5786 = vsub.f32 %v5774, %v5782
      %v5787 = vsub.f32 %v5777, %v5785
      %v5788 = vmul.f32 %v5786, 1.442695
      %v5789 = vpow.pop %v5788
      %v5790 = vmul.f32 %v5787, 1.442695
      %v5791 = vpow.pop %v5790
      %v5792 = vsel %vm2603, %v5789, 0.0
      %5793 = vadd.xlane.f32.xlu0 %v5792
      %v5794 = vpop.xlane.xlu0 %5793
      %v5795 = vsel %vm2603, %v5791, 0.0
      %5796 = vadd.xlane.f32.xlu0 %v5795
      %v5797 = vpop.xlane.xlu0 %5796
      %v5798 = vrcp.pop %v5794
      %v5799 = vrcp.pop %v5797
      %v5800 = vmul.f32 %v5789, %v5798
      %v5801 = vmul.f32 %v5791, %v5799
      %v5802 = vpack.c.bf16 %v5801, %v5800
      %v5804 = vsel %vm2603, %v5802, 0
      %5806 = vmatprep.subr.bf16.mxu0 0
      %5807 = vmatpush1.bf16.msra.mxu0 0
      %5808 = vmatprep.subr.bf16.mxu0 0
      %5809 = vmatpush1.bf16.msra.mxu0 0
      %5810 = vmatprep.subr.bf16.mxu0 0
      %5811 = vmatpush1.bf16.msra.mxu0 0
      %5812 = vmatprep.subr.bf16.mxu0 0
      %5813 = vmatpush1.bf16.msra.mxu0 0
      %5814 = vmatprep.subr.bf16.mxu0 0
      %5815 = vmatpush1.bf16.msra.mxu0 0
      %5816 = vmatprep.subr.bf16.mxu0 0
      %5817 = vmatpush1.bf16.msra.mxu0 0
      %5818 = vmatprep.subr.bf16.mxu0 0
      %5819 = vmatpush1.bf16.msra.mxu0 0
      %5820 = vmatprep.subr.bf16.mxu0 0
      %5821 = vmatpush1.bf16.msra.mxu0 %v5725
      %5822 = vmatprep.subr.bf16.mxu0 0
      %5823 = vmatpush2.bf16.msra.mxu0 0
      %5824 = vmatprep.subr.bf16.mxu0 0
      %5825 = vmatpush2.bf16.msra.mxu0 0
      %5826 = vmatprep.subr.bf16.mxu0 0
      %5827 = vmatpush2.bf16.msra.mxu0 0
      %5828 = vmatprep.subr.bf16.mxu0 0
      %5829 = vmatpush2.bf16.msra.mxu0 0
      %5830 = vmatprep.subr.bf16.mxu0 0
      %5831 = vmatpush2.bf16.msra.mxu0 0
      %5832 = vmatprep.subr.bf16.mxu0 0
      %5833 = vmatpush2.bf16.msra.mxu0 0
      %5834 = vmatprep.subr.bf16.mxu0 0
      %5835 = vmatpush2.bf16.msra.mxu0 0
      %5836 = vmatprep.subr.bf16.mxu0 0
      %5837 = vmatpush2.bf16.msra.mxu0 0
      %5838 = vmatprep.mubr.bf16.mxu0 0
      %5839 = vmatmul.mubr.bf16.gmra.mxu0 %v5804
      %v5840 = vpop.f32.mrf.mxu0
      %v5841 = vadd.f32 0.0, %v5840
      %v5842 = vpop.f32.mrf.mxu0
      %v5843 = vpop.f32.mrf.mxu0
      %v5844 = vadd.f32 0.0, %v5843
      %v5845 = vpop.f32.mrf.mxu0
      %5846 = vdwg.mxu0
      %s5847 = scalar_lea.vmem %s71, 8
      %v5848 = vld [vmem:[%s5847] sm:$0xf]
      %v5849 = vld [vmem:[%s5847 + $0x4] sm:$0xf]
      %v5850 = vunpack.c.l.bf16 %v5848
      %v5851 = vunpack.c.l.bf16 %v5849
      %5852 = vrot.lane.b32.xlu0 %v5724, 112
      %v5853 = vpop.permute.xlu0 %5852
      %5854 = vrot.lane.b32.xlu0 %v5724, 48
      %v5855 = vpop.permute.xlu0 %5854
      %v5857 = vsel %vm2603, %v5853, 0
      %v5860 = vsel %vm2603, %v5855, 0
      %5862 = vmatprep.subr.bf16.mxu0 0
      %5863 = vmatpush1.bf16.xpose.msra.mxu0 0
      %5864 = vmatprep.subr.bf16.mxu0 0
      %5865 = vmatpush1.bf16.xpose.msra.mxu0 0
      %5866 = vmatprep.subr.bf16.mxu0 0
      %5867 = vmatpush1.bf16.xpose.msra.mxu0 0
      %5868 = vmatprep.subr.bf16.mxu0 0
      %5869 = vmatpush1.bf16.xpose.msra.mxu0 0
      %5870 = vmatprep.subr.bf16.mxu0 0
      %5871 = vmatpush1.bf16.xpose.msra.mxu0 0
      %5872 = vmatprep.subr.bf16.mxu0 0
      %5873 = vmatpush1.bf16.xpose.msra.mxu0 0
      %5874 = vmatprep.subr.bf16.mxu0 0
      %5875 = vmatpush1.bf16.xpose.msra.mxu0 0
      %5876 = vmatprep.subr.bf16.mxu0 0
      %5877 = vmatpush1.bf16.xpose.msra.mxu0 %v5860
      %5878 = vmatprep.subr.bf16.mxu0 0
      %5879 = vmatpush2.bf16.xpose.msra.mxu0 0
      %5880 = vmatprep.subr.bf16.mxu0 0
      %5881 = vmatpush2.bf16.xpose.msra.mxu0 0
      %5882 = vmatprep.subr.bf16.mxu0 0
      %5883 = vmatpush2.bf16.xpose.msra.mxu0 0
      %5884 = vmatprep.subr.bf16.mxu0 0
      %5885 = vmatpush2.bf16.xpose.msra.mxu0 0
      %5886 = vmatprep.subr.bf16.mxu0 0
      %5887 = vmatpush2.bf16.xpose.msra.mxu0 0
      %5888 = vmatprep.subr.bf16.mxu0 0
      %5889 = vmatpush2.bf16.xpose.msra.mxu0 0
      %5890 = vmatprep.subr.bf16.mxu0 0
      %5891 = vmatpush2.bf16.xpose.msra.mxu0 0
      %5892 = vmatprep.subr.bf16.mxu0 0
      %5893 = vmatpush2.bf16.xpose.msra.mxu0 0
      %5894 = vmatprep.mubr.bf16.mxu0 0
      %5895 = vmatmul.mubr.bf16.gmra.mxu0 %v5857
      %v5896 = vpop.f32.mrf.mxu0
      %v5897 = vadd.f32 %v5850, %v5896
      %v5898 = vpop.f32.mrf.mxu0
      %v5899 = vpop.f32.mrf.mxu0
      %v5900 = vadd.f32 %v5851, %v5899
      %v5901 = vpop.f32.mrf.mxu0
      %5902 = vdwg.mxu0
      %v5903 = vsel %vm2603, %v5897, -inf
      %5904 = vmax.xlane.f32.xlu0 %v5903
      %v5905 = vpop.xlane.xlu0 %5904
      %v5906 = vsel %vm2603, %v5900, -inf
      %5907 = vmax.xlane.f32.xlu0 %v5906
      %v5908 = vpop.xlane.xlu0 %5907
      %v5909 = vsub.f32 %v5897, %v5905
      %v5910 = vsub.f32 %v5900, %v5908
      %v5911 = vmul.f32 %v5909, 1.442695
      %v5912 = vpow.pop %v5911
      %v5913 = vmul.f32 %v5910, 1.442695
      %v5914 = vpow.pop %v5913
      %v5915 = vsel %vm2603, %v5912, 0.0
      %5916 = vadd.xlane.f32.xlu0 %v5915
      %v5917 = vpop.xlane.xlu0 %5916
      %v5918 = vsel %vm2603, %v5914, 0.0
      %5919 = vadd.xlane.f32.xlu0 %v5918
      %v5920 = vpop.xlane.xlu0 %5919
      %v5921 = vrcp.pop %v5917
      %v5922 = vrcp.pop %v5920
      %v5923 = vmul.f32 %v5912, %v5921
      %v5924 = vmul.f32 %v5914, %v5922
      %v5925 = vpack.c.bf16 %v5924, %v5923
      %5927 = vrot.lane.b32.xlu0 %v5725, 112
      %v5928 = vpop.permute.xlu0 %5927
      %v5931 = vsel %vm2603, %v5925, 0
      %5933 = vmatprep.subr.bf16.mxu0 0
      %5934 = vmatpush1.bf16.msra.mxu0 0
      %5935 = vmatprep.subr.bf16.mxu0 0
      %5936 = vmatpush1.bf16.msra.mxu0 0
      %5937 = vmatprep.subr.bf16.mxu0 0
      %5938 = vmatpush1.bf16.msra.mxu0 0
      %5939 = vmatprep.subr.bf16.mxu0 0
      %5940 = vmatpush1.bf16.msra.mxu0 0
      %5941 = vmatprep.subr.bf16.mxu0 0
      %5942 = vmatpush1.bf16.msra.mxu0 0
      %5943 = vmatprep.subr.bf16.mxu0 0
      %5944 = vmatpush1.bf16.msra.mxu0 0
      %5945 = vmatprep.subr.bf16.mxu0 0
      %5946 = vmatpush1.bf16.msra.mxu0 0
      %5947 = vmatprep.subr.bf16.mxu0 0
      %5948 = vmatpush1.bf16.msra.mxu0 %v5928
      %5949 = vmatprep.subr.bf16.mxu0 0
      %5950 = vmatpush2.bf16.msra.mxu0 0
      %5951 = vmatprep.subr.bf16.mxu0 0
      %5952 = vmatpush2.bf16.msra.mxu0 0
      %5953 = vmatprep.subr.bf16.mxu0 0
      %5954 = vmatpush2.bf16.msra.mxu0 0
      %5955 = vmatprep.subr.bf16.mxu0 0
      %5956 = vmatpush2.bf16.msra.mxu0 0
      %5957 = vmatprep.subr.bf16.mxu0 0
      %5958 = vmatpush2.bf16.msra.mxu0 0
      %5959 = vmatprep.subr.bf16.mxu0 0
      %5960 = vmatpush2.bf16.msra.mxu0 0
      %5961 = vmatprep.subr.bf16.mxu0 0
      %5962 = vmatpush2.bf16.msra.mxu0 0
      %5963 = vmatprep.subr.bf16.mxu0 0
      %5964 = vmatpush2.bf16.msra.mxu0 0
      %5965 = vmatprep.mubr.bf16.mxu0 0
      %5966 = vmatmul.mubr.bf16.gmra.mxu0 %v5931
      %v5967 = vpop.f32.mrf.mxu0
      %v5968 = vadd.f32 0.0, %v5967
      %v5969 = vpop.f32.mrf.mxu0
      %v5970 = vpop.f32.mrf.mxu0
      %v5971 = vadd.f32 0.0, %v5970
      %v5972 = vpop.f32.mrf.mxu0
      %5973 = vdwg.mxu0
      %s5974 = scalar_lea.vmem %s71, 16
      %v5975 = vld [vmem:[%s5974] sm:$0xf]
      %v5976 = vld [vmem:[%s5974 + $0x4] sm:$0xf]
      %v5977 = vunpack.c.l.bf16 %v5975
      %v5978 = vunpack.c.l.bf16 %v5976
      %5979 = vrot.lane.b32.xlu0 %v5724, 96
      %v5980 = vpop.permute.xlu0 %5979
      %5981 = vrot.lane.b32.xlu0 %v5724, 32
      %v5982 = vpop.permute.xlu0 %5981
      %v5984 = vsel %vm2603, %v5980, 0
      %v5987 = vsel %vm2603, %v5982, 0
      %5989 = vmatprep.subr.bf16.mxu0 0
      %5990 = vmatpush1.bf16.xpose.msra.mxu0 0
      %5991 = vmatprep.subr.bf16.mxu0 0
      %5992 = vmatpush1.bf16.xpose.msra.mxu0 0
      %5993 = vmatprep.subr.bf16.mxu0 0
      %5994 = vmatpush1.bf16.xpose.msra.mxu0 0
      %5995 = vmatprep.subr.bf16.mxu0 0
      %5996 = vmatpush1.bf16.xpose.msra.mxu0 0
      %5997 = vmatprep.subr.bf16.mxu0 0
      %5998 = vmatpush1.bf16.xpose.msra.mxu0 0
      %5999 = vmatprep.subr.bf16.mxu0 0
      %6000 = vmatpush1.bf16.xpose.msra.mxu0 0
      %6001 = vmatprep.subr.bf16.mxu0 0
      %6002 = vmatpush1.bf16.xpose.msra.mxu0 0
      %6003 = vmatprep.subr.bf16.mxu0 0
      %6004 = vmatpush1.bf16.xpose.msra.mxu0 %v5987
      %6005 = vmatprep.subr.bf16.mxu0 0
      %6006 = vmatpush2.bf16.xpose.msra.mxu0 0
      %6007 = vmatprep.subr.bf16.mxu0 0
      %6008 = vmatpush2.bf16.xpose.msra.mxu0 0
      %6009 = vmatprep.subr.bf16.mxu0 0
      %6010 = vmatpush2.bf16.xpose.msra.mxu0 0
      %6011 = vmatprep.subr.bf16.mxu0 0
      %6012 = vmatpush2.bf16.xpose.msra.mxu0 0
      %6013 = vmatprep.subr.bf16.mxu0 0
      %6014 = vmatpush2.bf16.xpose.msra.mxu0 0
      %6015 = vmatprep.subr.bf16.mxu0 0
      %6016 = vmatpush2.bf16.xpose.msra.mxu0 0
      %6017 = vmatprep.subr.bf16.mxu0 0
      %6018 = vmatpush2.bf16.xpose.msra.mxu0 0
      %6019 = vmatprep.subr.bf16.mxu0 0
      %6020 = vmatpush2.bf16.xpose.msra.mxu0 0
      %6021 = vmatprep.mubr.bf16.mxu0 0
      %6022 = vmatmul.mubr.bf16.gmra.mxu0 %v5984
      %v6023 = vpop.f32.mrf.mxu0
      %v6024 = vadd.f32 %v5977, %v6023
      %v6025 = vpop.f32.mrf.mxu0
      %v6026 = vpop.f32.mrf.mxu0
      %v6027 = vadd.f32 %v5978, %v6026
      %v6028 = vpop.f32.mrf.mxu0
      %6029 = vdwg.mxu0
      %v6030 = vsel %vm2603, %v6024, -inf
      %6031 = vmax.xlane.f32.xlu0 %v6030
      %v6032 = vpop.xlane.xlu0 %6031
      %v6033 = vsel %vm2603, %v6027, -inf
      %6034 = vmax.xlane.f32.xlu0 %v6033
      %v6035 = vpop.xlane.xlu0 %6034
      %v6036 = vsub.f32 %v6024, %v6032
      %v6037 = vsub.f32 %v6027, %v6035
      %v6038 = vmul.f32 %v6036, 1.442695
      %v6039 = vpow.pop %v6038
      %v6040 = vmul.f32 %v6037, 1.442695
      %v6041 = vpow.pop %v6040
      %v6042 = vsel %vm2603, %v6039, 0.0
      %6043 = vadd.xlane.f32.xlu0 %v6042
      %v6044 = vpop.xlane.xlu0 %6043
      %v6045 = vsel %vm2603, %v6041, 0.0
      %6046 = vadd.xlane.f32.xlu0 %v6045
      %v6047 = vpop.xlane.xlu0 %6046
      %v6048 = vrcp.pop %v6044
      %v6049 = vrcp.pop %v6047
      %v6050 = vmul.f32 %v6039, %v6048
      %v6051 = vmul.f32 %v6041, %v6049
      %v6052 = vpack.c.bf16 %v6051, %v6050
      %6053 = vrot.lane.b32.xlu0 %v5725, 96
      %v6054 = vpop.permute.xlu0 %6053
      %v6057 = vsel %vm2603, %v6052, 0
      %6059 = vmatprep.subr.bf16.mxu0 0
      %6060 = vmatpush1.bf16.msra.mxu0 0
      %6061 = vmatprep.subr.bf16.mxu0 0
      %6062 = vmatpush1.bf16.msra.mxu0 0
      %6063 = vmatprep.subr.bf16.mxu0 0
      %6064 = vmatpush1.bf16.msra.mxu0 0
      %6065 = vmatprep.subr.bf16.mxu0 0
      %6066 = vmatpush1.bf16.msra.mxu0 0
      %6067 = vmatprep.subr.bf16.mxu0 0
      %6068 = vmatpush1.bf16.msra.mxu0 0
      %6069 = vmatprep.subr.bf16.mxu0 0
      %6070 = vmatpush1.bf16.msra.mxu0 0
      %6071 = vmatprep.subr.bf16.mxu0 0
      %6072 = vmatpush1.bf16.msra.mxu0 0
      %6073 = vmatprep.subr.bf16.mxu0 0
      %6074 = vmatpush1.bf16.msra.mxu0 %v6054
      %6075 = vmatprep.subr.bf16.mxu0 0
      %6076 = vmatpush2.bf16.msra.mxu0 0
      %6077 = vmatprep.subr.bf16.mxu0 0
      %6078 = vmatpush2.bf16.msra.mxu0 0
      %6079 = vmatprep.subr.bf16.mxu0 0
      %6080 = vmatpush2.bf16.msra.mxu0 0
      %6081 = vmatprep.subr.bf16.mxu0 0
      %6082 = vmatpush2.bf16.msra.mxu0 0
      %6083 = vmatprep.subr.bf16.mxu0 0
      %6084 = vmatpush2.bf16.msra.mxu0 0
      %6085 = vmatprep.subr.bf16.mxu0 0
      %6086 = vmatpush2.bf16.msra.mxu0 0
      %6087 = vmatprep.subr.bf16.mxu0 0
      %6088 = vmatpush2.bf16.msra.mxu0 0
      %6089 = vmatprep.subr.bf16.mxu0 0
      %6090 = vmatpush2.bf16.msra.mxu0 0
      %6091 = vmatprep.mubr.bf16.mxu0 0
      %6092 = vmatmul.mubr.bf16.gmra.mxu0 %v6057
      %v6093 = vpop.f32.mrf.mxu0
      %v6094 = vadd.f32 0.0, %v6093
      %v6095 = vpop.f32.mrf.mxu0
      %v6096 = vpop.f32.mrf.mxu0
      %v6097 = vadd.f32 0.0, %v6096
      %v6098 = vpop.f32.mrf.mxu0
      %6099 = vdwg.mxu0
      %s6100 = scalar_lea.vmem %s71, 24
      %v6101 = vld [vmem:[%s6100] sm:$0xf]
      %v6102 = vld [vmem:[%s6100 + $0x4] sm:$0xf]
      %v6103 = vunpack.c.l.bf16 %v6101
      %v6104 = vunpack.c.l.bf16 %v6102
      %6105 = vrot.lane.b32.xlu0 %v5724, 80
      %v6106 = vpop.permute.xlu0 %6105
      %6107 = vrot.lane.b32.xlu0 %v5724, 16
      %v6108 = vpop.permute.xlu0 %6107
      %v6110 = vsel %vm2603, %v6106, 0
      %v6113 = vsel %vm2603, %v6108, 0
      %6115 = vmatprep.subr.bf16.mxu0 0
      %6116 = vmatpush1.bf16.xpose.msra.mxu0 0
      %6117 = vmatprep.subr.bf16.mxu0 0
      %6118 = vmatpush1.bf16.xpose.msra.mxu0 0
      %6119 = vmatprep.subr.bf16.mxu0 0
      %6120 = vmatpush1.bf16.xpose.msra.mxu0 0
      %6121 = vmatprep.subr.bf16.mxu0 0
      %6122 = vmatpush1.bf16.xpose.msra.mxu0 0
      %6123 = vmatprep.subr.bf16.mxu0 0
      %6124 = vmatpush1.bf16.xpose.msra.mxu0 0
      %6125 = vmatprep.subr.bf16.mxu0 0
      %6126 = vmatpush1.bf16.xpose.msra.mxu0 0
      %6127 = vmatprep.subr.bf16.mxu0 0
      %6128 = vmatpush1.bf16.xpose.msra.mxu0 0
      %6129 = vmatprep.subr.bf16.mxu0 0
      %6130 = vmatpush1.bf16.xpose.msra.mxu0 %v6113
      %6131 = vmatprep.subr.bf16.mxu0 0
      %6132 = vmatpush2.bf16.xpose.msra.mxu0 0
      %6133 = vmatprep.subr.bf16.mxu0 0
      %6134 = vmatpush2.bf16.xpose.msra.mxu0 0
      %6135 = vmatprep.subr.bf16.mxu0 0
      %6136 = vmatpush2.bf16.xpose.msra.mxu0 0
      %6137 = vmatprep.subr.bf16.mxu0 0
      %6138 = vmatpush2.bf16.xpose.msra.mxu0 0
      %6139 = vmatprep.subr.bf16.mxu0 0
      %6140 = vmatpush2.bf16.xpose.msra.mxu0 0
      %6141 = vmatprep.subr.bf16.mxu0 0
      %6142 = vmatpush2.bf16.xpose.msra.mxu0 0
      %6143 = vmatprep.subr.bf16.mxu0 0
      %6144 = vmatpush2.bf16.xpose.msra.mxu0 0
      %6145 = vmatprep.subr.bf16.mxu0 0
      %6146 = vmatpush2.bf16.xpose.msra.mxu0 0
      %6147 = vmatprep.mubr.bf16.mxu0 0
      %6148 = vmatmul.mubr.bf16.gmra.mxu0 %v6110
      %v6149 = vpop.f32.mrf.mxu0
      %v6150 = vadd.f32 %v6103, %v6149
      %v6151 = vpop.f32.mrf.mxu0
      %v6152 = vpop.f32.mrf.mxu0
      %v6153 = vadd.f32 %v6104, %v6152
      %v6154 = vpop.f32.mrf.mxu0
      %6155 = vdwg.mxu0
      %v6156 = vsel %vm2603, %v6150, -inf
      %6157 = vmax.xlane.f32.xlu0 %v6156
      %v6158 = vpop.xlane.xlu0 %6157
      %v6159 = vsel %vm2603, %v6153, -inf
      %6160 = vmax.xlane.f32.xlu0 %v6159
      %v6161 = vpop.xlane.xlu0 %6160
      %v6162 = vsub.f32 %v6150, %v6158
      %v6163 = vsub.f32 %v6153, %v6161
      %v6164 = vmul.f32 %v6162, 1.442695
      %v6165 = vpow.pop %v6164
      %v6166 = vmul.f32 %v6163, 1.442695
      %v6167 = vpow.pop %v6166
      %v6168 = vsel %vm2603, %v6165, 0.0
      %6169 = vadd.xlane.f32.xlu0 %v6168
      %v6170 = vpop.xlane.xlu0 %6169
      %v6171 = vsel %vm2603, %v6167, 0.0
      %6172 = vadd.xlane.f32.xlu0 %v6171
      %v6173 = vpop.xlane.xlu0 %6172
      %v6174 = vrcp.pop %v6170
      %v6175 = vrcp.pop %v6173
      %v6176 = vmul.f32 %v6165, %v6174
      %v6177 = vmul.f32 %v6167, %v6175
      %v6178 = vpack.c.bf16 %v6177, %v6176
      %6179 = vrot.lane.b32.xlu0 %v5725, 80
      %v6180 = vpop.permute.xlu0 %6179
      %v6183 = vsel %vm2603, %v6178, 0
      %6185 = vmatprep.subr.bf16.mxu0 0
      %6186 = vmatpush1.bf16.msra.mxu0 0
      %6187 = vmatprep.subr.bf16.mxu0 0
      %6188 = vmatpush1.bf16.msra.mxu0 0
      %6189 = vmatprep.subr.bf16.mxu0 0
      %6190 = vmatpush1.bf16.msra.mxu0 0
      %6191 = vmatprep.subr.bf16.mxu0 0
      %6192 = vmatpush1.bf16.msra.mxu0 0
      %6193 = vmatprep.subr.bf16.mxu0 0
      %6194 = vmatpush1.bf16.msra.mxu0 0
      %6195 = vmatprep.subr.bf16.mxu0 0
      %6196 = vmatpush1.bf16.msra.mxu0 0
      %6197 = vmatprep.subr.bf16.mxu0 0
      %6198 = vmatpush1.bf16.msra.mxu0 0
      %6199 = vmatprep.subr.bf16.mxu0 0
      %6200 = vmatpush1.bf16.msra.mxu0 %v6180
      %6201 = vmatprep.subr.bf16.mxu0 0
      %6202 = vmatpush2.bf16.msra.mxu0 0
      %6203 = vmatprep.subr.bf16.mxu0 0
      %6204 = vmatpush2.bf16.msra.mxu0 0
      %6205 = vmatprep.subr.bf16.mxu0 0
      %6206 = vmatpush2.bf16.msra.mxu0 0
      %6207 = vmatprep.subr.bf16.mxu0 0
      %6208 = vmatpush2.bf16.msra.mxu0 0
      %6209 = vmatprep.subr.bf16.mxu0 0
      %6210 = vmatpush2.bf16.msra.mxu0 0
      %6211 = vmatprep.subr.bf16.mxu0 0
      %6212 = vmatpush2.bf16.msra.mxu0 0
      %6213 = vmatprep.subr.bf16.mxu0 0
      %6214 = vmatpush2.bf16.msra.mxu0 0
      %6215 = vmatprep.subr.bf16.mxu0 0
      %6216 = vmatpush2.bf16.msra.mxu0 0
      %6217 = vmatprep.mubr.bf16.mxu0 0
      %6218 = vmatmul.mubr.bf16.gmra.mxu0 %v6183
      %v6219 = vpop.f32.mrf.mxu0
      %v6220 = vadd.f32 0.0, %v6219
      %v6221 = vpop.f32.mrf.mxu0
      %v6222 = vpop.f32.mrf.mxu0
      %v6223 = vadd.f32 0.0, %v6222
      %v6224 = vpop.f32.mrf.mxu0
      %6225 = vdwg.mxu0
      %6228 = vrot.lane.b32.xlu0 %v5968, 16
      %v6229 = vpop.permute.xlu0 %6228
      %6230 = vrot.lane.b32.xlu0 %v5971, 16
      %v6231 = vpop.permute.xlu0 %6230
      %6236 = vrot.lane.b32.xlu0 %v6094, 32
      %v6237 = vpop.permute.xlu0 %6236
      %6238 = vrot.lane.b32.xlu0 %v6097, 32
      %v6239 = vpop.permute.xlu0 %6238
      %6244 = vrot.lane.b32.xlu0 %v6220, 48
      %v6245 = vpop.permute.xlu0 %6244
      %6246 = vrot.lane.b32.xlu0 %v6223, 48
      %v6247 = vpop.permute.xlu0 %6246
      %v6250 = vsel %vm2603, %v5841, %v6229
      %v6251 = vsel %vm2603, %v5844, %v6231
      %v6252 = vsel %vm2199, %v6250, %v6237
      %v6253 = vsel %vm2199, %v6251, %v6239
      %v6254 = vsel %vm2119, %v6252, %v6245
      %v6255 = vsel %vm2119, %v6253, %v6247
      %v6256 = vpack.c.bf16 %v6255, %v6254
      %v6257 = vld [vmem:[%s83] sm:$0xf]
      %v6258 = vld [vmem:[%s83 + $0x4] sm:$0xf]
      %v6259 = vld [vmem:[%s83 + $0x8] sm:$0xf]
      %v6260 = vld [vmem:[%s83 + $0xc] sm:$0xf]
      %v6261 = vld [vmem:[%s83 + $0x10] sm:$0xf]
      %v6262 = vld [vmem:[%s83 + $0x14] sm:$0xf]
      %v6263 = vld [vmem:[%s83 + $0x18] sm:$0xf]
      %v6264 = vld [vmem:[%s83 + $0x1c] sm:$0xf]
      %v6273 = vunpack.c.l.b16 %v6257
      %v6274 = vunpack.c.l.b16 %v6258
      %v6275 = vunpack.c.l.b16 %v6259
      %v6276 = vunpack.c.l.b16 %v6260
      %v6277 = vunpack.c.l.b16 %v6261
      %v6278 = vunpack.c.l.b16 %v6262
      %v6279 = vunpack.c.l.b16 %v6263
      %v6280 = vunpack.c.l.b16 %v6264
      %v6281 = vpack.c.b16 %v6274, %v6273
      %v6282 = vpack.c.b16 %v6276, %v6275
      %v6283 = vpack.c.b16 %v6278, %v6277
      %v6284 = vpack.c.b16 %v6280, %v6279
      %v6290 = vsel %vm2693, %v6256, 0
      %6292 = vmatprep.subr.bf16.mxu0 0
      %6293 = vmatpush1.bf16.msra.mxu0 0
      %6294 = vmatprep.subr.bf16.mxu0 0
      %6295 = vmatpush1.bf16.msra.mxu0 0
      %6296 = vmatprep.subr.bf16.mxu0 0
      %6297 = vmatpush1.bf16.msra.mxu0 0
      %6298 = vmatprep.subr.bf16.mxu0 0
      %6299 = vmatpush1.bf16.msra.mxu0 0
      %6300 = vmatprep.subr.bf16.mxu0 0
      %6301 = vmatpush1.bf16.msra.mxu0 %v6284
      %6302 = vmatprep.subr.bf16.mxu0 0
      %6303 = vmatpush1.bf16.msra.mxu0 %v6283
      %6304 = vmatprep.subr.bf16.mxu0 0
      %6305 = vmatpush1.bf16.msra.mxu0 %v6282
      %6306 = vmatprep.subr.bf16.mxu0 0
      %6307 = vmatpush1.bf16.msra.mxu0 %v6281
      %6308 = vmatprep.subr.bf16.mxu0 0
      %6309 = vmatpush2.bf16.msra.mxu0 0
      %6310 = vmatprep.subr.bf16.mxu0 0
      %6311 = vmatpush2.bf16.msra.mxu0 0
      %6312 = vmatprep.subr.bf16.mxu0 0
      %6313 = vmatpush2.bf16.msra.mxu0 0
      %6314 = vmatprep.subr.bf16.mxu0 0
      %6315 = vmatpush2.bf16.msra.mxu0 0
      %6316 = vmatprep.subr.bf16.mxu0 0
      %6317 = vmatpush2.bf16.msra.mxu0 0
      %6318 = vmatprep.subr.bf16.mxu0 0
      %6319 = vmatpush2.bf16.msra.mxu0 0
      %6320 = vmatprep.subr.bf16.mxu0 0
      %6321 = vmatpush2.bf16.msra.mxu0 0
      %6322 = vmatprep.subr.bf16.mxu0 0
      %6323 = vmatpush2.bf16.msra.mxu0 0
      %6324 = vmatprep.mubr.bf16.mxu0 0
      %6325 = vmatmul.mubr.bf16.gmra.mxu0 %v6290
      %v6326 = vpop.f32.mrf.mxu0
      %v6327 = vadd.f32 0.0, %v6326
      %v6328 = vpop.f32.mrf.mxu0
      %v6329 = vpop.f32.mrf.mxu0
      %v6330 = vadd.f32 0.0, %v6329
      %v6331 = vpop.f32.mrf.mxu0
      %6332 = vdwg.mxu0
      %v6333 = vadd.f32 %v5566, %v6327
      %v6334 = vadd.f32 %v5569, %v6330
      %v6335 = vld [vmem:[%s85] sm:$0x1]
      %v6337 = vlaneseq
      %v6338 = vshrl.u32 %v6337, 7
      %v6339 = vsub.s32 0, %v6338
      %v6340 = vrot.slane %v6335, %v6339
      %v6342 = vadd.f32 %v6333, %v6340
      %v6343 = vadd.f32 %v6334, %v6340
      %v6344 = vld [vmem:[%s87] sm:$0x1]
      %v6345 = vld [vmem:[%s89] sm:$0x1]
      %v6346 = vsel %vm2693, %v6342, 0.0
      %6347 = vadd.xlane.f32.xlu0 %v6346
      %v6348 = vpop.xlane.xlu0 %6347
      %v6349 = vsel %vm2693, %v6343, 0.0
      %6350 = vadd.xlane.f32.xlu0 %v6349
      %v6351 = vpop.xlane.xlu0 %6350
      %v6352 = vmul.f32 %v6348, %v5580
      %v6353 = vmul.f32 %v6351, %v5580
      %v6354 = vsub.f32 %v6342, %v6352
      %v6355 = vsub.f32 %v6343, %v6353
      %v6356 = vmul.f32 %v6354, %v6354
      %v6357 = vmul.f32 %v6355, %v6355
      %v6358 = vsel %vm2693, %v6356, 0.0
      %6359 = vadd.xlane.f32.xlu0 %v6358
      %v6360 = vpop.xlane.xlu0 %6359
      %v6361 = vsel %vm2693, %v6357, 0.0
      %6362 = vadd.xlane.f32.xlu0 %v6361
      %v6363 = vpop.xlane.xlu0 %6362
      %v6364 = vmul.f32 %v6360, %v5580
      %v6365 = vmul.f32 %v6363, %v5580
      %v6366 = vadd.f32 %v6364, 1e-05
      %v6367 = vadd.f32 %v6365, 1e-05
      %v6368 = vrsqrt.pop %v6366
      %v6369 = vrsqrt.pop %v6367
      %v6370 = vmul.f32 %v6354, %v6368
      %v6371 = vmul.f32 %v6355, %v6369
      %v6373 = vlaneseq
      %v6374 = vshrl.u32 %v6373, 7
      %v6375 = vsub.s32 0, %v6374
      %v6376 = vrot.slane %v6344, %v6375
      %v6378 = vmul.f32 %v6370, %v6376
      %v6379 = vmul.f32 %v6371, %v6376
      %v6381 = vlaneseq
      %v6382 = vshrl.u32 %v6381, 7
      %v6383 = vsub.s32 0, %v6382
      %v6384 = vrot.slane %v6345, %v6383
      %v6386 = vadd.f32 %v6378, %v6384
      %v6387 = vadd.f32 %v6379, %v6384
      %v6388 = vpack.c.bf16 %v6387, %v6386
      %v6389 = vld [vmem:[%s91] sm:$0xff]
      %v6390 = vld [vmem:[%s91 + $0x8] sm:$0xff]
      %v6391 = vld [vmem:[%s91 + $0x10] sm:$0xff]
      %v6392 = vld [vmem:[%s91 + $0x18] sm:$0xff]
      %v6393 = vld [vmem:[%s91 + $0x20] sm:$0xff]
      %v6394 = vld [vmem:[%s91 + $0x28] sm:$0xff]
      %v6395 = vld [vmem:[%s91 + $0x30] sm:$0xff]
      %v6396 = vld [vmem:[%s91 + $0x38] sm:$0xff]
      %v6397 = vld [vmem:[%s93] sm:$0x3]
      %v6399 = vlaneseq
      %v6400 = vshrl.u32 %v6399, 7
      %v6401 = vsub.s32 0, %v6400
      %v6402 = vrot.slane %v6397, %v6401
      %v6403 = vlaneseq
      %v6404 = vshrl.u32 %v6403, 7
      %v6405 = vsub.s32 1, %v6404
      %v6406 = vrot.slane %v6397, %v6405
      %v6417 = vunpack.c.l.b16 %v6389
      %v6418 = vunpack.c.h.b16 %v6389
      %v6419 = vunpack.c.l.b16 %v6390
      %v6420 = vunpack.c.h.b16 %v6390
      %v6421 = vunpack.c.l.b16 %v6391
      %v6422 = vunpack.c.h.b16 %v6391
      %v6423 = vunpack.c.l.b16 %v6392
      %v6424 = vunpack.c.h.b16 %v6392
      %v6425 = vunpack.c.l.b16 %v6393
      %v6426 = vunpack.c.h.b16 %v6393
      %v6427 = vunpack.c.l.b16 %v6394
      %v6428 = vunpack.c.h.b16 %v6394
      %v6429 = vunpack.c.l.b16 %v6395
      %v6430 = vunpack.c.h.b16 %v6395
      %v6431 = vunpack.c.l.b16 %v6396
      %v6432 = vunpack.c.h.b16 %v6396
      %v6433 = vpack.c.b16 %v6419, %v6417
      %v6434 = vpack.c.b16 %v6420, %v6418
      %v6435 = vpack.c.b16 %v6423, %v6421
      %v6436 = vpack.c.b16 %v6424, %v6422
      %v6437 = vpack.c.b16 %v6427, %v6425
      %v6438 = vpack.c.b16 %v6428, %v6426
      %v6439 = vpack.c.b16 %v6431, %v6429
      %v6440 = vpack.c.b16 %v6432, %v6430
      %v6450 = vsel %vm2693, %v6388, 0
      %6452 = vmatprep.subr.bf16.mxu0 0
      %6453 = vmatpush1.bf16.msra.mxu0 0
      %6454 = vmatprep.subr.bf16.mxu0 0
      %6455 = vmatpush1.bf16.msra.mxu0 0
      %6456 = vmatprep.subr.bf16.mxu0 0
      %6457 = vmatpush1.bf16.msra.mxu0 0
      %6458 = vmatprep.subr.bf16.mxu0 0
      %6459 = vmatpush1.bf16.msra.mxu0 0
      %6460 = vmatprep.subr.bf16.mxu0 %v6440
      %6461 = vmatpush1.bf16.msra.mxu0 %v6439
      %6462 = vmatprep.subr.bf16.mxu0 %v6438
      %6463 = vmatpush1.bf16.msra.mxu0 %v6437
      %6464 = vmatprep.subr.bf16.mxu0 %v6436
      %6465 = vmatpush1.bf16.msra.mxu0 %v6435
      %6466 = vmatprep.subr.bf16.mxu0 %v6434
      %6467 = vmatpush1.bf16.msra.mxu0 %v6433
      %6468 = vmatprep.subr.bf16.mxu0 0
      %6469 = vmatpush2.bf16.msra.mxu0 0
      %6470 = vmatprep.subr.bf16.mxu0 0
      %6471 = vmatpush2.bf16.msra.mxu0 0
      %6472 = vmatprep.subr.bf16.mxu0 0
      %6473 = vmatpush2.bf16.msra.mxu0 0
      %6474 = vmatprep.subr.bf16.mxu0 0
      %6475 = vmatpush2.bf16.msra.mxu0 0
      %6476 = vmatprep.subr.bf16.mxu0 0
      %6477 = vmatpush2.bf16.msra.mxu0 0
      %6478 = vmatprep.subr.bf16.mxu0 0
      %6479 = vmatpush2.bf16.msra.mxu0 0
      %6480 = vmatprep.subr.bf16.mxu0 0
      %6481 = vmatpush2.bf16.msra.mxu0 0
      %6482 = vmatprep.subr.bf16.mxu0 0
      %6483 = vmatpush2.bf16.msra.mxu0 0
      %6484 = vmatprep.mubr.bf16.mxu0 0
      %6485 = vmatmul.mubr.bf16.gmra.mxu0 %v6450
      %v6486 = vpop.f32.mrf.mxu0
      %v6487 = vadd.f32 %v6402, %v6486
      %v6488 = vpop.f32.mrf.mxu0
      %v6489 = vadd.f32 %v6406, %v6488
      %v6490 = vpop.f32.mrf.mxu0
      %v6491 = vadd.f32 %v6402, %v6490
      %v6492 = vpop.f32.mrf.mxu0
      %v6493 = vadd.f32 %v6406, %v6492
      %6494 = vdwg.mxu0
      %v6495 = vmul.f32 %v6487, 0.5
      %v6496 = vmul.f32 %v6489, 0.5
      %v6497 = vmul.f32 %v6491, 0.5
      %v6498 = vmul.f32 %v6493, 0.5
      %v6499 = vmul.f32 %v6487, 0.044715
      %v6500 = vmul.f32 %v6489, 0.044715
      %v6501 = vmul.f32 %v6491, 0.044715
      %v6502 = vmul.f32 %v6493, 0.044715
      %v6503 = vmul.f32 %v6499, %v6487
      %v6504 = vmul.f32 %v6500, %v6489
      %v6505 = vmul.f32 %v6501, %v6491
      %v6506 = vmul.f32 %v6502, %v6493
      %v6507 = vmul.f32 %v6503, %v6487
      %v6508 = vmul.f32 %v6504, %v6489
      %v6509 = vmul.f32 %v6505, %v6491
      %v6510 = vmul.f32 %v6506, %v6493
      %v6511 = vadd.f32 %v6487, %v6507
      %v6512 = vadd.f32 %v6489, %v6508
      %v6513 = vadd.f32 %v6491, %v6509
      %v6514 = vadd.f32 %v6493, %v6510
      %v6515 = vmul.f32 %v6511, 0.7978846
      %v6516 = vmul.f32 %v6512, 0.7978846
      %v6517 = vmul.f32 %v6513, 0.7978846
      %v6518 = vmul.f32 %v6514, 0.7978846
      %v6519 = vtanh.pop %v6515
      %v6520 = vtanh.pop %v6516
      %v6521 = vtanh.pop %v6517
      %v6522 = vtanh.pop %v6518
      %v6523 = vadd.f32 %v6519, 1.0
      %v6524 = vadd.f32 %v6520, 1.0
      %v6525 = vadd.f32 %v6521, 1.0
      %v6526 = vadd.f32 %v6522, 1.0
      %v6527 = vmul.f32 %v6495, %v6523
      %v6528 = vmul.f32 %v6496, %v6524
      %v6529 = vmul.f32 %v6497, %v6525
      %v6530 = vmul.f32 %v6498, %v6526
      %v6531 = vpack.c.bf16 %v6529, %v6527
      %v6532 = vpack.c.bf16 %v6530, %v6528
      %v6533 = vld [vmem:[%s95] sm:$0xf]
      %v6534 = vld [vmem:[%s95 + $0x4] sm:$0xf]
      %v6535 = vld [vmem:[%s95 + $0x8] sm:$0xf]
      %v6536 = vld [vmem:[%s95 + $0xc] sm:$0xf]
      %v6537 = vld [vmem:[%s95 + $0x10] sm:$0xf]
      %v6538 = vld [vmem:[%s95 + $0x14] sm:$0xf]
      %v6539 = vld [vmem:[%s95 + $0x18] sm:$0xf]
      %v6540 = vld [vmem:[%s95 + $0x1c] sm:$0xf]
      %v6541 = vld [vmem:[%s95 + $0x20] sm:$0xf]
      %v6542 = vld [vmem:[%s95 + $0x24] sm:$0xf]
      %v6543 = vld [vmem:[%s95 + $0x28] sm:$0xf]
      %v6544 = vld [vmem:[%s95 + $0x2c] sm:$0xf]
      %v6545 = vld [vmem:[%s95 + $0x30] sm:$0xf]
      %v6546 = vld [vmem:[%s95 + $0x34] sm:$0xf]
      %v6547 = vld [vmem:[%s95 + $0x38] sm:$0xf]
      %v6548 = vld [vmem:[%s95 + $0x3c] sm:$0xf]
      %v6549 = vld [vmem:[%s95 + $0x40] sm:$0xf]
      %v6550 = vld [vmem:[%s95 + $0x44] sm:$0xf]
      %v6551 = vld [vmem:[%s95 + $0x48] sm:$0xf]
      %v6552 = vld [vmem:[%s95 + $0x4c] sm:$0xf]
      %v6553 = vld [vmem:[%s95 + $0x50] sm:$0xf]
      %v6554 = vld [vmem:[%s95 + $0x54] sm:$0xf]
      %v6555 = vld [vmem:[%s95 + $0x58] sm:$0xf]
      %v6556 = vld [vmem:[%s95 + $0x5c] sm:$0xf]
      %v6557 = vld [vmem:[%s95 + $0x60] sm:$0xf]
      %v6558 = vld [vmem:[%s95 + $0x64] sm:$0xf]
      %v6559 = vld [vmem:[%s95 + $0x68] sm:$0xf]
      %v6560 = vld [vmem:[%s95 + $0x6c] sm:$0xf]
      %v6561 = vld [vmem:[%s95 + $0x70] sm:$0xf]
      %v6562 = vld [vmem:[%s95 + $0x74] sm:$0xf]
      %v6563 = vld [vmem:[%s95 + $0x78] sm:$0xf]
      %v6564 = vld [vmem:[%s95 + $0x7c] sm:$0xf]
      %v6565 = vld [vmem:[%s97] sm:$0x1]
      %v6567 = vlaneseq
      %v6568 = vshrl.u32 %v6567, 7
      %v6569 = vsub.s32 0, %v6568
      %v6570 = vrot.slane %v6565, %v6569
      %v6604 = vunpack.c.l.b16 %v6533
      %v6605 = vunpack.c.l.b16 %v6534
      %v6606 = vunpack.c.l.b16 %v6535
      %v6607 = vunpack.c.l.b16 %v6536
      %v6608 = vunpack.c.l.b16 %v6537
      %v6609 = vunpack.c.l.b16 %v6538
      %v6610 = vunpack.c.l.b16 %v6539
      %v6611 = vunpack.c.l.b16 %v6540
      %v6612 = vunpack.c.l.b16 %v6541
      %v6613 = vunpack.c.l.b16 %v6542
      %v6614 = vunpack.c.l.b16 %v6543
      %v6615 = vunpack.c.l.b16 %v6544
      %v6616 = vunpack.c.l.b16 %v6545
      %v6617 = vunpack.c.l.b16 %v6546
      %v6618 = vunpack.c.l.b16 %v6547
      %v6619 = vunpack.c.l.b16 %v6548
      %v6620 = vunpack.c.l.b16 %v6549
      %v6621 = vunpack.c.l.b16 %v6550
      %v6622 = vunpack.c.l.b16 %v6551
      %v6623 = vunpack.c.l.b16 %v6552
      %v6624 = vunpack.c.l.b16 %v6553
      %v6625 = vunpack.c.l.b16 %v6554
      %v6626 = vunpack.c.l.b16 %v6555
      %v6627 = vunpack.c.l.b16 %v6556
      %v6628 = vunpack.c.l.b16 %v6557
      %v6629 = vunpack.c.l.b16 %v6558
      %v6630 = vunpack.c.l.b16 %v6559
      %v6631 = vunpack.c.l.b16 %v6560
      %v6632 = vunpack.c.l.b16 %v6561
      %v6633 = vunpack.c.l.b16 %v6562
      %v6634 = vunpack.c.l.b16 %v6563
      %v6635 = vunpack.c.l.b16 %v6564
      %v6636 = vpack.c.b16 %v6605, %v6604
      %v6637 = vpack.c.b16 %v6607, %v6606
      %v6638 = vpack.c.b16 %v6609, %v6608
      %v6639 = vpack.c.b16 %v6611, %v6610
      %v6640 = vpack.c.b16 %v6613, %v6612
      %v6641 = vpack.c.b16 %v6615, %v6614
      %v6642 = vpack.c.b16 %v6617, %v6616
      %v6643 = vpack.c.b16 %v6619, %v6618
      %v6644 = vpack.c.b16 %v6621, %v6620
      %v6645 = vpack.c.b16 %v6623, %v6622
      %v6646 = vpack.c.b16 %v6625, %v6624
      %v6647 = vpack.c.b16 %v6627, %v6626
      %v6648 = vpack.c.b16 %v6629, %v6628
      %v6649 = vpack.c.b16 %v6631, %v6630
      %v6650 = vpack.c.b16 %v6633, %v6632
      %v6651 = vpack.c.b16 %v6635, %v6634
      %6668 = vmatprep.subr.bf16.mxu0 0
      %6669 = vmatpush1.bf16.msra.mxu0 %v6643
      %6670 = vmatprep.subr.bf16.mxu0 0
      %6671 = vmatpush1.bf16.msra.mxu0 %v6642
      %6672 = vmatprep.subr.bf16.mxu0 0
      %6673 = vmatpush1.bf16.msra.mxu0 %v6641
      %6674 = vmatprep.subr.bf16.mxu0 0
      %6675 = vmatpush1.bf16.msra.mxu0 %v6640
      %6676 = vmatprep.subr.bf16.mxu0 0
      %6677 = vmatpush1.bf16.msra.mxu0 %v6639
      %6678 = vmatprep.subr.bf16.mxu0 0
      %6679 = vmatpush1.bf16.msra.mxu0 %v6638
      %6680 = vmatprep.subr.bf16.mxu0 0
      %6681 = vmatpush1.bf16.msra.mxu0 %v6637
      %6682 = vmatprep.subr.bf16.mxu0 0
      %6683 = vmatpush1.bf16.msra.mxu0 %v6636
      %6684 = vmatprep.subr.bf16.mxu0 0
      %6685 = vmatpush2.bf16.msra.mxu0 %v6651
      %6686 = vmatprep.subr.bf16.mxu0 0
      %6687 = vmatpush2.bf16.msra.mxu0 %v6650
      %6688 = vmatprep.subr.bf16.mxu0 0
      %6689 = vmatpush2.bf16.msra.mxu0 %v6649
      %6690 = vmatprep.subr.bf16.mxu0 0
      %6691 = vmatpush2.bf16.msra.mxu0 %v6648
      %6692 = vmatprep.subr.bf16.mxu0 0
      %6693 = vmatpush2.bf16.msra.mxu0 %v6647
      %6694 = vmatprep.subr.bf16.mxu0 0
      %6695 = vmatpush2.bf16.msra.mxu0 %v6646
      %6696 = vmatprep.subr.bf16.mxu0 0
      %6697 = vmatpush2.bf16.msra.mxu0 %v6645
      %6698 = vmatprep.subr.bf16.mxu0 0
      %6699 = vmatpush2.bf16.msra.mxu0 %v6644
      %6700 = vmatprep.mubr.bf16.mxu0 %v6532
      %6701 = vmatmul.mubr.bf16.gmra.mxu0 %v6531
      %v6702 = vpop.f32.mrf.mxu0
      %v6703 = vadd.f32 %v6570, %v6702
      %v6704 = vpop.f32.mrf.mxu0
      %v6705 = vpop.f32.mrf.mxu0
      %v6706 = vadd.f32 %v6570, %v6705
      %v6707 = vpop.f32.mrf.mxu0
      %6708 = vdwg.mxu0
      %v6709 = vadd.f32 %v6342, %v6703
      %v6710 = vadd.f32 %v6343, %v6706
      %v6711 = vld [vmem:[%s99] sm:$0x1]
      %v6712 = vld [vmem:[%s101] sm:$0x1]
      %v6713 = vsel %vm2693, %v6709, 0.0
      %6714 = vadd.xlane.f32.xlu0 %v6713
      %v6715 = vpop.xlane.xlu0 %6714
      %v6716 = vsel %vm2693, %v6710, 0.0
      %6717 = vadd.xlane.f32.xlu0 %v6716
      %v6718 = vpop.xlane.xlu0 %6717
      %v6719 = vmul.f32 %v6715, %v5580
      %v6720 = vmul.f32 %v6718, %v5580
      %v6721 = vsub.f32 %v6709, %v6719
      %v6722 = vsub.f32 %v6710, %v6720
      %v6723 = vmul.f32 %v6721, %v6721
      %v6724 = vmul.f32 %v6722, %v6722
      %v6725 = vsel %vm2693, %v6723, 0.0
      %6726 = vadd.xlane.f32.xlu0 %v6725
      %v6727 = vpop.xlane.xlu0 %6726
      %v6728 = vsel %vm2693, %v6724, 0.0
      %6729 = vadd.xlane.f32.xlu0 %v6728
      %v6730 = vpop.xlane.xlu0 %6729
      %v6731 = vmul.f32 %v6727, %v5580
      %v6732 = vmul.f32 %v6730, %v5580
      %v6733 = vadd.f32 %v6731, 1e-05
      %v6734 = vadd.f32 %v6732, 1e-05
      %v6735 = vrsqrt.pop %v6733
      %v6736 = vrsqrt.pop %v6734
      %v6737 = vmul.f32 %v6721, %v6735
      %v6738 = vmul.f32 %v6722, %v6736
      %v6740 = vlaneseq
      %v6741 = vshrl.u32 %v6740, 7
      %v6742 = vsub.s32 0, %v6741
      %v6743 = vrot.slane %v6711, %v6742
      %v6745 = vmul.f32 %v6737, %v6743
      %v6746 = vmul.f32 %v6738, %v6743
      %v6748 = vlaneseq
      %v6749 = vshrl.u32 %v6748, 7
      %v6750 = vsub.s32 0, %v6749
      %v6751 = vrot.slane %v6712, %v6750
      %v6753 = vadd.f32 %v6745, %v6751
      %v6754 = vadd.f32 %v6746, %v6751
      %v6755 = vpack.c.bf16 %v6754, %v6753
      %v6756 = vld [vmem:[%s103] sm:$0xff]
      %v6757 = vld [vmem:[%s103 + $0x8] sm:$0xff]
      %v6758 = vld [vmem:[%s103 + $0x10] sm:$0xff]
      %v6759 = vld [vmem:[%s103 + $0x18] sm:$0xff]
      %v6760 = vld [vmem:[%s103 + $0x20] sm:$0xff]
      %v6761 = vld [vmem:[%s103 + $0x28] sm:$0xff]
      %v6762 = vld [vmem:[%s103 + $0x30] sm:$0xff]
      %v6763 = vld [vmem:[%s103 + $0x38] sm:$0xff]
      %v6764 = vld [vmem:[%s105] sm:$0x3]
      %v6766 = vlaneseq
      %v6767 = vshrl.u32 %v6766, 7
      %v6768 = vsub.s32 0, %v6767
      %v6769 = vrot.slane %v6764, %v6768
      %v6770 = vlaneseq
      %v6771 = vshrl.u32 %v6770, 7
      %v6772 = vsub.s32 1, %v6771
      %v6773 = vrot.slane %v6764, %v6772
      %v6784 = vunpack.c.l.b16 %v6756
      %v6785 = vunpack.c.h.b16 %v6756
      %v6786 = vunpack.c.l.b16 %v6757
      %v6787 = vunpack.c.h.b16 %v6757
      %v6788 = vunpack.c.l.b16 %v6758
      %v6789 = vunpack.c.h.b16 %v6758
      %v6790 = vunpack.c.l.b16 %v6759
      %v6791 = vunpack.c.h.b16 %v6759
      %v6792 = vunpack.c.l.b16 %v6760
      %v6793 = vunpack.c.h.b16 %v6760
      %v6794 = vunpack.c.l.b16 %v6761
      %v6795 = vunpack.c.h.b16 %v6761
      %v6796 = vunpack.c.l.b16 %v6762
      %v6797 = vunpack.c.h.b16 %v6762
      %v6798 = vunpack.c.l.b16 %v6763
      %v6799 = vunpack.c.h.b16 %v6763
      %v6800 = vpack.c.b16 %v6786, %v6784
      %v6801 = vpack.c.b16 %v6787, %v6785
      %v6802 = vpack.c.b16 %v6790, %v6788
      %v6803 = vpack.c.b16 %v6791, %v6789
      %v6804 = vpack.c.b16 %v6794, %v6792
      %v6805 = vpack.c.b16 %v6795, %v6793
      %v6806 = vpack.c.b16 %v6798, %v6796
      %v6807 = vpack.c.b16 %v6799, %v6797
      %v6817 = vsel %vm2693, %v6755, 0
      %6819 = vmatprep.subr.bf16.mxu0 0
      %6820 = vmatpush1.bf16.msra.mxu0 0
      %6821 = vmatprep.subr.bf16.mxu0 0
      %6822 = vmatpush1.bf16.msra.mxu0 0
      %6823 = vmatprep.subr.bf16.mxu0 0
      %6824 = vmatpush1.bf16.msra.mxu0 0
      %6825 = vmatprep.subr.bf16.mxu0 0
      %6826 = vmatpush1.bf16.msra.mxu0 0
      %6827 = vmatprep.subr.bf16.mxu0 %v6807
      %6828 = vmatpush1.bf16.msra.mxu0 %v6806
      %6829 = vmatprep.subr.bf16.mxu0 %v6805
      %6830 = vmatpush1.bf16.msra.mxu0 %v6804
      %6831 = vmatprep.subr.bf16.mxu0 %v6803
      %6832 = vmatpush1.bf16.msra.mxu0 %v6802
      %6833 = vmatprep.subr.bf16.mxu0 %v6801
      %6834 = vmatpush1.bf16.msra.mxu0 %v6800
      %6835 = vmatprep.subr.bf16.mxu0 0
      %6836 = vmatpush2.bf16.msra.mxu0 0
      %6837 = vmatprep.subr.bf16.mxu0 0
      %6838 = vmatpush2.bf16.msra.mxu0 0
      %6839 = vmatprep.subr.bf16.mxu0 0
      %6840 = vmatpush2.bf16.msra.mxu0 0
      %6841 = vmatprep.subr.bf16.mxu0 0
      %6842 = vmatpush2.bf16.msra.mxu0 0
      %6843 = vmatprep.subr.bf16.mxu0 0
      %6844 = vmatpush2.bf16.msra.mxu0 0
      %6845 = vmatprep.subr.bf16.mxu0 0
      %6846 = vmatpush2.bf16.msra.mxu0 0
      %6847 = vmatprep.subr.bf16.mxu0 0
      %6848 = vmatpush2.bf16.msra.mxu0 0
      %6849 = vmatprep.subr.bf16.mxu0 0
      %6850 = vmatpush2.bf16.msra.mxu0 0
      %6851 = vmatprep.mubr.bf16.mxu0 0
      %6852 = vmatmul.mubr.bf16.gmra.mxu0 %v6817
      %v6853 = vpop.f32.mrf.mxu0
      %v6854 = vadd.f32 %v6769, %v6853
      %v6855 = vpop.f32.mrf.mxu0
      %v6856 = vadd.f32 %v6773, %v6855
      %v6857 = vpop.f32.mrf.mxu0
      %v6858 = vadd.f32 %v6769, %v6857
      %v6859 = vpop.f32.mrf.mxu0
      %v6860 = vadd.f32 %v6773, %v6859
      %6861 = vdwg.mxu0
      %v6862 = vpack.c.bf16 %v6858, %v6854
      %v6863 = vpack.c.bf16 %v6860, %v6856
      %v6864 = vld [vmem:[%s73] sm:$0xf]
      %v6865 = vld [vmem:[%s73 + $0x4] sm:$0xf]
      %v6866 = vunpack.c.l.bf16 %v6864
      %v6867 = vunpack.c.l.bf16 %v6865
      %6869 = vrot.lane.b32.xlu0 %v6862, 64
      %v6870 = vpop.permute.xlu0 %6869
      %v6872 = vsel %vm2603, %v6862, 0
      %v6875 = vsel %vm2603, %v6870, 0
      %6877 = vmatprep.subr.bf16.mxu0 0
      %6878 = vmatpush1.bf16.xpose.msra.mxu0 0
      %6879 = vmatprep.subr.bf16.mxu0 0
      %6880 = vmatpush1.bf16.xpose.msra.mxu0 0
      %6881 = vmatprep.subr.bf16.mxu0 0
      %6882 = vmatpush1.bf16.xpose.msra.mxu0 0
      %6883 = vmatprep.subr.bf16.mxu0 0
      %6884 = vmatpush1.bf16.xpose.msra.mxu0 0
      %6885 = vmatprep.subr.bf16.mxu0 0
      %6886 = vmatpush1.bf16.xpose.msra.mxu0 0
      %6887 = vmatprep.subr.bf16.mxu0 0
      %6888 = vmatpush1.bf16.xpose.msra.mxu0 0
      %6889 = vmatprep.subr.bf16.mxu0 0
      %6890 = vmatpush1.bf16.xpose.msra.mxu0 0
      %6891 = vmatprep.subr.bf16.mxu0 0
      %6892 = vmatpush1.bf16.xpose.msra.mxu0 %v6875
      %6893 = vmatprep.subr.bf16.mxu0 0
      %6894 = vmatpush2.bf16.xpose.msra.mxu0 0
      %6895 = vmatprep.subr.bf16.mxu0 0
      %6896 = vmatpush2.bf16.xpose.msra.mxu0 0
      %6897 = vmatprep.subr.bf16.mxu0 0
      %6898 = vmatpush2.bf16.xpose.msra.mxu0 0
      %6899 = vmatprep.subr.bf16.mxu0 0
      %6900 = vmatpush2.bf16.xpose.msra.mxu0 0
      %6901 = vmatprep.subr.bf16.mxu0 0
      %6902 = vmatpush2.bf16.xpose.msra.mxu0 0
      %6903 = vmatprep.subr.bf16.mxu0 0
      %6904 = vmatpush2.bf16.xpose.msra.mxu0 0
      %6905 = vmatprep.subr.bf16.mxu0 0
      %6906 = vmatpush2.bf16.xpose.msra.mxu0 0
      %6907 = vmatprep.subr.bf16.mxu0 0
      %6908 = vmatpush2.bf16.xpose.msra.mxu0 0
      %6909 = vmatprep.mubr.bf16.mxu0 0
      %6910 = vmatmul.mubr.bf16.gmra.mxu0 %v6872
      %v6911 = vpop.f32.mrf.mxu0
      %v6912 = vadd.f32 %v6866, %v6911
      %v6913 = vpop.f32.mrf.mxu0
      %v6914 = vpop.f32.mrf.mxu0
      %v6915 = vadd.f32 %v6867, %v6914
      %v6916 = vpop.f32.mrf.mxu0
      %6917 = vdwg.mxu0
      %v6918 = vsel %vm2603, %v6912, -inf
      %6919 = vmax.xlane.f32.xlu0 %v6918
      %v6920 = vpop.xlane.xlu0 %6919
      %v6921 = vsel %vm2603, %v6915, -inf
      %6922 = vmax.xlane.f32.xlu0 %v6921
      %v6923 = vpop.xlane.xlu0 %6922
      %v6924 = vsub.f32 %v6912, %v6920
      %v6925 = vsub.f32 %v6915, %v6923
      %v6926 = vmul.f32 %v6924, 1.442695
      %v6927 = vpow.pop %v6926
      %v6928 = vmul.f32 %v6925, 1.442695
      %v6929 = vpow.pop %v6928
      %v6930 = vsel %vm2603, %v6927, 0.0
      %6931 = vadd.xlane.f32.xlu0 %v6930
      %v6932 = vpop.xlane.xlu0 %6931
      %v6933 = vsel %vm2603, %v6929, 0.0
      %6934 = vadd.xlane.f32.xlu0 %v6933
      %v6935 = vpop.xlane.xlu0 %6934
      %v6936 = vrcp.pop %v6932
      %v6937 = vrcp.pop %v6935
      %v6938 = vmul.f32 %v6927, %v6936
      %v6939 = vmul.f32 %v6929, %v6937
      %v6940 = vpack.c.bf16 %v6939, %v6938
      %v6942 = vsel %vm2603, %v6940, 0
      %6944 = vmatprep.subr.bf16.mxu0 0
      %6945 = vmatpush1.bf16.msra.mxu0 0
      %6946 = vmatprep.subr.bf16.mxu0 0
      %6947 = vmatpush1.bf16.msra.mxu0 0
      %6948 = vmatprep.subr.bf16.mxu0 0
      %6949 = vmatpush1.bf16.msra.mxu0 0
      %6950 = vmatprep.subr.bf16.mxu0 0
      %6951 = vmatpush1.bf16.msra.mxu0 0
      %6952 = vmatprep.subr.bf16.mxu0 0
      %6953 = vmatpush1.bf16.msra.mxu0 0
      %6954 = vmatprep.subr.bf16.mxu0 0
      %6955 = vmatpush1.bf16.msra.mxu0 0
      %6956 = vmatprep.subr.bf16.mxu0 0
      %6957 = vmatpush1.bf16.msra.mxu0 0
      %6958 = vmatprep.subr.bf16.mxu0 0
      %6959 = vmatpush1.bf16.msra.mxu0 %v6863
      %6960 = vmatprep.subr.bf16.mxu0 0
      %6961 = vmatpush2.bf16.msra.mxu0 0
      %6962 = vmatprep.subr.bf16.mxu0 0
      %6963 = vmatpush2.bf16.msra.mxu0 0
      %6964 = vmatprep.subr.bf16.mxu0 0
      %6965 = vmatpush2.bf16.msra.mxu0 0
      %6966 = vmatprep.subr.bf16.mxu0 0
      %6967 = vmatpush2.bf16.msra.mxu0 0
      %6968 = vmatprep.subr.bf16.mxu0 0
      %6969 = vmatpush2.bf16.msra.mxu0 0
      %6970 = vmatprep.subr.bf16.mxu0 0
      %6971 = vmatpush2.bf16.msra.mxu0 0
      %6972 = vmatprep.subr.bf16.mxu0 0
      %6973 = vmatpush2.bf16.msra.mxu0 0
      %6974 = vmatprep.subr.bf16.mxu0 0
      %6975 = vmatpush2.bf16.msra.mxu0 0
      %6976 = vmatprep.mubr.bf16.mxu0 0
      %6977 = vmatmul.mubr.bf16.gmra.mxu0 %v6942
      %v6978 = vpop.f32.mrf.mxu0
      %v6979 = vadd.f32 0.0, %v6978
      %v6980 = vpop.f32.mrf.mxu0
      %v6981 = vpop.f32.mrf.mxu0
      %v6982 = vadd.f32 0.0, %v6981
      %v6983 = vpop.f32.mrf.mxu0
      %6984 = vdwg.mxu0
      %s6985 = scalar_lea.vmem %s73, 8
      %v6986 = vld [vmem:[%s6985] sm:$0xf]
      %v6987 = vld [vmem:[%s6985 + $0x4] sm:$0xf]
      %v6988 = vunpack.c.l.bf16 %v6986
      %v6989 = vunpack.c.l.bf16 %v6987
      %6990 = vrot.lane.b32.xlu0 %v6862, 112
      %v6991 = vpop.permute.xlu0 %6990
      %6992 = vrot.lane.b32.xlu0 %v6862, 48
      %v6993 = vpop.permute.xlu0 %6992
      %v6995 = vsel %vm2603, %v6991, 0
      %v6998 = vsel %vm2603, %v6993, 0
      %7000 = vmatprep.subr.bf16.mxu0 0
      %7001 = vmatpush1.bf16.xpose.msra.mxu0 0
      %7002 = vmatprep.subr.bf16.mxu0 0
      %7003 = vmatpush1.bf16.xpose.msra.mxu0 0
      %7004 = vmatprep.subr.bf16.mxu0 0
      %7005 = vmatpush1.bf16.xpose.msra.mxu0 0
      %7006 = vmatprep.subr.bf16.mxu0 0
      %7007 = vmatpush1.bf16.xpose.msra.mxu0 0
      %7008 = vmatprep.subr.bf16.mxu0 0
      %7009 = vmatpush1.bf16.xpose.msra.mxu0 0
      %7010 = vmatprep.subr.bf16.mxu0 0
      %7011 = vmatpush1.bf16.xpose.msra.mxu0 0
      %7012 = vmatprep.subr.bf16.mxu0 0
      %7013 = vmatpush1.bf16.xpose.msra.mxu0 0
      %7014 = vmatprep.subr.bf16.mxu0 0
      %7015 = vmatpush1.bf16.xpose.msra.mxu0 %v6998
      %7016 = vmatprep.subr.bf16.mxu0 0
      %7017 = vmatpush2.bf16.xpose.msra.mxu0 0
      %7018 = vmatprep.subr.bf16.mxu0 0
      %7019 = vmatpush2.bf16.xpose.msra.mxu0 0
      %7020 = vmatprep.subr.bf16.mxu0 0
      %7021 = vmatpush2.bf16.xpose.msra.mxu0 0
      %7022 = vmatprep.subr.bf16.mxu0 0
      %7023 = vmatpush2.bf16.xpose.msra.mxu0 0
      %7024 = vmatprep.subr.bf16.mxu0 0
      %7025 = vmatpush2.bf16.xpose.msra.mxu0 0
      %7026 = vmatprep.subr.bf16.mxu0 0
      %7027 = vmatpush2.bf16.xpose.msra.mxu0 0
      %7028 = vmatprep.subr.bf16.mxu0 0
      %7029 = vmatpush2.bf16.xpose.msra.mxu0 0
      %7030 = vmatprep.subr.bf16.mxu0 0
      %7031 = vmatpush2.bf16.xpose.msra.mxu0 0
      %7032 = vmatprep.mubr.bf16.mxu0 0
      %7033 = vmatmul.mubr.bf16.gmra.mxu0 %v6995
      %v7034 = vpop.f32.mrf.mxu0
      %v7035 = vadd.f32 %v6988, %v7034
      %v7036 = vpop.f32.mrf.mxu0
      %v7037 = vpop.f32.mrf.mxu0
      %v7038 = vadd.f32 %v6989, %v7037
      %v7039 = vpop.f32.mrf.mxu0
      %7040 = vdwg.mxu0
      %v7041 = vsel %vm2603, %v7035, -inf
      %7042 = vmax.xlane.f32.xlu0 %v7041
      %v7043 = vpop.xlane.xlu0 %7042
      %v7044 = vsel %vm2603, %v7038, -inf
      %7045 = vmax.xlane.f32.xlu0 %v7044
      %v7046 = vpop.xlane.xlu0 %7045
      %v7047 = vsub.f32 %v7035, %v7043
      %v7048 = vsub.f32 %v7038, %v7046
      %v7049 = vmul.f32 %v7047, 1.442695
      %v7050 = vpow.pop %v7049
      %v7051 = vmul.f32 %v7048, 1.442695
      %v7052 = vpow.pop %v7051
      %v7053 = vsel %vm2603, %v7050, 0.0
      %7054 = vadd.xlane.f32.xlu0 %v7053
      %v7055 = vpop.xlane.xlu0 %7054
      %v7056 = vsel %vm2603, %v7052, 0.0
      %7057 = vadd.xlane.f32.xlu0 %v7056
      %v7058 = vpop.xlane.xlu0 %7057
      %v7059 = vrcp.pop %v7055
      %v7060 = vrcp.pop %v7058
      %v7061 = vmul.f32 %v7050, %v7059
      %v7062 = vmul.f32 %v7052, %v7060
      %v7063 = vpack.c.bf16 %v7062, %v7061
      %7065 = vrot.lane.b32.xlu0 %v6863, 112
      %v7066 = vpop.permute.xlu0 %7065
      %v7069 = vsel %vm2603, %v7063, 0
      %7071 = vmatprep.subr.bf16.mxu0 0
      %7072 = vmatpush1.bf16.msra.mxu0 0
      %7073 = vmatprep.subr.bf16.mxu0 0
      %7074 = vmatpush1.bf16.msra.mxu0 0
      %7075 = vmatprep.subr.bf16.mxu0 0
      %7076 = vmatpush1.bf16.msra.mxu0 0
      %7077 = vmatprep.subr.bf16.mxu0 0
      %7078 = vmatpush1.bf16.msra.mxu0 0
      %7079 = vmatprep.subr.bf16.mxu0 0
      %7080 = vmatpush1.bf16.msra.mxu0 0
      %7081 = vmatprep.subr.bf16.mxu0 0
      %7082 = vmatpush1.bf16.msra.mxu0 0
      %7083 = vmatprep.subr.bf16.mxu0 0
      %7084 = vmatpush1.bf16.msra.mxu0 0
      %7085 = vmatprep.subr.bf16.mxu0 0
      %7086 = vmatpush1.bf16.msra.mxu0 %v7066
      %7087 = vmatprep.subr.bf16.mxu0 0
      %7088 = vmatpush2.bf16.msra.mxu0 0
      %7089 = vmatprep.subr.bf16.mxu0 0
      %7090 = vmatpush2.bf16.msra.mxu0 0
      %7091 = vmatprep.subr.bf16.mxu0 0
      %7092 = vmatpush2.bf16.msra.mxu0 0
      %7093 = vmatprep.subr.bf16.mxu0 0
      %7094 = vmatpush2.bf16.msra.mxu0 0
      %7095 = vmatprep.subr.bf16.mxu0 0
      %7096 = vmatpush2.bf16.msra.mxu0 0
      %7097 = vmatprep.subr.bf16.mxu0 0
      %7098 = vmatpush2.bf16.msra.mxu0 0
      %7099 = vmatprep.subr.bf16.mxu0 0
      %7100 = vmatpush2.bf16.msra.mxu0 0
      %7101 = vmatprep.subr.bf16.mxu0 0
      %7102 = vmatpush2.bf16.msra.mxu0 0
      %7103 = vmatprep.mubr.bf16.mxu0 0
      %7104 = vmatmul.mubr.bf16.gmra.mxu0 %v7069
      %v7105 = vpop.f32.mrf.mxu0
      %v7106 = vadd.f32 0.0, %v7105
      %v7107 = vpop.f32.mrf.mxu0
      %v7108 = vpop.f32.mrf.mxu0
      %v7109 = vadd.f32 0.0, %v7108
      %v7110 = vpop.f32.mrf.mxu0
      %7111 = vdwg.mxu0
      %s7112 = scalar_lea.vmem %s73, 16
      %v7113 = vld [vmem:[%s7112] sm:$0xf]
      %v7114 = vld [vmem:[%s7112 + $0x4] sm:$0xf]
      %v7115 = vunpack.c.l.bf16 %v7113
      %v7116 = vunpack.c.l.bf16 %v7114
      %7117 = vrot.lane.b32.xlu0 %v6862, 96
      %v7118 = vpop.permute.xlu0 %7117
      %7119 = vrot.lane.b32.xlu0 %v6862, 32
      %v7120 = vpop.permute.xlu0 %7119
      %v7122 = vsel %vm2603, %v7118, 0
      %v7125 = vsel %vm2603, %v7120, 0
      %7127 = vmatprep.subr.bf16.mxu0 0
      %7128 = vmatpush1.bf16.xpose.msra.mxu0 0
      %7129 = vmatprep.subr.bf16.mxu0 0
      %7130 = vmatpush1.bf16.xpose.msra.mxu0 0
      %7131 = vmatprep.subr.bf16.mxu0 0
      %7132 = vmatpush1.bf16.xpose.msra.mxu0 0
      %7133 = vmatprep.subr.bf16.mxu0 0
      %7134 = vmatpush1.bf16.xpose.msra.mxu0 0
      %7135 = vmatprep.subr.bf16.mxu0 0
      %7136 = vmatpush1.bf16.xpose.msra.mxu0 0
      %7137 = vmatprep.subr.bf16.mxu0 0
      %7138 = vmatpush1.bf16.xpose.msra.mxu0 0
      %7139 = vmatprep.subr.bf16.mxu0 0
      %7140 = vmatpush1.bf16.xpose.msra.mxu0 0
      %7141 = vmatprep.subr.bf16.mxu0 0
      %7142 = vmatpush1.bf16.xpose.msra.mxu0 %v7125
      %7143 = vmatprep.subr.bf16.mxu0 0
      %7144 = vmatpush2.bf16.xpose.msra.mxu0 0
      %7145 = vmatprep.subr.bf16.mxu0 0
      %7146 = vmatpush2.bf16.xpose.msra.mxu0 0
      %7147 = vmatprep.subr.bf16.mxu0 0
      %7148 = vmatpush2.bf16.xpose.msra.mxu0 0
      %7149 = vmatprep.subr.bf16.mxu0 0
      %7150 = vmatpush2.bf16.xpose.msra.mxu0 0
      %7151 = vmatprep.subr.bf16.mxu0 0
      %7152 = vmatpush2.bf16.xpose.msra.mxu0 0
      %7153 = vmatprep.subr.bf16.mxu0 0
      %7154 = vmatpush2.bf16.xpose.msra.mxu0 0
      %7155 = vmatprep.subr.bf16.mxu0 0
      %7156 = vmatpush2.bf16.xpose.msra.mxu0 0
      %7157 = vmatprep.subr.bf16.mxu0 0
      %7158 = vmatpush2.bf16.xpose.msra.mxu0 0
      %7159 = vmatprep.mubr.bf16.mxu0 0
      %7160 = vmatmul.mubr.bf16.gmra.mxu0 %v7122
      %v7161 = vpop.f32.mrf.mxu0
      %v7162 = vadd.f32 %v7115, %v7161
      %v7163 = vpop.f32.mrf.mxu0
      %v7164 = vpop.f32.mrf.mxu0
      %v7165 = vadd.f32 %v7116, %v7164
      %v7166 = vpop.f32.mrf.mxu0
      %7167 = vdwg.mxu0
      %v7168 = vsel %vm2603, %v7162, -inf
      %7169 = vmax.xlane.f32.xlu0 %v7168
      %v7170 = vpop.xlane.xlu0 %7169
      %v7171 = vsel %vm2603, %v7165, -inf
      %7172 = vmax.xlane.f32.xlu0 %v7171
      %v7173 = vpop.xlane.xlu0 %7172
      %v7174 = vsub.f32 %v7162, %v7170
      %v7175 = vsub.f32 %v7165, %v7173
      %v7176 = vmul.f32 %v7174, 1.442695
      %v7177 = vpow.pop %v7176
      %v7178 = vmul.f32 %v7175, 1.442695
      %v7179 = vpow.pop %v7178
      %v7180 = vsel %vm2603, %v7177, 0.0
      %7181 = vadd.xlane.f32.xlu0 %v7180
      %v7182 = vpop.xlane.xlu0 %7181
      %v7183 = vsel %vm2603, %v7179, 0.0
      %7184 = vadd.xlane.f32.xlu0 %v7183
      %v7185 = vpop.xlane.xlu0 %7184
      %v7186 = vrcp.pop %v7182
      %v7187 = vrcp.pop %v7185
      %v7188 = vmul.f32 %v7177, %v7186
      %v7189 = vmul.f32 %v7179, %v7187
      %v7190 = vpack.c.bf16 %v7189, %v7188
      %7191 = vrot.lane.b32.xlu0 %v6863, 96
      %v7192 = vpop.permute.xlu0 %7191
      %v7195 = vsel %vm2603, %v7190, 0
      %7197 = vmatprep.subr.bf16.mxu0 0
      %7198 = vmatpush1.bf16.msra.mxu0 0
      %7199 = vmatprep.subr.bf16.mxu0 0
      %7200 = vmatpush1.bf16.msra.mxu0 0
      %7201 = vmatprep.subr.bf16.mxu0 0
      %7202 = vmatpush1.bf16.msra.mxu0 0
      %7203 = vmatprep.subr.bf16.mxu0 0
      %7204 = vmatpush1.bf16.msra.mxu0 0
      %7205 = vmatprep.subr.bf16.mxu0 0
      %7206 = vmatpush1.bf16.msra.mxu0 0
      %7207 = vmatprep.subr.bf16.mxu0 0
      %7208 = vmatpush1.bf16.msra.mxu0 0
      %7209 = vmatprep.subr.bf16.mxu0 0
      %7210 = vmatpush1.bf16.msra.mxu0 0
      %7211 = vmatprep.subr.bf16.mxu0 0
      %7212 = vmatpush1.bf16.msra.mxu0 %v7192
      %7213 = vmatprep.subr.bf16.mxu0 0
      %7214 = vmatpush2.bf16.msra.mxu0 0
      %7215 = vmatprep.subr.bf16.mxu0 0
      %7216 = vmatpush2.bf16.msra.mxu0 0
      %7217 = vmatprep.subr.bf16.mxu0 0
      %7218 = vmatpush2.bf16.msra.mxu0 0
      %7219 = vmatprep.subr.bf16.mxu0 0
      %7220 = vmatpush2.bf16.msra.mxu0 0
      %7221 = vmatprep.subr.bf16.mxu0 0
      %7222 = vmatpush2.bf16.msra.mxu0 0
      %7223 = vmatprep.subr.bf16.mxu0 0
      %7224 = vmatpush2.bf16.msra.mxu0 0
      %7225 = vmatprep.subr.bf16.mxu0 0
      %7226 = vmatpush2.bf16.msra.mxu0 0
      %7227 = vmatprep.subr.bf16.mxu0 0
      %7228 = vmatpush2.bf16.msra.mxu0 0
      %7229 = vmatprep.mubr.bf16.mxu0 0
      %7230 = vmatmul.mubr.bf16.gmra.mxu0 %v7195
      %v7231 = vpop.f32.mrf.mxu0
      %v7232 = vadd.f32 0.0, %v7231
      %v7233 = vpop.f32.mrf.mxu0
      %v7234 = vpop.f32.mrf.mxu0
      %v7235 = vadd.f32 0.0, %v7234
      %v7236 = vpop.f32.mrf.mxu0
      %7237 = vdwg.mxu0
      %s7238 = scalar_lea.vmem %s73, 24
      %v7239 = vld [vmem:[%s7238] sm:$0xf]
      %v7240 = vld [vmem:[%s7238 + $0x4] sm:$0xf]
      %v7241 = vunpack.c.l.bf16 %v7239
      %v7242 = vunpack.c.l.bf16 %v7240
      %7243 = vrot.lane.b32.xlu0 %v6862, 80
      %v7244 = vpop.permute.xlu0 %7243
      %7245 = vrot.lane.b32.xlu0 %v6862, 16
      %v7246 = vpop.permute.xlu0 %7245
      %v7248 = vsel %vm2603, %v7244, 0
      %v7251 = vsel %vm2603, %v7246, 0
      %7253 = vmatprep.subr.bf16.mxu0 0
      %7254 = vmatpush1.bf16.xpose.msra.mxu0 0
      %7255 = vmatprep.subr.bf16.mxu0 0
      %7256 = vmatpush1.bf16.xpose.msra.mxu0 0
      %7257 = vmatprep.subr.bf16.mxu0 0
      %7258 = vmatpush1.bf16.xpose.msra.mxu0 0
      %7259 = vmatprep.subr.bf16.mxu0 0
      %7260 = vmatpush1.bf16.xpose.msra.mxu0 0
      %7261 = vmatprep.subr.bf16.mxu0 0
      %7262 = vmatpush1.bf16.xpose.msra.mxu0 0
      %7263 = vmatprep.subr.bf16.mxu0 0
      %7264 = vmatpush1.bf16.xpose.msra.mxu0 0
      %7265 = vmatprep.subr.bf16.mxu0 0
      %7266 = vmatpush1.bf16.xpose.msra.mxu0 0
      %7267 = vmatprep.subr.bf16.mxu0 0
      %7268 = vmatpush1.bf16.xpose.msra.mxu0 %v7251
      %7269 = vmatprep.subr.bf16.mxu0 0
      %7270 = vmatpush2.bf16.xpose.msra.mxu0 0
      %7271 = vmatprep.subr.bf16.mxu0 0
      %7272 = vmatpush2.bf16.xpose.msra.mxu0 0
      %7273 = vmatprep.subr.bf16.mxu0 0
      %7274 = vmatpush2.bf16.xpose.msra.mxu0 0
      %7275 = vmatprep.subr.bf16.mxu0 0
      %7276 = vmatpush2.bf16.xpose.msra.mxu0 0
      %7277 = vmatprep.subr.bf16.mxu0 0
      %7278 = vmatpush2.bf16.xpose.msra.mxu0 0
      %7279 = vmatprep.subr.bf16.mxu0 0
      %7280 = vmatpush2.bf16.xpose.msra.mxu0 0
      %7281 = vmatprep.subr.bf16.mxu0 0
      %7282 = vmatpush2.bf16.xpose.msra.mxu0 0
      %7283 = vmatprep.subr.bf16.mxu0 0
      %7284 = vmatpush2.bf16.xpose.msra.mxu0 0
      %7285 = vmatprep.mubr.bf16.mxu0 0
      %7286 = vmatmul.mubr.bf16.gmra.mxu0 %v7248
      %v7287 = vpop.f32.mrf.mxu0
      %v7288 = vadd.f32 %v7241, %v7287
      %v7289 = vpop.f32.mrf.mxu0
      %v7290 = vpop.f32.mrf.mxu0
      %v7291 = vadd.f32 %v7242, %v7290
      %v7292 = vpop.f32.mrf.mxu0
      %7293 = vdwg.mxu0
      %v7294 = vsel %vm2603, %v7288, -inf
      %7295 = vmax.xlane.f32.xlu0 %v7294
      %v7296 = vpop.xlane.xlu0 %7295
      %v7297 = vsel %vm2603, %v7291, -inf
      %7298 = vmax.xlane.f32.xlu0 %v7297
      %v7299 = vpop.xlane.xlu0 %7298
      %v7300 = vsub.f32 %v7288, %v7296
      %v7301 = vsub.f32 %v7291, %v7299
      %v7302 = vmul.f32 %v7300, 1.442695
      %v7303 = vpow.pop %v7302
      %v7304 = vmul.f32 %v7301, 1.442695
      %v7305 = vpow.pop %v7304
      %v7306 = vsel %vm2603, %v7303, 0.0
      %7307 = vadd.xlane.f32.xlu0 %v7306
      %v7308 = vpop.xlane.xlu0 %7307
      %v7309 = vsel %vm2603, %v7305, 0.0
      %7310 = vadd.xlane.f32.xlu0 %v7309
      %v7311 = vpop.xlane.xlu0 %7310
      %v7312 = vrcp.pop %v7308
      %v7313 = vrcp.pop %v7311
      %v7314 = vmul.f32 %v7303, %v7312
      %v7315 = vmul.f32 %v7305, %v7313
      %v7316 = vpack.c.bf16 %v7315, %v7314
      %7317 = vrot.lane.b32.xlu0 %v6863, 80
      %v7318 = vpop.permute.xlu0 %7317
      %v7321 = vsel %vm2603, %v7316, 0
      %7323 = vmatprep.subr.bf16.mxu0 0
      %7324 = vmatpush1.bf16.msra.mxu0 0
      %7325 = vmatprep.subr.bf16.mxu0 0
      %7326 = vmatpush1.bf16.msra.mxu0 0
      %7327 = vmatprep.subr.bf16.mxu0 0
      %7328 = vmatpush1.bf16.msra.mxu0 0
      %7329 = vmatprep.subr.bf16.mxu0 0
      %7330 = vmatpush1.bf16.msra.mxu0 0
      %7331 = vmatprep.subr.bf16.mxu0 0
      %7332 = vmatpush1.bf16.msra.mxu0 0
      %7333 = vmatprep.subr.bf16.mxu0 0
      %7334 = vmatpush1.bf16.msra.mxu0 0
      %7335 = vmatprep.subr.bf16.mxu0 0
      %7336 = vmatpush1.bf16.msra.mxu0 0
      %7337 = vmatprep.subr.bf16.mxu0 0
      %7338 = vmatpush1.bf16.msra.mxu0 %v7318
      %7339 = vmatprep.subr.bf16.mxu0 0
      %7340 = vmatpush2.bf16.msra.mxu0 0
      %7341 = vmatprep.subr.bf16.mxu0 0
      %7342 = vmatpush2.bf16.msra.mxu0 0
      %7343 = vmatprep.subr.bf16.mxu0 0
      %7344 = vmatpush2.bf16.msra.mxu0 0
      %7345 = vmatprep.subr.bf16.mxu0 0
      %7346 = vmatpush2.bf16.msra.mxu0 0
      %7347 = vmatprep.subr.bf16.mxu0 0
      %7348 = vmatpush2.bf16.msra.mxu0 0
      %7349 = vmatprep.subr.bf16.mxu0 0
      %7350 = vmatpush2.bf16.msra.mxu0 0
      %7351 = vmatprep.subr.bf16.mxu0 0
      %7352 = vmatpush2.bf16.msra.mxu0 0
      %7353 = vmatprep.subr.bf16.mxu0 0
      %7354 = vmatpush2.bf16.msra.mxu0 0
      %7355 = vmatprep.mubr.bf16.mxu0 0
      %7356 = vmatmul.mubr.bf16.gmra.mxu0 %v7321
      %v7357 = vpop.f32.mrf.mxu0
      %v7358 = vadd.f32 0.0, %v7357
      %v7359 = vpop.f32.mrf.mxu0
      %v7360 = vpop.f32.mrf.mxu0
      %v7361 = vadd.f32 0.0, %v7360
      %v7362 = vpop.f32.mrf.mxu0
      %7363 = vdwg.mxu0
      %7366 = vrot.lane.b32.xlu0 %v7106, 16
      %v7367 = vpop.permute.xlu0 %7366
      %7368 = vrot.lane.b32.xlu0 %v7109, 16
      %v7369 = vpop.permute.xlu0 %7368
      %7374 = vrot.lane.b32.xlu0 %v7232, 32
      %v7375 = vpop.permute.xlu0 %7374
      %7376 = vrot.lane.b32.xlu0 %v7235, 32
      %v7377 = vpop.permute.xlu0 %7376
      %7382 = vrot.lane.b32.xlu0 %v7358, 48
      %v7383 = vpop.permute.xlu0 %7382
      %7384 = vrot.lane.b32.xlu0 %v7361, 48
      %v7385 = vpop.permute.xlu0 %7384
      %v7388 = vsel %vm2603, %v6979, %v7367
      %v7389 = vsel %vm2603, %v6982, %v7369
      %v7390 = vsel %vm2199, %v7388, %v7375
      %v7391 = vsel %vm2199, %v7389, %v7377
      %v7392 = vsel %vm2119, %v7390, %v7383
      %v7393 = vsel %vm2119, %v7391, %v7385
      %v7394 = vpack.c.bf16 %v7393, %v7392
      %v7395 = vld [vmem:[%s107] sm:$0xf]
      %v7396 = vld [vmem:[%s107 + $0x4] sm:$0xf]
      %v7397 = vld [vmem:[%s107 + $0x8] sm:$0xf]
      %v7398 = vld [vmem:[%s107 + $0xc] sm:$0xf]
      %v7399 = vld [vmem:[%s107 + $0x10] sm:$0xf]
      %v7400 = vld [vmem:[%s107 + $0x14] sm:$0xf]
      %v7401 = vld [vmem:[%s107 + $0x18] sm:$0xf]
      %v7402 = vld [vmem:[%s107 + $0x1c] sm:$0xf]
      %v7411 = vunpack.c.l.b16 %v7395
      %v7412 = vunpack.c.l.b16 %v7396
      %v7413 = vunpack.c.l.b16 %v7397
      %v7414 = vunpack.c.l.b16 %v7398
      %v7415 = vunpack.c.l.b16 %v7399
      %v7416 = vunpack.c.l.b16 %v7400
      %v7417 = vunpack.c.l.b16 %v7401
      %v7418 = vunpack.c.l.b16 %v7402
      %v7419 = vpack.c.b16 %v7412, %v7411
      %v7420 = vpack.c.b16 %v7414, %v7413
      %v7421 = vpack.c.b16 %v7416, %v7415
      %v7422 = vpack.c.b16 %v7418, %v7417
      %v7428 = vsel %vm2693, %v7394, 0
      %7430 = vmatprep.subr.bf16.mxu0 0
      %7431 = vmatpush1.bf16.msra.mxu0 0
      %7432 = vmatprep.subr.bf16.mxu0 0
      %7433 = vmatpush1.bf16.msra.mxu0 0
      %7434 = vmatprep.subr.bf16.mxu0 0
      %7435 = vmatpush1.bf16.msra.mxu0 0
      %7436 = vmatprep.subr.bf16.mxu0 0
      %7437 = vmatpush1.bf16.msra.mxu0 0
      %7438 = vmatprep.subr.bf16.mxu0 0
      %7439 = vmatpush1.bf16.msra.mxu0 %v7422
      %7440 = vmatprep.subr.bf16.mxu0 0
      %7441 = vmatpush1.bf16.msra.mxu0 %v7421
      %7442 = vmatprep.subr.bf16.mxu0 0
      %7443 = vmatpush1.bf16.msra.mxu0 %v7420
      %7444 = vmatprep.subr.bf16.mxu0 0
      %7445 = vmatpush1.bf16.msra.mxu0 %v7419
      %7446 = vmatprep.subr.bf16.mxu0 0
      %7447 = vmatpush2.bf16.msra.mxu0 0
      %7448 = vmatprep.subr.bf16.mxu0 0
      %7449 = vmatpush2.bf16.msra.mxu0 0
      %7450 = vmatprep.subr.bf16.mxu0 0
      %7451 = vmatpush2.bf16.msra.mxu0 0
      %7452 = vmatprep.subr.bf16.mxu0 0
      %7453 = vmatpush2.bf16.msra.mxu0 0
      %7454 = vmatprep.subr.bf16.mxu0 0
      %7455 = vmatpush2.bf16.msra.mxu0 0
      %7456 = vmatprep.subr.bf16.mxu0 0
      %7457 = vmatpush2.bf16.msra.mxu0 0
      %7458 = vmatprep.subr.bf16.mxu0 0
      %7459 = vmatpush2.bf16.msra.mxu0 0
      %7460 = vmatprep.subr.bf16.mxu0 0
      %7461 = vmatpush2.bf16.msra.mxu0 0
      %7462 = vmatprep.mubr.bf16.mxu0 0
      %7463 = vmatmul.mubr.bf16.gmra.mxu0 %v7428
      %v7464 = vpop.f32.mrf.mxu0
      %v7465 = vadd.f32 0.0, %v7464
      %v7466 = vpop.f32.mrf.mxu0
      %v7467 = vpop.f32.mrf.mxu0
      %v7468 = vadd.f32 0.0, %v7467
      %v7469 = vpop.f32.mrf.mxu0
      %7470 = vdwg.mxu0
      %v7471 = vadd.f32 %v6709, %v7465
      %v7472 = vadd.f32 %v6710, %v7468
      %v7473 = vld [vmem:[%s109] sm:$0x1]
      %v7475 = vlaneseq
      %v7476 = vshrl.u32 %v7475, 7
      %v7477 = vsub.s32 0, %v7476
      %v7478 = vrot.slane %v7473, %v7477
      %v7480 = vadd.f32 %v7471, %v7478
      %v7481 = vadd.f32 %v7472, %v7478
      %v7482 = vld [vmem:[%s111] sm:$0x1]
      %v7483 = vld [vmem:[%s113] sm:$0x1]
      %v7484 = vsel %vm2693, %v7480, 0.0
      %7485 = vadd.xlane.f32.xlu0 %v7484
      %v7486 = vpop.xlane.xlu0 %7485
      %v7487 = vsel %vm2693, %v7481, 0.0
      %7488 = vadd.xlane.f32.xlu0 %v7487
      %v7489 = vpop.xlane.xlu0 %7488
      %v7490 = vmul.f32 %v7486, %v5580
      %v7491 = vmul.f32 %v7489, %v5580
      %v7492 = vsub.f32 %v7480, %v7490
      %v7493 = vsub.f32 %v7481, %v7491
      %v7494 = vmul.f32 %v7492, %v7492
      %v7495 = vmul.f32 %v7493, %v7493
      %v7496 = vsel %vm2693, %v7494, 0.0
      %7497 = vadd.xlane.f32.xlu0 %v7496
      %v7498 = vpop.xlane.xlu0 %7497
      %v7499 = vsel %vm2693, %v7495, 0.0
      %7500 = vadd.xlane.f32.xlu0 %v7499
      %v7501 = vpop.xlane.xlu0 %7500
      %v7502 = vmul.f32 %v7498, %v5580
      %v7503 = vmul.f32 %v7501, %v5580
      %v7504 = vadd.f32 %v7502, 1e-05
      %v7505 = vadd.f32 %v7503, 1e-05
      %v7506 = vrsqrt.pop %v7504
      %v7507 = vrsqrt.pop %v7505
      %v7508 = vmul.f32 %v7492, %v7506
      %v7509 = vmul.f32 %v7493, %v7507
      %v7511 = vlaneseq
      %v7512 = vshrl.u32 %v7511, 7
      %v7513 = vsub.s32 0, %v7512
      %v7514 = vrot.slane %v7482, %v7513
      %v7516 = vmul.f32 %v7508, %v7514
      %v7517 = vmul.f32 %v7509, %v7514
      %v7519 = vlaneseq
      %v7520 = vshrl.u32 %v7519, 7
      %v7521 = vsub.s32 0, %v7520
      %v7522 = vrot.slane %v7483, %v7521
      %v7524 = vadd.f32 %v7516, %v7522
      %v7525 = vadd.f32 %v7517, %v7522
      %v7526 = vpack.c.bf16 %v7525, %v7524
      %v7527 = vld [vmem:[%s115] sm:$0xff]
      %v7528 = vld [vmem:[%s115 + $0x8] sm:$0xff]
      %v7529 = vld [vmem:[%s115 + $0x10] sm:$0xff]
      %v7530 = vld [vmem:[%s115 + $0x18] sm:$0xff]
      %v7531 = vld [vmem:[%s115 + $0x20] sm:$0xff]
      %v7532 = vld [vmem:[%s115 + $0x28] sm:$0xff]
      %v7533 = vld [vmem:[%s115 + $0x30] sm:$0xff]
      %v7534 = vld [vmem:[%s115 + $0x38] sm:$0xff]
      %v7535 = vld [vmem:[%s117] sm:$0x3]
      %v7537 = vlaneseq
      %v7538 = vshrl.u32 %v7537, 7
      %v7539 = vsub.s32 0, %v7538
      %v7540 = vrot.slane %v7535, %v7539
      %v7541 = vlaneseq
      %v7542 = vshrl.u32 %v7541, 7
      %v7543 = vsub.s32 1, %v7542
      %v7544 = vrot.slane %v7535, %v7543
      %v7555 = vunpack.c.l.b16 %v7527
      %v7556 = vunpack.c.h.b16 %v7527
      %v7557 = vunpack.c.l.b16 %v7528
      %v7558 = vunpack.c.h.b16 %v7528
      %v7559 = vunpack.c.l.b16 %v7529
      %v7560 = vunpack.c.h.b16 %v7529
      %v7561 = vunpack.c.l.b16 %v7530
      %v7562 = vunpack.c.h.b16 %v7530
      %v7563 = vunpack.c.l.b16 %v7531
      %v7564 = vunpack.c.h.b16 %v7531
      %v7565 = vunpack.c.l.b16 %v7532
      %v7566 = vunpack.c.h.b16 %v7532
      %v7567 = vunpack.c.l.b16 %v7533
      %v7568 = vunpack.c.h.b16 %v7533
      %v7569 = vunpack.c.l.b16 %v7534
      %v7570 = vunpack.c.h.b16 %v7534
      %v7571 = vpack.c.b16 %v7557, %v7555
      %v7572 = vpack.c.b16 %v7558, %v7556
      %v7573 = vpack.c.b16 %v7561, %v7559
      %v7574 = vpack.c.b16 %v7562, %v7560
      %v7575 = vpack.c.b16 %v7565, %v7563
      %v7576 = vpack.c.b16 %v7566, %v7564
      %v7577 = vpack.c.b16 %v7569, %v7567
      %v7578 = vpack.c.b16 %v7570, %v7568
      %v7588 = vsel %vm2693, %v7526, 0
      %7590 = vmatprep.subr.bf16.mxu0 0
      %7591 = vmatpush1.bf16.msra.mxu0 0
      %7592 = vmatprep.subr.bf16.mxu0 0
      %7593 = vmatpush1.bf16.msra.mxu0 0
      %7594 = vmatprep.subr.bf16.mxu0 0
      %7595 = vmatpush1.bf16.msra.mxu0 0
      %7596 = vmatprep.subr.bf16.mxu0 0
      %7597 = vmatpush1.bf16.msra.mxu0 0
      %7598 = vmatprep.subr.bf16.mxu0 %v7578
      %7599 = vmatpush1.bf16.msra.mxu0 %v7577
      %7600 = vmatprep.subr.bf16.mxu0 %v7576
      %7601 = vmatpush1.bf16.msra.mxu0 %v7575
      %7602 = vmatprep.subr.bf16.mxu0 %v7574
      %7603 = vmatpush1.bf16.msra.mxu0 %v7573
      %7604 = vmatprep.subr.bf16.mxu0 %v7572
      %7605 = vmatpush1.bf16.msra.mxu0 %v7571
      %7606 = vmatprep.subr.bf16.mxu0 0
      %7607 = vmatpush2.bf16.msra.mxu0 0
      %7608 = vmatprep.subr.bf16.mxu0 0
      %7609 = vmatpush2.bf16.msra.mxu0 0
      %7610 = vmatprep.subr.bf16.mxu0 0
      %7611 = vmatpush2.bf16.msra.mxu0 0
      %7612 = vmatprep.subr.bf16.mxu0 0
      %7613 = vmatpush2.bf16.msra.mxu0 0
      %7614 = vmatprep.subr.bf16.mxu0 0
      %7615 = vmatpush2.bf16.msra.mxu0 0
      %7616 = vmatprep.subr.bf16.mxu0 0
      %7617 = vmatpush2.bf16.msra.mxu0 0
      %7618 = vmatprep.subr.bf16.mxu0 0
      %7619 = vmatpush2.bf16.msra.mxu0 0
      %7620 = vmatprep.subr.bf16.mxu0 0
      %7621 = vmatpush2.bf16.msra.mxu0 0
      %7622 = vmatprep.mubr.bf16.mxu0 0
      %7623 = vmatmul.mubr.bf16.gmra.mxu0 %v7588
      %v7624 = vpop.f32.mrf.mxu0
      %v7625 = vadd.f32 %v7540, %v7624
      %v7626 = vpop.f32.mrf.mxu0
      %v7627 = vadd.f32 %v7544, %v7626
      %v7628 = vpop.f32.mrf.mxu0
      %v7629 = vadd.f32 %v7540, %v7628
      %v7630 = vpop.f32.mrf.mxu0
      %v7631 = vadd.f32 %v7544, %v7630
      %7632 = vdwg.mxu0
      %v7633 = vmul.f32 %v7625, 0.5
      %v7634 = vmul.f32 %v7627, 0.5
      %v7635 = vmul.f32 %v7629, 0.5
      %v7636 = vmul.f32 %v7631, 0.5
      %v7637 = vmul.f32 %v7625, 0.044715
      %v7638 = vmul.f32 %v7627, 0.044715
      %v7639 = vmul.f32 %v7629, 0.044715
      %v7640 = vmul.f32 %v7631, 0.044715
      %v7641 = vmul.f32 %v7637, %v7625
      %v7642 = vmul.f32 %v7638, %v7627
      %v7643 = vmul.f32 %v7639, %v7629
      %v7644 = vmul.f32 %v7640, %v7631
      %v7645 = vmul.f32 %v7641, %v7625
      %v7646 = vmul.f32 %v7642, %v7627
      %v7647 = vmul.f32 %v7643, %v7629
      %v7648 = vmul.f32 %v7644, %v7631
      %v7649 = vadd.f32 %v7625, %v7645
      %v7650 = vadd.f32 %v7627, %v7646
      %v7651 = vadd.f32 %v7629, %v7647
      %v7652 = vadd.f32 %v7631, %v7648
      %v7653 = vmul.f32 %v7649, 0.7978846
      %v7654 = vmul.f32 %v7650, 0.7978846
      %v7655 = vmul.f32 %v7651, 0.7978846
      %v7656 = vmul.f32 %v7652, 0.7978846
      %v7657 = vtanh.pop %v7653
      %v7658 = vtanh.pop %v7654
      %v7659 = vtanh.pop %v7655
      %v7660 = vtanh.pop %v7656
      %v7661 = vadd.f32 %v7657, 1.0
      %v7662 = vadd.f32 %v7658, 1.0
      %v7663 = vadd.f32 %v7659, 1.0
      %v7664 = vadd.f32 %v7660, 1.0
      %v7665 = vmul.f32 %v7633, %v7661
      %v7666 = vmul.f32 %v7634, %v7662
      %v7667 = vmul.f32 %v7635, %v7663
      %v7668 = vmul.f32 %v7636, %v7664
      %v7669 = vpack.c.bf16 %v7667, %v7665
      %v7670 = vpack.c.bf16 %v7668, %v7666
      %v7671 = vld [vmem:[%s119] sm:$0xf]
      %v7672 = vld [vmem:[%s119 + $0x4] sm:$0xf]
      %v7673 = vld [vmem:[%s119 + $0x8] sm:$0xf]
      %v7674 = vld [vmem:[%s119 + $0xc] sm:$0xf]
      %v7675 = vld [vmem:[%s119 + $0x10] sm:$0xf]
      %v7676 = vld [vmem:[%s119 + $0x14] sm:$0xf]
      %v7677 = vld [vmem:[%s119 + $0x18] sm:$0xf]
      %v7678 = vld [vmem:[%s119 + $0x1c] sm:$0xf]
      %v7679 = vld [vmem:[%s119 + $0x20] sm:$0xf]
      %v7680 = vld [vmem:[%s119 + $0x24] sm:$0xf]
      %v7681 = vld [vmem:[%s119 + $0x28] sm:$0xf]
      %v7682 = vld [vmem:[%s119 + $0x2c] sm:$0xf]
      %v7683 = vld [vmem:[%s119 + $0x30] sm:$0xf]
      %v7684 = vld [vmem:[%s119 + $0x34] sm:$0xf]
      %v7685 = vld [vmem:[%s119 + $0x38] sm:$0xf]
      %v7686 = vld [vmem:[%s119 + $0x3c] sm:$0xf]
      %v7687 = vld [vmem:[%s119 + $0x40] sm:$0xf]
      %v7688 = vld [vmem:[%s119 + $0x44] sm:$0xf]
      %v7689 = vld [vmem:[%s119 + $0x48] sm:$0xf]
      %v7690 = vld [vmem:[%s119 + $0x4c] sm:$0xf]
      %v7691 = vld [vmem:[%s119 + $0x50] sm:$0xf]
      %v7692 = vld [vmem:[%s119 + $0x54] sm:$0xf]
      %v7693 = vld [vmem:[%s119 + $0x58] sm:$0xf]
      %v7694 = vld [vmem:[%s119 + $0x5c] sm:$0xf]
      %v7695 = vld [vmem:[%s119 + $0x60] sm:$0xf]
      %v7696 = vld [vmem:[%s119 + $0x64] sm:$0xf]
      %v7697 = vld [vmem:[%s119 + $0x68] sm:$0xf]
      %v7698 = vld [vmem:[%s119 + $0x6c] sm:$0xf]
      %v7699 = vld [vmem:[%s119 + $0x70] sm:$0xf]
      %v7700 = vld [vmem:[%s119 + $0x74] sm:$0xf]
      %v7701 = vld [vmem:[%s119 + $0x78] sm:$0xf]
      %v7702 = vld [vmem:[%s119 + $0x7c] sm:$0xf]
      %v7703 = vld [vmem:[%s121] sm:$0x1]
      %v7705 = vlaneseq
      %v7706 = vshrl.u32 %v7705, 7
      %v7707 = vsub.s32 0, %v7706
      %v7708 = vrot.slane %v7703, %v7707
      %v7742 = vunpack.c.l.b16 %v7671
      %v7743 = vunpack.c.l.b16 %v7672
      %v7744 = vunpack.c.l.b16 %v7673
      %v7745 = vunpack.c.l.b16 %v7674
      %v7746 = vunpack.c.l.b16 %v7675
      %v7747 = vunpack.c.l.b16 %v7676
      %v7748 = vunpack.c.l.b16 %v7677
      %v7749 = vunpack.c.l.b16 %v7678
      %v7750 = vunpack.c.l.b16 %v7679
      %v7751 = vunpack.c.l.b16 %v7680
      %v7752 = vunpack.c.l.b16 %v7681
      %v7753 = vunpack.c.l.b16 %v7682
      %v7754 = vunpack.c.l.b16 %v7683
      %v7755 = vunpack.c.l.b16 %v7684
      %v7756 = vunpack.c.l.b16 %v7685
      %v7757 = vunpack.c.l.b16 %v7686
      %v7758 = vunpack.c.l.b16 %v7687
      %v7759 = vunpack.c.l.b16 %v7688
      %v7760 = vunpack.c.l.b16 %v7689
      %v7761 = vunpack.c.l.b16 %v7690
      %v7762 = vunpack.c.l.b16 %v7691
      %v7763 = vunpack.c.l.b16 %v7692
      %v7764 = vunpack.c.l.b16 %v7693
      %v7765 = vunpack.c.l.b16 %v7694
      %v7766 = vunpack.c.l.b16 %v7695
      %v7767 = vunpack.c.l.b16 %v7696
      %v7768 = vunpack.c.l.b16 %v7697
      %v7769 = vunpack.c.l.b16 %v7698
      %v7770 = vunpack.c.l.b16 %v7699
      %v7771 = vunpack.c.l.b16 %v7700
      %v7772 = vunpack.c.l.b16 %v7701
      %v7773 = vunpack.c.l.b16 %v7702
      %v7774 = vpack.c.b16 %v7743, %v7742
      %v7775 = vpack.c.b16 %v7745, %v7744
      %v7776 = vpack.c.b16 %v7747, %v7746
      %v7777 = vpack.c.b16 %v7749, %v7748
      %v7778 = vpack.c.b16 %v7751, %v7750
      %v7779 = vpack.c.b16 %v7753, %v7752
      %v7780 = vpack.c.b16 %v7755, %v7754
      %v7781 = vpack.c.b16 %v7757, %v7756
      %v7782 = vpack.c.b16 %v7759, %v7758
      %v7783 = vpack.c.b16 %v7761, %v7760
      %v7784 = vpack.c.b16 %v7763, %v7762
      %v7785 = vpack.c.b16 %v7765, %v7764
      %v7786 = vpack.c.b16 %v7767, %v7766
      %v7787 = vpack.c.b16 %v7769, %v7768
      %v7788 = vpack.c.b16 %v7771, %v7770
      %v7789 = vpack.c.b16 %v7773, %v7772
      %7806 = vmatprep.subr.bf16.mxu0 0
      %7807 = vmatpush1.bf16.msra.mxu0 %v7781
      %7808 = vmatprep.subr.bf16.mxu0 0
      %7809 = vmatpush1.bf16.msra.mxu0 %v7780
      %7810 = vmatprep.subr.bf16.mxu0 0
      %7811 = vmatpush1.bf16.msra.mxu0 %v7779
      %7812 = vmatprep.subr.bf16.mxu0 0
      %7813 = vmatpush1.bf16.msra.mxu0 %v7778
      %7814 = vmatprep.subr.bf16.mxu0 0
      %7815 = vmatpush1.bf16.msra.mxu0 %v7777
      %7816 = vmatprep.subr.bf16.mxu0 0
      %7817 = vmatpush1.bf16.msra.mxu0 %v7776
      %7818 = vmatprep.subr.bf16.mxu0 0
      %7819 = vmatpush1.bf16.msra.mxu0 %v7775
      %7820 = vmatprep.subr.bf16.mxu0 0
      %7821 = vmatpush1.bf16.msra.mxu0 %v7774
      %7822 = vmatprep.subr.bf16.mxu0 0
      %7823 = vmatpush2.bf16.msra.mxu0 %v7789
      %7824 = vmatprep.subr.bf16.mxu0 0
      %7825 = vmatpush2.bf16.msra.mxu0 %v7788
      %7826 = vmatprep.subr.bf16.mxu0 0
      %7827 = vmatpush2.bf16.msra.mxu0 %v7787
      %7828 = vmatprep.subr.bf16.mxu0 0
      %7829 = vmatpush2.bf16.msra.mxu0 %v7786
      %7830 = vmatprep.subr.bf16.mxu0 0
      %7831 = vmatpush2.bf16.msra.mxu0 %v7785
      %7832 = vmatprep.subr.bf16.mxu0 0
      %7833 = vmatpush2.bf16.msra.mxu0 %v7784
      %7834 = vmatprep.subr.bf16.mxu0 0
      %7835 = vmatpush2.bf16.msra.mxu0 %v7783
      %7836 = vmatprep.subr.bf16.mxu0 0
      %7837 = vmatpush2.bf16.msra.mxu0 %v7782
      %7838 = vmatprep.mubr.bf16.mxu0 %v7670
      %7839 = vmatmul.mubr.bf16.gmra.mxu0 %v7669
      %v7840 = vpop.f32.mrf.mxu0
      %v7841 = vadd.f32 %v7708, %v7840
      %v7842 = vpop.f32.mrf.mxu0
      %v7843 = vpop.f32.mrf.mxu0
      %v7844 = vadd.f32 %v7708, %v7843
      %v7845 = vpop.f32.mrf.mxu0
      %7846 = vdwg.mxu0
      %v7847 = vadd.f32 %v7480, %v7841
      %v7848 = vadd.f32 %v7481, %v7844
      %v7849 = vld [vmem:[%s123] sm:$0x1]
      %v7850 = vld [vmem:[%s125] sm:$0x1]
      %v7851 = vsel %vm2693, %v7847, 0.0
      %7852 = vadd.xlane.f32.xlu0 %v7851
      %v7853 = vpop.xlane.xlu0 %7852
      %v7854 = vsel %vm2693, %v7848, 0.0
      %7855 = vadd.xlane.f32.xlu0 %v7854
      %v7856 = vpop.xlane.xlu0 %7855
      %v7857 = vmul.f32 %v7853, %v5580
      %v7858 = vmul.f32 %v7856, %v5580
      %v7859 = vsub.f32 %v7847, %v7857
      %v7860 = vsub.f32 %v7848, %v7858
      %v7861 = vmul.f32 %v7859, %v7859
      %v7862 = vmul.f32 %v7860, %v7860
      %v7863 = vsel %vm2693, %v7861, 0.0
      %7864 = vadd.xlane.f32.xlu0 %v7863
      %v7865 = vpop.xlane.xlu0 %7864
      %v7866 = vsel %vm2693, %v7862, 0.0
      %7867 = vadd.xlane.f32.xlu0 %v7866
      %v7868 = vpop.xlane.xlu0 %7867
      %v7869 = vmul.f32 %v7865, %v5580
      %v7870 = vmul.f32 %v7868, %v5580
      %v7871 = vadd.f32 %v7869, 1e-05
      %v7872 = vadd.f32 %v7870, 1e-05
      %v7873 = vrsqrt.pop %v7871
      %v7874 = vrsqrt.pop %v7872
      %v7875 = vmul.f32 %v7859, %v7873
      %v7876 = vmul.f32 %v7860, %v7874
      %v7878 = vlaneseq
      %v7879 = vshrl.u32 %v7878, 7
      %v7880 = vsub.s32 0, %v7879
      %v7881 = vrot.slane %v7849, %v7880
      %v7883 = vmul.f32 %v7875, %v7881
      %v7884 = vmul.f32 %v7876, %v7881
      %v7886 = vlaneseq
      %v7887 = vshrl.u32 %v7886, 7
      %v7888 = vsub.s32 0, %v7887
      %v7889 = vrot.slane %v7850, %v7888
      %v7891 = vadd.f32 %v7883, %v7889
      %v7892 = vadd.f32 %v7884, %v7889
      %v7893 = vsel %vm2693, %v7891, 0.0
      %v7894 = vsel %vm2693, %v7892, 0.0
      %v7895 = vadd.f32 %v7893, %v7894
      %v7896 = vrot.slane %v7895, 4
      %v7897 = vadd.f32 %v7895, %v7896
      %v7898 = vrot.slane %v7897, 2
      %v7899 = vadd.f32 %v7897, %v7898
      %v7900 = vrot.slane %v7899, 1
      %v7901 = vadd.f32 %v7899, %v7900
      %v7902 = vrcp.pop 16.0
      %v7903 = vmul.f32 %v7901, %v7902
      %v7904 = vpack.c.bf16 %v7903, %v7903
      %v7905 = vld [vmem:[%s127] sm:$0xf]
      %v7906 = vld [vmem:[%s127 + $0x4] sm:$0xf]
      %v7907 = vld [vmem:[%s127 + $0x8] sm:$0xf]
      %v7908 = vld [vmem:[%s127 + $0xc] sm:$0xf]
      %v7909 = vld [vmem:[%s127 + $0x10] sm:$0xf]
      %v7910 = vld [vmem:[%s127 + $0x14] sm:$0xf]
      %v7911 = vld [vmem:[%s127 + $0x18] sm:$0xf]
      %v7912 = vld [vmem:[%s127 + $0x1c] sm:$0xf]
      %v7913 = vld [vmem:[%s129] sm:$0x1]
      %v7922 = vunpack.c.l.b16 %v7905
      %v7923 = vunpack.c.l.b16 %v7906
      %v7924 = vunpack.c.l.b16 %v7907
      %v7925 = vunpack.c.l.b16 %v7908
      %v7926 = vunpack.c.l.b16 %v7909
      %v7927 = vunpack.c.l.b16 %v7910
      %v7928 = vunpack.c.l.b16 %v7911
      %v7929 = vunpack.c.l.b16 %v7912
      %v7930 = vpack.c.b16 %v7923, %v7922
      %v7931 = vpack.c.b16 %v7925, %v7924
      %v7932 = vpack.c.b16 %v7927, %v7926
      %v7933 = vpack.c.b16 %v7929, %v7928
      %v7939 = vsel %vm2693, %v7904, 0
      %7941 = vmatprep.subr.bf16.mxu0 0
      %7942 = vmatpush1.bf16.msra.mxu0 0
      %7943 = vmatprep.subr.bf16.mxu0 0
      %7944 = vmatpush1.bf16.msra.mxu0 0
      %7945 = vmatprep.subr.bf16.mxu0 0
      %7946 = vmatpush1.bf16.msra.mxu0 0
      %7947 = vmatprep.subr.bf16.mxu0 0
      %7948 = vmatpush1.bf16.msra.mxu0 0
      %7949 = vmatprep.subr.bf16.mxu0 0
      %7950 = vmatpush1.bf16.msra.mxu0 %v7933
      %7951 = vmatprep.subr.bf16.mxu0 0
      %7952 = vmatpush1.bf16.msra.mxu0 %v7932
      %7953 = vmatprep.subr.bf16.mxu0 0
      %7954 = vmatpush1.bf16.msra.mxu0 %v7931
      %7955 = vmatprep.subr.bf16.mxu0 0
      %7956 = vmatpush1.bf16.msra.mxu0 %v7930
      %7957 = vmatprep.subr.bf16.mxu0 0
      %7958 = vmatpush2.bf16.msra.mxu0 0
      %7959 = vmatprep.subr.bf16.mxu0 0
      %7960 = vmatpush2.bf16.msra.mxu0 0
      %7961 = vmatprep.subr.bf16.mxu0 0
      %7962 = vmatpush2.bf16.msra.mxu0 0
      %7963 = vmatprep.subr.bf16.mxu0 0
      %7964 = vmatpush2.bf16.msra.mxu0 0
      %7965 = vmatprep.subr.bf16.mxu0 0
      %7966 = vmatpush2.bf16.msra.mxu0 0
      %7967 = vmatprep.subr.bf16.mxu0 0
      %7968 = vmatpush2.bf16.msra.mxu0 0
      %7969 = vmatprep.subr.bf16.mxu0 0
      %7970 = vmatpush2.bf16.msra.mxu0 0
      %7971 = vmatprep.subr.bf16.mxu0 0
      %7972 = vmatpush2.bf16.msra.mxu0 0
      %7973 = vmatprep.mubr.bf16.mxu0 0
      %7974 = vmatmul.mubr.bf16.gmra.mxu0 %v7939
      %v7975 = vpop.f32.mrf.mxu0
      %v7976 = vadd.f32 %v7913, %v7975
      %v7977 = vpop.f32.mrf.mxu0
      %v7978 = vpop.f32.mrf.mxu0
      %v7979 = vpop.f32.mrf.mxu0
      %7980 = vdwg.mxu0
      %v7981 = vpack.c.bf16 %v7976, %v7976
      %v7982 = vld [vmem:[%s131] sm:$0xff]
      %v7983 = vld [vmem:[%s131 + $0x8] sm:$0xff]
      %v7984 = vld [vmem:[%s133] sm:$0x3]
      %v7987 = vunpack.c.l.b16 %v7982
      %v7988 = vunpack.c.h.b16 %v7982
      %v7989 = vunpack.c.l.b16 %v7983
      %v7990 = vunpack.c.h.b16 %v7983
      %v7991 = vpack.c.b16 %v7989, %v7987
      %v7992 = vpack.c.b16 %v7990, %v7988
      %v7996 = vlaneseq
      %v7997 = vshrl.u32 %v7996, 7
      %v7998 = vsub.s32 0, %v7997
      %v7999 = vrot.slane %v7984, %v7998
      %v8000 = vlaneseq
      %v8001 = vshrl.u32 %v8000, 7
      %v8002 = vsub.s32 1, %v8001
      %v8003 = vrot.slane %v7984, %v8002
      %v8007 = vsel %vm2603, %v7981, 0
      %8009 = vmatprep.subr.bf16.mxu0 0
      %8010 = vmatpush1.bf16.msra.mxu0 0
      %8011 = vmatprep.subr.bf16.mxu0 0
      %8012 = vmatpush1.bf16.msra.mxu0 0
      %8013 = vmatprep.subr.bf16.mxu0 0
      %8014 = vmatpush1.bf16.msra.mxu0 0
      %8015 = vmatprep.subr.bf16.mxu0 0
      %8016 = vmatpush1.bf16.msra.mxu0 0
      %8017 = vmatprep.subr.bf16.mxu0 0
      %8018 = vmatpush1.bf16.msra.mxu0 0
      %8019 = vmatprep.subr.bf16.mxu0 0
      %8020 = vmatpush1.bf16.msra.mxu0 0
      %8021 = vmatprep.subr.bf16.mxu0 0
      %8022 = vmatpush1.bf16.msra.mxu0 0
      %8023 = vmatprep.subr.bf16.mxu0 %v7992
      %8024 = vmatpush1.bf16.msra.mxu0 %v7991
      %8025 = vmatprep.subr.bf16.mxu0 0
      %8026 = vmatpush2.bf16.msra.mxu0 0
      %8027 = vmatprep.subr.bf16.mxu0 0
      %8028 = vmatpush2.bf16.msra.mxu0 0
      %8029 = vmatprep.subr.bf16.mxu0 0
      %8030 = vmatpush2.bf16.msra.mxu0 0
      %8031 = vmatprep.subr.bf16.mxu0 0
      %8032 = vmatpush2.bf16.msra.mxu0 0
      %8033 = vmatprep.subr.bf16.mxu0 0
      %8034 = vmatpush2.bf16.msra.mxu0 0
      %8035 = vmatprep.subr.bf16.mxu0 0
      %8036 = vmatpush2.bf16.msra.mxu0 0
      %8037 = vmatprep.subr.bf16.mxu0 0
      %8038 = vmatpush2.bf16.msra.mxu0 0
      %8039 = vmatprep.subr.bf16.mxu0 0
      %8040 = vmatpush2.bf16.msra.mxu0 0
      %8041 = vmatprep.mubr.bf16.mxu0 0
      %8042 = vmatmul.mubr.bf16.gmra.mxu0 %v8007
      %v8043 = vpop.f32.mrf.mxu0
      %v8044 = vadd.f32 %v7999, %v8043
      %v8045 = vpop.f32.mrf.mxu0
      %v8046 = vadd.f32 %v8003, %v8045
      %v8047 = vpop.f32.mrf.mxu0
      %v8048 = vpop.f32.mrf.mxu0
      %8049 = vdwg.mxu0
      %v8050 = vmax.f32 %v8044, 0.0
      %v8051 = vmax.f32 %v8046, 0.0
      %v8052 = vpack.c.bf16 %v8050, %v8050
      %v8053 = vpack.c.bf16 %v8051, %v8051
      %v8054 = vld [vmem:[%s135] sm:$0xff]
      %v8055 = vld [vmem:[%s135 + $0x8] sm:$0xff]
      %v8056 = vld [vmem:[%s135 + $0x10] sm:$0xff]
      %v8057 = vld [vmem:[%s135 + $0x18] sm:$0xff]
      %v8058 = vld [vmem:[%s135 + $0x20] sm:$0xff]
      %v8059 = vld [vmem:[%s135 + $0x28] sm:$0xff]
      %v8060 = vld [vmem:[%s135 + $0x30] sm:$0xff]
      %v8061 = vld [vmem:[%s135 + $0x38] sm:$0xff]
      %v8062 = vld [vmem:[%s135 + $0x40] sm:$0xff]
      %v8063 = vld [vmem:[%s135 + $0x48] sm:$0xff]
      %v8064 = vld [vmem:[%s135 + $0x50] sm:$0xff]
      %v8065 = vld [vmem:[%s135 + $0x58] sm:$0xff]
      %v8066 = vld [vmem:[%s135 + $0x60] sm:$0xff]
      %v8067 = vld [vmem:[%s135 + $0x68] sm:$0xff]
      %v8068 = vld [vmem:[%s135 + $0x70] sm:$0xff]
      %v8069 = vld [vmem:[%s135 + $0x78] sm:$0xff]
      %v8070 = vld [vmem:[%s135 + $0x80] sm:$0xff]
      %v8071 = vld [vmem:[%s135 + $0x88] sm:$0xff]
      %v8072 = vld [vmem:[%s135 + $0x90] sm:$0xff]
      %v8073 = vld [vmem:[%s135 + $0x98] sm:$0xff]
      %v8074 = vld [vmem:[%s135 + $0xa0] sm:$0xff]
      %v8075 = vld [vmem:[%s135 + $0xa8] sm:$0xff]
      %v8076 = vld [vmem:[%s135 + $0xb0] sm:$0xff]
      %v8077 = vld [vmem:[%s135 + $0xb8] sm:$0xff]
      %v8078 = vld [vmem:[%s137] sm:$0x3]
      %v8103 = vunpack.c.l.b16 %v8054
      %v8104 = vunpack.c.h.b16 %v8054
      %v8105 = vunpack.c.l.b16 %v8055
      %v8106 = vunpack.c.h.b16 %v8055
      %v8107 = vunpack.c.l.b16 %v8056
      %v8108 = vunpack.c.h.b16 %v8056
      %v8109 = vunpack.c.l.b16 %v8057
      %v8110 = vunpack.c.h.b16 %v8057
      %v8111 = vunpack.c.l.b16 %v8058
      %v8112 = vunpack.c.h.b16 %v8058
      %v8113 = vunpack.c.l.b16 %v8059
      %v8114 = vunpack.c.h.b16 %v8059
      %v8115 = vunpack.c.l.b16 %v8060
      %v8116 = vunpack.c.h.b16 %v8060
      %v8117 = vunpack.c.l.b16 %v8061
      %v8118 = vunpack.c.h.b16 %v8061
      %v8119 = vunpack.c.l.b16 %v8062
      %v8120 = vunpack.c.h.b16 %v8062
      %v8121 = vunpack.c.l.b16 %v8063
      %v8122 = vunpack.c.h.b16 %v8063
      %v8123 = vunpack.c.l.b16 %v8064
      %v8124 = vunpack.c.h.b16 %v8064
      %v8125 = vunpack.c.l.b16 %v8065
      %v8126 = vunpack.c.h.b16 %v8065
      %v8127 = vunpack.c.l.b16 %v8066
      %v8128 = vunpack.c.h.b16 %v8066
      %v8129 = vunpack.c.l.b16 %v8067
      %v8130 = vunpack.c.h.b16 %v8067
      %v8131 = vunpack.c.l.b16 %v8068
      %v8132 = vunpack.c.h.b16 %v8068
      %v8133 = vunpack.c.l.b16 %v8069
      %v8134 = vunpack.c.h.b16 %v8069
      %v8135 = vunpack.c.l.b16 %v8070
      %v8136 = vunpack.c.h.b16 %v8070
      %v8137 = vunpack.c.l.b16 %v8071
      %v8138 = vunpack.c.h.b16 %v8071
      %v8139 = vunpack.c.l.b16 %v8072
      %v8140 = vunpack.c.h.b16 %v8072
      %v8141 = vunpack.c.l.b16 %v8073
      %v8142 = vunpack.c.h.b16 %v8073
      %v8143 = vunpack.c.l.b16 %v8074
      %v8144 = vunpack.c.h.b16 %v8074
      %v8145 = vunpack.c.l.b16 %v8075
      %v8146 = vunpack.c.h.b16 %v8075
      %v8147 = vunpack.c.l.b16 %v8076
      %v8148 = vunpack.c.h.b16 %v8076
      %v8149 = vunpack.c.l.b16 %v8077
      %v8150 = vunpack.c.h.b16 %v8077
      %v8151 = vpack.c.b16 %v8105, %v8103
      %v8152 = vpack.c.b16 %v8106, %v8104
      %v8153 = vpack.c.b16 %v8109, %v8107
      %v8154 = vpack.c.b16 %v8110, %v8108
      %v8155 = vpack.c.b16 %v8113, %v8111
      %v8156 = vpack.c.b16 %v8114, %v8112
      %v8157 = vpack.c.b16 %v8117, %v8115
      %v8158 = vpack.c.b16 %v8118, %v8116
      %v8159 = vpack.c.b16 %v8121, %v8119
      %v8160 = vpack.c.b16 %v8122, %v8120
      %v8161 = vpack.c.b16 %v8125, %v8123
      %v8162 = vpack.c.b16 %v8126, %v8124
      %v8163 = vpack.c.b16 %v8129, %v8127
      %v8164 = vpack.c.b16 %v8130, %v8128
      %v8165 = vpack.c.b16 %v8133, %v8131
      %v8166 = vpack.c.b16 %v8134, %v8132
      %v8167 = vpack.c.b16 %v8137, %v8135
      %v8168 = vpack.c.b16 %v8138, %v8136
      %v8169 = vpack.c.b16 %v8141, %v8139
      %v8170 = vpack.c.b16 %v8142, %v8140
      %v8171 = vpack.c.b16 %v8145, %v8143
      %v8172 = vpack.c.b16 %v8146, %v8144
      %v8173 = vpack.c.b16 %v8149, %v8147
      %v8174 = vpack.c.b16 %v8150, %v8148
      %v8200 = vlaneseq
      %v8201 = vshrl.u32 %v8200, 7
      %v8202 = vsub.s32 0, %v8201
      %v8203 = vrot.slane %v8078, %v8202
      %v8204 = vlaneseq
      %v8205 = vshrl.u32 %v8204, 7
      %v8206 = vsub.s32 1, %v8205
      %v8207 = vrot.slane %v8078, %v8206
      %v8211 = vsel %vm2693, %v8053, 0
      %8213 = vmatprep.subr.bf16.mxu0 %v8166
      %8214 = vmatpush1.bf16.msra.mxu0 %v8165
      %8215 = vmatprep.subr.bf16.mxu0 %v8164
      %8216 = vmatpush1.bf16.msra.mxu0 %v8163
      %8217 = vmatprep.subr.bf16.mxu0 %v8162
      %8218 = vmatpush1.bf16.msra.mxu0 %v8161
      %8219 = vmatprep.subr.bf16.mxu0 %v8160
      %8220 = vmatpush1.bf16.msra.mxu0 %v8159
      %8221 = vmatprep.subr.bf16.mxu0 %v8158
      %8222 = vmatpush1.bf16.msra.mxu0 %v8157
      %8223 = vmatprep.subr.bf16.mxu0 %v8156
      %8224 = vmatpush1.bf16.msra.mxu0 %v8155
      %8225 = vmatprep.subr.bf16.mxu0 %v8154
      %8226 = vmatpush1.bf16.msra.mxu0 %v8153
      %8227 = vmatprep.subr.bf16.mxu0 %v8152
      %8228 = vmatpush1.bf16.msra.mxu0 %v8151
      %8229 = vmatprep.subr.bf16.mxu0 0
      %8230 = vmatpush2.bf16.msra.mxu0 0
      %8231 = vmatprep.subr.bf16.mxu0 0
      %8232 = vmatpush2.bf16.msra.mxu0 0
      %8233 = vmatprep.subr.bf16.mxu0 0
      %8234 = vmatpush2.bf16.msra.mxu0 0
      %8235 = vmatprep.subr.bf16.mxu0 0
      %8236 = vmatpush2.bf16.msra.mxu0 0
      %8237 = vmatprep.subr.bf16.mxu0 %v8174
      %8238 = vmatpush2.bf16.msra.mxu0 %v8173
      %8239 = vmatprep.subr.bf16.mxu0 %v8172
      %8240 = vmatpush2.bf16.msra.mxu0 %v8171
      %8241 = vmatprep.subr.bf16.mxu0 %v8170
      %8242 = vmatpush2.bf16.msra.mxu0 %v8169
      %8243 = vmatprep.subr.bf16.mxu0 %v8168
      %8244 = vmatpush2.bf16.msra.mxu0 %v8167
      %8245 = vmatprep.mubr.bf16.mxu0 %v8211
      %8246 = vmatmul.mubr.bf16.gmra.mxu0 %v8052
      %v8247 = vpop.f32.mrf.mxu0
      %v8248 = vadd.f32 %v8203, %v8247
      %v8249 = vpop.f32.mrf.mxu0
      %v8250 = vadd.f32 %v8207, %v8249
      %v8251 = vpop.f32.mrf.mxu0
      %v8252 = vpop.f32.mrf.mxu0
      %8253 = vdwg.mxu0
      %v8254 = vmax.f32 %v8248, 0.0
      %v8255 = vmax.f32 %v8250, 0.0
      %v8256 = vpack.c.bf16 %v8254, %v8254
      %v8257 = vpack.c.bf16 %v8255, %v8255
      %v8258 = vld [vmem:[%s139] sm:$0xf]
      %v8259 = vld [vmem:[%s139 + $0x4] sm:$0xf]
      %v8260 = vld [vmem:[%s139 + $0x8] sm:$0xf]
      %v8261 = vld [vmem:[%s139 + $0xc] sm:$0xf]
      %v8262 = vld [vmem:[%s139 + $0x10] sm:$0xf]
      %v8263 = vld [vmem:[%s139 + $0x14] sm:$0xf]
      %v8264 = vld [vmem:[%s139 + $0x18] sm:$0xf]
      %v8265 = vld [vmem:[%s139 + $0x1c] sm:$0xf]
      %v8266 = vld [vmem:[%s139 + $0x20] sm:$0xf]
      %v8267 = vld [vmem:[%s139 + $0x24] sm:$0xf]
      %v8268 = vld [vmem:[%s139 + $0x28] sm:$0xf]
      %v8269 = vld [vmem:[%s139 + $0x2c] sm:$0xf]
      %v8270 = vld [vmem:[%s139 + $0x30] sm:$0xf]
      %v8271 = vld [vmem:[%s139 + $0x34] sm:$0xf]
      %v8272 = vld [vmem:[%s139 + $0x38] sm:$0xf]
      %v8273 = vld [vmem:[%s139 + $0x3c] sm:$0xf]
      %v8274 = vld [vmem:[%s139 + $0x40] sm:$0xf]
      %v8275 = vld [vmem:[%s139 + $0x44] sm:$0xf]
      %v8276 = vld [vmem:[%s139 + $0x48] sm:$0xf]
      %v8277 = vld [vmem:[%s139 + $0x4c] sm:$0xf]
      %v8278 = vld [vmem:[%s139 + $0x50] sm:$0xf]
      %v8279 = vld [vmem:[%s139 + $0x54] sm:$0xf]
      %v8280 = vld [vmem:[%s139 + $0x58] sm:$0xf]
      %v8281 = vld [vmem:[%s139 + $0x5c] sm:$0xf]
      %v8282 = vld [vmem:[%s141] sm:$0x1]
      %v8307 = vunpack.c.l.b16 %v8258
      %v8308 = vunpack.c.l.b16 %v8259
      %v8309 = vunpack.c.l.b16 %v8260
      %v8310 = vunpack.c.l.b16 %v8261
      %v8311 = vunpack.c.l.b16 %v8262
      %v8312 = vunpack.c.l.b16 %v8263
      %v8313 = vunpack.c.l.b16 %v8264
      %v8314 = vunpack.c.l.b16 %v8265
      %v8315 = vunpack.c.l.b16 %v8266
      %v8316 = vunpack.c.l.b16 %v8267
      %v8317 = vunpack.c.l.b16 %v8268
      %v8318 = vunpack.c.l.b16 %v8269
      %v8319 = vunpack.c.l.b16 %v8270
      %v8320 = vunpack.c.l.b16 %v8271
      %v8321 = vunpack.c.l.b16 %v8272
      %v8322 = vunpack.c.l.b16 %v8273
      %v8323 = vunpack.c.l.b16 %v8274
      %v8324 = vunpack.c.l.b16 %v8275
      %v8325 = vunpack.c.l.b16 %v8276
      %v8326 = vunpack.c.l.b16 %v8277
      %v8327 = vunpack.c.l.b16 %v8278
      %v8328 = vunpack.c.l.b16 %v8279
      %v8329 = vunpack.c.l.b16 %v8280
      %v8330 = vunpack.c.l.b16 %v8281
      %v8331 = vpack.c.b16 %v8308, %v8307
      %v8332 = vpack.c.b16 %v8310, %v8309
      %v8333 = vpack.c.b16 %v8312, %v8311
      %v8334 = vpack.c.b16 %v8314, %v8313
      %v8335 = vpack.c.b16 %v8316, %v8315
      %v8336 = vpack.c.b16 %v8318, %v8317
      %v8337 = vpack.c.b16 %v8320, %v8319
      %v8338 = vpack.c.b16 %v8322, %v8321
      %v8339 = vpack.c.b16 %v8324, %v8323
      %v8340 = vpack.c.b16 %v8326, %v8325
      %v8341 = vpack.c.b16 %v8328, %v8327
      %v8342 = vpack.c.b16 %v8330, %v8329
      %v8356 = vsel %vm2693, %v8257, 0
      %8358 = vmatprep.subr.bf16.mxu0 0
      %8359 = vmatpush1.bf16.msra.mxu0 %v8338
      %8360 = vmatprep.subr.bf16.mxu0 0
      %8361 = vmatpush1.bf16.msra.mxu0 %v8337
      %8362 = vmatprep.subr.bf16.mxu0 0
      %8363 = vmatpush1.bf16.msra.mxu0 %v8336
      %8364 = vmatprep.subr.bf16.mxu0 0
      %8365 = vmatpush1.bf16.msra.mxu0 %v8335
      %8366 = vmatprep.subr.bf16.mxu0 0
      %8367 = vmatpush1.bf16.msra.mxu0 %v8334
      %8368 = vmatprep.subr.bf16.mxu0 0
      %8369 = vmatpush1.bf16.msra.mxu0 %v8333
      %8370 = vmatprep.subr.bf16.mxu0 0
      %8371 = vmatpush1.bf16.msra.mxu0 %v8332
      %8372 = vmatprep.subr.bf16.mxu0 0
      %8373 = vmatpush1.bf16.msra.mxu0 %v8331
      %8374 = vmatprep.subr.bf16.mxu0 0
      %8375 = vmatpush2.bf16.msra.mxu0 0
      %8376 = vmatprep.subr.bf16.mxu0 0
      %8377 = vmatpush2.bf16.msra.mxu0 0
      %8378 = vmatprep.subr.bf16.mxu0 0
      %8379 = vmatpush2.bf16.msra.mxu0 0
      %8380 = vmatprep.subr.bf16.mxu0 0
      %8381 = vmatpush2.bf16.msra.mxu0 0
      %8382 = vmatprep.subr.bf16.mxu0 0
      %8383 = vmatpush2.bf16.msra.mxu0 %v8342
      %8384 = vmatprep.subr.bf16.mxu0 0
      %8385 = vmatpush2.bf16.msra.mxu0 %v8341
      %8386 = vmatprep.subr.bf16.mxu0 0
      %8387 = vmatpush2.bf16.msra.mxu0 %v8340
      %8388 = vmatprep.subr.bf16.mxu0 0
      %8389 = vmatpush2.bf16.msra.mxu0 %v8339
      %8390 = vmatprep.mubr.bf16.mxu0 %v8356
      %8391 = vmatmul.mubr.bf16.gmra.mxu0 %v8256
      %v8392 = vpop.f32.mrf.mxu0
      %v8393 = vadd.f32 %v8282, %v8392
      %v8394 = vpop.f32.mrf.mxu0
      %v8395 = vpop.f32.mrf.mxu0
      %v8396 = vpop.f32.mrf.mxu0
      %8397 = vdwg.mxu0
      %v8398 = vlaneseq
      %v8399 = vand.u32 %v8398, 127
      %vm8400 = vcmp.eq.s32.totalorder %v8399, 3
      %v8401 = vxor.u32 %v8393, 2147483648
      %v8402 = vmul.f32 %v8401, 1.442695
      %v8403 = vpow.pop %v8402
      %v8404 = vadd.f32 %v8403, 1.0
      %v8405 = vrcp.pop %v8404
      %v8406 = vmul.f32 1.0, %v8405
      %v8407 = vsel %vm8400, %v8406, %v8393
      %vm8408 = vcmask 57344
      %8409 = vst.msk [vmem:[%s2074] sm:$0x1] %vm8408, %v8407
      %p8410 = scmp.lt.s32.totalorder %s154, 1
      %s8411 = scalar_select %p8410, %s154, 1
      %s8412 = scalar_lea.vmem %s143, %s8411
      // Predicated region
      $region305: #{_lambda_.1} parent=303 // pred_check
        %p8413 = pneg %p1668
      $region306: #{_lambda_.1} parent=303 // pred_check_branch
        %8415 = sbr.rel (%p8413) target = $region308
      $region307: #{_lambda_.1} parent=303 // pred_region
        _
      $region308: #{_lambda_.1} parent=303 // pred_fallthru
        _
    $region304: #{_lambda_.1} parent=5 // pred_fallthru
      _
    %p8416 = scmp.le.s32.totalorder 2, %s149
    // Predicated region
    $region309: #{_lambda_.1} parent=5 // pred_check
      %p8417 = pneg %p8416
    $region310: #{_lambda_.1} parent=5 // pred_check_branch
      %8419 = sbr.rel (%p8417) target = $region312
    $region311: #{_lambda_.1} parent=5 // pred_region
      %s8420 = ssub.s32 %s149, 2
      // Predicated region
      $region313: #{_lambda_.1} parent=311 // pred_check
        %p8421 = pneg %p1674
      $region314: #{_lambda_.1} parent=311 // pred_check_branch
        %8423 = sbr.rel (%p8421) target = $region316
      $region315: #{_lambda_.1} parent=311 // pred_region
        %p8424 = scmp.lt.s32.totalorder %s155, 1
        %s8425 = scalar_select %p8424, %s155, 1
        %s8426 = scalar_lea.vmem %s143, %s8425
      $region316: #{_lambda_.1} parent=311 // pred_fallthru
        _
    $region312: #{_lambda_.1} parent=5 // pred_fallthru
      _
  $region6: #{_lambda_.1} parent=0 // loop_footer
    %s153 = sadd.s32 1, %s149
  $region7: #{_lambda_.1} parent=0 // loop_footer_branch
    %148 = sbr.rel target = $region3
  $region8: #{_lambda_.1} parent=0 // loop_exit
    _

</llo_original>
